<compile_context>
chip_gen: v6e
topology: v6e:2x2x1
jax: 0.10.0
libtpu: 0.0.40
codegen_flags: <defaults>
</compile_context>

<pallas_src>
import functools

import jax
import jax.numpy as jnp
from jax import lax
from jax.experimental import pallas as pl
from jax.experimental.pallas import tpu as pltpu


# ---------------------------------------------------------------------------
# 1x1 conv (pointwise) == matmul over channels (used for q1 and fin).
# ---------------------------------------------------------------------------
def _pointwise_kernel(x_ref, w_ref, b_ref, o_ref):
    # x_ref: (tm, Cin)  w_ref: (Cin, Cout)  b_ref: (1, Cout)  o_ref: (tm, Cout)
    acc = jnp.dot(x_ref[...], w_ref[...], preferred_element_type=jnp.float32)
    o_ref[...] = (acc + b_ref[...].astype(jnp.float32)).astype(o_ref.dtype)


def _pick_row_tile(m):
    for t in (256, 128, 64, 32, 16, 8):
        if m % t == 0:
            return t
    return m


def pointwise_conv(x_nhwc, w, b):
    """1x1 conv: (B,H,W,Cin) @ (Cin,Cout) + (Cout,) -> (B,H,W,Cout)."""
    B, H, W, Cin = x_nhwc.shape
    Cout = w.shape[1]
    M = B * H * W
    tm = _pick_row_tile(M)
    x2 = x_nhwc.reshape(M, Cin)
    out = pl.pallas_call(
        _pointwise_kernel,
        out_shape=jax.ShapeDtypeStruct((M, Cout), x_nhwc.dtype),
        grid_spec=pltpu.PrefetchScalarGridSpec(
            num_scalar_prefetch=0,
            grid=(M // tm,),
            in_specs=[
                pl.BlockSpec((tm, Cin), lambda i: (i, 0)),
                pl.BlockSpec((Cin, Cout), lambda i: (0, 0)),
                pl.BlockSpec((1, Cout), lambda i: (0, 0)),
            ],
            out_specs=pl.BlockSpec((tm, Cout), lambda i: (i, 0)),
        ),
        compiler_params=pltpu.CompilerParams(
            dimension_semantics=("parallel",)),
    )(x2, w, b.reshape(1, Cout))
    return out.reshape(B, H, W, Cout)


# ---------------------------------------------------------------------------
# Depthwise 3x3 conv, padding=1, groups=C (q2 / q3).
# ---------------------------------------------------------------------------
def _dwconv_kernel(x_ref, w_ref, b_ref, o_ref, xp_ref):
    # x_ref : (1, H, W, C)  unpadded input tile (no wrapper jnp.pad)
    # w_ref : (9, C)        tap-major depthwise weights (i*3+j, c)
    # b_ref : (1, C)        bias
    # o_ref : (1, H, W, C)  output tile
    # xp_ref: (H+2, W+2, C) VMEM halo scratch
    H, W, C = o_ref.shape[1], o_ref.shape[2], o_ref.shape[3]

    # Zero only the 1-pixel halo border (cheap strips), then drop the tile in
    # the middle of the scratch.  Re-zeroed every step so the kernel stays
    # correct if the batch axis is split across cores.
    zrow = jnp.zeros((1, W + 2, C), dtype=xp_ref.dtype)
    xp_ref[0:1, :, :] = zrow
    xp_ref[H + 1:H + 2, :, :] = zrow
    zcol = jnp.zeros((H, 1, C), dtype=xp_ref.dtype)
    xp_ref[1:H + 1, 0:1, :] = zcol
    xp_ref[1:H + 1, W + 1:W + 2, :] = zcol
    xp_ref[1:H + 1, 1:W + 1, :] = x_ref[0]

    w = w_ref[...].astype(xp_ref.dtype)      # multiply in the input dtype
    b = b_ref[...].astype(jnp.float32)       # accumulate in f32

    # Fold bias + tap (0,0) into the accumulator init (no zeros pass).
    acc = (xp_ref[0:H, 0:W, :] * w[0].reshape(1, 1, C)).astype(jnp.float32)
    acc = acc + b.reshape(1, 1, C)
    for i in range(3):
        for j in range(3):
            if i == 0 and j == 0:
                continue
            tap = xp_ref[i:i + H, j:j + W, :]        # per-tap ref read
            acc = acc + (tap * w[i * 3 + j].reshape(1, 1, C)).astype(jnp.float32)
    o_ref[0] = acc.astype(o_ref.dtype)


def dwconv3x3(x_nhwc, weight, bias):
    """Depthwise 3x3 'SAME' conv. weight (3,3,C) = torch weight[c,0,i,j] -> [i,j,c]."""
    B, H, W, C = x_nhwc.shape
    return pl.pallas_call(
        _dwconv_kernel,
        out_shape=jax.ShapeDtypeStruct((B, H, W, C), x_nhwc.dtype),
        grid_spec=pltpu.PrefetchScalarGridSpec(
            num_scalar_prefetch=0,
            grid=(B,),
            in_specs=[
                pl.BlockSpec((1, H, W, C), lambda b: (b, 0, 0, 0)),
                pl.BlockSpec((9, C), lambda b: (0, 0)),
                pl.BlockSpec((1, C), lambda b: (0, 0)),
            ],
            out_specs=pl.BlockSpec((1, H, W, C), lambda b: (b, 0, 0, 0)),
            scratch_shapes=[pltpu.VMEM((H + 2, W + 2, C), x_nhwc.dtype)],
        ),
        compiler_params=pltpu.CompilerParams(
            dimension_semantics=("parallel",)),
    )(x_nhwc, weight.reshape(9, C), bias.reshape(1, C))


# ---------------------------------------------------------------------------
# Row attention: for each (batch*head) image, every row attends over W.
# ---------------------------------------------------------------------------
def _row_attention_kernel(fac_ref, q_ref, k_ref, v_ref, o_ref):
    # fac_ref: (1,) f32 in SMEM.  q/k/v/o blocks: (1, H, W, D).
    q = q_ref[0].astype(jnp.float32)         # (H, W, D)
    k = k_ref[0].astype(jnp.float32)
    v = v_ref[0].astype(jnp.float32)
    fac = fac_ref[0]

    eps = 1e-12                              # F.normalize semantics
    qn = q / jnp.maximum(jnp.sqrt(jnp.sum(q * q, axis=-1, keepdims=True)), eps)
    kn = k / jnp.maximum(jnp.sqrt(jnp.sum(k * k, axis=-1, keepdims=True)), eps)

    s = jnp.einsum("hwd,hud->hwu", qn, kn,
                   preferred_element_type=jnp.float32) * fac      # (H, W, W)
    m = jnp.max(s, axis=-1, keepdims=True)
    p = jnp.exp(s - m)
    attn = p / jnp.sum(p, axis=-1, keepdims=True)
    out = jnp.einsum("hwu,hud->hwd", attn, v,
                     preferred_element_type=jnp.float32)          # (H, W, D)
    o_ref[0] = out.astype(o_ref.dtype)


def row_attention(q, k, v, fac):
    BN, H, W, D = q.shape
    fac_arr = jnp.asarray(fac, jnp.float32).reshape((1,))
    return pl.pallas_call(
        _row_attention_kernel,
        out_shape=jax.ShapeDtypeStruct((BN, H, W, D), q.dtype),
        grid_spec=pltpu.PrefetchScalarGridSpec(
            num_scalar_prefetch=0,
            grid=(BN,),
            in_specs=[
                pl.BlockSpec(memory_space=pltpu.MemorySpace.SMEM),
                pl.BlockSpec((1, H, W, D), lambda n: (n, 0, 0, 0)),
                pl.BlockSpec((1, H, W, D), lambda n: (n, 0, 0, 0)),
                pl.BlockSpec((1, H, W, D), lambda n: (n, 0, 0, 0)),
            ],
            out_specs=pl.BlockSpec((1, H, W, D), lambda n: (n, 0, 0, 0)),
        ),
        compiler_params=pltpu.CompilerParams(
            dimension_semantics=("parallel",)),
    )(fac_arr, q, k, v)


# ---------------------------------------------------------------------------
# Full NextAttentionImplZ forward (Pallas path).
# ---------------------------------------------------------------------------
@functools.partial(jax.jit, static_argnames=("num_heads",))
def next_attention_forward(x_nchw, params, num_heads):
    B, C, H, W = x_nchw.shape
    dh = C // num_heads

    x = jnp.transpose(x_nchw, (0, 2, 3, 1))                 # NCHW -> NHWC glue
    t = pointwise_conv(x, params["w1"], params["b1"])       # q1: C -> 3C
    t = dwconv3x3(t, params["w2"], params["b2"])            # q2
    t = dwconv3x3(t, params["w3"], params["b3"])            # q3

    def heads(z):                                           # (B,H,W,C) -> (B*nh,H,W,dh)
        z = z.reshape(B, H, W, num_heads, dh)
        z = jnp.transpose(z, (0, 3, 1, 2, 4))
        return z.reshape(B * num_heads, H, W, dh)

    q = heads(t[..., 0 * C:1 * C])
    k = heads(t[..., 1 * C:2 * C])
    v = heads(t[..., 2 * C:3 * C])

    o = row_attention(q, k, v, params["fac"])               # (B*nh, H, W, dh)
    o = o.reshape(B, num_heads, H, W, dh)
    o = jnp.transpose(o, (0, 2, 3, 1, 4)).reshape(B, H, W, C)
    o = pointwise_conv(o, params["wf"], params["bf"])       # fin: C -> C
    return jnp.transpose(o, (0, 3, 1, 2))                   # back to NCHW


# ---------------------------------------------------------------------------
# Pure-JAX reference (mirrors the PyTorch forward) for validation.
# ---------------------------------------------------------------------------
def _depthwise_ref(x_nhwc, weight, bias):
    C = x_nhwc.shape[-1]
    w_hwio = weight[:, :, None, :]                          # (3,3,1,C)
    y = lax.conv_general_dilated(
        x_nhwc, w_hwio, window_strides=(1, 1), padding="SAME",
        dimension_numbers=("NHWC", "HWIO", "NHWC"), feature_group_count=C)
    return y + bias.reshape(1, 1, 1, C)


def reference_forward(x_nchw, params, num_heads):
    B, C, H, W = x_nchw.shape
    dh = C // num_heads
    x = jnp.transpose(x_nchw, (0, 2, 3, 1)).astype(jnp.float32)
    t = jnp.einsum("bhwc,cd->bhwd", x, params["w1"]) + params["b1"]
    t = _depthwise_ref(t, params["w2"], params["b2"])
    t = _depthwise_ref(t, params["w3"], params["b3"])
    q, k, v = jnp.split(t, 3, axis=-1)

    def heads(z):
        z = z.reshape(B, H, W, num_heads, dh)
        return jnp.transpose(z, (0, 3, 1, 2, 4))            # (B,nh,H,W,dh)

    q, k, v = heads(q), heads(k), heads(v)
    qn = q / jnp.maximum(jnp.linalg.norm(q, axis=-1, keepdims=True), 1e-12)
    kn = k / jnp.maximum(jnp.linalg.norm(k, axis=-1, keepdims=True), 1e-12)
    s = jnp.einsum("bnhwd,bnhud->bnhwu", qn, kn) * params["fac"][0]
    a = jax.nn.softmax(s, axis=-1)
    o = jnp.einsum("bnhwu,bnhud->bnhwd", a, v)
    o = jnp.transpose(o, (0, 2, 3, 1, 4)).reshape(B, H, W, C)
    o = jnp.einsum("bhwc,cd->bhwd", o, params["wf"]) + params["bf"]
    return jnp.transpose(o, (0, 3, 1, 2))


if __name__ == "__main__":
    # Small shapes consistent with the module: x is (B, num_dims, H, W).
    B, C, H, W = 2, 8, 16, 16
    num_heads = 2
    C3 = 3 * C

    key = jax.random.PRNGKey(0)
    ks = jax.random.split(key, 9)
    x = jax.random.normal(ks[0], (B, C, H, W), dtype=jnp.float32)
    params = {
        "w1": jax.random.normal(ks[1], (C, C3), dtype=jnp.float32) * 0.2,   # q1 (Cin,Cout)
        "b1": jax.random.normal(ks[2], (C3,), dtype=jnp.float32) * 0.1,
        "w2": jax.random.normal(ks[3], (3, 3, C3), dtype=jnp.float32) * 0.2,  # q2 depthwise
        "b2": jax.random.normal(ks[4], (C3,), dtype=jnp.float32) * 0.1,
        "w3": jax.random.normal(ks[5], (3, 3, C3), dtype=jnp.float32) * 0.2,  # q3 depthwise
        "b3": jax.random.normal(ks[6], (C3,), dtype=jnp.float32) * 0.1,
        "fac": jnp.ones((1,), dtype=jnp.float32),
        "wf": jax.random.normal(ks[7], (C, C), dtype=jnp.float32) * 0.2,    # fin (Cin,Cout)
        "bf": jax.random.normal(ks[8], (C,), dtype=jnp.float32) * 0.1,
    }

    out = next_attention_forward(x, params, num_heads=num_heads)
    out = jax.block_until_ready(out)

    ref = reference_forward(x, params, num_heads)
    assert out.shape == (B, C, H, W)
    # Tolerance covers the MXU's default (bf16-pass) f32 matmul precision inside
    # the kernels vs the XLA reference; a tap/layout bug would be orders larger.
    err = float(jnp.max(jnp.abs(out - ref)))
    assert jnp.allclose(out, ref, atol=2e-2, rtol=2e-2), (
        "mismatch vs reference, max abs err = %g" % err)
    print("KERNEL_OK")
</pallas_src>

<mosaic_0001>
module attributes {stable_mosaic.version = 11 : i64} {
  func.func @_dwconv_kernel(%arg0: i32, %arg1: memref<1x16x16x24xf32, #tpu.memory_space<vmem>>, %arg2: memref<9x24xf32, #tpu.memory_space<vmem>>, %arg3: memref<1x24xf32, #tpu.memory_space<vmem>>, %arg4: memref<1x16x16x24xf32, #tpu.memory_space<vmem>>, %arg5: memref<18x18x24xf32, #tpu.memory_space<vmem>>) attributes {dimension_semantics = [#tpu.dimension_semantics<parallel>], iteration_bounds = array<i64: 2>, scalar_prefetch = 0 : i64, scratch_operands = 1 : i64, tpu.core_type = #tpu.core_type<tc>, window_params = [{transform_indices = @transform_0, window_bounds = array<i64: 1, 16, 16, 24>}, {pipeline_mode = #tpu.pipeline_mode<synchronous>, transform_indices = @transform_1, window_bounds = array<i64: 9, 24>}, {pipeline_mode = #tpu.pipeline_mode<synchronous>, transform_indices = @transform_2, window_bounds = array<i64: 1, 24>}, {transform_indices = @transform_3, window_bounds = array<i64: 1, 16, 16, 24>}]} {
    %cst = arith.constant 0.000000e+00 : f32
    %0 = vector.broadcast %cst : f32 to vector<1x18x24xf32>
    %c0 = arith.constant 0 : index
    %c0_0 = arith.constant 0 : index
    %c0_1 = arith.constant 0 : index
    %1 = vector.load %arg5[%c0, %c0_0, %c0_1] : memref<18x18x24xf32, #tpu.memory_space<vmem>>, vector<1x18x24xf32>
    tpu.vector_store %arg5[%c0, %c0_0, %c0_1], %0 {strides = array<i32>} : memref<18x18x24xf32, #tpu.memory_space<vmem>>, vector<1x18x24xf32>,
    %c17 = arith.constant 17 : index
    %c0_2 = arith.constant 0 : index
    %c0_3 = arith.constant 0 : index
    %2 = vector.load %arg5[%c17, %c0_2, %c0_3] : memref<18x18x24xf32, #tpu.memory_space<vmem>>, vector<1x18x24xf32>
    tpu.vector_store %arg5[%c17, %c0_2, %c0_3], %0 {strides = array<i32>} : memref<18x18x24xf32, #tpu.memory_space<vmem>>, vector<1x18x24xf32>,
    %cst_4 = arith.constant 0.000000e+00 : f32
    %3 = vector.broadcast %cst_4 : f32 to vector<16x1x24xf32>
    %c1 = arith.constant 1 : index
    %c0_5 = arith.constant 0 : index
    %c0_6 = arith.constant 0 : index
    %4 = vector.load %arg5[%c1, %c0_5, %c0_6] : memref<18x18x24xf32, #tpu.memory_space<vmem>>, vector<16x1x24xf32>
    tpu.vector_store %arg5[%c1, %c0_5, %c0_6], %3 {strides = array<i32>} : memref<18x18x24xf32, #tpu.memory_space<vmem>>, vector<16x1x24xf32>,
    %c1_7 = arith.constant 1 : index
    %c17_8 = arith.constant 17 : index
    %c0_9 = arith.constant 0 : index
    %5 = vector.load %arg5[%c1_7, %c17_8, %c0_9] : memref<18x18x24xf32, #tpu.memory_space<vmem>>, vector<16x1x24xf32>
    tpu.vector_store %arg5[%c1_7, %c17_8, %c0_9], %3 {strides = array<i32>} : memref<18x18x24xf32, #tpu.memory_space<vmem>>, vector<16x1x24xf32>,
    %c0_10 = arith.constant 0 : index
    %c0_11 = arith.constant 0 : index
    %c0_12 = arith.constant 0 : index
    %c0_13 = arith.constant 0 : index
    %6 = vector.load %arg1[%c0_10, %c0_11, %c0_12, %c0_13] : memref<1x16x16x24xf32, #tpu.memory_space<vmem>>, vector<1x16x16x24xf32>
    %7 = vector.shape_cast %6 : vector<1x16x16x24xf32> to vector<16x16x24xf32>
    %c1_14 = arith.constant 1 : index
    %c1_15 = arith.constant 1 : index
    %c0_16 = arith.constant 0 : index
    %8 = vector.load %arg5[%c1_14, %c1_15, %c0_16] : memref<18x18x24xf32, #tpu.memory_space<vmem>>, vector<16x16x24xf32>
    tpu.vector_store %arg5[%c1_14, %c1_15, %c0_16], %7 {strides = array<i32>} : memref<18x18x24xf32, #tpu.memory_space<vmem>>, vector<16x16x24xf32>,
    %c0_17 = arith.constant 0 : index
    %c0_18 = arith.constant 0 : index
    %9 = vector.load %arg2[%c0_17, %c0_18] : memref<9x24xf32, #tpu.memory_space<vmem>>, vector<9x24xf32>
    %c0_19 = arith.constant 0 : index
    %c0_20 = arith.constant 0 : index
    %10 = vector.load %arg3[%c0_19, %c0_20] : memref<1x24xf32, #tpu.memory_space<vmem>>, vector<1x24xf32>
    %c0_21 = arith.constant 0 : index
    %c0_22 = arith.constant 0 : index
    %c0_23 = arith.constant 0 : index
    %11 = vector.load %arg5[%c0_21, %c0_22, %c0_23] : memref<18x18x24xf32, #tpu.memory_space<vmem>>, vector<16x16x24xf32>
    %12 = vector.extract_strided_slice %9 {offsets = [0, 0], sizes = [1, 24], strides = [1, 1]} : vector<9x24xf32> to vector<1x24xf32>
    %13 = vector.shape_cast %12 : vector<1x24xf32> to vector<24xf32>
    %14 = vector.shape_cast %13 : vector<24xf32> to vector<1x1x24xf32>
    %15 = vector.broadcast %14 : vector<1x1x24xf32> to vector<16x16x24xf32>
    %16 = arith.mulf %11, %15 : vector<16x16x24xf32>
    %17 = vector.shape_cast %10 : vector<1x24xf32> to vector<1x1x24xf32>
    %18 = vector.broadcast %17 : vector<1x1x24xf32> to vector<16x16x24xf32>
    %19 = arith.addf %16, %18 : vector<16x16x24xf32>
    %c0_24 = arith.constant 0 : index
    %c1_25 = arith.constant 1 : index
    %c0_26 = arith.constant 0 : index
    %20 = vector.load %arg5[%c0_24, %c1_25, %c0_26] : memref<18x18x24xf32, #tpu.memory_space<vmem>>, vector<16x16x24xf32>
    %21 = vector.extract_strided_slice %9 {offsets = [1, 0], sizes = [1, 24], strides = [1, 1]} : vector<9x24xf32> to vector<1x24xf32>
    %22 = vector.shape_cast %21 : vector<1x24xf32> to vector<24xf32>
    %23 = vector.shape_cast %22 : vector<24xf32> to vector<1x1x24xf32>
    %24 = vector.broadcast %23 : vector<1x1x24xf32> to vector<16x16x24xf32>
    %25 = arith.mulf %20, %24 : vector<16x16x24xf32>
    %26 = arith.addf %19, %25 : vector<16x16x24xf32>
    %c0_27 = arith.constant 0 : index
    %c2 = arith.constant 2 : index
    %c0_28 = arith.constant 0 : index
    %27 = vector.load %arg5[%c0_27, %c2, %c0_28] : memref<18x18x24xf32, #tpu.memory_space<vmem>>, vector<16x16x24xf32>
    %28 = vector.extract_strided_slice %9 {offsets = [2, 0], sizes = [1, 24], strides = [1, 1]} : vector<9x24xf32> to vector<1x24xf32>
    %29 = vector.shape_cast %28 : vector<1x24xf32> to vector<24xf32>
    %30 = vector.shape_cast %29 : vector<24xf32> to vector<1x1x24xf32>
    %31 = vector.broadcast %30 : vector<1x1x24xf32> to vector<16x16x24xf32>
    %32 = arith.mulf %27, %31 : vector<16x16x24xf32>
    %33 = arith.addf %26, %32 : vector<16x16x24xf32>
    %c1_29 = arith.constant 1 : index
    %c0_30 = arith.constant 0 : index
    %c0_31 = arith.constant 0 : index
    %34 = vector.load %arg5[%c1_29, %c0_30, %c0_31] : memref<18x18x24xf32, #tpu.memory_space<vmem>>, vector<16x16x24xf32>
    %35 = vector.extract_strided_slice %9 {offsets = [3, 0], sizes = [1, 24], strides = [1, 1]} : vector<9x24xf32> to vector<1x24xf32>
    %36 = vector.shape_cast %35 : vector<1x24xf32> to vector<24xf32>
    %37 = vector.shape_cast %36 : vector<24xf32> to vector<1x1x24xf32>
    %38 = vector.broadcast %37 : vector<1x1x24xf32> to vector<16x16x24xf32>
    %39 = arith.mulf %34, %38 : vector<16x16x24xf32>
    %40 = arith.addf %33, %39 : vector<16x16x24xf32>
    %c1_32 = arith.constant 1 : index
    %c1_33 = arith.constant 1 : index
    %c0_34 = arith.constant 0 : index
    %41 = vector.load %arg5[%c1_32, %c1_33, %c0_34] : memref<18x18x24xf32, #tpu.memory_space<vmem>>, vector<16x16x24xf32>
    %42 = vector.extract_strided_slice %9 {offsets = [4, 0], sizes = [1, 24], strides = [1, 1]} : vector<9x24xf32> to vector<1x24xf32>
    %43 = vector.shape_cast %42 : vector<1x24xf32> to vector<24xf32>
    %44 = vector.shape_cast %43 : vector<24xf32> to vector<1x1x24xf32>
    %45 = vector.broadcast %44 : vector<1x1x24xf32> to vector<16x16x24xf32>
    %46 = arith.mulf %41, %45 : vector<16x16x24xf32>
    %47 = arith.addf %40, %46 : vector<16x16x24xf32>
    %c1_35 = arith.constant 1 : index
    %c2_36 = arith.constant 2 : index
    %c0_37 = arith.constant 0 : index
    %48 = vector.load %arg5[%c1_35, %c2_36, %c0_37] : memref<18x18x24xf32, #tpu.memory_space<vmem>>, vector<16x16x24xf32>
    %49 = vector.extract_strided_slice %9 {offsets = [5, 0], sizes = [1, 24], strides = [1, 1]} : vector<9x24xf32> to vector<1x24xf32>
    %50 = vector.shape_cast %49 : vector<1x24xf32> to vector<24xf32>
    %51 = vector.shape_cast %50 : vector<24xf32> to vector<1x1x24xf32>
    %52 = vector.broadcast %51 : vector<1x1x24xf32> to vector<16x16x24xf32>
    %53 = arith.mulf %48, %52 : vector<16x16x24xf32>
    %54 = arith.addf %47, %53 : vector<16x16x24xf32>
    %c2_38 = arith.constant 2 : index
    %c0_39 = arith.constant 0 : index
    %c0_40 = arith.constant 0 : index
    %55 = vector.load %arg5[%c2_38, %c0_39, %c0_40] : memref<18x18x24xf32, #tpu.memory_space<vmem>>, vector<16x16x24xf32>
    %56 = vector.extract_strided_slice %9 {offsets = [6, 0], sizes = [1, 24], strides = [1, 1]} : vector<9x24xf32> to vector<1x24xf32>
    %57 = vector.shape_cast %56 : vector<1x24xf32> to vector<24xf32>
    %58 = vector.shape_cast %57 : vector<24xf32> to vector<1x1x24xf32>
    %59 = vector.broadcast %58 : vector<1x1x24xf32> to vector<16x16x24xf32>
    %60 = arith.mulf %55, %59 : vector<16x16x24xf32>
    %61 = arith.addf %54, %60 : vector<16x16x24xf32>
    %c2_41 = arith.constant 2 : index
    %c1_42 = arith.constant 1 : index
    %c0_43 = arith.constant 0 : index
    %62 = vector.load %arg5[%c2_41, %c1_42, %c0_43] : memref<18x18x24xf32, #tpu.memory_space<vmem>>, vector<16x16x24xf32>
    %63 = vector.extract_strided_slice %9 {offsets = [7, 0], sizes = [1, 24], strides = [1, 1]} : vector<9x24xf32> to vector<1x24xf32>
    %64 = vector.shape_cast %63 : vector<1x24xf32> to vector<24xf32>
    %65 = vector.shape_cast %64 : vector<24xf32> to vector<1x1x24xf32>
    %66 = vector.broadcast %65 : vector<1x1x24xf32> to vector<16x16x24xf32>
    %67 = arith.mulf %62, %66 : vector<16x16x24xf32>
    %68 = arith.addf %61, %67 : vector<16x16x24xf32>
    %c2_44 = arith.constant 2 : index
    %c2_45 = arith.constant 2 : index
    %c0_46 = arith.constant 0 : index
    %69 = vector.load %arg5[%c2_44, %c2_45, %c0_46] : memref<18x18x24xf32, #tpu.memory_space<vmem>>, vector<16x16x24xf32>
    %70 = vector.extract_strided_slice %9 {offsets = [8, 0], sizes = [1, 24], strides = [1, 1]} : vector<9x24xf32> to vector<1x24xf32>
    %71 = vector.shape_cast %70 : vector<1x24xf32> to vector<24xf32>
    %72 = vector.shape_cast %71 : vector<24xf32> to vector<1x1x24xf32>
    %73 = vector.broadcast %72 : vector<1x1x24xf32> to vector<16x16x24xf32>
    %74 = arith.mulf %69, %73 : vector<16x16x24xf32>
    %75 = arith.addf %68, %74 : vector<16x16x24xf32>
    %c0_47 = arith.constant 0 : index
    %c0_48 = arith.constant 0 : index
    %c0_49 = arith.constant 0 : index
    %c0_50 = arith.constant 0 : index
    %76 = vector.load %arg4[%c0_47, %c0_48, %c0_49, %c0_50] : memref<1x16x16x24xf32, #tpu.memory_space<vmem>>, vector<1x16x16x24xf32>
    %77 = vector.shape_cast %76 : vector<1x16x16x24xf32> to vector<16x16x24xf32>
    %78 = vector.shape_cast %75 : vector<16x16x24xf32> to vector<1x16x16x24xf32>
    tpu.vector_store %arg4[%c0_47, %c0_48, %c0_49, %c0_50], %78 {strides = array<i32>} : memref<1x16x16x24xf32, #tpu.memory_space<vmem>>, vector<1x16x16x24xf32>,
    return
  }
  func.func @transform_0(%arg0: i32) -> (i32, i32, i32, i32) {
    %c0_i32 = arith.constant 0 : i32
    %c0_i32_0 = arith.constant 0 : i32
    %c0_i32_1 = arith.constant 0 : i32
    %c0_i32_2 = arith.constant 0 : i32
    return %arg0, %c0_i32, %c0_i32_0, %c0_i32_1 : i32, i32, i32, i32
  }
  func.func @transform_1(%arg0: i32) -> (i32, i32) {
    %c0_i32 = arith.constant 0 : i32
    %c0_i32_0 = arith.constant 0 : i32
    %c0_i32_1 = arith.constant 0 : i32
    return %c0_i32, %c0_i32_0 : i32, i32
  }
  func.func @transform_2(%arg0: i32) -> (i32, i32) {
    %c0_i32 = arith.constant 0 : i32
    %c0_i32_0 = arith.constant 0 : i32
    %c0_i32_1 = arith.constant 0 : i32
    return %c0_i32, %c0_i32_0 : i32, i32
  }
  func.func @transform_3(%arg0: i32) -> (i32, i32, i32, i32) {
    %c0_i32 = arith.constant 0 : i32
    %c0_i32_0 = arith.constant 0 : i32
    %c0_i32_1 = arith.constant 0 : i32
    %c0_i32_2 = arith.constant 0 : i32
    return %arg0, %c0_i32, %c0_i32_0, %c0_i32_1 : i32, i32, i32, i32
  }
}

module attributes {stable_mosaic.version = 11 : i64} {
  func.func @_pointwise_kernel(%arg0: i32, %arg1: memref<256x8xf32, #tpu.memory_space<vmem>>, %arg2: memref<8x24xf32, #tpu.memory_space<vmem>>, %arg3: memref<1x24xf32, #tpu.memory_space<vmem>>, %arg4: memref<256x24xf32, #tpu.memory_space<vmem>>) attributes {dimension_semantics = [#tpu.dimension_semantics<parallel>], iteration_bounds = array<i64: 2>, scalar_prefetch = 0 : i64, scratch_operands = 0 : i64, tpu.core_type = #tpu.core_type<tc>, window_params = [{transform_indices = @transform_0, window_bounds = array<i64: 256, 8>}, {pipeline_mode = #tpu.pipeline_mode<synchronous>, transform_indices = @transform_1, window_bounds = array<i64: 8, 24>}, {pipeline_mode = #tpu.pipeline_mode<synchronous>, transform_indices = @transform_2, window_bounds = array<i64: 1, 24>}, {transform_indices = @transform_3, window_bounds = array<i64: 256, 24>}]} {
    %c0 = arith.constant 0 : index
    %c0_0 = arith.constant 0 : index
    %0 = vector.load %arg1[%c0, %c0_0] : memref<256x8xf32, #tpu.memory_space<vmem>>, vector<256x8xf32>
    %c0_1 = arith.constant 0 : index
    %c0_2 = arith.constant 0 : index
    %1 = vector.load %arg2[%c0_1, %c0_2] : memref<8x24xf32, #tpu.memory_space<vmem>>, vector<8x24xf32>
    %cst = arith.constant dense<0.000000e+00> : vector<256x24xf32>
    %2 = tpu.matmul %0, %1, %cst {dimension_numbers = #tpu.dot_dimension_numbers<[1], [0], [0], [1], [0, 0, 1, 1], [], []>} : vector<256x8xf32>, vector<8x24xf32>, vector<256x24xf32> -> vector<256x24xf32>
    %c0_3 = arith.constant 0 : index
    %c0_4 = arith.constant 0 : index
    %3 = vector.load %arg3[%c0_3, %c0_4] : memref<1x24xf32, #tpu.memory_space<vmem>>, vector<1x24xf32>
    %4 = vector.broadcast %3 : vector<1x24xf32> to vector<256x24xf32>
    %5 = arith.addf %2, %4 : vector<256x24xf32>
    %c0_5 = arith.constant 0 : index
    %c0_6 = arith.constant 0 : index
    %6 = vector.load %arg4[%c0_5, %c0_6] : memref<256x24xf32, #tpu.memory_space<vmem>>, vector<256x24xf32>
    tpu.vector_store %arg4[%c0_5, %c0_6], %5 {strides = array<i32>} : memref<256x24xf32, #tpu.memory_space<vmem>>, vector<256x24xf32>,
    return
  }
  func.func @transform_0(%arg0: i32) -> (i32, i32) {
    %c0_i32 = arith.constant 0 : i32
    %c0_i32_0 = arith.constant 0 : i32
    return %arg0, %c0_i32 : i32, i32
  }
  func.func @transform_1(%arg0: i32) -> (i32, i32) {
    %c0_i32 = arith.constant 0 : i32
    %c0_i32_0 = arith.constant 0 : i32
    %c0_i32_1 = arith.constant 0 : i32
    return %c0_i32, %c0_i32_0 : i32, i32
  }
  func.func @transform_2(%arg0: i32) -> (i32, i32) {
    %c0_i32 = arith.constant 0 : i32
    %c0_i32_0 = arith.constant 0 : i32
    %c0_i32_1 = arith.constant 0 : i32
    return %c0_i32, %c0_i32_0 : i32, i32
  }
  func.func @transform_3(%arg0: i32) -> (i32, i32) {
    %c0_i32 = arith.constant 0 : i32
    %c0_i32_0 = arith.constant 0 : i32
    return %arg0, %c0_i32 : i32, i32
  }
}

module attributes {stable_mosaic.version = 11 : i64} {
  func.func @_row_attention_kernel(%arg0: i32, %arg1: memref<1xf32, #tpu.memory_space<smem>>, %arg2: memref<1x16x16x4xf32, #tpu.memory_space<vmem>>, %arg3: memref<1x16x16x4xf32, #tpu.memory_space<vmem>>, %arg4: memref<1x16x16x4xf32, #tpu.memory_space<vmem>>, %arg5: memref<1x16x16x4xf32, #tpu.memory_space<vmem>>) attributes {dimension_semantics = [#tpu.dimension_semantics<parallel>], iteration_bounds = array<i64: 4>, scalar_prefetch = 0 : i64, scratch_operands = 0 : i64, tpu.core_type = #tpu.core_type<tc>, window_params = [{transform_indices = @transform_0, window_bounds = array<i64: 1>}, {transform_indices = @transform_1, window_bounds = array<i64: 1, 16, 16, 4>}, {transform_indices = @transform_2, window_bounds = array<i64: 1, 16, 16, 4>}, {transform_indices = @transform_3, window_bounds = array<i64: 1, 16, 16, 4>}, {transform_indices = @transform_4, window_bounds = array<i64: 1, 16, 16, 4>}]} {
    %c0 = arith.constant 0 : index
    %c0_0 = arith.constant 0 : index
    %c0_1 = arith.constant 0 : index
    %c0_2 = arith.constant 0 : index
    %0 = vector.load %arg2[%c0, %c0_0, %c0_1, %c0_2] : memref<1x16x16x4xf32, #tpu.memory_space<vmem>>, vector<1x16x16x4xf32>
    %1 = vector.shape_cast %0 : vector<1x16x16x4xf32> to vector<16x16x4xf32>
    %c0_3 = arith.constant 0 : index
    %c0_4 = arith.constant 0 : index
    %c0_5 = arith.constant 0 : index
    %c0_6 = arith.constant 0 : index
    %2 = vector.load %arg3[%c0_3, %c0_4, %c0_5, %c0_6] : memref<1x16x16x4xf32, #tpu.memory_space<vmem>>, vector<1x16x16x4xf32>
    %3 = vector.shape_cast %2 : vector<1x16x16x4xf32> to vector<16x16x4xf32>
    %c0_7 = arith.constant 0 : index
    %c0_8 = arith.constant 0 : index
    %c0_9 = arith.constant 0 : index
    %c0_10 = arith.constant 0 : index
    %4 = vector.load %arg4[%c0_7, %c0_8, %c0_9, %c0_10] : memref<1x16x16x4xf32, #tpu.memory_space<vmem>>, vector<1x16x16x4xf32>
    %5 = vector.shape_cast %4 : vector<1x16x16x4xf32> to vector<16x16x4xf32>
    %c0_11 = arith.constant 0 : index
    %6 = memref.load %arg1[%c0_11] : memref<1xf32, #tpu.memory_space<smem>>
    %7 = arith.mulf %1, %1 : vector<16x16x4xf32>
    %cst = arith.constant dense<0.000000e+00> : vector<16x16xf32>
    %8 = vector.multi_reduction <add>, %7, %cst [2] : vector<16x16x4xf32> to vector<16x16xf32>
    %9 = vector.shape_cast %8 : vector<16x16xf32> to vector<16x16x1xf32>
    %10 = math.sqrt %9 : vector<16x16x1xf32>
    %cst_12 = arith.constant 9.99999996E-13 : f32
    %11 = vector.broadcast %cst_12 : f32 to vector<16x16x1xf32>
    %12 = arith.maximumf %10, %11 : vector<16x16x1xf32>
    %13 = vector.broadcast %12 : vector<16x16x1xf32> to vector<16x16x4xf32>
    %14 = arith.divf %1, %13 : vector<16x16x4xf32>
    %15 = arith.mulf %3, %3 : vector<16x16x4xf32>
    %cst_13 = arith.constant dense<0.000000e+00> : vector<16x16xf32>
    %16 = vector.multi_reduction <add>, %15, %cst_13 [2] : vector<16x16x4xf32> to vector<16x16xf32>
    %17 = vector.shape_cast %16 : vector<16x16xf32> to vector<16x16x1xf32>
    %18 = math.sqrt %17 : vector<16x16x1xf32>
    %cst_14 = arith.constant 9.99999996E-13 : f32
    %19 = vector.broadcast %cst_14 : f32 to vector<16x16x1xf32>
    %20 = arith.maximumf %18, %19 : vector<16x16x1xf32>
    %21 = vector.broadcast %20 : vector<16x16x1xf32> to vector<16x16x4xf32>
    %22 = arith.divf %3, %21 : vector<16x16x4xf32>
    "tpu.trace_start"() <{level = 10 : i32, message = "hwd,hud->hwu"}> : () -> ()
    %cst_15 = arith.constant dense<0.000000e+00> : vector<16x16x16xf32>
    %23 = tpu.matmul %14, %22, %cst_15 {dimension_numbers = #tpu.dot_dimension_numbers<[2], [2], [1], [1], [0, 0, 0, 1, 1, 1], [0], [0]>} : vector<16x16x4xf32>, vector<16x16x4xf32>, vector<16x16x16xf32> -> vector<16x16x16xf32>
    "tpu.trace_stop"() : () -> ()
    %24 = vector.broadcast %6 : f32 to vector<16x16x16xf32>
    %25 = arith.mulf %23, %24 : vector<16x16x16xf32>
    %cst_16 = arith.constant dense<0xFF800000> : vector<16x16xf32>
    %26 = vector.multi_reduction <maximumf>, %25, %cst_16 [2] : vector<16x16x16xf32> to vector<16x16xf32>
    %27 = vector.shape_cast %26 : vector<16x16xf32> to vector<16x16x1xf32>
    %28 = vector.broadcast %27 : vector<16x16x1xf32> to vector<16x16x16xf32>
    %29 = arith.subf %25, %28 : vector<16x16x16xf32>
    %30 = math.exp %29 : vector<16x16x16xf32>
    %cst_17 = arith.constant dense<0.000000e+00> : vector<16x16xf32>
    %31 = vector.multi_reduction <add>, %30, %cst_17 [2] : vector<16x16x16xf32> to vector<16x16xf32>
    %32 = vector.shape_cast %31 : vector<16x16xf32> to vector<16x16x1xf32>
    %33 = vector.broadcast %32 : vector<16x16x1xf32> to vector<16x16x16xf32>
    %34 = arith.divf %30, %33 : vector<16x16x16xf32>
    "tpu.trace_start"() <{level = 10 : i32, message = "hwu,hud->hwd"}> : () -> ()
    %cst_18 = arith.constant dense<0.000000e+00> : vector<16x16x4xf32>
    %35 = tpu.matmul %34, %5, %cst_18 {dimension_numbers = #tpu.dot_dimension_numbers<[2], [1], [1], [2], [0, 0, 0, 1, 1, 2], [0], [0]>} : vector<16x16x16xf32>, vector<16x16x4xf32>, vector<16x16x4xf32> -> vector<16x16x4xf32>
    "tpu.trace_stop"() : () -> ()
    %c0_19 = arith.constant 0 : index
    %c0_20 = arith.constant 0 : index
    %c0_21 = arith.constant 0 : index
    %c0_22 = arith.constant 0 : index
    %36 = vector.load %arg5[%c0_19, %c0_20, %c0_21, %c0_22] : memref<1x16x16x4xf32, #tpu.memory_space<vmem>>, vector<1x16x16x4xf32>
    %37 = vector.shape_cast %36 : vector<1x16x16x4xf32> to vector<16x16x4xf32>
    %38 = vector.shape_cast %35 : vector<16x16x4xf32> to vector<1x16x16x4xf32>
    tpu.vector_store %arg5[%c0_19, %c0_20, %c0_21, %c0_22], %38 {strides = array<i32>} : memref<1x16x16x4xf32, #tpu.memory_space<vmem>>, vector<1x16x16x4xf32>,
    return
  }
  func.func @transform_0(%arg0: i32) -> i32 {
    %c0_i32 = arith.constant 0 : i32
    %c0_i32_0 = arith.constant 0 : i32
    return %c0_i32 : i32
  }
  func.func @transform_1(%arg0: i32) -> (i32, i32, i32, i32) {
    %c0_i32 = arith.constant 0 : i32
    %c0_i32_0 = arith.constant 0 : i32
    %c0_i32_1 = arith.constant 0 : i32
    %c0_i32_2 = arith.constant 0 : i32
    return %arg0, %c0_i32, %c0_i32_0, %c0_i32_1 : i32, i32, i32, i32
  }
  func.func @transform_2(%arg0: i32) -> (i32, i32, i32, i32) {
    %c0_i32 = arith.constant 0 : i32
    %c0_i32_0 = arith.constant 0 : i32
    %c0_i32_1 = arith.constant 0 : i32
    %c0_i32_2 = arith.constant 0 : i32
    return %arg0, %c0_i32, %c0_i32_0, %c0_i32_1 : i32, i32, i32, i32
  }
  func.func @transform_3(%arg0: i32) -> (i32, i32, i32, i32) {
    %c0_i32 = arith.constant 0 : i32
    %c0_i32_0 = arith.constant 0 : i32
    %c0_i32_1 = arith.constant 0 : i32
    %c0_i32_2 = arith.constant 0 : i32
    return %arg0, %c0_i32, %c0_i32_0, %c0_i32_1 : i32, i32, i32, i32
  }
  func.func @transform_4(%arg0: i32) -> (i32, i32, i32, i32) {
    %c0_i32 = arith.constant 0 : i32
    %c0_i32_0 = arith.constant 0 : i32
    %c0_i32_1 = arith.constant 0 : i32
    %c0_i32_2 = arith.constant 0 : i32
    return %arg0, %c0_i32, %c0_i32_0, %c0_i32_1 : i32, i32, i32, i32
  }
}

module attributes {stable_mosaic.version = 11 : i64} {
  func.func @_pointwise_kernel(%arg0: i32, %arg1: memref<256x8xf32, #tpu.memory_space<vmem>>, %arg2: memref<8x8xf32, #tpu.memory_space<vmem>>, %arg3: memref<1x8xf32, #tpu.memory_space<vmem>>, %arg4: memref<256x8xf32, #tpu.memory_space<vmem>>) attributes {dimension_semantics = [#tpu.dimension_semantics<parallel>], iteration_bounds = array<i64: 2>, scalar_prefetch = 0 : i64, scratch_operands = 0 : i64, tpu.core_type = #tpu.core_type<tc>, window_params = [{transform_indices = @transform_0, window_bounds = array<i64: 256, 8>}, {pipeline_mode = #tpu.pipeline_mode<synchronous>, transform_indices = @transform_1, window_bounds = array<i64: 8, 8>}, {pipeline_mode = #tpu.pipeline_mode<synchronous>, transform_indices = @transform_2, window_bounds = array<i64: 1, 8>}, {transform_indices = @transform_3, window_bounds = array<i64: 256, 8>}]} {
    %c0 = arith.constant 0 : index
    %c0_0 = arith.constant 0 : index
    %0 = vector.load %arg1[%c0, %c0_0] : memref<256x8xf32, #tpu.memory_space<vmem>>, vector<256x8xf32>
    %c0_1 = arith.constant 0 : index
    %c0_2 = arith.constant 0 : index
    %1 = vector.load %arg2[%c0_1, %c0_2] : memref<8x8xf32, #tpu.memory_space<vmem>>, vector<8x8xf32>
    %cst = arith.constant dense<0.000000e+00> : vector<256x8xf32>
    %2 = tpu.matmul %0, %1, %cst {dimension_numbers = #tpu.dot_dimension_numbers<[1], [0], [0], [1], [0, 0, 1, 1], [], []>} : vector<256x8xf32>, vector<8x8xf32>, vector<256x8xf32> -> vector<256x8xf32>
    %c0_3 = arith.constant 0 : index
    %c0_4 = arith.constant 0 : index
    %3 = vector.load %arg3[%c0_3, %c0_4] : memref<1x8xf32, #tpu.memory_space<vmem>>, vector<1x8xf32>
    %4 = vector.broadcast %3 : vector<1x8xf32> to vector<256x8xf32>
    %5 = arith.addf %2, %4 : vector<256x8xf32>
    %c0_5 = arith.constant 0 : index
    %c0_6 = arith.constant 0 : index
    %6 = vector.load %arg4[%c0_5, %c0_6] : memref<256x8xf32, #tpu.memory_space<vmem>>, vector<256x8xf32>
    tpu.vector_store %arg4[%c0_5, %c0_6], %5 {strides = array<i32>} : memref<256x8xf32, #tpu.memory_space<vmem>>, vector<256x8xf32>,
    return
  }
  func.func @transform_0(%arg0: i32) -> (i32, i32) {
    %c0_i32 = arith.constant 0 : i32
    %c0_i32_0 = arith.constant 0 : i32
    return %arg0, %c0_i32 : i32, i32
  }
  func.func @transform_1(%arg0: i32) -> (i32, i32) {
    %c0_i32 = arith.constant 0 : i32
    %c0_i32_0 = arith.constant 0 : i32
    %c0_i32_1 = arith.constant 0 : i32
    return %c0_i32, %c0_i32_0 : i32, i32
  }
  func.func @transform_2(%arg0: i32) -> (i32, i32) {
    %c0_i32 = arith.constant 0 : i32
    %c0_i32_0 = arith.constant 0 : i32
    %c0_i32_1 = arith.constant 0 : i32
    return %c0_i32, %c0_i32_0 : i32, i32
  }
  func.func @transform_3(%arg0: i32) -> (i32, i32) {
    %c0_i32 = arith.constant 0 : i32
    %c0_i32_0 = arith.constant 0 : i32
    return %arg0, %c0_i32 : i32, i32
  }
}

</mosaic_0001>

<llo_original>
// kernel: next_attention_forward.5
$region0: #{next_attention_forward.5}
  #allocation0 [shape = 'u32[]', space=smem, size = 0x4, offset = 0x4, fixed_abs, tag = 'smem constant byte address 0x4 - core index']
  #allocation1 [shape = 'u32[144,128]{1,0:T(1,128)}', space=vmem, size = 0x12000, scoped, tag = 'internal scratch']
  %s0 = inlined_call_operand.vmem [shape: f32[512,8], index: 0, kind: input, shape index: {}]
  %s1 = inlined_call_operand.vmem [shape: f32[8,24], index: 1, kind: input, shape index: {}]
  %s2 = inlined_call_operand.vmem [shape: f32[1,24], index: 2, kind: input, shape index: {}]
  %s3 = inlined_call_operand.vmem [shape: f32[512,24], index: 3, kind: output, shape index: {}]
  %s4 = sld [smem:[#allocation0]]
  $region45: #{next_attention_forward.5} parent=0
    _
  %s6 = ssub.s32 1, %s4
  %s7 = scalar_select 0, %s6, %s4
  loop: start=0, step=1, limit=4
  $region2: #{next_attention_forward.5} parent=0 // loop_pre_header
    _
  $region3: #{next_attention_forward.5} parent=0 // loop_header
    %s9 = sphi 0, %s13
    %p10 = scmp.ge.s32.totalorder %s9, 4
    %s19 = sphi 0, %s21
    %s22 = sphi 0, %s19
    %s23 = sphi 0, %s22
    %s39 = sphi 0, %s23
    %s43 = sphi 0, %s43
    %s45 = sphi 0, %s43
    %s46 = sphi 0, %s45
    %s60 = sphi 0, %s46
    %s64 = sphi 0, %s64
    %s66 = sphi 0, %s64
    %s67 = sphi 0, %s66
    %s81 = sphi 0, %s67
    %s87 = sphi 0, %s89
    %s90 = sphi 0, %s87
    %s91 = sphi 0, %s90
    %s107 = sphi 0, %s91
  $region4: #{next_attention_forward.5} parent=0 // loop_header_branch
    %12 = sbr.rel (%p10) target = $region8
  $region5: #{next_attention_forward.5} parent=0 // loop_body
    %s14 = ssub.s32 %s9, 1
    %s15 = ssub.s32 %s9, 2
    %s16 = sadd.s32 %s9, 1
    %s17 = ssub.s32 %s9, %s16
    %p18 = scmp.eq.s32.totalorder %s17, 0
    %s20 = sadd.s32 %s19, 1
    %s21 = scalar_select %p18, %s19, %s20
    %p24 = pneg %p18
    %p25 = scmp.eq.s32.totalorder %s9, 1
    %p26 = por %p24, %p25
    %p27 = scmp.ne.s32.totalorder %s19, %s22
    %p28 = scmp.eq.s32.totalorder %s9, 0
    %p29 = por %p27, %p28
    %p30 = scmp.ne.s32.totalorder %s19, %s22
    %p31 = scmp.eq.s32.totalorder %s14, 1
    %p32 = por %p30, %p31
    %p33 = scmp.ne.s32.totalorder %s22, %s23
    %p34 = scmp.eq.s32.totalorder %s14, 0
    %p35 = por %p33, %p34
    %p36 = scmp.ne.s32.totalorder %s22, %s23
    %p37 = scmp.eq.s32.totalorder %s15, 1
    %p38 = por %p36, %p37
    %p40 = scmp.ne.s32.totalorder %s23, %s39
    %p41 = scmp.eq.s32.totalorder %s15, 0
    %p42 = por %p40, %p41
    %s44 = sadd.s32 %s43, 1
    %p47 = scmp.eq.s32.totalorder %s9, 1
    %p48 = scmp.ne.s32.totalorder %s43, %s45
    %p49 = scmp.eq.s32.totalorder %s9, 0
    %p50 = por %p48, %p49
    %p51 = scmp.ne.s32.totalorder %s43, %s45
    %p52 = scmp.eq.s32.totalorder %s14, 1
    %p53 = por %p51, %p52
    %p54 = scmp.ne.s32.totalorder %s45, %s46
    %p55 = scmp.eq.s32.totalorder %s14, 0
    %p56 = por %p54, %p55
    %p57 = scmp.ne.s32.totalorder %s45, %s46
    %p58 = scmp.eq.s32.totalorder %s15, 1
    %p59 = por %p57, %p58
    %p61 = scmp.ne.s32.totalorder %s46, %s60
    %p62 = scmp.eq.s32.totalorder %s15, 0
    %p63 = por %p61, %p62
    %s65 = sadd.s32 %s64, 1
    %p68 = scmp.eq.s32.totalorder %s9, 1
    %p69 = scmp.ne.s32.totalorder %s64, %s66
    %p70 = scmp.eq.s32.totalorder %s9, 0
    %p71 = por %p69, %p70
    %p72 = scmp.ne.s32.totalorder %s64, %s66
    %p73 = scmp.eq.s32.totalorder %s14, 1
    %p74 = por %p72, %p73
    %p75 = scmp.ne.s32.totalorder %s66, %s67
    %p76 = scmp.eq.s32.totalorder %s14, 0
    %p77 = por %p75, %p76
    %p78 = scmp.ne.s32.totalorder %s66, %s67
    %p79 = scmp.eq.s32.totalorder %s15, 1
    %p80 = por %p78, %p79
    %p82 = scmp.ne.s32.totalorder %s67, %s81
    %p83 = scmp.eq.s32.totalorder %s15, 0
    %p84 = por %p82, %p83
    %s85 = ssub.s32 %s9, %s16
    %p86 = scmp.eq.s32.totalorder %s85, 0
    %s88 = sadd.s32 %s87, 1
    %s89 = scalar_select %p86, %s87, %s88
    %p92 = pneg %p86
    %p93 = scmp.eq.s32.totalorder %s9, 1
    %p94 = por %p92, %p93
    %p95 = scmp.ne.s32.totalorder %s87, %s90
    %p96 = scmp.eq.s32.totalorder %s9, 0
    %p97 = por %p95, %p96
    %p98 = scmp.ne.s32.totalorder %s87, %s90
    %p99 = scmp.eq.s32.totalorder %s14, 1
    %p100 = por %p98, %p99
    %p101 = scmp.ne.s32.totalorder %s90, %s91
    %p102 = scmp.eq.s32.totalorder %s14, 0
    %p103 = por %p101, %p102
    %p104 = scmp.ne.s32.totalorder %s90, %s91
    %p105 = scmp.eq.s32.totalorder %s15, 1
    %p106 = por %p104, %p105
    %p108 = scmp.ne.s32.totalorder %s91, %s107
    %p109 = scmp.eq.s32.totalorder %s15, 0
    %p110 = por %p108, %p109
    %p111 = scmp.le.s32.totalorder 1, %s9
    %p112 = scmp.lt.s32.totalorder %s9, 3
    %p113 = pnand %p111, %p112
    %p114 = pneg %p113
    // Predicated region
    $region9: #{next_attention_forward.5} parent=5 // pred_check
      _
    $region10: #{next_attention_forward.5} parent=5 // pred_check_branch
      %116 = sbr.rel (%p113) target = $region12
    $region11: #{next_attention_forward.5} parent=5 // pred_region
      %s117 = ssub.s32 %s9, 1
      // Predicated region
      $region13: #{next_attention_forward.5} parent=11 // pred_check
        %p118 = pneg %p56
      $region14: #{next_attention_forward.5} parent=11 // pred_check_branch
        %120 = sbr.rel (%p118) target = $region16
      $region15: #{next_attention_forward.5} parent=11 // pred_region
        _
      $region16: #{next_attention_forward.5} parent=11 // pred_fallthru
        _
      // Predicated region
      $region17: #{next_attention_forward.5} parent=11 // pred_check
        %p121 = pneg %p77
      $region18: #{next_attention_forward.5} parent=11 // pred_check_branch
        %123 = sbr.rel (%p121) target = $region20
      $region19: #{next_attention_forward.5} parent=11 // pred_region
        _
      $region20: #{next_attention_forward.5} parent=11 // pred_fallthru
        _
    $region12: #{next_attention_forward.5} parent=5 // pred_fallthru
      _
    %p124 = scmp.lt.s32.totalorder %s9, 2
    // Predicated region
    $region21: #{next_attention_forward.5} parent=5 // pred_check
      %p125 = pneg %p124
    $region22: #{next_attention_forward.5} parent=5 // pred_check_branch
      %127 = sbr.rel (%p125) target = $region24
    $region23: #{next_attention_forward.5} parent=5 // pred_region
      // Predicated region
      $region25: #{next_attention_forward.5} parent=23 // pred_check
        %p128 = pneg %p29
      $region26: #{next_attention_forward.5} parent=23 // pred_check_branch
        %130 = sbr.rel (%p128) target = $region28
      $region27: #{next_attention_forward.5} parent=23 // pred_region
        %s131 = smul.u32 32, %s9
        %p132 = scmp.lt.s32.totalorder %s131, 63
        %s133 = scalar_select %p132, %s131, 63
        %s134 = smul.addr %s133, 8
        %s135 = scalar_lea.vmem %s0, %s134
        %s136 = smul.u32 32, %s9
      $region28: #{next_attention_forward.5} parent=23 // pred_fallthru
        _
    $region24: #{next_attention_forward.5} parent=5 // pred_fallthru
      _
    %p137 = scmp.le.s32.totalorder 1, %s9
    %p138 = scmp.lt.s32.totalorder %s9, 3
    %p139 = pnand %p137, %p138
    %p140 = pneg %p139
    // Predicated region
    $region29: #{next_attention_forward.5} parent=5 // pred_check
      _
    $region30: #{next_attention_forward.5} parent=5 // pred_check_branch
      %142 = sbr.rel (%p139) target = $region32
    $region31: #{next_attention_forward.5} parent=5 // pred_region
      %s143 = ssub.s32 %s9, 1
      %s144 = smul.u32 32, %s14
      %p145 = scmp.lt.s32.totalorder %s144, 63
      %s146 = scalar_select %p145, %s144, 63
      %s147 = smul.addr %s146, 8
      %s148 = scalar_lea.vmem %s0, %s147
      %p149 = pneg %p35
      %p150 = pneg %p32
      %p151 = pneg %p56
      %p152 = pneg %p53
      %p153 = pneg %p77
      %p154 = pneg %p74
      %p155 = pneg %p103
      %p156 = pneg %p100
      %s157 = smul.u32 32, %s14
      %p158 = scmp.lt.s32.totalorder %s157, 63
      %s159 = scalar_select %p158, %s157, 63
      %s160 = smul.addr %s159, 8
      %s161 = scalar_lea.vmem %s3, %s160
      %s162 = smul.u32 32, %s14
      %p163 = scmp.lt.s32.totalorder %s162, 63
      %s164 = scalar_select %p163, %s162, 63
      %s165 = smul.addr %s164, 8
      %s166 = scalar_lea.vmem %s0, %s165
      %s167 = smul.u32 32, %s14
      %s168 = smul.u32 32, %s14
      %p169 = scmp.lt.s32.totalorder %s168, 63
      %s170 = scalar_select %p169, %s168, 63
      %s171 = smul.addr %s170, 8
      %s172 = scalar_lea.vmem %s3, %s171
      %s173 = smul.u32 32, %s14
      %v174 = vld [vmem:[%s166] sm:$0xff]
      %v175 = vld [vmem:[%s166 + $0x8] sm:$0xff]
      %v176 = vld [vmem:[%s166 + $0x10] sm:$0xff]
      %v177 = vld [vmem:[%s166 + $0x18] sm:$0xff]
      %v178 = vld [vmem:[%s166 + $0x20] sm:$0xff]
      %v179 = vld [vmem:[%s166 + $0x28] sm:$0xff]
      %v180 = vld [vmem:[%s166 + $0x30] sm:$0xff]
      %v181 = vld [vmem:[%s166 + $0x38] sm:$0xff]
      %v182 = vld [vmem:[%s166 + $0x40] sm:$0xff]
      %v183 = vld [vmem:[%s166 + $0x48] sm:$0xff]
      %v184 = vld [vmem:[%s166 + $0x50] sm:$0xff]
      %v185 = vld [vmem:[%s166 + $0x58] sm:$0xff]
      %v186 = vld [vmem:[%s166 + $0x60] sm:$0xff]
      %v187 = vld [vmem:[%s166 + $0x68] sm:$0xff]
      %v188 = vld [vmem:[%s166 + $0x70] sm:$0xff]
      %v189 = vld [vmem:[%s166 + $0x78] sm:$0xff]
      %v190 = vld [vmem:[%s166 + $0x80] sm:$0xff]
      %v191 = vld [vmem:[%s166 + $0x88] sm:$0xff]
      %v192 = vld [vmem:[%s166 + $0x90] sm:$0xff]
      %v193 = vld [vmem:[%s166 + $0x98] sm:$0xff]
      %v194 = vld [vmem:[%s166 + $0xa0] sm:$0xff]
      %v195 = vld [vmem:[%s166 + $0xa8] sm:$0xff]
      %v196 = vld [vmem:[%s166 + $0xb0] sm:$0xff]
      %v197 = vld [vmem:[%s166 + $0xb8] sm:$0xff]
      %v198 = vld [vmem:[%s166 + $0xc0] sm:$0xff]
      %v199 = vld [vmem:[%s166 + $0xc8] sm:$0xff]
      %v200 = vld [vmem:[%s166 + $0xd0] sm:$0xff]
      %v201 = vld [vmem:[%s166 + $0xd8] sm:$0xff]
      %v202 = vld [vmem:[%s166 + $0xe0] sm:$0xff]
      %v203 = vld [vmem:[%s166 + $0xe8] sm:$0xff]
      %v204 = vld [vmem:[%s166 + $0xf0] sm:$0xff]
      %v205 = vld [vmem:[%s166 + $0xf8] sm:$0xff]
      %v206 = vld [vmem:[%s1] sm:$0xff]
      %v207 = vld [vmem:[%s2] sm:$0x1]
      %v209 = vlaneseq
      %v210 = vshrl.u32 %v209, 7
      %v211 = vsub.s32 0, %v210
      %v212 = vrot.slane %v207, %v211
      %vm214 = vcmask 64512
      %v216 = vsel %vm214, %v174, 0
      %v219 = vsel %vm214, %v175, 0
      %v222 = vsel %vm214, %v176, 0
      %v225 = vsel %vm214, %v177, 0
      %v228 = vsel %vm214, %v178, 0
      %v231 = vsel %vm214, %v179, 0
      %v234 = vsel %vm214, %v180, 0
      %v237 = vsel %vm214, %v181, 0
      %v240 = vsel %vm214, %v182, 0
      %v243 = vsel %vm214, %v183, 0
      %v246 = vsel %vm214, %v184, 0
      %v249 = vsel %vm214, %v185, 0
      %v252 = vsel %vm214, %v186, 0
      %v255 = vsel %vm214, %v187, 0
      %v258 = vsel %vm214, %v188, 0
      %v261 = vsel %vm214, %v189, 0
      %v264 = vsel %vm214, %v190, 0
      %v267 = vsel %vm214, %v191, 0
      %v270 = vsel %vm214, %v192, 0
      %v273 = vsel %vm214, %v193, 0
      %v276 = vsel %vm214, %v194, 0
      %v279 = vsel %vm214, %v195, 0
      %v282 = vsel %vm214, %v196, 0
      %v285 = vsel %vm214, %v197, 0
      %v288 = vsel %vm214, %v198, 0
      %v291 = vsel %vm214, %v199, 0
      %v294 = vsel %vm214, %v200, 0
      %v297 = vsel %vm214, %v201, 0
      %v300 = vsel %vm214, %v202, 0
      %v303 = vsel %vm214, %v203, 0
      %v306 = vsel %vm214, %v204, 0
      %v309 = vsel %vm214, %v205, 0
      %311 = vmatprep.subr.mxu0 0.0
      %312 = vmatpush1.msra.mxu0 0.0
      %313 = vmatprep.subr.mxu0 0.0
      %314 = vmatpush1.msra.mxu0 0.0
      %315 = vmatprep.subr.mxu0 0.0
      %316 = vmatpush1.msra.mxu0 0.0
      %317 = vmatprep.subr.mxu0 0.0
      %318 = vmatpush1.msra.mxu0 0.0
      %319 = vmatprep.subr.mxu0 0.0
      %320 = vmatpush1.msra.mxu0 0.0
      %321 = vmatprep.subr.mxu0 0.0
      %322 = vmatpush1.msra.mxu0 0.0
      %323 = vmatprep.subr.mxu0 0.0
      %324 = vmatpush1.msra.mxu0 0.0
      %325 = vmatprep.subr.mxu0 0.0
      %326 = vmatpush1.msra.mxu0 0.0
      %327 = vmatprep.subr.mxu0 0.0
      %328 = vmatpush1.msra.mxu0 0.0
      %329 = vmatprep.subr.mxu0 0.0
      %330 = vmatpush1.msra.mxu0 0.0
      %331 = vmatprep.subr.mxu0 0.0
      %332 = vmatpush1.msra.mxu0 0.0
      %333 = vmatprep.subr.mxu0 0.0
      %334 = vmatpush1.msra.mxu0 0.0
      %335 = vmatprep.subr.mxu0 0.0
      %336 = vmatpush1.msra.mxu0 0.0
      %337 = vmatprep.subr.mxu0 0.0
      %338 = vmatpush1.msra.mxu0 0.0
      %339 = vmatprep.subr.mxu0 0.0
      %340 = vmatpush1.msra.mxu0 0.0
      %341 = vmatprep.subr.mxu0 0.0
      %342 = vmatpush1.msra.mxu0 %v206
      %343 = vmatprep.subr.mxu0 0.0
      %344 = vmatpush2.msra.mxu0 0.0
      %345 = vmatprep.subr.mxu0 0.0
      %346 = vmatpush2.msra.mxu0 0.0
      %347 = vmatprep.subr.mxu0 0.0
      %348 = vmatpush2.msra.mxu0 0.0
      %349 = vmatprep.subr.mxu0 0.0
      %350 = vmatpush2.msra.mxu0 0.0
      %351 = vmatprep.subr.mxu0 0.0
      %352 = vmatpush2.msra.mxu0 0.0
      %353 = vmatprep.subr.mxu0 0.0
      %354 = vmatpush2.msra.mxu0 0.0
      %355 = vmatprep.subr.mxu0 0.0
      %356 = vmatpush2.msra.mxu0 0.0
      %357 = vmatprep.subr.mxu0 0.0
      %358 = vmatpush2.msra.mxu0 0.0
      %359 = vmatprep.subr.mxu0 0.0
      %360 = vmatpush2.msra.mxu0 0.0
      %361 = vmatprep.subr.mxu0 0.0
      %362 = vmatpush2.msra.mxu0 0.0
      %363 = vmatprep.subr.mxu0 0.0
      %364 = vmatpush2.msra.mxu0 0.0
      %365 = vmatprep.subr.mxu0 0.0
      %366 = vmatpush2.msra.mxu0 0.0
      %367 = vmatprep.subr.mxu0 0.0
      %368 = vmatpush2.msra.mxu0 0.0
      %369 = vmatprep.subr.mxu0 0.0
      %370 = vmatpush2.msra.mxu0 0.0
      %371 = vmatprep.subr.mxu0 0.0
      %372 = vmatpush2.msra.mxu0 0.0
      %373 = vmatprep.subr.mxu0 0.0
      %374 = vmatpush2.msra.mxu0 0.0
      %375 = vmatprep.mubr.f32.mxu0 0.0
      %376 = vmatmul.mubr.f32.gmra.mxu0 %v216
      %v377 = vpop.f32.mrf.mxu0
      %v378 = vadd.f32 %v212, %v377
      %v379 = vpop.f32.mrf.mxu0
      %380 = vmatprep.mubr.f32.mxu0 0.0
      %381 = vmatmul.mubr.f32.gmra.mxu0 %v219
      %v382 = vpop.f32.mrf.mxu0
      %v383 = vadd.f32 %v212, %v382
      %v384 = vpop.f32.mrf.mxu0
      %385 = vmatprep.mubr.f32.mxu0 0.0
      %386 = vmatmul.mubr.f32.gmra.mxu0 %v222
      %v387 = vpop.f32.mrf.mxu0
      %v388 = vadd.f32 %v212, %v387
      %v389 = vpop.f32.mrf.mxu0
      %390 = vmatprep.mubr.f32.mxu0 0.0
      %391 = vmatmul.mubr.f32.gmra.mxu0 %v225
      %v392 = vpop.f32.mrf.mxu0
      %v393 = vadd.f32 %v212, %v392
      %v394 = vpop.f32.mrf.mxu0
      %395 = vmatprep.mubr.f32.mxu0 0.0
      %396 = vmatmul.mubr.f32.gmra.mxu0 %v228
      %v397 = vpop.f32.mrf.mxu0
      %v398 = vadd.f32 %v212, %v397
      %v399 = vpop.f32.mrf.mxu0
      %400 = vmatprep.mubr.f32.mxu0 0.0
      %401 = vmatmul.mubr.f32.gmra.mxu0 %v231
      %v402 = vpop.f32.mrf.mxu0
      %v403 = vadd.f32 %v212, %v402
      %v404 = vpop.f32.mrf.mxu0
      %405 = vmatprep.mubr.f32.mxu0 0.0
      %406 = vmatmul.mubr.f32.gmra.mxu0 %v234
      %v407 = vpop.f32.mrf.mxu0
      %v408 = vadd.f32 %v212, %v407
      %v409 = vpop.f32.mrf.mxu0
      %410 = vmatprep.mubr.f32.mxu0 0.0
      %411 = vmatmul.mubr.f32.gmra.mxu0 %v237
      %v412 = vpop.f32.mrf.mxu0
      %v413 = vadd.f32 %v212, %v412
      %v414 = vpop.f32.mrf.mxu0
      %415 = vmatprep.mubr.f32.mxu0 0.0
      %416 = vmatmul.mubr.f32.gmra.mxu0 %v240
      %v417 = vpop.f32.mrf.mxu0
      %v418 = vadd.f32 %v212, %v417
      %v419 = vpop.f32.mrf.mxu0
      %420 = vmatprep.mubr.f32.mxu0 0.0
      %421 = vmatmul.mubr.f32.gmra.mxu0 %v243
      %v422 = vpop.f32.mrf.mxu0
      %v423 = vadd.f32 %v212, %v422
      %v424 = vpop.f32.mrf.mxu0
      %425 = vmatprep.mubr.f32.mxu0 0.0
      %426 = vmatmul.mubr.f32.gmra.mxu0 %v246
      %v427 = vpop.f32.mrf.mxu0
      %v428 = vadd.f32 %v212, %v427
      %v429 = vpop.f32.mrf.mxu0
      %430 = vmatprep.mubr.f32.mxu0 0.0
      %431 = vmatmul.mubr.f32.gmra.mxu0 %v249
      %v432 = vpop.f32.mrf.mxu0
      %v433 = vadd.f32 %v212, %v432
      %v434 = vpop.f32.mrf.mxu0
      %435 = vmatprep.mubr.f32.mxu0 0.0
      %436 = vmatmul.mubr.f32.gmra.mxu0 %v252
      %v437 = vpop.f32.mrf.mxu0
      %v438 = vadd.f32 %v212, %v437
      %v439 = vpop.f32.mrf.mxu0
      %440 = vmatprep.mubr.f32.mxu0 0.0
      %441 = vmatmul.mubr.f32.gmra.mxu0 %v255
      %v442 = vpop.f32.mrf.mxu0
      %v443 = vadd.f32 %v212, %v442
      %v444 = vpop.f32.mrf.mxu0
      %445 = vmatprep.mubr.f32.mxu0 0.0
      %446 = vmatmul.mubr.f32.gmra.mxu0 %v258
      %v447 = vpop.f32.mrf.mxu0
      %v448 = vadd.f32 %v212, %v447
      %v449 = vpop.f32.mrf.mxu0
      %450 = vmatprep.mubr.f32.mxu0 0.0
      %451 = vmatmul.mubr.f32.gmra.mxu0 %v261
      %v452 = vpop.f32.mrf.mxu0
      %v453 = vadd.f32 %v212, %v452
      %v454 = vpop.f32.mrf.mxu0
      %455 = vmatprep.mubr.f32.mxu0 0.0
      %456 = vmatmul.mubr.f32.gmra.mxu0 %v264
      %v457 = vpop.f32.mrf.mxu0
      %v458 = vadd.f32 %v212, %v457
      %v459 = vpop.f32.mrf.mxu0
      %460 = vmatprep.mubr.f32.mxu0 0.0
      %461 = vmatmul.mubr.f32.gmra.mxu0 %v267
      %v462 = vpop.f32.mrf.mxu0
      %v463 = vadd.f32 %v212, %v462
      %v464 = vpop.f32.mrf.mxu0
      %465 = vmatprep.mubr.f32.mxu0 0.0
      %466 = vmatmul.mubr.f32.gmra.mxu0 %v270
      %v467 = vpop.f32.mrf.mxu0
      %v468 = vadd.f32 %v212, %v467
      %v469 = vpop.f32.mrf.mxu0
      %470 = vmatprep.mubr.f32.mxu0 0.0
      %471 = vmatmul.mubr.f32.gmra.mxu0 %v273
      %v472 = vpop.f32.mrf.mxu0
      %v473 = vadd.f32 %v212, %v472
      %v474 = vpop.f32.mrf.mxu0
      %475 = vmatprep.mubr.f32.mxu0 0.0
      %476 = vmatmul.mubr.f32.gmra.mxu0 %v276
      %v477 = vpop.f32.mrf.mxu0
      %v478 = vadd.f32 %v212, %v477
      %v479 = vpop.f32.mrf.mxu0
      %480 = vmatprep.mubr.f32.mxu0 0.0
      %481 = vmatmul.mubr.f32.gmra.mxu0 %v279
      %v482 = vpop.f32.mrf.mxu0
      %v483 = vadd.f32 %v212, %v482
      %v484 = vpop.f32.mrf.mxu0
      %485 = vmatprep.mubr.f32.mxu0 0.0
      %486 = vmatmul.mubr.f32.gmra.mxu0 %v282
      %v487 = vpop.f32.mrf.mxu0
      %v488 = vadd.f32 %v212, %v487
      %v489 = vpop.f32.mrf.mxu0
      %490 = vmatprep.mubr.f32.mxu0 0.0
      %491 = vmatmul.mubr.f32.gmra.mxu0 %v285
      %v492 = vpop.f32.mrf.mxu0
      %v493 = vadd.f32 %v212, %v492
      %v494 = vpop.f32.mrf.mxu0
      %495 = vmatprep.mubr.f32.mxu0 0.0
      %496 = vmatmul.mubr.f32.gmra.mxu0 %v288
      %v497 = vpop.f32.mrf.mxu0
      %v498 = vadd.f32 %v212, %v497
      %v499 = vpop.f32.mrf.mxu0
      %500 = vmatprep.mubr.f32.mxu0 0.0
      %501 = vmatmul.mubr.f32.gmra.mxu0 %v291
      %v502 = vpop.f32.mrf.mxu0
      %v503 = vadd.f32 %v212, %v502
      %v504 = vpop.f32.mrf.mxu0
      %505 = vmatprep.mubr.f32.mxu0 0.0
      %506 = vmatmul.mubr.f32.gmra.mxu0 %v294
      %v507 = vpop.f32.mrf.mxu0
      %v508 = vadd.f32 %v212, %v507
      %v509 = vpop.f32.mrf.mxu0
      %510 = vmatprep.mubr.f32.mxu0 0.0
      %511 = vmatmul.mubr.f32.gmra.mxu0 %v297
      %v512 = vpop.f32.mrf.mxu0
      %v513 = vadd.f32 %v212, %v512
      %v514 = vpop.f32.mrf.mxu0
      %515 = vmatprep.mubr.f32.mxu0 0.0
      %516 = vmatmul.mubr.f32.gmra.mxu0 %v300
      %v517 = vpop.f32.mrf.mxu0
      %v518 = vadd.f32 %v212, %v517
      %v519 = vpop.f32.mrf.mxu0
      %520 = vmatprep.mubr.f32.mxu0 0.0
      %521 = vmatmul.mubr.f32.gmra.mxu0 %v303
      %v522 = vpop.f32.mrf.mxu0
      %v523 = vadd.f32 %v212, %v522
      %v524 = vpop.f32.mrf.mxu0
      %525 = vmatprep.mubr.f32.mxu0 0.0
      %526 = vmatmul.mubr.f32.gmra.mxu0 %v306
      %v527 = vpop.f32.mrf.mxu0
      %v528 = vadd.f32 %v212, %v527
      %v529 = vpop.f32.mrf.mxu0
      %530 = vmatprep.mubr.f32.mxu0 0.0
      %531 = vmatmul.mubr.f32.gmra.mxu0 %v309
      %v532 = vpop.f32.mrf.mxu0
      %v533 = vadd.f32 %v212, %v532
      %v534 = vpop.f32.mrf.mxu0
      %535 = vdwg.mxu0
      %vm536 = vcmask 195584
      %537 = vst.msk [vmem:[%s172] sm:$0xff] %vm536, %v378
      %538 = vst.msk [vmem:[%s172 + $0x8] sm:$0xff] %vm536, %v383
      %539 = vst.msk [vmem:[%s172 + $0x10] sm:$0xff] %vm536, %v388
      %540 = vst.msk [vmem:[%s172 + $0x18] sm:$0xff] %vm536, %v393
      %541 = vst.msk [vmem:[%s172 + $0x20] sm:$0xff] %vm536, %v398
      %542 = vst.msk [vmem:[%s172 + $0x28] sm:$0xff] %vm536, %v403
      %543 = vst.msk [vmem:[%s172 + $0x30] sm:$0xff] %vm536, %v408
      %544 = vst.msk [vmem:[%s172 + $0x38] sm:$0xff] %vm536, %v413
      %545 = vst.msk [vmem:[%s172 + $0x40] sm:$0xff] %vm536, %v418
      %546 = vst.msk [vmem:[%s172 + $0x48] sm:$0xff] %vm536, %v423
      %547 = vst.msk [vmem:[%s172 + $0x50] sm:$0xff] %vm536, %v428
      %548 = vst.msk [vmem:[%s172 + $0x58] sm:$0xff] %vm536, %v433
      %549 = vst.msk [vmem:[%s172 + $0x60] sm:$0xff] %vm536, %v438
      %550 = vst.msk [vmem:[%s172 + $0x68] sm:$0xff] %vm536, %v443
      %551 = vst.msk [vmem:[%s172 + $0x70] sm:$0xff] %vm536, %v448
      %552 = vst.msk [vmem:[%s172 + $0x78] sm:$0xff] %vm536, %v453
      %553 = vst.msk [vmem:[%s172 + $0x80] sm:$0xff] %vm536, %v458
      %554 = vst.msk [vmem:[%s172 + $0x88] sm:$0xff] %vm536, %v463
      %555 = vst.msk [vmem:[%s172 + $0x90] sm:$0xff] %vm536, %v468
      %556 = vst.msk [vmem:[%s172 + $0x98] sm:$0xff] %vm536, %v473
      %557 = vst.msk [vmem:[%s172 + $0xa0] sm:$0xff] %vm536, %v478
      %558 = vst.msk [vmem:[%s172 + $0xa8] sm:$0xff] %vm536, %v483
      %559 = vst.msk [vmem:[%s172 + $0xb0] sm:$0xff] %vm536, %v488
      %560 = vst.msk [vmem:[%s172 + $0xb8] sm:$0xff] %vm536, %v493
      %561 = vst.msk [vmem:[%s172 + $0xc0] sm:$0xff] %vm536, %v498
      %562 = vst.msk [vmem:[%s172 + $0xc8] sm:$0xff] %vm536, %v503
      %563 = vst.msk [vmem:[%s172 + $0xd0] sm:$0xff] %vm536, %v508
      %564 = vst.msk [vmem:[%s172 + $0xd8] sm:$0xff] %vm536, %v513
      %565 = vst.msk [vmem:[%s172 + $0xe0] sm:$0xff] %vm536, %v518
      %566 = vst.msk [vmem:[%s172 + $0xe8] sm:$0xff] %vm536, %v523
      %567 = vst.msk [vmem:[%s172 + $0xf0] sm:$0xff] %vm536, %v528
      %568 = vst.msk [vmem:[%s172 + $0xf8] sm:$0xff] %vm536, %v533
      %s569 = smul.u32 32, %s14
      %p570 = scmp.lt.s32.totalorder %s569, 63
      %s571 = scalar_select %p570, %s569, 63
      %s572 = smul.addr %s571, 8
      %s573 = scalar_lea.vmem %s3, %s572
      // Predicated region
      $region33: #{next_attention_forward.5} parent=31 // pred_check
        %p574 = pneg %p100
      $region34: #{next_attention_forward.5} parent=31 // pred_check_branch
        %576 = sbr.rel (%p574) target = $region36
      $region35: #{next_attention_forward.5} parent=31 // pred_region
        %s577 = smul.u32 32, %s14
      $region36: #{next_attention_forward.5} parent=31 // pred_fallthru
        _
    $region32: #{next_attention_forward.5} parent=5 // pred_fallthru
      _
    %p578 = scmp.le.s32.totalorder 2, %s9
    // Predicated region
    $region37: #{next_attention_forward.5} parent=5 // pred_check
      %p579 = pneg %p578
    $region38: #{next_attention_forward.5} parent=5 // pred_check_branch
      %581 = sbr.rel (%p579) target = $region40
    $region39: #{next_attention_forward.5} parent=5 // pred_region
      %s582 = ssub.s32 %s9, 2
      // Predicated region
      $region41: #{next_attention_forward.5} parent=39 // pred_check
        %p583 = pneg %p106
      $region42: #{next_attention_forward.5} parent=39 // pred_check_branch
        %585 = sbr.rel (%p583) target = $region44
      $region43: #{next_attention_forward.5} parent=39 // pred_region
        %s586 = smul.u32 32, %s15
        %p587 = scmp.lt.s32.totalorder %s586, 63
        %s588 = scalar_select %p587, %s586, 63
        %s589 = smul.addr %s588, 8
        %s590 = scalar_lea.vmem %s3, %s589
      $region44: #{next_attention_forward.5} parent=39 // pred_fallthru
        _
    $region40: #{next_attention_forward.5} parent=5 // pred_fallthru
      _
  $region6: #{next_attention_forward.5} parent=0 // loop_footer
    %s13 = sadd.s32 1, %s9
  $region7: #{next_attention_forward.5} parent=0 // loop_footer_branch
    %8 = sbr.rel target = $region3
  $region8: #{next_attention_forward.5} parent=0 // loop_exit
    _

// kernel: next_attention_forward.6
$region0: #{next_attention_forward.6}
  #allocation0 [shape = 'u32[]', space=smem, size = 0x4, offset = 0x4, fixed_abs, tag = 'smem constant byte address 0x4 - core index']
  #allocation1 [shape = 'u32[144,128]{1,0:T(1,128)}', space=vmem, size = 0x12000, scoped, tag = 'internal scratch']
  #allocation2 [shape = 'f32[18,18,24]{2,1,0:T(8,128)}', space=vmem, size = 0x36000, scoped, tag = 'scratch operand']
  %s0 = inlined_call_operand.vmem [shape: f32[2,16,16,24], index: 0, kind: input, shape index: {}]
  %s1 = inlined_call_operand.vmem [shape: f32[9,24], index: 1, kind: input, shape index: {}]
  %s2 = inlined_call_operand.vmem [shape: f32[1,24], index: 2, kind: input, shape index: {}]
  %s3 = inlined_call_operand.vmem [shape: f32[2,16,16,24], index: 3, kind: output, shape index: {}]
  %s4 = sld [smem:[#allocation0]]
  $region45: #{next_attention_forward.6} parent=0
    _
  %s6 = ssub.s32 1, %s4
  %s7 = scalar_select 0, %s6, %s4
  loop: start=0, step=1, limit=4
  $region2: #{next_attention_forward.6} parent=0 // loop_pre_header
    _
  $region3: #{next_attention_forward.6} parent=0 // loop_header
    %s9 = sphi 0, %s13
    %p10 = scmp.ge.s32.totalorder %s9, 4
    %s19 = sphi 0, %s21
    %s22 = sphi 0, %s19
    %s23 = sphi 0, %s22
    %s39 = sphi 0, %s23
    %s43 = sphi 0, %s43
    %s45 = sphi 0, %s43
    %s46 = sphi 0, %s45
    %s60 = sphi 0, %s46
    %s64 = sphi 0, %s64
    %s66 = sphi 0, %s64
    %s67 = sphi 0, %s66
    %s81 = sphi 0, %s67
    %s87 = sphi 0, %s89
    %s90 = sphi 0, %s87
    %s91 = sphi 0, %s90
    %s107 = sphi 0, %s91
  $region4: #{next_attention_forward.6} parent=0 // loop_header_branch
    %12 = sbr.rel (%p10) target = $region8
  $region5: #{next_attention_forward.6} parent=0 // loop_body
    %s14 = ssub.s32 %s9, 1
    %s15 = ssub.s32 %s9, 2
    %s16 = sadd.s32 %s9, 1
    %s17 = ssub.s32 %s9, %s16
    %p18 = scmp.eq.s32.totalorder %s17, 0
    %s20 = sadd.s32 %s19, 1
    %s21 = scalar_select %p18, %s19, %s20
    %p24 = pneg %p18
    %p25 = scmp.eq.s32.totalorder %s9, 1
    %p26 = por %p24, %p25
    %p27 = scmp.ne.s32.totalorder %s19, %s22
    %p28 = scmp.eq.s32.totalorder %s9, 0
    %p29 = por %p27, %p28
    %p30 = scmp.ne.s32.totalorder %s19, %s22
    %p31 = scmp.eq.s32.totalorder %s14, 1
    %p32 = por %p30, %p31
    %p33 = scmp.ne.s32.totalorder %s22, %s23
    %p34 = scmp.eq.s32.totalorder %s14, 0
    %p35 = por %p33, %p34
    %p36 = scmp.ne.s32.totalorder %s22, %s23
    %p37 = scmp.eq.s32.totalorder %s15, 1
    %p38 = por %p36, %p37
    %p40 = scmp.ne.s32.totalorder %s23, %s39
    %p41 = scmp.eq.s32.totalorder %s15, 0
    %p42 = por %p40, %p41
    %s44 = sadd.s32 %s43, 1
    %p47 = scmp.eq.s32.totalorder %s9, 1
    %p48 = scmp.ne.s32.totalorder %s43, %s45
    %p49 = scmp.eq.s32.totalorder %s9, 0
    %p50 = por %p48, %p49
    %p51 = scmp.ne.s32.totalorder %s43, %s45
    %p52 = scmp.eq.s32.totalorder %s14, 1
    %p53 = por %p51, %p52
    %p54 = scmp.ne.s32.totalorder %s45, %s46
    %p55 = scmp.eq.s32.totalorder %s14, 0
    %p56 = por %p54, %p55
    %p57 = scmp.ne.s32.totalorder %s45, %s46
    %p58 = scmp.eq.s32.totalorder %s15, 1
    %p59 = por %p57, %p58
    %p61 = scmp.ne.s32.totalorder %s46, %s60
    %p62 = scmp.eq.s32.totalorder %s15, 0
    %p63 = por %p61, %p62
    %s65 = sadd.s32 %s64, 1
    %p68 = scmp.eq.s32.totalorder %s9, 1
    %p69 = scmp.ne.s32.totalorder %s64, %s66
    %p70 = scmp.eq.s32.totalorder %s9, 0
    %p71 = por %p69, %p70
    %p72 = scmp.ne.s32.totalorder %s64, %s66
    %p73 = scmp.eq.s32.totalorder %s14, 1
    %p74 = por %p72, %p73
    %p75 = scmp.ne.s32.totalorder %s66, %s67
    %p76 = scmp.eq.s32.totalorder %s14, 0
    %p77 = por %p75, %p76
    %p78 = scmp.ne.s32.totalorder %s66, %s67
    %p79 = scmp.eq.s32.totalorder %s15, 1
    %p80 = por %p78, %p79
    %p82 = scmp.ne.s32.totalorder %s67, %s81
    %p83 = scmp.eq.s32.totalorder %s15, 0
    %p84 = por %p82, %p83
    %s85 = ssub.s32 %s9, %s16
    %p86 = scmp.eq.s32.totalorder %s85, 0
    %s88 = sadd.s32 %s87, 1
    %s89 = scalar_select %p86, %s87, %s88
    %p92 = pneg %p86
    %p93 = scmp.eq.s32.totalorder %s9, 1
    %p94 = por %p92, %p93
    %p95 = scmp.ne.s32.totalorder %s87, %s90
    %p96 = scmp.eq.s32.totalorder %s9, 0
    %p97 = por %p95, %p96
    %p98 = scmp.ne.s32.totalorder %s87, %s90
    %p99 = scmp.eq.s32.totalorder %s14, 1
    %p100 = por %p98, %p99
    %p101 = scmp.ne.s32.totalorder %s90, %s91
    %p102 = scmp.eq.s32.totalorder %s14, 0
    %p103 = por %p101, %p102
    %p104 = scmp.ne.s32.totalorder %s90, %s91
    %p105 = scmp.eq.s32.totalorder %s15, 1
    %p106 = por %p104, %p105
    %p108 = scmp.ne.s32.totalorder %s91, %s107
    %p109 = scmp.eq.s32.totalorder %s15, 0
    %p110 = por %p108, %p109
    %p111 = scmp.le.s32.totalorder 1, %s9
    %p112 = scmp.lt.s32.totalorder %s9, 3
    %p113 = pnand %p111, %p112
    %p114 = pneg %p113
    // Predicated region
    $region9: #{next_attention_forward.6} parent=5 // pred_check
      _
    $region10: #{next_attention_forward.6} parent=5 // pred_check_branch
      %116 = sbr.rel (%p113) target = $region12
    $region11: #{next_attention_forward.6} parent=5 // pred_region
      %s117 = ssub.s32 %s9, 1
      // Predicated region
      $region13: #{next_attention_forward.6} parent=11 // pred_check
        %p118 = pneg %p56
      $region14: #{next_attention_forward.6} parent=11 // pred_check_branch
        %120 = sbr.rel (%p118) target = $region16
      $region15: #{next_attention_forward.6} parent=11 // pred_region
        _
      $region16: #{next_attention_forward.6} parent=11 // pred_fallthru
        _
      // Predicated region
      $region17: #{next_attention_forward.6} parent=11 // pred_check
        %p121 = pneg %p77
      $region18: #{next_attention_forward.6} parent=11 // pred_check_branch
        %123 = sbr.rel (%p121) target = $region20
      $region19: #{next_attention_forward.6} parent=11 // pred_region
        _
      $region20: #{next_attention_forward.6} parent=11 // pred_fallthru
        _
    $region12: #{next_attention_forward.6} parent=5 // pred_fallthru
      _
    %p124 = scmp.lt.s32.totalorder %s9, 2
    // Predicated region
    $region21: #{next_attention_forward.6} parent=5 // pred_check
      %p125 = pneg %p124
    $region22: #{next_attention_forward.6} parent=5 // pred_check_branch
      %127 = sbr.rel (%p125) target = $region24
    $region23: #{next_attention_forward.6} parent=5 // pred_region
      // Predicated region
      $region25: #{next_attention_forward.6} parent=23 // pred_check
        %p128 = pneg %p29
      $region26: #{next_attention_forward.6} parent=23 // pred_check_branch
        %130 = sbr.rel (%p128) target = $region28
      $region27: #{next_attention_forward.6} parent=23 // pred_region
        %p131 = scmp.lt.s32.totalorder %s9, 1
        %s132 = scalar_select %p131, %s9, 1
        %s133 = smul.addr %s132, 32
        %s134 = smul.addr %s133, 8
        %s135 = scalar_lea.vmem %s0, %s134
      $region28: #{next_attention_forward.6} parent=23 // pred_fallthru
        _
    $region24: #{next_attention_forward.6} parent=5 // pred_fallthru
      _
    %p136 = scmp.le.s32.totalorder 1, %s9
    %p137 = scmp.lt.s32.totalorder %s9, 3
    %p138 = pnand %p136, %p137
    %p139 = pneg %p138
    // Predicated region
    $region29: #{next_attention_forward.6} parent=5 // pred_check
      _
    $region30: #{next_attention_forward.6} parent=5 // pred_check_branch
      %141 = sbr.rel (%p138) target = $region32
    $region31: #{next_attention_forward.6} parent=5 // pred_region
      %s142 = ssub.s32 %s9, 1
      %p143 = scmp.lt.s32.totalorder %s14, 1
      %s144 = scalar_select %p143, %s14, 1
      %s145 = smul.addr %s144, 32
      %s146 = smul.addr %s145, 8
      %s147 = scalar_lea.vmem %s0, %s146
      %p148 = pneg %p35
      %p149 = pneg %p32
      %p150 = pneg %p56
      %p151 = pneg %p53
      %p152 = pneg %p77
      %p153 = pneg %p74
      %p154 = pneg %p103
      %p155 = pneg %p100
      %p156 = scmp.lt.s32.totalorder %s14, 1
      %s157 = scalar_select %p156, %s14, 1
      %s158 = smul.addr %s157, 32
      %s159 = smul.addr %s158, 8
      %s160 = scalar_lea.vmem %s3, %s159
      %p161 = scmp.lt.s32.totalorder %s14, 1
      %s162 = scalar_select %p161, %s14, 1
      %s163 = smul.addr %s162, 32
      %s164 = smul.addr %s163, 8
      %s165 = scalar_lea.vmem %s0, %s164
      %p166 = scmp.lt.s32.totalorder %s14, 1
      %s167 = scalar_select %p166, %s14, 1
      %s168 = smul.addr %s167, 32
      %s169 = smul.addr %s168, 8
      %s170 = scalar_lea.vmem %s3, %s169
      %vm171 = vcmask 195584
      %172 = vst.msk [vmem:[#allocation2] sm:$0xff] %vm171, 0.0
      %173 = vst.msk [vmem:[#allocation2 + $0x8] sm:$0xff] %vm171, 0.0
      %vm174 = vcmask 189440
      %175 = vst.msk [vmem:[#allocation2 + $0x10] sm:$0x3] %vm174, 0.0
      %s176 = scalar_lea.vmem [#allocation2], 408
      %177 = vst.msk [vmem:[%s176] sm:$0xff] %vm171, 0.0
      %178 = vst.msk [vmem:[%s176 + $0x8] sm:$0xff] %vm171, 0.0
      %179 = vst.msk [vmem:[%s176 + $0x10] sm:$0x3] %vm174, 0.0
      %s180 = scalar_lea.vmem [#allocation2], 24
      %vm181 = vcmask 188416
      %182 = vst.msk [vmem:[%s180] sm:$0x1] %vm181, 0.0
      %183 = vst.msk [vmem:[%s180 + $0x18] sm:$0x1] %vm181, 0.0
      %184 = vst.msk [vmem:[%s180 + $0x30] sm:$0x1] %vm181, 0.0
      %185 = vst.msk [vmem:[%s180 + $0x48] sm:$0x1] %vm181, 0.0
      %186 = vst.msk [vmem:[%s180 + $0x60] sm:$0x1] %vm181, 0.0
      %187 = vst.msk [vmem:[%s180 + $0x78] sm:$0x1] %vm181, 0.0
      %188 = vst.msk [vmem:[%s180 + $0x90] sm:$0x1] %vm181, 0.0
      %189 = vst.msk [vmem:[%s180 + $0xa8] sm:$0x1] %vm181, 0.0
      %190 = vst.msk [vmem:[%s180 + $0xc0] sm:$0x1] %vm181, 0.0
      %191 = vst.msk [vmem:[%s180 + $0xd8] sm:$0x1] %vm181, 0.0
      %192 = vst.msk [vmem:[%s180 + $0xf0] sm:$0x1] %vm181, 0.0
      %193 = vst.msk [vmem:[%s180 + $0x108] sm:$0x1] %vm181, 0.0
      %194 = vst.msk [vmem:[%s180 + $0x120] sm:$0x1] %vm181, 0.0
      %195 = vst.msk [vmem:[%s180 + $0x138] sm:$0x1] %vm181, 0.0
      %196 = vst.msk [vmem:[%s180 + $0x150] sm:$0x1] %vm181, 0.0
      %197 = vst.msk [vmem:[%s180 + $0x168] sm:$0x1] %vm181, 0.0
      %198 = vst.msk [vmem:[%s180 + $0x11] sm:$0x1] %vm181, 0.0
      %199 = vst.msk [vmem:[%s180 + $0x29] sm:$0x1] %vm181, 0.0
      %200 = vst.msk [vmem:[%s180 + $0x41] sm:$0x1] %vm181, 0.0
      %201 = vst.msk [vmem:[%s180 + $0x59] sm:$0x1] %vm181, 0.0
      %202 = vst.msk [vmem:[%s180 + $0x71] sm:$0x1] %vm181, 0.0
      %203 = vst.msk [vmem:[%s180 + $0x89] sm:$0x1] %vm181, 0.0
      %204 = vst.msk [vmem:[%s180 + $0xa1] sm:$0x1] %vm181, 0.0
      %205 = vst.msk [vmem:[%s180 + $0xb9] sm:$0x1] %vm181, 0.0
      %206 = vst.msk [vmem:[%s180 + $0xd1] sm:$0x1] %vm181, 0.0
      %207 = vst.msk [vmem:[%s180 + $0xe9] sm:$0x1] %vm181, 0.0
      %208 = vst.msk [vmem:[%s180 + $0x101] sm:$0x1] %vm181, 0.0
      %209 = vst.msk [vmem:[%s180 + $0x119] sm:$0x1] %vm181, 0.0
      %210 = vst.msk [vmem:[%s180 + $0x131] sm:$0x1] %vm181, 0.0
      %211 = vst.msk [vmem:[%s180 + $0x149] sm:$0x1] %vm181, 0.0
      %212 = vst.msk [vmem:[%s180 + $0x161] sm:$0x1] %vm181, 0.0
      %213 = vst.msk [vmem:[%s180 + $0x179] sm:$0x1] %vm181, 0.0
      %v214 = vld [vmem:[%s165] sm:$0xff]
      %v215 = vld [vmem:[%s165 + $0x8] sm:$0xff]
      %v216 = vld [vmem:[%s165 + $0x10] sm:$0xff]
      %v217 = vld [vmem:[%s165 + $0x18] sm:$0xff]
      %v218 = vld [vmem:[%s165 + $0x20] sm:$0xff]
      %v219 = vld [vmem:[%s165 + $0x28] sm:$0xff]
      %v220 = vld [vmem:[%s165 + $0x30] sm:$0xff]
      %v221 = vld [vmem:[%s165 + $0x38] sm:$0xff]
      %v222 = vld [vmem:[%s165 + $0x40] sm:$0xff]
      %v223 = vld [vmem:[%s165 + $0x48] sm:$0xff]
      %v224 = vld [vmem:[%s165 + $0x50] sm:$0xff]
      %v225 = vld [vmem:[%s165 + $0x58] sm:$0xff]
      %v226 = vld [vmem:[%s165 + $0x60] sm:$0xff]
      %v227 = vld [vmem:[%s165 + $0x68] sm:$0xff]
      %v228 = vld [vmem:[%s165 + $0x70] sm:$0xff]
      %v229 = vld [vmem:[%s165 + $0x78] sm:$0xff]
      %v230 = vld [vmem:[%s165 + $0x80] sm:$0xff]
      %v231 = vld [vmem:[%s165 + $0x88] sm:$0xff]
      %v232 = vld [vmem:[%s165 + $0x90] sm:$0xff]
      %v233 = vld [vmem:[%s165 + $0x98] sm:$0xff]
      %v234 = vld [vmem:[%s165 + $0xa0] sm:$0xff]
      %v235 = vld [vmem:[%s165 + $0xa8] sm:$0xff]
      %v236 = vld [vmem:[%s165 + $0xb0] sm:$0xff]
      %v237 = vld [vmem:[%s165 + $0xb8] sm:$0xff]
      %v238 = vld [vmem:[%s165 + $0xc0] sm:$0xff]
      %v239 = vld [vmem:[%s165 + $0xc8] sm:$0xff]
      %v240 = vld [vmem:[%s165 + $0xd0] sm:$0xff]
      %v241 = vld [vmem:[%s165 + $0xd8] sm:$0xff]
      %v242 = vld [vmem:[%s165 + $0xe0] sm:$0xff]
      %v243 = vld [vmem:[%s165 + $0xe8] sm:$0xff]
      %v244 = vld [vmem:[%s165 + $0xf0] sm:$0xff]
      %v245 = vld [vmem:[%s165 + $0xf8] sm:$0xff]
      %246 = vst.msk [vmem:[%s180 + $0x1] sm:$0xff] %vm171, %v214
      %247 = vst.msk [vmem:[%s180 + $0x9] sm:$0xff] %vm171, %v215
      %248 = vst.msk [vmem:[%s180 + $0x19] sm:$0xff] %vm171, %v216
      %249 = vst.msk [vmem:[%s180 + $0x21] sm:$0xff] %vm171, %v217
      %250 = vst.msk [vmem:[%s180 + $0x31] sm:$0xff] %vm171, %v218
      %251 = vst.msk [vmem:[%s180 + $0x39] sm:$0xff] %vm171, %v219
      %252 = vst.msk [vmem:[%s180 + $0x49] sm:$0xff] %vm171, %v220
      %253 = vst.msk [vmem:[%s180 + $0x51] sm:$0xff] %vm171, %v221
      %254 = vst.msk [vmem:[%s180 + $0x61] sm:$0xff] %vm171, %v222
      %255 = vst.msk [vmem:[%s180 + $0x69] sm:$0xff] %vm171, %v223
      %256 = vst.msk [vmem:[%s180 + $0x79] sm:$0xff] %vm171, %v224
      %257 = vst.msk [vmem:[%s180 + $0x81] sm:$0xff] %vm171, %v225
      %258 = vst.msk [vmem:[%s180 + $0x91] sm:$0xff] %vm171, %v226
      %259 = vst.msk [vmem:[%s180 + $0x99] sm:$0xff] %vm171, %v227
      %260 = vst.msk [vmem:[%s180 + $0xa9] sm:$0xff] %vm171, %v228
      %261 = vst.msk [vmem:[%s180 + $0xb1] sm:$0xff] %vm171, %v229
      %262 = vst.msk [vmem:[%s180 + $0xc1] sm:$0xff] %vm171, %v230
      %263 = vst.msk [vmem:[%s180 + $0xc9] sm:$0xff] %vm171, %v231
      %264 = vst.msk [vmem:[%s180 + $0xd9] sm:$0xff] %vm171, %v232
      %265 = vst.msk [vmem:[%s180 + $0xe1] sm:$0xff] %vm171, %v233
      %266 = vst.msk [vmem:[%s180 + $0xf1] sm:$0xff] %vm171, %v234
      %267 = vst.msk [vmem:[%s180 + $0xf9] sm:$0xff] %vm171, %v235
      %268 = vst.msk [vmem:[%s180 + $0x109] sm:$0xff] %vm171, %v236
      %269 = vst.msk [vmem:[%s180 + $0x111] sm:$0xff] %vm171, %v237
      %270 = vst.msk [vmem:[%s180 + $0x121] sm:$0xff] %vm171, %v238
      %271 = vst.msk [vmem:[%s180 + $0x129] sm:$0xff] %vm171, %v239
      %272 = vst.msk [vmem:[%s180 + $0x139] sm:$0xff] %vm171, %v240
      %273 = vst.msk [vmem:[%s180 + $0x141] sm:$0xff] %vm171, %v241
      %274 = vst.msk [vmem:[%s180 + $0x151] sm:$0xff] %vm171, %v242
      %275 = vst.msk [vmem:[%s180 + $0x159] sm:$0xff] %vm171, %v243
      %276 = vst.msk [vmem:[%s180 + $0x169] sm:$0xff] %vm171, %v244
      %277 = vst.msk [vmem:[%s180 + $0x171] sm:$0xff] %vm171, %v245
      %v278 = vld [vmem:[%s1] sm:$0xff]
      %v279 = vld [vmem:[%s1 + $0x8] sm:$0x1]
      %v280 = vld [vmem:[%s2] sm:$0x1]
      %v281 = vld [vmem:[#allocation2] sm:$0xff]
      %v282 = vld [vmem:[#allocation2 + $0x8] sm:$0xff]
      %v283 = vld [vmem:[#allocation2 + $0x18] sm:$0xff]
      %v284 = vld [vmem:[#allocation2 + $0x20] sm:$0xff]
      %v285 = vld [vmem:[#allocation2 + $0x30] sm:$0xff]
      %v286 = vld [vmem:[#allocation2 + $0x38] sm:$0xff]
      %v287 = vld [vmem:[#allocation2 + $0x48] sm:$0xff]
      %v288 = vld [vmem:[#allocation2 + $0x50] sm:$0xff]
      %v289 = vld [vmem:[#allocation2 + $0x60] sm:$0xff]
      %v290 = vld [vmem:[#allocation2 + $0x68] sm:$0xff]
      %v291 = vld [vmem:[#allocation2 + $0x78] sm:$0xff]
      %v292 = vld [vmem:[#allocation2 + $0x80] sm:$0xff]
      %v293 = vld [vmem:[#allocation2 + $0x90] sm:$0xff]
      %v294 = vld [vmem:[#allocation2 + $0x98] sm:$0xff]
      %v295 = vld [vmem:[#allocation2 + $0xa8] sm:$0xff]
      %v296 = vld [vmem:[#allocation2 + $0xb0] sm:$0xff]
      %v297 = vld [vmem:[#allocation2 + $0xc0] sm:$0xff]
      %v298 = vld [vmem:[#allocation2 + $0xc8] sm:$0xff]
      %v299 = vld [vmem:[#allocation2 + $0xd8] sm:$0xff]
      %v300 = vld [vmem:[#allocation2 + $0xe0] sm:$0xff]
      %v301 = vld [vmem:[#allocation2 + $0xf0] sm:$0xff]
      %v302 = vld [vmem:[#allocation2 + $0xf8] sm:$0xff]
      %v303 = vld [vmem:[#allocation2 + $0x108] sm:$0xff]
      %v304 = vld [vmem:[#allocation2 + $0x110] sm:$0xff]
      %v305 = vld [vmem:[#allocation2 + $0x120] sm:$0xff]
      %v306 = vld [vmem:[#allocation2 + $0x128] sm:$0xff]
      %v307 = vld [vmem:[#allocation2 + $0x138] sm:$0xff]
      %v308 = vld [vmem:[#allocation2 + $0x140] sm:$0xff]
      %v309 = vld [vmem:[#allocation2 + $0x150] sm:$0xff]
      %v310 = vld [vmem:[#allocation2 + $0x158] sm:$0xff]
      %v311 = vld [vmem:[#allocation2 + $0x168] sm:$0xff]
      %v312 = vld [vmem:[#allocation2 + $0x170] sm:$0xff]
      %v313 = vlaneseq
      %v314 = vshrl.u32 %v313, 7
      %v315 = vsub.s32 0, %v314
      %v316 = vrot.slane %v278, %v315
      %v317 = vmul.f32 %v281, %v316
      %v318 = vmul.f32 %v282, %v316
      %v319 = vmul.f32 %v283, %v316
      %v320 = vmul.f32 %v284, %v316
      %v321 = vmul.f32 %v285, %v316
      %v322 = vmul.f32 %v286, %v316
      %v323 = vmul.f32 %v287, %v316
      %v324 = vmul.f32 %v288, %v316
      %v325 = vmul.f32 %v289, %v316
      %v326 = vmul.f32 %v290, %v316
      %v327 = vmul.f32 %v291, %v316
      %v328 = vmul.f32 %v292, %v316
      %v329 = vmul.f32 %v293, %v316
      %v330 = vmul.f32 %v294, %v316
      %v331 = vmul.f32 %v295, %v316
      %v332 = vmul.f32 %v296, %v316
      %v333 = vmul.f32 %v297, %v316
      %v334 = vmul.f32 %v298, %v316
      %v335 = vmul.f32 %v299, %v316
      %v336 = vmul.f32 %v300, %v316
      %v337 = vmul.f32 %v301, %v316
      %v338 = vmul.f32 %v302, %v316
      %v339 = vmul.f32 %v303, %v316
      %v340 = vmul.f32 %v304, %v316
      %v341 = vmul.f32 %v305, %v316
      %v342 = vmul.f32 %v306, %v316
      %v343 = vmul.f32 %v307, %v316
      %v344 = vmul.f32 %v308, %v316
      %v345 = vmul.f32 %v309, %v316
      %v346 = vmul.f32 %v310, %v316
      %v347 = vmul.f32 %v311, %v316
      %v348 = vmul.f32 %v312, %v316
      %v350 = vlaneseq
      %v351 = vshrl.u32 %v350, 7
      %v352 = vsub.s32 0, %v351
      %v353 = vrot.slane %v280, %v352
      %v355 = vadd.f32 %v317, %v353
      %v356 = vadd.f32 %v318, %v353
      %v357 = vadd.f32 %v319, %v353
      %v358 = vadd.f32 %v320, %v353
      %v359 = vadd.f32 %v321, %v353
      %v360 = vadd.f32 %v322, %v353
      %v361 = vadd.f32 %v323, %v353
      %v362 = vadd.f32 %v324, %v353
      %v363 = vadd.f32 %v325, %v353
      %v364 = vadd.f32 %v326, %v353
      %v365 = vadd.f32 %v327, %v353
      %v366 = vadd.f32 %v328, %v353
      %v367 = vadd.f32 %v329, %v353
      %v368 = vadd.f32 %v330, %v353
      %v369 = vadd.f32 %v331, %v353
      %v370 = vadd.f32 %v332, %v353
      %v371 = vadd.f32 %v333, %v353
      %v372 = vadd.f32 %v334, %v353
      %v373 = vadd.f32 %v335, %v353
      %v374 = vadd.f32 %v336, %v353
      %v375 = vadd.f32 %v337, %v353
      %v376 = vadd.f32 %v338, %v353
      %v377 = vadd.f32 %v339, %v353
      %v378 = vadd.f32 %v340, %v353
      %v379 = vadd.f32 %v341, %v353
      %v380 = vadd.f32 %v342, %v353
      %v381 = vadd.f32 %v343, %v353
      %v382 = vadd.f32 %v344, %v353
      %v383 = vadd.f32 %v345, %v353
      %v384 = vadd.f32 %v346, %v353
      %v385 = vadd.f32 %v347, %v353
      %v386 = vadd.f32 %v348, %v353
      %v387 = vld [vmem:[#allocation2 + $0x1] sm:$0xff]
      %v388 = vld [vmem:[#allocation2 + $0x9] sm:$0xff]
      %v389 = vld [vmem:[#allocation2 + $0x19] sm:$0xff]
      %v390 = vld [vmem:[#allocation2 + $0x21] sm:$0xff]
      %v391 = vld [vmem:[#allocation2 + $0x31] sm:$0xff]
      %v392 = vld [vmem:[#allocation2 + $0x39] sm:$0xff]
      %v393 = vld [vmem:[#allocation2 + $0x49] sm:$0xff]
      %v394 = vld [vmem:[#allocation2 + $0x51] sm:$0xff]
      %v395 = vld [vmem:[#allocation2 + $0x61] sm:$0xff]
      %v396 = vld [vmem:[#allocation2 + $0x69] sm:$0xff]
      %v397 = vld [vmem:[#allocation2 + $0x79] sm:$0xff]
      %v398 = vld [vmem:[#allocation2 + $0x81] sm:$0xff]
      %v399 = vld [vmem:[#allocation2 + $0x91] sm:$0xff]
      %v400 = vld [vmem:[#allocation2 + $0x99] sm:$0xff]
      %v401 = vld [vmem:[#allocation2 + $0xa9] sm:$0xff]
      %v402 = vld [vmem:[#allocation2 + $0xb1] sm:$0xff]
      %v403 = vld [vmem:[#allocation2 + $0xc1] sm:$0xff]
      %v404 = vld [vmem:[#allocation2 + $0xc9] sm:$0xff]
      %v405 = vld [vmem:[#allocation2 + $0xd9] sm:$0xff]
      %v406 = vld [vmem:[#allocation2 + $0xe1] sm:$0xff]
      %v407 = vld [vmem:[#allocation2 + $0xf1] sm:$0xff]
      %v408 = vld [vmem:[#allocation2 + $0xf9] sm:$0xff]
      %v409 = vld [vmem:[#allocation2 + $0x109] sm:$0xff]
      %v410 = vld [vmem:[#allocation2 + $0x111] sm:$0xff]
      %v411 = vld [vmem:[#allocation2 + $0x121] sm:$0xff]
      %v412 = vld [vmem:[#allocation2 + $0x129] sm:$0xff]
      %v413 = vld [vmem:[#allocation2 + $0x139] sm:$0xff]
      %v414 = vld [vmem:[#allocation2 + $0x141] sm:$0xff]
      %v415 = vld [vmem:[#allocation2 + $0x151] sm:$0xff]
      %v416 = vld [vmem:[#allocation2 + $0x159] sm:$0xff]
      %v417 = vld [vmem:[#allocation2 + $0x169] sm:$0xff]
      %v418 = vld [vmem:[#allocation2 + $0x171] sm:$0xff]
      %v419 = vlaneseq
      %v420 = vshrl.u32 %v419, 7
      %v421 = vsub.s32 1, %v420
      %v422 = vrot.slane %v278, %v421
      %v423 = vmul.f32 %v387, %v422
      %v424 = vmul.f32 %v388, %v422
      %v425 = vmul.f32 %v389, %v422
      %v426 = vmul.f32 %v390, %v422
      %v427 = vmul.f32 %v391, %v422
      %v428 = vmul.f32 %v392, %v422
      %v429 = vmul.f32 %v393, %v422
      %v430 = vmul.f32 %v394, %v422
      %v431 = vmul.f32 %v395, %v422
      %v432 = vmul.f32 %v396, %v422
      %v433 = vmul.f32 %v397, %v422
      %v434 = vmul.f32 %v398, %v422
      %v435 = vmul.f32 %v399, %v422
      %v436 = vmul.f32 %v400, %v422
      %v437 = vmul.f32 %v401, %v422
      %v438 = vmul.f32 %v402, %v422
      %v439 = vmul.f32 %v403, %v422
      %v440 = vmul.f32 %v404, %v422
      %v441 = vmul.f32 %v405, %v422
      %v442 = vmul.f32 %v406, %v422
      %v443 = vmul.f32 %v407, %v422
      %v444 = vmul.f32 %v408, %v422
      %v445 = vmul.f32 %v409, %v422
      %v446 = vmul.f32 %v410, %v422
      %v447 = vmul.f32 %v411, %v422
      %v448 = vmul.f32 %v412, %v422
      %v449 = vmul.f32 %v413, %v422
      %v450 = vmul.f32 %v414, %v422
      %v451 = vmul.f32 %v415, %v422
      %v452 = vmul.f32 %v416, %v422
      %v453 = vmul.f32 %v417, %v422
      %v454 = vmul.f32 %v418, %v422
      %v455 = vadd.f32 %v355, %v423
      %v456 = vadd.f32 %v356, %v424
      %v457 = vadd.f32 %v357, %v425
      %v458 = vadd.f32 %v358, %v426
      %v459 = vadd.f32 %v359, %v427
      %v460 = vadd.f32 %v360, %v428
      %v461 = vadd.f32 %v361, %v429
      %v462 = vadd.f32 %v362, %v430
      %v463 = vadd.f32 %v363, %v431
      %v464 = vadd.f32 %v364, %v432
      %v465 = vadd.f32 %v365, %v433
      %v466 = vadd.f32 %v366, %v434
      %v467 = vadd.f32 %v367, %v435
      %v468 = vadd.f32 %v368, %v436
      %v469 = vadd.f32 %v369, %v437
      %v470 = vadd.f32 %v370, %v438
      %v471 = vadd.f32 %v371, %v439
      %v472 = vadd.f32 %v372, %v440
      %v473 = vadd.f32 %v373, %v441
      %v474 = vadd.f32 %v374, %v442
      %v475 = vadd.f32 %v375, %v443
      %v476 = vadd.f32 %v376, %v444
      %v477 = vadd.f32 %v377, %v445
      %v478 = vadd.f32 %v378, %v446
      %v479 = vadd.f32 %v379, %v447
      %v480 = vadd.f32 %v380, %v448
      %v481 = vadd.f32 %v381, %v449
      %v482 = vadd.f32 %v382, %v450
      %v483 = vadd.f32 %v383, %v451
      %v484 = vadd.f32 %v384, %v452
      %v485 = vadd.f32 %v385, %v453
      %v486 = vadd.f32 %v386, %v454
      %v487 = vld [vmem:[#allocation2 + $0x2] sm:$0xff]
      %v488 = vld [vmem:[#allocation2 + $0xa] sm:$0xff]
      %v489 = vld [vmem:[#allocation2 + $0x1a] sm:$0xff]
      %v490 = vld [vmem:[#allocation2 + $0x22] sm:$0xff]
      %v491 = vld [vmem:[#allocation2 + $0x32] sm:$0xff]
      %v492 = vld [vmem:[#allocation2 + $0x3a] sm:$0xff]
      %v493 = vld [vmem:[#allocation2 + $0x4a] sm:$0xff]
      %v494 = vld [vmem:[#allocation2 + $0x52] sm:$0xff]
      %v495 = vld [vmem:[#allocation2 + $0x62] sm:$0xff]
      %v496 = vld [vmem:[#allocation2 + $0x6a] sm:$0xff]
      %v497 = vld [vmem:[#allocation2 + $0x7a] sm:$0xff]
      %v498 = vld [vmem:[#allocation2 + $0x82] sm:$0xff]
      %v499 = vld [vmem:[#allocation2 + $0x92] sm:$0xff]
      %v500 = vld [vmem:[#allocation2 + $0x9a] sm:$0xff]
      %v501 = vld [vmem:[#allocation2 + $0xaa] sm:$0xff]
      %v502 = vld [vmem:[#allocation2 + $0xb2] sm:$0xff]
      %v503 = vld [vmem:[#allocation2 + $0xc2] sm:$0xff]
      %v504 = vld [vmem:[#allocation2 + $0xca] sm:$0xff]
      %v505 = vld [vmem:[#allocation2 + $0xda] sm:$0xff]
      %v506 = vld [vmem:[#allocation2 + $0xe2] sm:$0xff]
      %v507 = vld [vmem:[#allocation2 + $0xf2] sm:$0xff]
      %v508 = vld [vmem:[#allocation2 + $0xfa] sm:$0xff]
      %v509 = vld [vmem:[#allocation2 + $0x10a] sm:$0xff]
      %v510 = vld [vmem:[#allocation2 + $0x112] sm:$0xff]
      %v511 = vld [vmem:[#allocation2 + $0x122] sm:$0xff]
      %v512 = vld [vmem:[#allocation2 + $0x12a] sm:$0xff]
      %v513 = vld [vmem:[#allocation2 + $0x13a] sm:$0xff]
      %v514 = vld [vmem:[#allocation2 + $0x142] sm:$0xff]
      %v515 = vld [vmem:[#allocation2 + $0x152] sm:$0xff]
      %v516 = vld [vmem:[#allocation2 + $0x15a] sm:$0xff]
      %v517 = vld [vmem:[#allocation2 + $0x16a] sm:$0xff]
      %v518 = vld [vmem:[#allocation2 + $0x172] sm:$0xff]
      %v519 = vlaneseq
      %v520 = vshrl.u32 %v519, 7
      %v521 = vsub.s32 2, %v520
      %v522 = vrot.slane %v278, %v521
      %v523 = vmul.f32 %v487, %v522
      %v524 = vmul.f32 %v488, %v522
      %v525 = vmul.f32 %v489, %v522
      %v526 = vmul.f32 %v490, %v522
      %v527 = vmul.f32 %v491, %v522
      %v528 = vmul.f32 %v492, %v522
      %v529 = vmul.f32 %v493, %v522
      %v530 = vmul.f32 %v494, %v522
      %v531 = vmul.f32 %v495, %v522
      %v532 = vmul.f32 %v496, %v522
      %v533 = vmul.f32 %v497, %v522
      %v534 = vmul.f32 %v498, %v522
      %v535 = vmul.f32 %v499, %v522
      %v536 = vmul.f32 %v500, %v522
      %v537 = vmul.f32 %v501, %v522
      %v538 = vmul.f32 %v502, %v522
      %v539 = vmul.f32 %v503, %v522
      %v540 = vmul.f32 %v504, %v522
      %v541 = vmul.f32 %v505, %v522
      %v542 = vmul.f32 %v506, %v522
      %v543 = vmul.f32 %v507, %v522
      %v544 = vmul.f32 %v508, %v522
      %v545 = vmul.f32 %v509, %v522
      %v546 = vmul.f32 %v510, %v522
      %v547 = vmul.f32 %v511, %v522
      %v548 = vmul.f32 %v512, %v522
      %v549 = vmul.f32 %v513, %v522
      %v550 = vmul.f32 %v514, %v522
      %v551 = vmul.f32 %v515, %v522
      %v552 = vmul.f32 %v516, %v522
      %v553 = vmul.f32 %v517, %v522
      %v554 = vmul.f32 %v518, %v522
      %v555 = vadd.f32 %v455, %v523
      %v556 = vadd.f32 %v456, %v524
      %v557 = vadd.f32 %v457, %v525
      %v558 = vadd.f32 %v458, %v526
      %v559 = vadd.f32 %v459, %v527
      %v560 = vadd.f32 %v460, %v528
      %v561 = vadd.f32 %v461, %v529
      %v562 = vadd.f32 %v462, %v530
      %v563 = vadd.f32 %v463, %v531
      %v564 = vadd.f32 %v464, %v532
      %v565 = vadd.f32 %v465, %v533
      %v566 = vadd.f32 %v466, %v534
      %v567 = vadd.f32 %v467, %v535
      %v568 = vadd.f32 %v468, %v536
      %v569 = vadd.f32 %v469, %v537
      %v570 = vadd.f32 %v470, %v538
      %v571 = vadd.f32 %v471, %v539
      %v572 = vadd.f32 %v472, %v540
      %v573 = vadd.f32 %v473, %v541
      %v574 = vadd.f32 %v474, %v542
      %v575 = vadd.f32 %v475, %v543
      %v576 = vadd.f32 %v476, %v544
      %v577 = vadd.f32 %v477, %v545
      %v578 = vadd.f32 %v478, %v546
      %v579 = vadd.f32 %v479, %v547
      %v580 = vadd.f32 %v480, %v548
      %v581 = vadd.f32 %v481, %v549
      %v582 = vadd.f32 %v482, %v550
      %v583 = vadd.f32 %v483, %v551
      %v584 = vadd.f32 %v484, %v552
      %v585 = vadd.f32 %v485, %v553
      %v586 = vadd.f32 %v486, %v554
      %v587 = vld [vmem:[%s180] sm:$0xff]
      %v588 = vld [vmem:[%s180 + $0x8] sm:$0xff]
      %v589 = vld [vmem:[%s180 + $0x18] sm:$0xff]
      %v590 = vld [vmem:[%s180 + $0x20] sm:$0xff]
      %v591 = vld [vmem:[%s180 + $0x30] sm:$0xff]
      %v592 = vld [vmem:[%s180 + $0x38] sm:$0xff]
      %v593 = vld [vmem:[%s180 + $0x48] sm:$0xff]
      %v594 = vld [vmem:[%s180 + $0x50] sm:$0xff]
      %v595 = vld [vmem:[%s180 + $0x60] sm:$0xff]
      %v596 = vld [vmem:[%s180 + $0x68] sm:$0xff]
      %v597 = vld [vmem:[%s180 + $0x78] sm:$0xff]
      %v598 = vld [vmem:[%s180 + $0x80] sm:$0xff]
      %v599 = vld [vmem:[%s180 + $0x90] sm:$0xff]
      %v600 = vld [vmem:[%s180 + $0x98] sm:$0xff]
      %v601 = vld [vmem:[%s180 + $0xa8] sm:$0xff]
      %v602 = vld [vmem:[%s180 + $0xb0] sm:$0xff]
      %v603 = vld [vmem:[%s180 + $0xc0] sm:$0xff]
      %v604 = vld [vmem:[%s180 + $0xc8] sm:$0xff]
      %v605 = vld [vmem:[%s180 + $0xd8] sm:$0xff]
      %v606 = vld [vmem:[%s180 + $0xe0] sm:$0xff]
      %v607 = vld [vmem:[%s180 + $0xf0] sm:$0xff]
      %v608 = vld [vmem:[%s180 + $0xf8] sm:$0xff]
      %v609 = vld [vmem:[%s180 + $0x108] sm:$0xff]
      %v610 = vld [vmem:[%s180 + $0x110] sm:$0xff]
      %v611 = vld [vmem:[%s180 + $0x120] sm:$0xff]
      %v612 = vld [vmem:[%s180 + $0x128] sm:$0xff]
      %v613 = vld [vmem:[%s180 + $0x138] sm:$0xff]
      %v614 = vld [vmem:[%s180 + $0x140] sm:$0xff]
      %v615 = vld [vmem:[%s180 + $0x150] sm:$0xff]
      %v616 = vld [vmem:[%s180 + $0x158] sm:$0xff]
      %v617 = vld [vmem:[%s180 + $0x168] sm:$0xff]
      %v618 = vld [vmem:[%s180 + $0x170] sm:$0xff]
      %v619 = vlaneseq
      %v620 = vshrl.u32 %v619, 7
      %v621 = vsub.s32 3, %v620
      %v622 = vrot.slane %v278, %v621
      %v623 = vmul.f32 %v587, %v622
      %v624 = vmul.f32 %v588, %v622
      %v625 = vmul.f32 %v589, %v622
      %v626 = vmul.f32 %v590, %v622
      %v627 = vmul.f32 %v591, %v622
      %v628 = vmul.f32 %v592, %v622
      %v629 = vmul.f32 %v593, %v622
      %v630 = vmul.f32 %v594, %v622
      %v631 = vmul.f32 %v595, %v622
      %v632 = vmul.f32 %v596, %v622
      %v633 = vmul.f32 %v597, %v622
      %v634 = vmul.f32 %v598, %v622
      %v635 = vmul.f32 %v599, %v622
      %v636 = vmul.f32 %v600, %v622
      %v637 = vmul.f32 %v601, %v622
      %v638 = vmul.f32 %v602, %v622
      %v639 = vmul.f32 %v603, %v622
      %v640 = vmul.f32 %v604, %v622
      %v641 = vmul.f32 %v605, %v622
      %v642 = vmul.f32 %v606, %v622
      %v643 = vmul.f32 %v607, %v622
      %v644 = vmul.f32 %v608, %v622
      %v645 = vmul.f32 %v609, %v622
      %v646 = vmul.f32 %v610, %v622
      %v647 = vmul.f32 %v611, %v622
      %v648 = vmul.f32 %v612, %v622
      %v649 = vmul.f32 %v613, %v622
      %v650 = vmul.f32 %v614, %v622
      %v651 = vmul.f32 %v615, %v622
      %v652 = vmul.f32 %v616, %v622
      %v653 = vmul.f32 %v617, %v622
      %v654 = vmul.f32 %v618, %v622
      %v655 = vadd.f32 %v555, %v623
      %v656 = vadd.f32 %v556, %v624
      %v657 = vadd.f32 %v557, %v625
      %v658 = vadd.f32 %v558, %v626
      %v659 = vadd.f32 %v559, %v627
      %v660 = vadd.f32 %v560, %v628
      %v661 = vadd.f32 %v561, %v629
      %v662 = vadd.f32 %v562, %v630
      %v663 = vadd.f32 %v563, %v631
      %v664 = vadd.f32 %v564, %v632
      %v665 = vadd.f32 %v565, %v633
      %v666 = vadd.f32 %v566, %v634
      %v667 = vadd.f32 %v567, %v635
      %v668 = vadd.f32 %v568, %v636
      %v669 = vadd.f32 %v569, %v637
      %v670 = vadd.f32 %v570, %v638
      %v671 = vadd.f32 %v571, %v639
      %v672 = vadd.f32 %v572, %v640
      %v673 = vadd.f32 %v573, %v641
      %v674 = vadd.f32 %v574, %v642
      %v675 = vadd.f32 %v575, %v643
      %v676 = vadd.f32 %v576, %v644
      %v677 = vadd.f32 %v577, %v645
      %v678 = vadd.f32 %v578, %v646
      %v679 = vadd.f32 %v579, %v647
      %v680 = vadd.f32 %v580, %v648
      %v681 = vadd.f32 %v581, %v649
      %v682 = vadd.f32 %v582, %v650
      %v683 = vadd.f32 %v583, %v651
      %v684 = vadd.f32 %v584, %v652
      %v685 = vadd.f32 %v585, %v653
      %v686 = vadd.f32 %v586, %v654
      %v687 = vld [vmem:[%s180 + $0x1] sm:$0xff]
      %v688 = vld [vmem:[%s180 + $0x9] sm:$0xff]
      %v689 = vld [vmem:[%s180 + $0x19] sm:$0xff]
      %v690 = vld [vmem:[%s180 + $0x21] sm:$0xff]
      %v691 = vld [vmem:[%s180 + $0x31] sm:$0xff]
      %v692 = vld [vmem:[%s180 + $0x39] sm:$0xff]
      %v693 = vld [vmem:[%s180 + $0x49] sm:$0xff]
      %v694 = vld [vmem:[%s180 + $0x51] sm:$0xff]
      %v695 = vld [vmem:[%s180 + $0x61] sm:$0xff]
      %v696 = vld [vmem:[%s180 + $0x69] sm:$0xff]
      %v697 = vld [vmem:[%s180 + $0x79] sm:$0xff]
      %v698 = vld [vmem:[%s180 + $0x81] sm:$0xff]
      %v699 = vld [vmem:[%s180 + $0x91] sm:$0xff]
      %v700 = vld [vmem:[%s180 + $0x99] sm:$0xff]
      %v701 = vld [vmem:[%s180 + $0xa9] sm:$0xff]
      %v702 = vld [vmem:[%s180 + $0xb1] sm:$0xff]
      %v703 = vld [vmem:[%s180 + $0xc1] sm:$0xff]
      %v704 = vld [vmem:[%s180 + $0xc9] sm:$0xff]
      %v705 = vld [vmem:[%s180 + $0xd9] sm:$0xff]
      %v706 = vld [vmem:[%s180 + $0xe1] sm:$0xff]
      %v707 = vld [vmem:[%s180 + $0xf1] sm:$0xff]
      %v708 = vld [vmem:[%s180 + $0xf9] sm:$0xff]
      %v709 = vld [vmem:[%s180 + $0x109] sm:$0xff]
      %v710 = vld [vmem:[%s180 + $0x111] sm:$0xff]
      %v711 = vld [vmem:[%s180 + $0x121] sm:$0xff]
      %v712 = vld [vmem:[%s180 + $0x129] sm:$0xff]
      %v713 = vld [vmem:[%s180 + $0x139] sm:$0xff]
      %v714 = vld [vmem:[%s180 + $0x141] sm:$0xff]
      %v715 = vld [vmem:[%s180 + $0x151] sm:$0xff]
      %v716 = vld [vmem:[%s180 + $0x159] sm:$0xff]
      %v717 = vld [vmem:[%s180 + $0x169] sm:$0xff]
      %v718 = vld [vmem:[%s180 + $0x171] sm:$0xff]
      %v719 = vlaneseq
      %v720 = vshrl.u32 %v719, 7
      %v721 = vsub.s32 4, %v720
      %v722 = vrot.slane %v278, %v721
      %v723 = vmul.f32 %v687, %v722
      %v724 = vmul.f32 %v688, %v722
      %v725 = vmul.f32 %v689, %v722
      %v726 = vmul.f32 %v690, %v722
      %v727 = vmul.f32 %v691, %v722
      %v728 = vmul.f32 %v692, %v722
      %v729 = vmul.f32 %v693, %v722
      %v730 = vmul.f32 %v694, %v722
      %v731 = vmul.f32 %v695, %v722
      %v732 = vmul.f32 %v696, %v722
      %v733 = vmul.f32 %v697, %v722
      %v734 = vmul.f32 %v698, %v722
      %v735 = vmul.f32 %v699, %v722
      %v736 = vmul.f32 %v700, %v722
      %v737 = vmul.f32 %v701, %v722
      %v738 = vmul.f32 %v702, %v722
      %v739 = vmul.f32 %v703, %v722
      %v740 = vmul.f32 %v704, %v722
      %v741 = vmul.f32 %v705, %v722
      %v742 = vmul.f32 %v706, %v722
      %v743 = vmul.f32 %v707, %v722
      %v744 = vmul.f32 %v708, %v722
      %v745 = vmul.f32 %v709, %v722
      %v746 = vmul.f32 %v710, %v722
      %v747 = vmul.f32 %v711, %v722
      %v748 = vmul.f32 %v712, %v722
      %v749 = vmul.f32 %v713, %v722
      %v750 = vmul.f32 %v714, %v722
      %v751 = vmul.f32 %v715, %v722
      %v752 = vmul.f32 %v716, %v722
      %v753 = vmul.f32 %v717, %v722
      %v754 = vmul.f32 %v718, %v722
      %v755 = vadd.f32 %v655, %v723
      %v756 = vadd.f32 %v656, %v724
      %v757 = vadd.f32 %v657, %v725
      %v758 = vadd.f32 %v658, %v726
      %v759 = vadd.f32 %v659, %v727
      %v760 = vadd.f32 %v660, %v728
      %v761 = vadd.f32 %v661, %v729
      %v762 = vadd.f32 %v662, %v730
      %v763 = vadd.f32 %v663, %v731
      %v764 = vadd.f32 %v664, %v732
      %v765 = vadd.f32 %v665, %v733
      %v766 = vadd.f32 %v666, %v734
      %v767 = vadd.f32 %v667, %v735
      %v768 = vadd.f32 %v668, %v736
      %v769 = vadd.f32 %v669, %v737
      %v770 = vadd.f32 %v670, %v738
      %v771 = vadd.f32 %v671, %v739
      %v772 = vadd.f32 %v672, %v740
      %v773 = vadd.f32 %v673, %v741
      %v774 = vadd.f32 %v674, %v742
      %v775 = vadd.f32 %v675, %v743
      %v776 = vadd.f32 %v676, %v744
      %v777 = vadd.f32 %v677, %v745
      %v778 = vadd.f32 %v678, %v746
      %v779 = vadd.f32 %v679, %v747
      %v780 = vadd.f32 %v680, %v748
      %v781 = vadd.f32 %v681, %v749
      %v782 = vadd.f32 %v682, %v750
      %v783 = vadd.f32 %v683, %v751
      %v784 = vadd.f32 %v684, %v752
      %v785 = vadd.f32 %v685, %v753
      %v786 = vadd.f32 %v686, %v754
      %v787 = vld [vmem:[%s180 + $0x2] sm:$0xff]
      %v788 = vld [vmem:[%s180 + $0xa] sm:$0xff]
      %v789 = vld [vmem:[%s180 + $0x1a] sm:$0xff]
      %v790 = vld [vmem:[%s180 + $0x22] sm:$0xff]
      %v791 = vld [vmem:[%s180 + $0x32] sm:$0xff]
      %v792 = vld [vmem:[%s180 + $0x3a] sm:$0xff]
      %v793 = vld [vmem:[%s180 + $0x4a] sm:$0xff]
      %v794 = vld [vmem:[%s180 + $0x52] sm:$0xff]
      %v795 = vld [vmem:[%s180 + $0x62] sm:$0xff]
      %v796 = vld [vmem:[%s180 + $0x6a] sm:$0xff]
      %v797 = vld [vmem:[%s180 + $0x7a] sm:$0xff]
      %v798 = vld [vmem:[%s180 + $0x82] sm:$0xff]
      %v799 = vld [vmem:[%s180 + $0x92] sm:$0xff]
      %v800 = vld [vmem:[%s180 + $0x9a] sm:$0xff]
      %v801 = vld [vmem:[%s180 + $0xaa] sm:$0xff]
      %v802 = vld [vmem:[%s180 + $0xb2] sm:$0xff]
      %v803 = vld [vmem:[%s180 + $0xc2] sm:$0xff]
      %v804 = vld [vmem:[%s180 + $0xca] sm:$0xff]
      %v805 = vld [vmem:[%s180 + $0xda] sm:$0xff]
      %v806 = vld [vmem:[%s180 + $0xe2] sm:$0xff]
      %v807 = vld [vmem:[%s180 + $0xf2] sm:$0xff]
      %v808 = vld [vmem:[%s180 + $0xfa] sm:$0xff]
      %v809 = vld [vmem:[%s180 + $0x10a] sm:$0xff]
      %v810 = vld [vmem:[%s180 + $0x112] sm:$0xff]
      %v811 = vld [vmem:[%s180 + $0x122] sm:$0xff]
      %v812 = vld [vmem:[%s180 + $0x12a] sm:$0xff]
      %v813 = vld [vmem:[%s180 + $0x13a] sm:$0xff]
      %v814 = vld [vmem:[%s180 + $0x142] sm:$0xff]
      %v815 = vld [vmem:[%s180 + $0x152] sm:$0xff]
      %v816 = vld [vmem:[%s180 + $0x15a] sm:$0xff]
      %v817 = vld [vmem:[%s180 + $0x16a] sm:$0xff]
      %v818 = vld [vmem:[%s180 + $0x172] sm:$0xff]
      %v819 = vlaneseq
      %v820 = vshrl.u32 %v819, 7
      %v821 = vsub.s32 5, %v820
      %v822 = vrot.slane %v278, %v821
      %v823 = vmul.f32 %v787, %v822
      %v824 = vmul.f32 %v788, %v822
      %v825 = vmul.f32 %v789, %v822
      %v826 = vmul.f32 %v790, %v822
      %v827 = vmul.f32 %v791, %v822
      %v828 = vmul.f32 %v792, %v822
      %v829 = vmul.f32 %v793, %v822
      %v830 = vmul.f32 %v794, %v822
      %v831 = vmul.f32 %v795, %v822
      %v832 = vmul.f32 %v796, %v822
      %v833 = vmul.f32 %v797, %v822
      %v834 = vmul.f32 %v798, %v822
      %v835 = vmul.f32 %v799, %v822
      %v836 = vmul.f32 %v800, %v822
      %v837 = vmul.f32 %v801, %v822
      %v838 = vmul.f32 %v802, %v822
      %v839 = vmul.f32 %v803, %v822
      %v840 = vmul.f32 %v804, %v822
      %v841 = vmul.f32 %v805, %v822
      %v842 = vmul.f32 %v806, %v822
      %v843 = vmul.f32 %v807, %v822
      %v844 = vmul.f32 %v808, %v822
      %v845 = vmul.f32 %v809, %v822
      %v846 = vmul.f32 %v810, %v822
      %v847 = vmul.f32 %v811, %v822
      %v848 = vmul.f32 %v812, %v822
      %v849 = vmul.f32 %v813, %v822
      %v850 = vmul.f32 %v814, %v822
      %v851 = vmul.f32 %v815, %v822
      %v852 = vmul.f32 %v816, %v822
      %v853 = vmul.f32 %v817, %v822
      %v854 = vmul.f32 %v818, %v822
      %v855 = vadd.f32 %v755, %v823
      %v856 = vadd.f32 %v756, %v824
      %v857 = vadd.f32 %v757, %v825
      %v858 = vadd.f32 %v758, %v826
      %v859 = vadd.f32 %v759, %v827
      %v860 = vadd.f32 %v760, %v828
      %v861 = vadd.f32 %v761, %v829
      %v862 = vadd.f32 %v762, %v830
      %v863 = vadd.f32 %v763, %v831
      %v864 = vadd.f32 %v764, %v832
      %v865 = vadd.f32 %v765, %v833
      %v866 = vadd.f32 %v766, %v834
      %v867 = vadd.f32 %v767, %v835
      %v868 = vadd.f32 %v768, %v836
      %v869 = vadd.f32 %v769, %v837
      %v870 = vadd.f32 %v770, %v838
      %v871 = vadd.f32 %v771, %v839
      %v872 = vadd.f32 %v772, %v840
      %v873 = vadd.f32 %v773, %v841
      %v874 = vadd.f32 %v774, %v842
      %v875 = vadd.f32 %v775, %v843
      %v876 = vadd.f32 %v776, %v844
      %v877 = vadd.f32 %v777, %v845
      %v878 = vadd.f32 %v778, %v846
      %v879 = vadd.f32 %v779, %v847
      %v880 = vadd.f32 %v780, %v848
      %v881 = vadd.f32 %v781, %v849
      %v882 = vadd.f32 %v782, %v850
      %v883 = vadd.f32 %v783, %v851
      %v884 = vadd.f32 %v784, %v852
      %v885 = vadd.f32 %v785, %v853
      %v886 = vadd.f32 %v786, %v854
      %s887 = scalar_lea.vmem [#allocation2], 48
      %v888 = vld [vmem:[%s887] sm:$0xff]
      %v889 = vld [vmem:[%s887 + $0x8] sm:$0xff]
      %v890 = vld [vmem:[%s887 + $0x18] sm:$0xff]
      %v891 = vld [vmem:[%s887 + $0x20] sm:$0xff]
      %v892 = vld [vmem:[%s887 + $0x30] sm:$0xff]
      %v893 = vld [vmem:[%s887 + $0x38] sm:$0xff]
      %v894 = vld [vmem:[%s887 + $0x48] sm:$0xff]
      %v895 = vld [vmem:[%s887 + $0x50] sm:$0xff]
      %v896 = vld [vmem:[%s887 + $0x60] sm:$0xff]
      %v897 = vld [vmem:[%s887 + $0x68] sm:$0xff]
      %v898 = vld [vmem:[%s887 + $0x78] sm:$0xff]
      %v899 = vld [vmem:[%s887 + $0x80] sm:$0xff]
      %v900 = vld [vmem:[%s887 + $0x90] sm:$0xff]
      %v901 = vld [vmem:[%s887 + $0x98] sm:$0xff]
      %v902 = vld [vmem:[%s887 + $0xa8] sm:$0xff]
      %v903 = vld [vmem:[%s887 + $0xb0] sm:$0xff]
      %v904 = vld [vmem:[%s887 + $0xc0] sm:$0xff]
      %v905 = vld [vmem:[%s887 + $0xc8] sm:$0xff]
      %v906 = vld [vmem:[%s887 + $0xd8] sm:$0xff]
      %v907 = vld [vmem:[%s887 + $0xe0] sm:$0xff]
      %v908 = vld [vmem:[%s887 + $0xf0] sm:$0xff]
      %v909 = vld [vmem:[%s887 + $0xf8] sm:$0xff]
      %v910 = vld [vmem:[%s887 + $0x108] sm:$0xff]
      %v911 = vld [vmem:[%s887 + $0x110] sm:$0xff]
      %v912 = vld [vmem:[%s887 + $0x120] sm:$0xff]
      %v913 = vld [vmem:[%s887 + $0x128] sm:$0xff]
      %v914 = vld [vmem:[%s887 + $0x138] sm:$0xff]
      %v915 = vld [vmem:[%s887 + $0x140] sm:$0xff]
      %v916 = vld [vmem:[%s887 + $0x150] sm:$0xff]
      %v917 = vld [vmem:[%s887 + $0x158] sm:$0xff]
      %v918 = vld [vmem:[%s887 + $0x168] sm:$0xff]
      %v919 = vld [vmem:[%s887 + $0x170] sm:$0xff]
      %v920 = vlaneseq
      %v921 = vshrl.u32 %v920, 7
      %v922 = vsub.s32 6, %v921
      %v923 = vrot.slane %v278, %v922
      %v924 = vmul.f32 %v888, %v923
      %v925 = vmul.f32 %v889, %v923
      %v926 = vmul.f32 %v890, %v923
      %v927 = vmul.f32 %v891, %v923
      %v928 = vmul.f32 %v892, %v923
      %v929 = vmul.f32 %v893, %v923
      %v930 = vmul.f32 %v894, %v923
      %v931 = vmul.f32 %v895, %v923
      %v932 = vmul.f32 %v896, %v923
      %v933 = vmul.f32 %v897, %v923
      %v934 = vmul.f32 %v898, %v923
      %v935 = vmul.f32 %v899, %v923
      %v936 = vmul.f32 %v900, %v923
      %v937 = vmul.f32 %v901, %v923
      %v938 = vmul.f32 %v902, %v923
      %v939 = vmul.f32 %v903, %v923
      %v940 = vmul.f32 %v904, %v923
      %v941 = vmul.f32 %v905, %v923
      %v942 = vmul.f32 %v906, %v923
      %v943 = vmul.f32 %v907, %v923
      %v944 = vmul.f32 %v908, %v923
      %v945 = vmul.f32 %v909, %v923
      %v946 = vmul.f32 %v910, %v923
      %v947 = vmul.f32 %v911, %v923
      %v948 = vmul.f32 %v912, %v923
      %v949 = vmul.f32 %v913, %v923
      %v950 = vmul.f32 %v914, %v923
      %v951 = vmul.f32 %v915, %v923
      %v952 = vmul.f32 %v916, %v923
      %v953 = vmul.f32 %v917, %v923
      %v954 = vmul.f32 %v918, %v923
      %v955 = vmul.f32 %v919, %v923
      %v956 = vadd.f32 %v855, %v924
      %v957 = vadd.f32 %v856, %v925
      %v958 = vadd.f32 %v857, %v926
      %v959 = vadd.f32 %v858, %v927
      %v960 = vadd.f32 %v859, %v928
      %v961 = vadd.f32 %v860, %v929
      %v962 = vadd.f32 %v861, %v930
      %v963 = vadd.f32 %v862, %v931
      %v964 = vadd.f32 %v863, %v932
      %v965 = vadd.f32 %v864, %v933
      %v966 = vadd.f32 %v865, %v934
      %v967 = vadd.f32 %v866, %v935
      %v968 = vadd.f32 %v867, %v936
      %v969 = vadd.f32 %v868, %v937
      %v970 = vadd.f32 %v869, %v938
      %v971 = vadd.f32 %v870, %v939
      %v972 = vadd.f32 %v871, %v940
      %v973 = vadd.f32 %v872, %v941
      %v974 = vadd.f32 %v873, %v942
      %v975 = vadd.f32 %v874, %v943
      %v976 = vadd.f32 %v875, %v944
      %v977 = vadd.f32 %v876, %v945
      %v978 = vadd.f32 %v877, %v946
      %v979 = vadd.f32 %v878, %v947
      %v980 = vadd.f32 %v879, %v948
      %v981 = vadd.f32 %v880, %v949
      %v982 = vadd.f32 %v881, %v950
      %v983 = vadd.f32 %v882, %v951
      %v984 = vadd.f32 %v883, %v952
      %v985 = vadd.f32 %v884, %v953
      %v986 = vadd.f32 %v885, %v954
      %v987 = vadd.f32 %v886, %v955
      %v988 = vld [vmem:[%s887 + $0x1] sm:$0xff]
      %v989 = vld [vmem:[%s887 + $0x9] sm:$0xff]
      %v990 = vld [vmem:[%s887 + $0x19] sm:$0xff]
      %v991 = vld [vmem:[%s887 + $0x21] sm:$0xff]
      %v992 = vld [vmem:[%s887 + $0x31] sm:$0xff]
      %v993 = vld [vmem:[%s887 + $0x39] sm:$0xff]
      %v994 = vld [vmem:[%s887 + $0x49] sm:$0xff]
      %v995 = vld [vmem:[%s887 + $0x51] sm:$0xff]
      %v996 = vld [vmem:[%s887 + $0x61] sm:$0xff]
      %v997 = vld [vmem:[%s887 + $0x69] sm:$0xff]
      %v998 = vld [vmem:[%s887 + $0x79] sm:$0xff]
      %v999 = vld [vmem:[%s887 + $0x81] sm:$0xff]
      %v1000 = vld [vmem:[%s887 + $0x91] sm:$0xff]
      %v1001 = vld [vmem:[%s887 + $0x99] sm:$0xff]
      %v1002 = vld [vmem:[%s887 + $0xa9] sm:$0xff]
      %v1003 = vld [vmem:[%s887 + $0xb1] sm:$0xff]
      %v1004 = vld [vmem:[%s887 + $0xc1] sm:$0xff]
      %v1005 = vld [vmem:[%s887 + $0xc9] sm:$0xff]
      %v1006 = vld [vmem:[%s887 + $0xd9] sm:$0xff]
      %v1007 = vld [vmem:[%s887 + $0xe1] sm:$0xff]
      %v1008 = vld [vmem:[%s887 + $0xf1] sm:$0xff]
      %v1009 = vld [vmem:[%s887 + $0xf9] sm:$0xff]
      %v1010 = vld [vmem:[%s887 + $0x109] sm:$0xff]
      %v1011 = vld [vmem:[%s887 + $0x111] sm:$0xff]
      %v1012 = vld [vmem:[%s887 + $0x121] sm:$0xff]
      %v1013 = vld [vmem:[%s887 + $0x129] sm:$0xff]
      %v1014 = vld [vmem:[%s887 + $0x139] sm:$0xff]
      %v1015 = vld [vmem:[%s887 + $0x141] sm:$0xff]
      %v1016 = vld [vmem:[%s887 + $0x151] sm:$0xff]
      %v1017 = vld [vmem:[%s887 + $0x159] sm:$0xff]
      %v1018 = vld [vmem:[%s887 + $0x169] sm:$0xff]
      %v1019 = vld [vmem:[%s887 + $0x171] sm:$0xff]
      %v1020 = vlaneseq
      %v1021 = vshrl.u32 %v1020, 7
      %v1022 = vsub.s32 7, %v1021
      %v1023 = vrot.slane %v278, %v1022
      %v1024 = vmul.f32 %v988, %v1023
      %v1025 = vmul.f32 %v989, %v1023
      %v1026 = vmul.f32 %v990, %v1023
      %v1027 = vmul.f32 %v991, %v1023
      %v1028 = vmul.f32 %v992, %v1023
      %v1029 = vmul.f32 %v993, %v1023
      %v1030 = vmul.f32 %v994, %v1023
      %v1031 = vmul.f32 %v995, %v1023
      %v1032 = vmul.f32 %v996, %v1023
      %v1033 = vmul.f32 %v997, %v1023
      %v1034 = vmul.f32 %v998, %v1023
      %v1035 = vmul.f32 %v999, %v1023
      %v1036 = vmul.f32 %v1000, %v1023
      %v1037 = vmul.f32 %v1001, %v1023
      %v1038 = vmul.f32 %v1002, %v1023
      %v1039 = vmul.f32 %v1003, %v1023
      %v1040 = vmul.f32 %v1004, %v1023
      %v1041 = vmul.f32 %v1005, %v1023
      %v1042 = vmul.f32 %v1006, %v1023
      %v1043 = vmul.f32 %v1007, %v1023
      %v1044 = vmul.f32 %v1008, %v1023
      %v1045 = vmul.f32 %v1009, %v1023
      %v1046 = vmul.f32 %v1010, %v1023
      %v1047 = vmul.f32 %v1011, %v1023
      %v1048 = vmul.f32 %v1012, %v1023
      %v1049 = vmul.f32 %v1013, %v1023
      %v1050 = vmul.f32 %v1014, %v1023
      %v1051 = vmul.f32 %v1015, %v1023
      %v1052 = vmul.f32 %v1016, %v1023
      %v1053 = vmul.f32 %v1017, %v1023
      %v1054 = vmul.f32 %v1018, %v1023
      %v1055 = vmul.f32 %v1019, %v1023
      %v1056 = vadd.f32 %v956, %v1024
      %v1057 = vadd.f32 %v957, %v1025
      %v1058 = vadd.f32 %v958, %v1026
      %v1059 = vadd.f32 %v959, %v1027
      %v1060 = vadd.f32 %v960, %v1028
      %v1061 = vadd.f32 %v961, %v1029
      %v1062 = vadd.f32 %v962, %v1030
      %v1063 = vadd.f32 %v963, %v1031
      %v1064 = vadd.f32 %v964, %v1032
      %v1065 = vadd.f32 %v965, %v1033
      %v1066 = vadd.f32 %v966, %v1034
      %v1067 = vadd.f32 %v967, %v1035
      %v1068 = vadd.f32 %v968, %v1036
      %v1069 = vadd.f32 %v969, %v1037
      %v1070 = vadd.f32 %v970, %v1038
      %v1071 = vadd.f32 %v971, %v1039
      %v1072 = vadd.f32 %v972, %v1040
      %v1073 = vadd.f32 %v973, %v1041
      %v1074 = vadd.f32 %v974, %v1042
      %v1075 = vadd.f32 %v975, %v1043
      %v1076 = vadd.f32 %v976, %v1044
      %v1077 = vadd.f32 %v977, %v1045
      %v1078 = vadd.f32 %v978, %v1046
      %v1079 = vadd.f32 %v979, %v1047
      %v1080 = vadd.f32 %v980, %v1048
      %v1081 = vadd.f32 %v981, %v1049
      %v1082 = vadd.f32 %v982, %v1050
      %v1083 = vadd.f32 %v983, %v1051
      %v1084 = vadd.f32 %v984, %v1052
      %v1085 = vadd.f32 %v985, %v1053
      %v1086 = vadd.f32 %v986, %v1054
      %v1087 = vadd.f32 %v987, %v1055
      %v1088 = vld [vmem:[%s887 + $0x2] sm:$0xff]
      %v1089 = vld [vmem:[%s887 + $0xa] sm:$0xff]
      %v1090 = vld [vmem:[%s887 + $0x1a] sm:$0xff]
      %v1091 = vld [vmem:[%s887 + $0x22] sm:$0xff]
      %v1092 = vld [vmem:[%s887 + $0x32] sm:$0xff]
      %v1093 = vld [vmem:[%s887 + $0x3a] sm:$0xff]
      %v1094 = vld [vmem:[%s887 + $0x4a] sm:$0xff]
      %v1095 = vld [vmem:[%s887 + $0x52] sm:$0xff]
      %v1096 = vld [vmem:[%s887 + $0x62] sm:$0xff]
      %v1097 = vld [vmem:[%s887 + $0x6a] sm:$0xff]
      %v1098 = vld [vmem:[%s887 + $0x7a] sm:$0xff]
      %v1099 = vld [vmem:[%s887 + $0x82] sm:$0xff]
      %v1100 = vld [vmem:[%s887 + $0x92] sm:$0xff]
      %v1101 = vld [vmem:[%s887 + $0x9a] sm:$0xff]
      %v1102 = vld [vmem:[%s887 + $0xaa] sm:$0xff]
      %v1103 = vld [vmem:[%s887 + $0xb2] sm:$0xff]
      %v1104 = vld [vmem:[%s887 + $0xc2] sm:$0xff]
      %v1105 = vld [vmem:[%s887 + $0xca] sm:$0xff]
      %v1106 = vld [vmem:[%s887 + $0xda] sm:$0xff]
      %v1107 = vld [vmem:[%s887 + $0xe2] sm:$0xff]
      %v1108 = vld [vmem:[%s887 + $0xf2] sm:$0xff]
      %v1109 = vld [vmem:[%s887 + $0xfa] sm:$0xff]
      %v1110 = vld [vmem:[%s887 + $0x10a] sm:$0xff]
      %v1111 = vld [vmem:[%s887 + $0x112] sm:$0xff]
      %v1112 = vld [vmem:[%s887 + $0x122] sm:$0xff]
      %v1113 = vld [vmem:[%s887 + $0x12a] sm:$0xff]
      %v1114 = vld [vmem:[%s887 + $0x13a] sm:$0xff]
      %v1115 = vld [vmem:[%s887 + $0x142] sm:$0xff]
      %v1116 = vld [vmem:[%s887 + $0x152] sm:$0xff]
      %v1117 = vld [vmem:[%s887 + $0x15a] sm:$0xff]
      %v1118 = vld [vmem:[%s887 + $0x16a] sm:$0xff]
      %v1119 = vld [vmem:[%s887 + $0x172] sm:$0xff]
      %v1120 = vlaneseq
      %v1121 = vshrl.u32 %v1120, 7
      %v1122 = vsub.s32 0, %v1121
      %v1123 = vrot.slane %v279, %v1122
      %v1124 = vmul.f32 %v1088, %v1123
      %v1125 = vmul.f32 %v1089, %v1123
      %v1126 = vmul.f32 %v1090, %v1123
      %v1127 = vmul.f32 %v1091, %v1123
      %v1128 = vmul.f32 %v1092, %v1123
      %v1129 = vmul.f32 %v1093, %v1123
      %v1130 = vmul.f32 %v1094, %v1123
      %v1131 = vmul.f32 %v1095, %v1123
      %v1132 = vmul.f32 %v1096, %v1123
      %v1133 = vmul.f32 %v1097, %v1123
      %v1134 = vmul.f32 %v1098, %v1123
      %v1135 = vmul.f32 %v1099, %v1123
      %v1136 = vmul.f32 %v1100, %v1123
      %v1137 = vmul.f32 %v1101, %v1123
      %v1138 = vmul.f32 %v1102, %v1123
      %v1139 = vmul.f32 %v1103, %v1123
      %v1140 = vmul.f32 %v1104, %v1123
      %v1141 = vmul.f32 %v1105, %v1123
      %v1142 = vmul.f32 %v1106, %v1123
      %v1143 = vmul.f32 %v1107, %v1123
      %v1144 = vmul.f32 %v1108, %v1123
      %v1145 = vmul.f32 %v1109, %v1123
      %v1146 = vmul.f32 %v1110, %v1123
      %v1147 = vmul.f32 %v1111, %v1123
      %v1148 = vmul.f32 %v1112, %v1123
      %v1149 = vmul.f32 %v1113, %v1123
      %v1150 = vmul.f32 %v1114, %v1123
      %v1151 = vmul.f32 %v1115, %v1123
      %v1152 = vmul.f32 %v1116, %v1123
      %v1153 = vmul.f32 %v1117, %v1123
      %v1154 = vmul.f32 %v1118, %v1123
      %v1155 = vmul.f32 %v1119, %v1123
      %v1156 = vadd.f32 %v1056, %v1124
      %v1157 = vadd.f32 %v1057, %v1125
      %v1158 = vadd.f32 %v1058, %v1126
      %v1159 = vadd.f32 %v1059, %v1127
      %v1160 = vadd.f32 %v1060, %v1128
      %v1161 = vadd.f32 %v1061, %v1129
      %v1162 = vadd.f32 %v1062, %v1130
      %v1163 = vadd.f32 %v1063, %v1131
      %v1164 = vadd.f32 %v1064, %v1132
      %v1165 = vadd.f32 %v1065, %v1133
      %v1166 = vadd.f32 %v1066, %v1134
      %v1167 = vadd.f32 %v1067, %v1135
      %v1168 = vadd.f32 %v1068, %v1136
      %v1169 = vadd.f32 %v1069, %v1137
      %v1170 = vadd.f32 %v1070, %v1138
      %v1171 = vadd.f32 %v1071, %v1139
      %v1172 = vadd.f32 %v1072, %v1140
      %v1173 = vadd.f32 %v1073, %v1141
      %v1174 = vadd.f32 %v1074, %v1142
      %v1175 = vadd.f32 %v1075, %v1143
      %v1176 = vadd.f32 %v1076, %v1144
      %v1177 = vadd.f32 %v1077, %v1145
      %v1178 = vadd.f32 %v1078, %v1146
      %v1179 = vadd.f32 %v1079, %v1147
      %v1180 = vadd.f32 %v1080, %v1148
      %v1181 = vadd.f32 %v1081, %v1149
      %v1182 = vadd.f32 %v1082, %v1150
      %v1183 = vadd.f32 %v1083, %v1151
      %v1184 = vadd.f32 %v1084, %v1152
      %v1185 = vadd.f32 %v1085, %v1153
      %v1186 = vadd.f32 %v1086, %v1154
      %v1187 = vadd.f32 %v1087, %v1155
      %1188 = vst.msk [vmem:[%s170] sm:$0xff] %vm171, %v1156
      %1189 = vst.msk [vmem:[%s170 + $0x8] sm:$0xff] %vm171, %v1157
      %1190 = vst.msk [vmem:[%s170 + $0x10] sm:$0xff] %vm171, %v1158
      %1191 = vst.msk [vmem:[%s170 + $0x18] sm:$0xff] %vm171, %v1159
      %1192 = vst.msk [vmem:[%s170 + $0x20] sm:$0xff] %vm171, %v1160
      %1193 = vst.msk [vmem:[%s170 + $0x28] sm:$0xff] %vm171, %v1161
      %1194 = vst.msk [vmem:[%s170 + $0x30] sm:$0xff] %vm171, %v1162
      %1195 = vst.msk [vmem:[%s170 + $0x38] sm:$0xff] %vm171, %v1163
      %1196 = vst.msk [vmem:[%s170 + $0x40] sm:$0xff] %vm171, %v1164
      %1197 = vst.msk [vmem:[%s170 + $0x48] sm:$0xff] %vm171, %v1165
      %1198 = vst.msk [vmem:[%s170 + $0x50] sm:$0xff] %vm171, %v1166
      %1199 = vst.msk [vmem:[%s170 + $0x58] sm:$0xff] %vm171, %v1167
      %1200 = vst.msk [vmem:[%s170 + $0x60] sm:$0xff] %vm171, %v1168
      %1201 = vst.msk [vmem:[%s170 + $0x68] sm:$0xff] %vm171, %v1169
      %1202 = vst.msk [vmem:[%s170 + $0x70] sm:$0xff] %vm171, %v1170
      %1203 = vst.msk [vmem:[%s170 + $0x78] sm:$0xff] %vm171, %v1171
      %1204 = vst.msk [vmem:[%s170 + $0x80] sm:$0xff] %vm171, %v1172
      %1205 = vst.msk [vmem:[%s170 + $0x88] sm:$0xff] %vm171, %v1173
      %1206 = vst.msk [vmem:[%s170 + $0x90] sm:$0xff] %vm171, %v1174
      %1207 = vst.msk [vmem:[%s170 + $0x98] sm:$0xff] %vm171, %v1175
      %1208 = vst.msk [vmem:[%s170 + $0xa0] sm:$0xff] %vm171, %v1176
      %1209 = vst.msk [vmem:[%s170 + $0xa8] sm:$0xff] %vm171, %v1177
      %1210 = vst.msk [vmem:[%s170 + $0xb0] sm:$0xff] %vm171, %v1178
      %1211 = vst.msk [vmem:[%s170 + $0xb8] sm:$0xff] %vm171, %v1179
      %1212 = vst.msk [vmem:[%s170 + $0xc0] sm:$0xff] %vm171, %v1180
      %1213 = vst.msk [vmem:[%s170 + $0xc8] sm:$0xff] %vm171, %v1181
      %1214 = vst.msk [vmem:[%s170 + $0xd0] sm:$0xff] %vm171, %v1182
      %1215 = vst.msk [vmem:[%s170 + $0xd8] sm:$0xff] %vm171, %v1183
      %1216 = vst.msk [vmem:[%s170 + $0xe0] sm:$0xff] %vm171, %v1184
      %1217 = vst.msk [vmem:[%s170 + $0xe8] sm:$0xff] %vm171, %v1185
      %1218 = vst.msk [vmem:[%s170 + $0xf0] sm:$0xff] %vm171, %v1186
      %1219 = vst.msk [vmem:[%s170 + $0xf8] sm:$0xff] %vm171, %v1187
      %p1220 = scmp.lt.s32.totalorder %s14, 1
      %s1221 = scalar_select %p1220, %s14, 1
      %s1222 = smul.addr %s1221, 32
      %s1223 = smul.addr %s1222, 8
      %s1224 = scalar_lea.vmem %s3, %s1223
      // Predicated region
      $region33: #{next_attention_forward.6} parent=31 // pred_check
        %p1225 = pneg %p100
      $region34: #{next_attention_forward.6} parent=31 // pred_check_branch
        %1227 = sbr.rel (%p1225) target = $region36
      $region35: #{next_attention_forward.6} parent=31 // pred_region
        _
      $region36: #{next_attention_forward.6} parent=31 // pred_fallthru
        _
    $region32: #{next_attention_forward.6} parent=5 // pred_fallthru
      _
    %p1228 = scmp.le.s32.totalorder 2, %s9
    // Predicated region
    $region37: #{next_attention_forward.6} parent=5 // pred_check
      %p1229 = pneg %p1228
    $region38: #{next_attention_forward.6} parent=5 // pred_check_branch
      %1231 = sbr.rel (%p1229) target = $region40
    $region39: #{next_attention_forward.6} parent=5 // pred_region
      %s1232 = ssub.s32 %s9, 2
      // Predicated region
      $region41: #{next_attention_forward.6} parent=39 // pred_check
        %p1233 = pneg %p106
      $region42: #{next_attention_forward.6} parent=39 // pred_check_branch
        %1235 = sbr.rel (%p1233) target = $region44
      $region43: #{next_attention_forward.6} parent=39 // pred_region
        %p1236 = scmp.lt.s32.totalorder %s15, 1
        %s1237 = scalar_select %p1236, %s15, 1
        %s1238 = smul.addr %s1237, 32
        %s1239 = smul.addr %s1238, 8
        %s1240 = scalar_lea.vmem %s3, %s1239
      $region44: #{next_attention_forward.6} parent=39 // pred_fallthru
        _
    $region40: #{next_attention_forward.6} parent=5 // pred_fallthru
      _
  $region6: #{next_attention_forward.6} parent=0 // loop_footer
    %s13 = sadd.s32 1, %s9
  $region7: #{next_attention_forward.6} parent=0 // loop_footer_branch
    %8 = sbr.rel target = $region3
  $region8: #{next_attention_forward.6} parent=0 // loop_exit
    _

// kernel: next_attention_forward.9
$region0: #{next_attention_forward.9}
  #allocation0 [shape = 'u32[]', space=smem, size = 0x4, offset = 0x4, fixed_abs, tag = 'smem constant byte address 0x4 - core index']
  #allocation1 [shape = 'u32[144,128]{1,0:T(1,128)}', space=vmem, size = 0x12000, scoped, tag = 'internal scratch']
  %s0 = inlined_call_operand.vmem [shape: f32[512,8], index: 0, kind: input, shape index: {}]
  %s1 = inlined_call_operand.vmem [shape: f32[8,8], index: 1, kind: input, shape index: {}]
  %s2 = inlined_call_operand.vmem [shape: f32[1,8], index: 2, kind: input, shape index: {}]
  %s3 = inlined_call_operand.vmem [shape: f32[512,8], index: 3, kind: output, shape index: {}]
  %s4 = sld [smem:[#allocation0]]
  $region45: #{next_attention_forward.9} parent=0
    _
  %s6 = ssub.s32 1, %s4
  %s7 = scalar_select 0, %s6, %s4
  loop: start=0, step=1, limit=4
  $region2: #{next_attention_forward.9} parent=0 // loop_pre_header
    _
  $region3: #{next_attention_forward.9} parent=0 // loop_header
    %s9 = sphi 0, %s13
    %p10 = scmp.ge.s32.totalorder %s9, 4
    %s19 = sphi 0, %s21
    %s22 = sphi 0, %s19
    %s23 = sphi 0, %s22
    %s39 = sphi 0, %s23
    %s43 = sphi 0, %s43
    %s45 = sphi 0, %s43
    %s46 = sphi 0, %s45
    %s60 = sphi 0, %s46
    %s64 = sphi 0, %s64
    %s66 = sphi 0, %s64
    %s67 = sphi 0, %s66
    %s81 = sphi 0, %s67
    %s87 = sphi 0, %s89
    %s90 = sphi 0, %s87
    %s91 = sphi 0, %s90
    %s107 = sphi 0, %s91
  $region4: #{next_attention_forward.9} parent=0 // loop_header_branch
    %12 = sbr.rel (%p10) target = $region8
  $region5: #{next_attention_forward.9} parent=0 // loop_body
    %s14 = ssub.s32 %s9, 1
    %s15 = ssub.s32 %s9, 2
    %s16 = sadd.s32 %s9, 1
    %s17 = ssub.s32 %s9, %s16
    %p18 = scmp.eq.s32.totalorder %s17, 0
    %s20 = sadd.s32 %s19, 1
    %s21 = scalar_select %p18, %s19, %s20
    %p24 = pneg %p18
    %p25 = scmp.eq.s32.totalorder %s9, 1
    %p26 = por %p24, %p25
    %p27 = scmp.ne.s32.totalorder %s19, %s22
    %p28 = scmp.eq.s32.totalorder %s9, 0
    %p29 = por %p27, %p28
    %p30 = scmp.ne.s32.totalorder %s19, %s22
    %p31 = scmp.eq.s32.totalorder %s14, 1
    %p32 = por %p30, %p31
    %p33 = scmp.ne.s32.totalorder %s22, %s23
    %p34 = scmp.eq.s32.totalorder %s14, 0
    %p35 = por %p33, %p34
    %p36 = scmp.ne.s32.totalorder %s22, %s23
    %p37 = scmp.eq.s32.totalorder %s15, 1
    %p38 = por %p36, %p37
    %p40 = scmp.ne.s32.totalorder %s23, %s39
    %p41 = scmp.eq.s32.totalorder %s15, 0
    %p42 = por %p40, %p41
    %s44 = sadd.s32 %s43, 1
    %p47 = scmp.eq.s32.totalorder %s9, 1
    %p48 = scmp.ne.s32.totalorder %s43, %s45
    %p49 = scmp.eq.s32.totalorder %s9, 0
    %p50 = por %p48, %p49
    %p51 = scmp.ne.s32.totalorder %s43, %s45
    %p52 = scmp.eq.s32.totalorder %s14, 1
    %p53 = por %p51, %p52
    %p54 = scmp.ne.s32.totalorder %s45, %s46
    %p55 = scmp.eq.s32.totalorder %s14, 0
    %p56 = por %p54, %p55
    %p57 = scmp.ne.s32.totalorder %s45, %s46
    %p58 = scmp.eq.s32.totalorder %s15, 1
    %p59 = por %p57, %p58
    %p61 = scmp.ne.s32.totalorder %s46, %s60
    %p62 = scmp.eq.s32.totalorder %s15, 0
    %p63 = por %p61, %p62
    %s65 = sadd.s32 %s64, 1
    %p68 = scmp.eq.s32.totalorder %s9, 1
    %p69 = scmp.ne.s32.totalorder %s64, %s66
    %p70 = scmp.eq.s32.totalorder %s9, 0
    %p71 = por %p69, %p70
    %p72 = scmp.ne.s32.totalorder %s64, %s66
    %p73 = scmp.eq.s32.totalorder %s14, 1
    %p74 = por %p72, %p73
    %p75 = scmp.ne.s32.totalorder %s66, %s67
    %p76 = scmp.eq.s32.totalorder %s14, 0
    %p77 = por %p75, %p76
    %p78 = scmp.ne.s32.totalorder %s66, %s67
    %p79 = scmp.eq.s32.totalorder %s15, 1
    %p80 = por %p78, %p79
    %p82 = scmp.ne.s32.totalorder %s67, %s81
    %p83 = scmp.eq.s32.totalorder %s15, 0
    %p84 = por %p82, %p83
    %s85 = ssub.s32 %s9, %s16
    %p86 = scmp.eq.s32.totalorder %s85, 0
    %s88 = sadd.s32 %s87, 1
    %s89 = scalar_select %p86, %s87, %s88
    %p92 = pneg %p86
    %p93 = scmp.eq.s32.totalorder %s9, 1
    %p94 = por %p92, %p93
    %p95 = scmp.ne.s32.totalorder %s87, %s90
    %p96 = scmp.eq.s32.totalorder %s9, 0
    %p97 = por %p95, %p96
    %p98 = scmp.ne.s32.totalorder %s87, %s90
    %p99 = scmp.eq.s32.totalorder %s14, 1
    %p100 = por %p98, %p99
    %p101 = scmp.ne.s32.totalorder %s90, %s91
    %p102 = scmp.eq.s32.totalorder %s14, 0
    %p103 = por %p101, %p102
    %p104 = scmp.ne.s32.totalorder %s90, %s91
    %p105 = scmp.eq.s32.totalorder %s15, 1
    %p106 = por %p104, %p105
    %p108 = scmp.ne.s32.totalorder %s91, %s107
    %p109 = scmp.eq.s32.totalorder %s15, 0
    %p110 = por %p108, %p109
    %p111 = scmp.le.s32.totalorder 1, %s9
    %p112 = scmp.lt.s32.totalorder %s9, 3
    %p113 = pnand %p111, %p112
    %p114 = pneg %p113
    // Predicated region
    $region9: #{next_attention_forward.9} parent=5 // pred_check
      _
    $region10: #{next_attention_forward.9} parent=5 // pred_check_branch
      %116 = sbr.rel (%p113) target = $region12
    $region11: #{next_attention_forward.9} parent=5 // pred_region
      %s117 = ssub.s32 %s9, 1
      // Predicated region
      $region13: #{next_attention_forward.9} parent=11 // pred_check
        %p118 = pneg %p56
      $region14: #{next_attention_forward.9} parent=11 // pred_check_branch
        %120 = sbr.rel (%p118) target = $region16
      $region15: #{next_attention_forward.9} parent=11 // pred_region
        _
      $region16: #{next_attention_forward.9} parent=11 // pred_fallthru
        _
      // Predicated region
      $region17: #{next_attention_forward.9} parent=11 // pred_check
        %p121 = pneg %p77
      $region18: #{next_attention_forward.9} parent=11 // pred_check_branch
        %123 = sbr.rel (%p121) target = $region20
      $region19: #{next_attention_forward.9} parent=11 // pred_region
        _
      $region20: #{next_attention_forward.9} parent=11 // pred_fallthru
        _
    $region12: #{next_attention_forward.9} parent=5 // pred_fallthru
      _
    %p124 = scmp.lt.s32.totalorder %s9, 2
    // Predicated region
    $region21: #{next_attention_forward.9} parent=5 // pred_check
      %p125 = pneg %p124
    $region22: #{next_attention_forward.9} parent=5 // pred_check_branch
      %127 = sbr.rel (%p125) target = $region24
    $region23: #{next_attention_forward.9} parent=5 // pred_region
      // Predicated region
      $region25: #{next_attention_forward.9} parent=23 // pred_check
        %p128 = pneg %p29
      $region26: #{next_attention_forward.9} parent=23 // pred_check_branch
        %130 = sbr.rel (%p128) target = $region28
      $region27: #{next_attention_forward.9} parent=23 // pred_region
        %s131 = smul.u32 32, %s9
        %p132 = scmp.lt.s32.totalorder %s131, 63
        %s133 = scalar_select %p132, %s131, 63
        %s134 = smul.addr %s133, 8
        %s135 = scalar_lea.vmem %s0, %s134
        %s136 = smul.u32 32, %s9
      $region28: #{next_attention_forward.9} parent=23 // pred_fallthru
        _
    $region24: #{next_attention_forward.9} parent=5 // pred_fallthru
      _
    %p137 = scmp.le.s32.totalorder 1, %s9
    %p138 = scmp.lt.s32.totalorder %s9, 3
    %p139 = pnand %p137, %p138
    %p140 = pneg %p139
    // Predicated region
    $region29: #{next_attention_forward.9} parent=5 // pred_check
      _
    $region30: #{next_attention_forward.9} parent=5 // pred_check_branch
      %142 = sbr.rel (%p139) target = $region32
    $region31: #{next_attention_forward.9} parent=5 // pred_region
      %s143 = ssub.s32 %s9, 1
      %s144 = smul.u32 32, %s14
      %p145 = scmp.lt.s32.totalorder %s144, 63
      %s146 = scalar_select %p145, %s144, 63
      %s147 = smul.addr %s146, 8
      %s148 = scalar_lea.vmem %s0, %s147
      %p149 = pneg %p35
      %p150 = pneg %p32
      %p151 = pneg %p56
      %p152 = pneg %p53
      %p153 = pneg %p77
      %p154 = pneg %p74
      %p155 = pneg %p103
      %p156 = pneg %p100
      %s157 = smul.u32 32, %s14
      %p158 = scmp.lt.s32.totalorder %s157, 63
      %s159 = scalar_select %p158, %s157, 63
      %s160 = smul.addr %s159, 8
      %s161 = scalar_lea.vmem %s3, %s160
      %s162 = smul.u32 32, %s14
      %p163 = scmp.lt.s32.totalorder %s162, 63
      %s164 = scalar_select %p163, %s162, 63
      %s165 = smul.addr %s164, 8
      %s166 = scalar_lea.vmem %s0, %s165
      %s167 = smul.u32 32, %s14
      %s168 = smul.u32 32, %s14
      %p169 = scmp.lt.s32.totalorder %s168, 63
      %s170 = scalar_select %p169, %s168, 63
      %s171 = smul.addr %s170, 8
      %s172 = scalar_lea.vmem %s3, %s171
      %s173 = smul.u32 32, %s14
      %v174 = vld [vmem:[%s166] sm:$0xff]
      %v175 = vld [vmem:[%s166 + $0x8] sm:$0xff]
      %v176 = vld [vmem:[%s166 + $0x10] sm:$0xff]
      %v177 = vld [vmem:[%s166 + $0x18] sm:$0xff]
      %v178 = vld [vmem:[%s166 + $0x20] sm:$0xff]
      %v179 = vld [vmem:[%s166 + $0x28] sm:$0xff]
      %v180 = vld [vmem:[%s166 + $0x30] sm:$0xff]
      %v181 = vld [vmem:[%s166 + $0x38] sm:$0xff]
      %v182 = vld [vmem:[%s166 + $0x40] sm:$0xff]
      %v183 = vld [vmem:[%s166 + $0x48] sm:$0xff]
      %v184 = vld [vmem:[%s166 + $0x50] sm:$0xff]
      %v185 = vld [vmem:[%s166 + $0x58] sm:$0xff]
      %v186 = vld [vmem:[%s166 + $0x60] sm:$0xff]
      %v187 = vld [vmem:[%s166 + $0x68] sm:$0xff]
      %v188 = vld [vmem:[%s166 + $0x70] sm:$0xff]
      %v189 = vld [vmem:[%s166 + $0x78] sm:$0xff]
      %v190 = vld [vmem:[%s166 + $0x80] sm:$0xff]
      %v191 = vld [vmem:[%s166 + $0x88] sm:$0xff]
      %v192 = vld [vmem:[%s166 + $0x90] sm:$0xff]
      %v193 = vld [vmem:[%s166 + $0x98] sm:$0xff]
      %v194 = vld [vmem:[%s166 + $0xa0] sm:$0xff]
      %v195 = vld [vmem:[%s166 + $0xa8] sm:$0xff]
      %v196 = vld [vmem:[%s166 + $0xb0] sm:$0xff]
      %v197 = vld [vmem:[%s166 + $0xb8] sm:$0xff]
      %v198 = vld [vmem:[%s166 + $0xc0] sm:$0xff]
      %v199 = vld [vmem:[%s166 + $0xc8] sm:$0xff]
      %v200 = vld [vmem:[%s166 + $0xd0] sm:$0xff]
      %v201 = vld [vmem:[%s166 + $0xd8] sm:$0xff]
      %v202 = vld [vmem:[%s166 + $0xe0] sm:$0xff]
      %v203 = vld [vmem:[%s166 + $0xe8] sm:$0xff]
      %v204 = vld [vmem:[%s166 + $0xf0] sm:$0xff]
      %v205 = vld [vmem:[%s166 + $0xf8] sm:$0xff]
      %v206 = vld [vmem:[%s1] sm:$0xff]
      %v207 = vld [vmem:[%s2] sm:$0x1]
      %v209 = vlaneseq
      %v210 = vshrl.u32 %v209, 7
      %v211 = vsub.s32 0, %v210
      %v212 = vrot.slane %v207, %v211
      %vm214 = vcmask 64512
      %v216 = vsel %vm214, %v174, 0
      %v219 = vsel %vm214, %v175, 0
      %v222 = vsel %vm214, %v176, 0
      %v225 = vsel %vm214, %v177, 0
      %v228 = vsel %vm214, %v178, 0
      %v231 = vsel %vm214, %v179, 0
      %v234 = vsel %vm214, %v180, 0
      %v237 = vsel %vm214, %v181, 0
      %v240 = vsel %vm214, %v182, 0
      %v243 = vsel %vm214, %v183, 0
      %v246 = vsel %vm214, %v184, 0
      %v249 = vsel %vm214, %v185, 0
      %v252 = vsel %vm214, %v186, 0
      %v255 = vsel %vm214, %v187, 0
      %v258 = vsel %vm214, %v188, 0
      %v261 = vsel %vm214, %v189, 0
      %v264 = vsel %vm214, %v190, 0
      %v267 = vsel %vm214, %v191, 0
      %v270 = vsel %vm214, %v192, 0
      %v273 = vsel %vm214, %v193, 0
      %v276 = vsel %vm214, %v194, 0
      %v279 = vsel %vm214, %v195, 0
      %v282 = vsel %vm214, %v196, 0
      %v285 = vsel %vm214, %v197, 0
      %v288 = vsel %vm214, %v198, 0
      %v291 = vsel %vm214, %v199, 0
      %v294 = vsel %vm214, %v200, 0
      %v297 = vsel %vm214, %v201, 0
      %v300 = vsel %vm214, %v202, 0
      %v303 = vsel %vm214, %v203, 0
      %v306 = vsel %vm214, %v204, 0
      %v309 = vsel %vm214, %v205, 0
      %311 = vmatprep.subr.mxu0 0.0
      %312 = vmatpush1.msra.mxu0 0.0
      %313 = vmatprep.subr.mxu0 0.0
      %314 = vmatpush1.msra.mxu0 0.0
      %315 = vmatprep.subr.mxu0 0.0
      %316 = vmatpush1.msra.mxu0 0.0
      %317 = vmatprep.subr.mxu0 0.0
      %318 = vmatpush1.msra.mxu0 0.0
      %319 = vmatprep.subr.mxu0 0.0
      %320 = vmatpush1.msra.mxu0 0.0
      %321 = vmatprep.subr.mxu0 0.0
      %322 = vmatpush1.msra.mxu0 0.0
      %323 = vmatprep.subr.mxu0 0.0
      %324 = vmatpush1.msra.mxu0 0.0
      %325 = vmatprep.subr.mxu0 0.0
      %326 = vmatpush1.msra.mxu0 0.0
      %327 = vmatprep.subr.mxu0 0.0
      %328 = vmatpush1.msra.mxu0 0.0
      %329 = vmatprep.subr.mxu0 0.0
      %330 = vmatpush1.msra.mxu0 0.0
      %331 = vmatprep.subr.mxu0 0.0
      %332 = vmatpush1.msra.mxu0 0.0
      %333 = vmatprep.subr.mxu0 0.0
      %334 = vmatpush1.msra.mxu0 0.0
      %335 = vmatprep.subr.mxu0 0.0
      %336 = vmatpush1.msra.mxu0 0.0
      %337 = vmatprep.subr.mxu0 0.0
      %338 = vmatpush1.msra.mxu0 0.0
      %339 = vmatprep.subr.mxu0 0.0
      %340 = vmatpush1.msra.mxu0 0.0
      %341 = vmatprep.subr.mxu0 0.0
      %342 = vmatpush1.msra.mxu0 %v206
      %343 = vmatprep.subr.mxu0 0.0
      %344 = vmatpush2.msra.mxu0 0.0
      %345 = vmatprep.subr.mxu0 0.0
      %346 = vmatpush2.msra.mxu0 0.0
      %347 = vmatprep.subr.mxu0 0.0
      %348 = vmatpush2.msra.mxu0 0.0
      %349 = vmatprep.subr.mxu0 0.0
      %350 = vmatpush2.msra.mxu0 0.0
      %351 = vmatprep.subr.mxu0 0.0
      %352 = vmatpush2.msra.mxu0 0.0
      %353 = vmatprep.subr.mxu0 0.0
      %354 = vmatpush2.msra.mxu0 0.0
      %355 = vmatprep.subr.mxu0 0.0
      %356 = vmatpush2.msra.mxu0 0.0
      %357 = vmatprep.subr.mxu0 0.0
      %358 = vmatpush2.msra.mxu0 0.0
      %359 = vmatprep.subr.mxu0 0.0
      %360 = vmatpush2.msra.mxu0 0.0
      %361 = vmatprep.subr.mxu0 0.0
      %362 = vmatpush2.msra.mxu0 0.0
      %363 = vmatprep.subr.mxu0 0.0
      %364 = vmatpush2.msra.mxu0 0.0
      %365 = vmatprep.subr.mxu0 0.0
      %366 = vmatpush2.msra.mxu0 0.0
      %367 = vmatprep.subr.mxu0 0.0
      %368 = vmatpush2.msra.mxu0 0.0
      %369 = vmatprep.subr.mxu0 0.0
      %370 = vmatpush2.msra.mxu0 0.0
      %371 = vmatprep.subr.mxu0 0.0
      %372 = vmatpush2.msra.mxu0 0.0
      %373 = vmatprep.subr.mxu0 0.0
      %374 = vmatpush2.msra.mxu0 0.0
      %375 = vmatprep.mubr.f32.mxu0 0.0
      %376 = vmatmul.mubr.f32.gmra.mxu0 %v216
      %v377 = vpop.f32.mrf.mxu0
      %v378 = vadd.f32 %v212, %v377
      %v379 = vpop.f32.mrf.mxu0
      %380 = vmatprep.mubr.f32.mxu0 0.0
      %381 = vmatmul.mubr.f32.gmra.mxu0 %v219
      %v382 = vpop.f32.mrf.mxu0
      %v383 = vadd.f32 %v212, %v382
      %v384 = vpop.f32.mrf.mxu0
      %385 = vmatprep.mubr.f32.mxu0 0.0
      %386 = vmatmul.mubr.f32.gmra.mxu0 %v222
      %v387 = vpop.f32.mrf.mxu0
      %v388 = vadd.f32 %v212, %v387
      %v389 = vpop.f32.mrf.mxu0
      %390 = vmatprep.mubr.f32.mxu0 0.0
      %391 = vmatmul.mubr.f32.gmra.mxu0 %v225
      %v392 = vpop.f32.mrf.mxu0
      %v393 = vadd.f32 %v212, %v392
      %v394 = vpop.f32.mrf.mxu0
      %395 = vmatprep.mubr.f32.mxu0 0.0
      %396 = vmatmul.mubr.f32.gmra.mxu0 %v228
      %v397 = vpop.f32.mrf.mxu0
      %v398 = vadd.f32 %v212, %v397
      %v399 = vpop.f32.mrf.mxu0
      %400 = vmatprep.mubr.f32.mxu0 0.0
      %401 = vmatmul.mubr.f32.gmra.mxu0 %v231
      %v402 = vpop.f32.mrf.mxu0
      %v403 = vadd.f32 %v212, %v402
      %v404 = vpop.f32.mrf.mxu0
      %405 = vmatprep.mubr.f32.mxu0 0.0
      %406 = vmatmul.mubr.f32.gmra.mxu0 %v234
      %v407 = vpop.f32.mrf.mxu0
      %v408 = vadd.f32 %v212, %v407
      %v409 = vpop.f32.mrf.mxu0
      %410 = vmatprep.mubr.f32.mxu0 0.0
      %411 = vmatmul.mubr.f32.gmra.mxu0 %v237
      %v412 = vpop.f32.mrf.mxu0
      %v413 = vadd.f32 %v212, %v412
      %v414 = vpop.f32.mrf.mxu0
      %415 = vmatprep.mubr.f32.mxu0 0.0
      %416 = vmatmul.mubr.f32.gmra.mxu0 %v240
      %v417 = vpop.f32.mrf.mxu0
      %v418 = vadd.f32 %v212, %v417
      %v419 = vpop.f32.mrf.mxu0
      %420 = vmatprep.mubr.f32.mxu0 0.0
      %421 = vmatmul.mubr.f32.gmra.mxu0 %v243
      %v422 = vpop.f32.mrf.mxu0
      %v423 = vadd.f32 %v212, %v422
      %v424 = vpop.f32.mrf.mxu0
      %425 = vmatprep.mubr.f32.mxu0 0.0
      %426 = vmatmul.mubr.f32.gmra.mxu0 %v246
      %v427 = vpop.f32.mrf.mxu0
      %v428 = vadd.f32 %v212, %v427
      %v429 = vpop.f32.mrf.mxu0
      %430 = vmatprep.mubr.f32.mxu0 0.0
      %431 = vmatmul.mubr.f32.gmra.mxu0 %v249
      %v432 = vpop.f32.mrf.mxu0
      %v433 = vadd.f32 %v212, %v432
      %v434 = vpop.f32.mrf.mxu0
      %435 = vmatprep.mubr.f32.mxu0 0.0
      %436 = vmatmul.mubr.f32.gmra.mxu0 %v252
      %v437 = vpop.f32.mrf.mxu0
      %v438 = vadd.f32 %v212, %v437
      %v439 = vpop.f32.mrf.mxu0
      %440 = vmatprep.mubr.f32.mxu0 0.0
      %441 = vmatmul.mubr.f32.gmra.mxu0 %v255
      %v442 = vpop.f32.mrf.mxu0
      %v443 = vadd.f32 %v212, %v442
      %v444 = vpop.f32.mrf.mxu0
      %445 = vmatprep.mubr.f32.mxu0 0.0
      %446 = vmatmul.mubr.f32.gmra.mxu0 %v258
      %v447 = vpop.f32.mrf.mxu0
      %v448 = vadd.f32 %v212, %v447
      %v449 = vpop.f32.mrf.mxu0
      %450 = vmatprep.mubr.f32.mxu0 0.0
      %451 = vmatmul.mubr.f32.gmra.mxu0 %v261
      %v452 = vpop.f32.mrf.mxu0
      %v453 = vadd.f32 %v212, %v452
      %v454 = vpop.f32.mrf.mxu0
      %455 = vmatprep.mubr.f32.mxu0 0.0
      %456 = vmatmul.mubr.f32.gmra.mxu0 %v264
      %v457 = vpop.f32.mrf.mxu0
      %v458 = vadd.f32 %v212, %v457
      %v459 = vpop.f32.mrf.mxu0
      %460 = vmatprep.mubr.f32.mxu0 0.0
      %461 = vmatmul.mubr.f32.gmra.mxu0 %v267
      %v462 = vpop.f32.mrf.mxu0
      %v463 = vadd.f32 %v212, %v462
      %v464 = vpop.f32.mrf.mxu0
      %465 = vmatprep.mubr.f32.mxu0 0.0
      %466 = vmatmul.mubr.f32.gmra.mxu0 %v270
      %v467 = vpop.f32.mrf.mxu0
      %v468 = vadd.f32 %v212, %v467
      %v469 = vpop.f32.mrf.mxu0
      %470 = vmatprep.mubr.f32.mxu0 0.0
      %471 = vmatmul.mubr.f32.gmra.mxu0 %v273
      %v472 = vpop.f32.mrf.mxu0
      %v473 = vadd.f32 %v212, %v472
      %v474 = vpop.f32.mrf.mxu0
      %475 = vmatprep.mubr.f32.mxu0 0.0
      %476 = vmatmul.mubr.f32.gmra.mxu0 %v276
      %v477 = vpop.f32.mrf.mxu0
      %v478 = vadd.f32 %v212, %v477
      %v479 = vpop.f32.mrf.mxu0
      %480 = vmatprep.mubr.f32.mxu0 0.0
      %481 = vmatmul.mubr.f32.gmra.mxu0 %v279
      %v482 = vpop.f32.mrf.mxu0
      %v483 = vadd.f32 %v212, %v482
      %v484 = vpop.f32.mrf.mxu0
      %485 = vmatprep.mubr.f32.mxu0 0.0
      %486 = vmatmul.mubr.f32.gmra.mxu0 %v282
      %v487 = vpop.f32.mrf.mxu0
      %v488 = vadd.f32 %v212, %v487
      %v489 = vpop.f32.mrf.mxu0
      %490 = vmatprep.mubr.f32.mxu0 0.0
      %491 = vmatmul.mubr.f32.gmra.mxu0 %v285
      %v492 = vpop.f32.mrf.mxu0
      %v493 = vadd.f32 %v212, %v492
      %v494 = vpop.f32.mrf.mxu0
      %495 = vmatprep.mubr.f32.mxu0 0.0
      %496 = vmatmul.mubr.f32.gmra.mxu0 %v288
      %v497 = vpop.f32.mrf.mxu0
      %v498 = vadd.f32 %v212, %v497
      %v499 = vpop.f32.mrf.mxu0
      %500 = vmatprep.mubr.f32.mxu0 0.0
      %501 = vmatmul.mubr.f32.gmra.mxu0 %v291
      %v502 = vpop.f32.mrf.mxu0
      %v503 = vadd.f32 %v212, %v502
      %v504 = vpop.f32.mrf.mxu0
      %505 = vmatprep.mubr.f32.mxu0 0.0
      %506 = vmatmul.mubr.f32.gmra.mxu0 %v294
      %v507 = vpop.f32.mrf.mxu0
      %v508 = vadd.f32 %v212, %v507
      %v509 = vpop.f32.mrf.mxu0
      %510 = vmatprep.mubr.f32.mxu0 0.0
      %511 = vmatmul.mubr.f32.gmra.mxu0 %v297
      %v512 = vpop.f32.mrf.mxu0
      %v513 = vadd.f32 %v212, %v512
      %v514 = vpop.f32.mrf.mxu0
      %515 = vmatprep.mubr.f32.mxu0 0.0
      %516 = vmatmul.mubr.f32.gmra.mxu0 %v300
      %v517 = vpop.f32.mrf.mxu0
      %v518 = vadd.f32 %v212, %v517
      %v519 = vpop.f32.mrf.mxu0
      %520 = vmatprep.mubr.f32.mxu0 0.0
      %521 = vmatmul.mubr.f32.gmra.mxu0 %v303
      %v522 = vpop.f32.mrf.mxu0
      %v523 = vadd.f32 %v212, %v522
      %v524 = vpop.f32.mrf.mxu0
      %525 = vmatprep.mubr.f32.mxu0 0.0
      %526 = vmatmul.mubr.f32.gmra.mxu0 %v306
      %v527 = vpop.f32.mrf.mxu0
      %v528 = vadd.f32 %v212, %v527
      %v529 = vpop.f32.mrf.mxu0
      %530 = vmatprep.mubr.f32.mxu0 0.0
      %531 = vmatmul.mubr.f32.gmra.mxu0 %v309
      %v532 = vpop.f32.mrf.mxu0
      %v533 = vadd.f32 %v212, %v532
      %v534 = vpop.f32.mrf.mxu0
      %535 = vdwg.mxu0
      %536 = vst.msk [vmem:[%s172] sm:$0xff] %vm214, %v378
      %537 = vst.msk [vmem:[%s172 + $0x8] sm:$0xff] %vm214, %v383
      %538 = vst.msk [vmem:[%s172 + $0x10] sm:$0xff] %vm214, %v388
      %539 = vst.msk [vmem:[%s172 + $0x18] sm:$0xff] %vm214, %v393
      %540 = vst.msk [vmem:[%s172 + $0x20] sm:$0xff] %vm214, %v398
      %541 = vst.msk [vmem:[%s172 + $0x28] sm:$0xff] %vm214, %v403
      %542 = vst.msk [vmem:[%s172 + $0x30] sm:$0xff] %vm214, %v408
      %543 = vst.msk [vmem:[%s172 + $0x38] sm:$0xff] %vm214, %v413
      %544 = vst.msk [vmem:[%s172 + $0x40] sm:$0xff] %vm214, %v418
      %545 = vst.msk [vmem:[%s172 + $0x48] sm:$0xff] %vm214, %v423
      %546 = vst.msk [vmem:[%s172 + $0x50] sm:$0xff] %vm214, %v428
      %547 = vst.msk [vmem:[%s172 + $0x58] sm:$0xff] %vm214, %v433
      %548 = vst.msk [vmem:[%s172 + $0x60] sm:$0xff] %vm214, %v438
      %549 = vst.msk [vmem:[%s172 + $0x68] sm:$0xff] %vm214, %v443
      %550 = vst.msk [vmem:[%s172 + $0x70] sm:$0xff] %vm214, %v448
      %551 = vst.msk [vmem:[%s172 + $0x78] sm:$0xff] %vm214, %v453
      %552 = vst.msk [vmem:[%s172 + $0x80] sm:$0xff] %vm214, %v458
      %553 = vst.msk [vmem:[%s172 + $0x88] sm:$0xff] %vm214, %v463
      %554 = vst.msk [vmem:[%s172 + $0x90] sm:$0xff] %vm214, %v468
      %555 = vst.msk [vmem:[%s172 + $0x98] sm:$0xff] %vm214, %v473
      %556 = vst.msk [vmem:[%s172 + $0xa0] sm:$0xff] %vm214, %v478
      %557 = vst.msk [vmem:[%s172 + $0xa8] sm:$0xff] %vm214, %v483
      %558 = vst.msk [vmem:[%s172 + $0xb0] sm:$0xff] %vm214, %v488
      %559 = vst.msk [vmem:[%s172 + $0xb8] sm:$0xff] %vm214, %v493
      %560 = vst.msk [vmem:[%s172 + $0xc0] sm:$0xff] %vm214, %v498
      %561 = vst.msk [vmem:[%s172 + $0xc8] sm:$0xff] %vm214, %v503
      %562 = vst.msk [vmem:[%s172 + $0xd0] sm:$0xff] %vm214, %v508
      %563 = vst.msk [vmem:[%s172 + $0xd8] sm:$0xff] %vm214, %v513
      %564 = vst.msk [vmem:[%s172 + $0xe0] sm:$0xff] %vm214, %v518
      %565 = vst.msk [vmem:[%s172 + $0xe8] sm:$0xff] %vm214, %v523
      %566 = vst.msk [vmem:[%s172 + $0xf0] sm:$0xff] %vm214, %v528
      %567 = vst.msk [vmem:[%s172 + $0xf8] sm:$0xff] %vm214, %v533
      %s568 = smul.u32 32, %s14
      %p569 = scmp.lt.s32.totalorder %s568, 63
      %s570 = scalar_select %p569, %s568, 63
      %s571 = smul.addr %s570, 8
      %s572 = scalar_lea.vmem %s3, %s571
      // Predicated region
      $region33: #{next_attention_forward.9} parent=31 // pred_check
        %p573 = pneg %p100
      $region34: #{next_attention_forward.9} parent=31 // pred_check_branch
        %575 = sbr.rel (%p573) target = $region36
      $region35: #{next_attention_forward.9} parent=31 // pred_region
        %s576 = smul.u32 32, %s14
      $region36: #{next_attention_forward.9} parent=31 // pred_fallthru
        _
    $region32: #{next_attention_forward.9} parent=5 // pred_fallthru
      _
    %p577 = scmp.le.s32.totalorder 2, %s9
    // Predicated region
    $region37: #{next_attention_forward.9} parent=5 // pred_check
      %p578 = pneg %p577
    $region38: #{next_attention_forward.9} parent=5 // pred_check_branch
      %580 = sbr.rel (%p578) target = $region40
    $region39: #{next_attention_forward.9} parent=5 // pred_region
      %s581 = ssub.s32 %s9, 2
      // Predicated region
      $region41: #{next_attention_forward.9} parent=39 // pred_check
        %p582 = pneg %p106
      $region42: #{next_attention_forward.9} parent=39 // pred_check_branch
        %584 = sbr.rel (%p582) target = $region44
      $region43: #{next_attention_forward.9} parent=39 // pred_region
        %s585 = smul.u32 32, %s15
        %p586 = scmp.lt.s32.totalorder %s585, 63
        %s587 = scalar_select %p586, %s585, 63
        %s588 = smul.addr %s587, 8
        %s589 = scalar_lea.vmem %s3, %s588
      $region44: #{next_attention_forward.9} parent=39 // pred_fallthru
        _
    $region40: #{next_attention_forward.9} parent=5 // pred_fallthru
      _
  $region6: #{next_attention_forward.9} parent=0 // loop_footer
    %s13 = sadd.s32 1, %s9
  $region7: #{next_attention_forward.9} parent=0 // loop_footer_branch
    %8 = sbr.rel target = $region3
  $region8: #{next_attention_forward.9} parent=0 // loop_exit
    _

// kernel: next_attention_forward.8
$region0: #{next_attention_forward.8}
  #allocation0 [shape = 'u32[]', space=smem, size = 0x4, offset = 0x4, fixed_abs, tag = 'smem constant byte address 0x4 - core index']
  #allocation1 [shape = 'u32[144,128]{1,0:T(1,128)}', space=vmem, size = 0x12000, scoped, tag = 'internal scratch']
  #allocation2 [shape = 'f32[1]{0:T(128)S(6)}', space=smem, size = 0x200, scoped, tag = 'scoped memory for next_attention_forward.8']
  %s0 = inlined_call_operand.<no memory space> [shape: f32[1], index: 0, kind: input, shape index: {}]
  %s1 = inlined_call_operand.vmem [shape: f32[4,16,16,4], index: 1, kind: input, shape index: {}]
  %s2 = inlined_call_operand.vmem [shape: f32[4,16,16,4], index: 2, kind: input, shape index: {}]
  %s3 = inlined_call_operand.vmem [shape: f32[4,16,16,4], index: 3, kind: input, shape index: {}]
  %s4 = inlined_call_operand.vmem [shape: f32[4,16,16,4], index: 4, kind: output, shape index: {}]
  %s5 = sld [smem:[#allocation0]]
  $region49: #{next_attention_forward.8} parent=0
    _
  %s7 = ssub.s32 1, %s5
  %s8 = scalar_select 0, %s7, %s5
  %9 = sst [smem:[#allocation2]] %s0
  loop: start=0, step=1, limit=6
  $region2: #{next_attention_forward.8} parent=0 // loop_pre_header
    _
  $region3: #{next_attention_forward.8} parent=0 // loop_header
    %s11 = sphi 0, %s15
    %p12 = scmp.ge.s32.totalorder %s11, 6
    %s19 = sphi 0, %s19
    %s21 = sphi 0, %s19
    %s22 = sphi 0, %s21
    %s36 = sphi 0, %s22
    %s42 = sphi 0, %s44
    %s45 = sphi 0, %s42
    %s46 = sphi 0, %s45
    %s62 = sphi 0, %s46
    %s68 = sphi 0, %s70
    %s71 = sphi 0, %s68
    %s72 = sphi 0, %s71
    %s88 = sphi 0, %s72
    %s94 = sphi 0, %s96
    %s97 = sphi 0, %s94
    %s98 = sphi 0, %s97
    %s114 = sphi 0, %s98
    %s120 = sphi 0, %s122
    %s123 = sphi 0, %s120
    %s124 = sphi 0, %s123
    %s140 = sphi 0, %s124
  $region4: #{next_attention_forward.8} parent=0 // loop_header_branch
    %14 = sbr.rel (%p12) target = $region8
  $region5: #{next_attention_forward.8} parent=0 // loop_body
    %s16 = ssub.s32 %s11, 1
    %s17 = ssub.s32 %s11, 2
    %s18 = sadd.s32 %s11, 1
    %s20 = sadd.s32 %s19, 1
    %p23 = scmp.eq.s32.totalorder %s11, 3
    %p24 = scmp.ne.s32.totalorder %s19, %s21
    %p25 = scmp.eq.s32.totalorder %s11, 0
    %p26 = por %p24, %p25
    %p27 = scmp.ne.s32.totalorder %s19, %s21
    %p28 = scmp.eq.s32.totalorder %s16, 3
    %p29 = por %p27, %p28
    %p30 = scmp.ne.s32.totalorder %s21, %s22
    %p31 = scmp.eq.s32.totalorder %s16, 0
    %p32 = por %p30, %p31
    %p33 = scmp.ne.s32.totalorder %s21, %s22
    %p34 = scmp.eq.s32.totalorder %s17, 3
    %p35 = por %p33, %p34
    %p37 = scmp.ne.s32.totalorder %s22, %s36
    %p38 = scmp.eq.s32.totalorder %s17, 0
    %p39 = por %p37, %p38
    %s40 = ssub.s32 %s11, %s18
    %p41 = scmp.eq.s32.totalorder %s40, 0
    %s43 = sadd.s32 %s42, 1
    %s44 = scalar_select %p41, %s42, %s43
    %p47 = pneg %p41
    %p48 = scmp.eq.s32.totalorder %s11, 3
    %p49 = por %p47, %p48
    %p50 = scmp.ne.s32.totalorder %s42, %s45
    %p51 = scmp.eq.s32.totalorder %s11, 0
    %p52 = por %p50, %p51
    %p53 = scmp.ne.s32.totalorder %s42, %s45
    %p54 = scmp.eq.s32.totalorder %s16, 3
    %p55 = por %p53, %p54
    %p56 = scmp.ne.s32.totalorder %s45, %s46
    %p57 = scmp.eq.s32.totalorder %s16, 0
    %p58 = por %p56, %p57
    %p59 = scmp.ne.s32.totalorder %s45, %s46
    %p60 = scmp.eq.s32.totalorder %s17, 3
    %p61 = por %p59, %p60
    %p63 = scmp.ne.s32.totalorder %s46, %s62
    %p64 = scmp.eq.s32.totalorder %s17, 0
    %p65 = por %p63, %p64
    %s66 = ssub.s32 %s11, %s18
    %p67 = scmp.eq.s32.totalorder %s66, 0
    %s69 = sadd.s32 %s68, 1
    %s70 = scalar_select %p67, %s68, %s69
    %p73 = pneg %p67
    %p74 = scmp.eq.s32.totalorder %s11, 3
    %p75 = por %p73, %p74
    %p76 = scmp.ne.s32.totalorder %s68, %s71
    %p77 = scmp.eq.s32.totalorder %s11, 0
    %p78 = por %p76, %p77
    %p79 = scmp.ne.s32.totalorder %s68, %s71
    %p80 = scmp.eq.s32.totalorder %s16, 3
    %p81 = por %p79, %p80
    %p82 = scmp.ne.s32.totalorder %s71, %s72
    %p83 = scmp.eq.s32.totalorder %s16, 0
    %p84 = por %p82, %p83
    %p85 = scmp.ne.s32.totalorder %s71, %s72
    %p86 = scmp.eq.s32.totalorder %s17, 3
    %p87 = por %p85, %p86
    %p89 = scmp.ne.s32.totalorder %s72, %s88
    %p90 = scmp.eq.s32.totalorder %s17, 0
    %p91 = por %p89, %p90
    %s92 = ssub.s32 %s11, %s18
    %p93 = scmp.eq.s32.totalorder %s92, 0
    %s95 = sadd.s32 %s94, 1
    %s96 = scalar_select %p93, %s94, %s95
    %p99 = pneg %p93
    %p100 = scmp.eq.s32.totalorder %s11, 3
    %p101 = por %p99, %p100
    %p102 = scmp.ne.s32.totalorder %s94, %s97
    %p103 = scmp.eq.s32.totalorder %s11, 0
    %p104 = por %p102, %p103
    %p105 = scmp.ne.s32.totalorder %s94, %s97
    %p106 = scmp.eq.s32.totalorder %s16, 3
    %p107 = por %p105, %p106
    %p108 = scmp.ne.s32.totalorder %s97, %s98
    %p109 = scmp.eq.s32.totalorder %s16, 0
    %p110 = por %p108, %p109
    %p111 = scmp.ne.s32.totalorder %s97, %s98
    %p112 = scmp.eq.s32.totalorder %s17, 3
    %p113 = por %p111, %p112
    %p115 = scmp.ne.s32.totalorder %s98, %s114
    %p116 = scmp.eq.s32.totalorder %s17, 0
    %p117 = por %p115, %p116
    %s118 = ssub.s32 %s11, %s18
    %p119 = scmp.eq.s32.totalorder %s118, 0
    %s121 = sadd.s32 %s120, 1
    %s122 = scalar_select %p119, %s120, %s121
    %p125 = pneg %p119
    %p126 = scmp.eq.s32.totalorder %s11, 3
    %p127 = por %p125, %p126
    %p128 = scmp.ne.s32.totalorder %s120, %s123
    %p129 = scmp.eq.s32.totalorder %s11, 0
    %p130 = por %p128, %p129
    %p131 = scmp.ne.s32.totalorder %s120, %s123
    %p132 = scmp.eq.s32.totalorder %s16, 3
    %p133 = por %p131, %p132
    %p134 = scmp.ne.s32.totalorder %s123, %s124
    %p135 = scmp.eq.s32.totalorder %s16, 0
    %p136 = por %p134, %p135
    %p137 = scmp.ne.s32.totalorder %s123, %s124
    %p138 = scmp.eq.s32.totalorder %s17, 3
    %p139 = por %p137, %p138
    %p141 = scmp.ne.s32.totalorder %s124, %s140
    %p142 = scmp.eq.s32.totalorder %s17, 0
    %p143 = por %p141, %p142
    %p144 = scmp.le.s32.totalorder 1, %s11
    %p145 = scmp.lt.s32.totalorder %s11, 5
    %p146 = pnand %p144, %p145
    %p147 = pneg %p146
    // Predicated region
    $region9: #{next_attention_forward.8} parent=5 // pred_check
      _
    $region10: #{next_attention_forward.8} parent=5 // pred_check_branch
      %149 = sbr.rel (%p146) target = $region12
    $region11: #{next_attention_forward.8} parent=5 // pred_region
      %s150 = ssub.s32 %s11, 1
      // Predicated region
      $region13: #{next_attention_forward.8} parent=11 // pred_check
        %p151 = pneg %p32
      $region14: #{next_attention_forward.8} parent=11 // pred_check_branch
        %153 = sbr.rel (%p151) target = $region16
      $region15: #{next_attention_forward.8} parent=11 // pred_region
        _
      $region16: #{next_attention_forward.8} parent=11 // pred_fallthru
        _
    $region12: #{next_attention_forward.8} parent=5 // pred_fallthru
      _
    %p154 = scmp.lt.s32.totalorder %s11, 4
    // Predicated region
    $region17: #{next_attention_forward.8} parent=5 // pred_check
      %p155 = pneg %p154
    $region18: #{next_attention_forward.8} parent=5 // pred_check_branch
      %157 = sbr.rel (%p155) target = $region20
    $region19: #{next_attention_forward.8} parent=5 // pred_region
      // Predicated region
      $region21: #{next_attention_forward.8} parent=19 // pred_check
        %p158 = pneg %p52
      $region22: #{next_attention_forward.8} parent=19 // pred_check_branch
        %160 = sbr.rel (%p158) target = $region24
      $region23: #{next_attention_forward.8} parent=19 // pred_region
        %p161 = scmp.lt.s32.totalorder %s11, 3
        %s162 = scalar_select %p161, %s11, 3
        %s163 = smul.addr %s162, 32
        %s164 = smul.addr %s163, 8
        %s165 = scalar_lea.vmem %s1, %s164
      $region24: #{next_attention_forward.8} parent=19 // pred_fallthru
        _
      // Predicated region
      $region25: #{next_attention_forward.8} parent=19 // pred_check
        %p166 = pneg %p78
      $region26: #{next_attention_forward.8} parent=19 // pred_check_branch
        %168 = sbr.rel (%p166) target = $region28
      $region27: #{next_attention_forward.8} parent=19 // pred_region
        %p169 = scmp.lt.s32.totalorder %s11, 3
        %s170 = scalar_select %p169, %s11, 3
        %s171 = smul.addr %s170, 32
        %s172 = smul.addr %s171, 8
        %s173 = scalar_lea.vmem %s2, %s172
      $region28: #{next_attention_forward.8} parent=19 // pred_fallthru
        _
      // Predicated region
      $region29: #{next_attention_forward.8} parent=19 // pred_check
        %p174 = pneg %p104
      $region30: #{next_attention_forward.8} parent=19 // pred_check_branch
        %176 = sbr.rel (%p174) target = $region32
      $region31: #{next_attention_forward.8} parent=19 // pred_region
        %p177 = scmp.lt.s32.totalorder %s11, 3
        %s178 = scalar_select %p177, %s11, 3
        %s179 = smul.addr %s178, 32
        %s180 = smul.addr %s179, 8
        %s181 = scalar_lea.vmem %s3, %s180
      $region32: #{next_attention_forward.8} parent=19 // pred_fallthru
        _
    $region20: #{next_attention_forward.8} parent=5 // pred_fallthru
      _
    %p182 = scmp.le.s32.totalorder 1, %s11
    %p183 = scmp.lt.s32.totalorder %s11, 5
    %p184 = pnand %p182, %p183
    %p185 = pneg %p184
    // Predicated region
    $region33: #{next_attention_forward.8} parent=5 // pred_check
      _
    $region34: #{next_attention_forward.8} parent=5 // pred_check_branch
      %187 = sbr.rel (%p184) target = $region36
    $region35: #{next_attention_forward.8} parent=5 // pred_region
      %s188 = ssub.s32 %s11, 1
      %p189 = pneg %p32
      %p190 = pneg %p29
      %p191 = scmp.lt.s32.totalorder %s16, 3
      %s192 = scalar_select %p191, %s16, 3
      %s193 = smul.addr %s192, 32
      %s194 = smul.addr %s193, 8
      %s195 = scalar_lea.vmem %s1, %s194
      %p196 = pneg %p58
      %p197 = pneg %p55
      %p198 = scmp.lt.s32.totalorder %s16, 3
      %s199 = scalar_select %p198, %s16, 3
      %s200 = smul.addr %s199, 32
      %s201 = smul.addr %s200, 8
      %s202 = scalar_lea.vmem %s2, %s201
      %p203 = pneg %p84
      %p204 = pneg %p81
      %p205 = scmp.lt.s32.totalorder %s16, 3
      %s206 = scalar_select %p205, %s16, 3
      %s207 = smul.addr %s206, 32
      %s208 = smul.addr %s207, 8
      %s209 = scalar_lea.vmem %s3, %s208
      %p210 = pneg %p110
      %p211 = pneg %p107
      %p212 = pneg %p136
      %p213 = pneg %p133
      %p214 = scmp.lt.s32.totalorder %s16, 3
      %s215 = scalar_select %p214, %s16, 3
      %s216 = smul.addr %s215, 32
      %s217 = smul.addr %s216, 8
      %s218 = scalar_lea.vmem %s4, %s217
      %p219 = scmp.lt.s32.totalorder %s16, 3
      %s220 = scalar_select %p219, %s16, 3
      %s221 = smul.addr %s220, 32
      %s222 = smul.addr %s221, 8
      %s223 = scalar_lea.vmem %s1, %s222
      %p224 = scmp.lt.s32.totalorder %s16, 3
      %s225 = scalar_select %p224, %s16, 3
      %s226 = smul.addr %s225, 32
      %s227 = smul.addr %s226, 8
      %s228 = scalar_lea.vmem %s2, %s227
      %p229 = scmp.lt.s32.totalorder %s16, 3
      %s230 = scalar_select %p229, %s16, 3
      %s231 = smul.addr %s230, 32
      %s232 = smul.addr %s231, 8
      %s233 = scalar_lea.vmem %s3, %s232
      %p234 = scmp.lt.s32.totalorder %s16, 3
      %s235 = scalar_select %p234, %s16, 3
      %s236 = smul.addr %s235, 32
      %s237 = smul.addr %s236, 8
      %s238 = scalar_lea.vmem %s4, %s237
      %v239 = vld [vmem:[%s223] sm:$0xff]
      %v240 = vld [vmem:[%s223 + $0x8] sm:$0xff]
      %v241 = vld [vmem:[%s223 + $0x10] sm:$0xff]
      %v242 = vld [vmem:[%s223 + $0x18] sm:$0xff]
      %v243 = vld [vmem:[%s223 + $0x20] sm:$0xff]
      %v244 = vld [vmem:[%s223 + $0x28] sm:$0xff]
      %v245 = vld [vmem:[%s223 + $0x30] sm:$0xff]
      %v246 = vld [vmem:[%s223 + $0x38] sm:$0xff]
      %v247 = vld [vmem:[%s223 + $0x40] sm:$0xff]
      %v248 = vld [vmem:[%s223 + $0x48] sm:$0xff]
      %v249 = vld [vmem:[%s223 + $0x50] sm:$0xff]
      %v250 = vld [vmem:[%s223 + $0x58] sm:$0xff]
      %v251 = vld [vmem:[%s223 + $0x60] sm:$0xff]
      %v252 = vld [vmem:[%s223 + $0x68] sm:$0xff]
      %v253 = vld [vmem:[%s223 + $0x70] sm:$0xff]
      %v254 = vld [vmem:[%s223 + $0x78] sm:$0xff]
      %v255 = vld [vmem:[%s223 + $0x80] sm:$0xff]
      %v256 = vld [vmem:[%s223 + $0x88] sm:$0xff]
      %v257 = vld [vmem:[%s223 + $0x90] sm:$0xff]
      %v258 = vld [vmem:[%s223 + $0x98] sm:$0xff]
      %v259 = vld [vmem:[%s223 + $0xa0] sm:$0xff]
      %v260 = vld [vmem:[%s223 + $0xa8] sm:$0xff]
      %v261 = vld [vmem:[%s223 + $0xb0] sm:$0xff]
      %v262 = vld [vmem:[%s223 + $0xb8] sm:$0xff]
      %v263 = vld [vmem:[%s223 + $0xc0] sm:$0xff]
      %v264 = vld [vmem:[%s223 + $0xc8] sm:$0xff]
      %v265 = vld [vmem:[%s223 + $0xd0] sm:$0xff]
      %v266 = vld [vmem:[%s223 + $0xd8] sm:$0xff]
      %v267 = vld [vmem:[%s223 + $0xe0] sm:$0xff]
      %v268 = vld [vmem:[%s223 + $0xe8] sm:$0xff]
      %v269 = vld [vmem:[%s223 + $0xf0] sm:$0xff]
      %v270 = vld [vmem:[%s223 + $0xf8] sm:$0xff]
      %v271 = vld [vmem:[%s228] sm:$0xff]
      %v272 = vld [vmem:[%s228 + $0x8] sm:$0xff]
      %v273 = vld [vmem:[%s228 + $0x10] sm:$0xff]
      %v274 = vld [vmem:[%s228 + $0x18] sm:$0xff]
      %v275 = vld [vmem:[%s228 + $0x20] sm:$0xff]
      %v276 = vld [vmem:[%s228 + $0x28] sm:$0xff]
      %v277 = vld [vmem:[%s228 + $0x30] sm:$0xff]
      %v278 = vld [vmem:[%s228 + $0x38] sm:$0xff]
      %v279 = vld [vmem:[%s228 + $0x40] sm:$0xff]
      %v280 = vld [vmem:[%s228 + $0x48] sm:$0xff]
      %v281 = vld [vmem:[%s228 + $0x50] sm:$0xff]
      %v282 = vld [vmem:[%s228 + $0x58] sm:$0xff]
      %v283 = vld [vmem:[%s228 + $0x60] sm:$0xff]
      %v284 = vld [vmem:[%s228 + $0x68] sm:$0xff]
      %v285 = vld [vmem:[%s228 + $0x70] sm:$0xff]
      %v286 = vld [vmem:[%s228 + $0x78] sm:$0xff]
      %v287 = vld [vmem:[%s228 + $0x80] sm:$0xff]
      %v288 = vld [vmem:[%s228 + $0x88] sm:$0xff]
      %v289 = vld [vmem:[%s228 + $0x90] sm:$0xff]
      %v290 = vld [vmem:[%s228 + $0x98] sm:$0xff]
      %v291 = vld [vmem:[%s228 + $0xa0] sm:$0xff]
      %v292 = vld [vmem:[%s228 + $0xa8] sm:$0xff]
      %v293 = vld [vmem:[%s228 + $0xb0] sm:$0xff]
      %v294 = vld [vmem:[%s228 + $0xb8] sm:$0xff]
      %v295 = vld [vmem:[%s228 + $0xc0] sm:$0xff]
      %v296 = vld [vmem:[%s228 + $0xc8] sm:$0xff]
      %v297 = vld [vmem:[%s228 + $0xd0] sm:$0xff]
      %v298 = vld [vmem:[%s228 + $0xd8] sm:$0xff]
      %v299 = vld [vmem:[%s228 + $0xe0] sm:$0xff]
      %v300 = vld [vmem:[%s228 + $0xe8] sm:$0xff]
      %v301 = vld [vmem:[%s228 + $0xf0] sm:$0xff]
      %v302 = vld [vmem:[%s228 + $0xf8] sm:$0xff]
      %v303 = vld [vmem:[%s233] sm:$0xff]
      %v304 = vld [vmem:[%s233 + $0x8] sm:$0xff]
      %v305 = vld [vmem:[%s233 + $0x10] sm:$0xff]
      %v306 = vld [vmem:[%s233 + $0x18] sm:$0xff]
      %v307 = vld [vmem:[%s233 + $0x20] sm:$0xff]
      %v308 = vld [vmem:[%s233 + $0x28] sm:$0xff]
      %v309 = vld [vmem:[%s233 + $0x30] sm:$0xff]
      %v310 = vld [vmem:[%s233 + $0x38] sm:$0xff]
      %v311 = vld [vmem:[%s233 + $0x40] sm:$0xff]
      %v312 = vld [vmem:[%s233 + $0x48] sm:$0xff]
      %v313 = vld [vmem:[%s233 + $0x50] sm:$0xff]
      %v314 = vld [vmem:[%s233 + $0x58] sm:$0xff]
      %v315 = vld [vmem:[%s233 + $0x60] sm:$0xff]
      %v316 = vld [vmem:[%s233 + $0x68] sm:$0xff]
      %v317 = vld [vmem:[%s233 + $0x70] sm:$0xff]
      %v318 = vld [vmem:[%s233 + $0x78] sm:$0xff]
      %v319 = vld [vmem:[%s233 + $0x80] sm:$0xff]
      %v320 = vld [vmem:[%s233 + $0x88] sm:$0xff]
      %v321 = vld [vmem:[%s233 + $0x90] sm:$0xff]
      %v322 = vld [vmem:[%s233 + $0x98] sm:$0xff]
      %v323 = vld [vmem:[%s233 + $0xa0] sm:$0xff]
      %v324 = vld [vmem:[%s233 + $0xa8] sm:$0xff]
      %v325 = vld [vmem:[%s233 + $0xb0] sm:$0xff]
      %v326 = vld [vmem:[%s233 + $0xb8] sm:$0xff]
      %v327 = vld [vmem:[%s233 + $0xc0] sm:$0xff]
      %v328 = vld [vmem:[%s233 + $0xc8] sm:$0xff]
      %v329 = vld [vmem:[%s233 + $0xd0] sm:$0xff]
      %v330 = vld [vmem:[%s233 + $0xd8] sm:$0xff]
      %v331 = vld [vmem:[%s233 + $0xe0] sm:$0xff]
      %v332 = vld [vmem:[%s233 + $0xe8] sm:$0xff]
      %v333 = vld [vmem:[%s233 + $0xf0] sm:$0xff]
      %v334 = vld [vmem:[%s233 + $0xf8] sm:$0xff]
      %s335 = sld [smem:[#allocation2]]
      %v336 = vmul.f32 %v239, %v239
      %v337 = vmul.f32 %v240, %v240
      %v338 = vmul.f32 %v241, %v241
      %v339 = vmul.f32 %v242, %v242
      %v340 = vmul.f32 %v243, %v243
      %v341 = vmul.f32 %v244, %v244
      %v342 = vmul.f32 %v245, %v245
      %v343 = vmul.f32 %v246, %v246
      %v344 = vmul.f32 %v247, %v247
      %v345 = vmul.f32 %v248, %v248
      %v346 = vmul.f32 %v249, %v249
      %v347 = vmul.f32 %v250, %v250
      %v348 = vmul.f32 %v251, %v251
      %v349 = vmul.f32 %v252, %v252
      %v350 = vmul.f32 %v253, %v253
      %v351 = vmul.f32 %v254, %v254
      %v352 = vmul.f32 %v255, %v255
      %v353 = vmul.f32 %v256, %v256
      %v354 = vmul.f32 %v257, %v257
      %v355 = vmul.f32 %v258, %v258
      %v356 = vmul.f32 %v259, %v259
      %v357 = vmul.f32 %v260, %v260
      %v358 = vmul.f32 %v261, %v261
      %v359 = vmul.f32 %v262, %v262
      %v360 = vmul.f32 %v263, %v263
      %v361 = vmul.f32 %v264, %v264
      %v362 = vmul.f32 %v265, %v265
      %v363 = vmul.f32 %v266, %v266
      %v364 = vmul.f32 %v267, %v267
      %v365 = vmul.f32 %v268, %v268
      %v366 = vmul.f32 %v269, %v269
      %v367 = vmul.f32 %v270, %v270
      %vm368 = vcmask 31744
      %v369 = vsel %vm368, %v336, 0.0
      %370 = vadd.xlane.f32.xlu0 %v369
      %v371 = vpop.xlane.xlu0 %370
      %v372 = vsel %vm368, %v337, 0.0
      %373 = vadd.xlane.f32.xlu0 %v372
      %v374 = vpop.xlane.xlu0 %373
      %v375 = vsel %vm368, %v338, 0.0
      %376 = vadd.xlane.f32.xlu0 %v375
      %v377 = vpop.xlane.xlu0 %376
      %v378 = vsel %vm368, %v339, 0.0
      %379 = vadd.xlane.f32.xlu0 %v378
      %v380 = vpop.xlane.xlu0 %379
      %v381 = vsel %vm368, %v340, 0.0
      %382 = vadd.xlane.f32.xlu0 %v381
      %v383 = vpop.xlane.xlu0 %382
      %v384 = vsel %vm368, %v341, 0.0
      %385 = vadd.xlane.f32.xlu0 %v384
      %v386 = vpop.xlane.xlu0 %385
      %v387 = vsel %vm368, %v342, 0.0
      %388 = vadd.xlane.f32.xlu0 %v387
      %v389 = vpop.xlane.xlu0 %388
      %v390 = vsel %vm368, %v343, 0.0
      %391 = vadd.xlane.f32.xlu0 %v390
      %v392 = vpop.xlane.xlu0 %391
      %v393 = vsel %vm368, %v344, 0.0
      %394 = vadd.xlane.f32.xlu0 %v393
      %v395 = vpop.xlane.xlu0 %394
      %v396 = vsel %vm368, %v345, 0.0
      %397 = vadd.xlane.f32.xlu0 %v396
      %v398 = vpop.xlane.xlu0 %397
      %v399 = vsel %vm368, %v346, 0.0
      %400 = vadd.xlane.f32.xlu0 %v399
      %v401 = vpop.xlane.xlu0 %400
      %v402 = vsel %vm368, %v347, 0.0
      %403 = vadd.xlane.f32.xlu0 %v402
      %v404 = vpop.xlane.xlu0 %403
      %v405 = vsel %vm368, %v348, 0.0
      %406 = vadd.xlane.f32.xlu0 %v405
      %v407 = vpop.xlane.xlu0 %406
      %v408 = vsel %vm368, %v349, 0.0
      %409 = vadd.xlane.f32.xlu0 %v408
      %v410 = vpop.xlane.xlu0 %409
      %v411 = vsel %vm368, %v350, 0.0
      %412 = vadd.xlane.f32.xlu0 %v411
      %v413 = vpop.xlane.xlu0 %412
      %v414 = vsel %vm368, %v351, 0.0
      %415 = vadd.xlane.f32.xlu0 %v414
      %v416 = vpop.xlane.xlu0 %415
      %v417 = vsel %vm368, %v352, 0.0
      %418 = vadd.xlane.f32.xlu0 %v417
      %v419 = vpop.xlane.xlu0 %418
      %v420 = vsel %vm368, %v353, 0.0
      %421 = vadd.xlane.f32.xlu0 %v420
      %v422 = vpop.xlane.xlu0 %421
      %v423 = vsel %vm368, %v354, 0.0
      %424 = vadd.xlane.f32.xlu0 %v423
      %v425 = vpop.xlane.xlu0 %424
      %v426 = vsel %vm368, %v355, 0.0
      %427 = vadd.xlane.f32.xlu0 %v426
      %v428 = vpop.xlane.xlu0 %427
      %v429 = vsel %vm368, %v356, 0.0
      %430 = vadd.xlane.f32.xlu0 %v429
      %v431 = vpop.xlane.xlu0 %430
      %v432 = vsel %vm368, %v357, 0.0
      %433 = vadd.xlane.f32.xlu0 %v432
      %v434 = vpop.xlane.xlu0 %433
      %v435 = vsel %vm368, %v358, 0.0
      %436 = vadd.xlane.f32.xlu0 %v435
      %v437 = vpop.xlane.xlu0 %436
      %v438 = vsel %vm368, %v359, 0.0
      %439 = vadd.xlane.f32.xlu0 %v438
      %v440 = vpop.xlane.xlu0 %439
      %v441 = vsel %vm368, %v360, 0.0
      %442 = vadd.xlane.f32.xlu0 %v441
      %v443 = vpop.xlane.xlu0 %442
      %v444 = vsel %vm368, %v361, 0.0
      %445 = vadd.xlane.f32.xlu0 %v444
      %v446 = vpop.xlane.xlu0 %445
      %v447 = vsel %vm368, %v362, 0.0
      %448 = vadd.xlane.f32.xlu0 %v447
      %v449 = vpop.xlane.xlu0 %448
      %v450 = vsel %vm368, %v363, 0.0
      %451 = vadd.xlane.f32.xlu0 %v450
      %v452 = vpop.xlane.xlu0 %451
      %v453 = vsel %vm368, %v364, 0.0
      %454 = vadd.xlane.f32.xlu0 %v453
      %v455 = vpop.xlane.xlu0 %454
      %v456 = vsel %vm368, %v365, 0.0
      %457 = vadd.xlane.f32.xlu0 %v456
      %v458 = vpop.xlane.xlu0 %457
      %v459 = vsel %vm368, %v366, 0.0
      %460 = vadd.xlane.f32.xlu0 %v459
      %v461 = vpop.xlane.xlu0 %460
      %v462 = vsel %vm368, %v367, 0.0
      %463 = vadd.xlane.f32.xlu0 %v462
      %v464 = vpop.xlane.xlu0 %463
      %v465 = vrsqrt.pop %v371
      %v466 = vmul.f32 %v371, %v465
      %vm467 = vcmp.eq.f32.partialorder %v371, inf
      %v468 = vsel %vm467, %v371, %v466
      %vm469 = vcmp.eq.f32.partialorder %v371, 0.0
      %v470 = vand.u32 %v371, 2147483648
      %v471 = vsel %vm469, %v470, %v468
      %v472 = vrsqrt.pop %v374
      %v473 = vmul.f32 %v374, %v472
      %vm474 = vcmp.eq.f32.partialorder %v374, inf
      %v475 = vsel %vm474, %v374, %v473
      %vm476 = vcmp.eq.f32.partialorder %v374, 0.0
      %v477 = vand.u32 %v374, 2147483648
      %v478 = vsel %vm476, %v477, %v475
      %v479 = vrsqrt.pop %v377
      %v480 = vmul.f32 %v377, %v479
      %vm481 = vcmp.eq.f32.partialorder %v377, inf
      %v482 = vsel %vm481, %v377, %v480
      %vm483 = vcmp.eq.f32.partialorder %v377, 0.0
      %v484 = vand.u32 %v377, 2147483648
      %v485 = vsel %vm483, %v484, %v482
      %v486 = vrsqrt.pop %v380
      %v487 = vmul.f32 %v380, %v486
      %vm488 = vcmp.eq.f32.partialorder %v380, inf
      %v489 = vsel %vm488, %v380, %v487
      %vm490 = vcmp.eq.f32.partialorder %v380, 0.0
      %v491 = vand.u32 %v380, 2147483648
      %v492 = vsel %vm490, %v491, %v489
      %v493 = vrsqrt.pop %v383
      %v494 = vmul.f32 %v383, %v493
      %vm495 = vcmp.eq.f32.partialorder %v383, inf
      %v496 = vsel %vm495, %v383, %v494
      %vm497 = vcmp.eq.f32.partialorder %v383, 0.0
      %v498 = vand.u32 %v383, 2147483648
      %v499 = vsel %vm497, %v498, %v496
      %v500 = vrsqrt.pop %v386
      %v501 = vmul.f32 %v386, %v500
      %vm502 = vcmp.eq.f32.partialorder %v386, inf
      %v503 = vsel %vm502, %v386, %v501
      %vm504 = vcmp.eq.f32.partialorder %v386, 0.0
      %v505 = vand.u32 %v386, 2147483648
      %v506 = vsel %vm504, %v505, %v503
      %v507 = vrsqrt.pop %v389
      %v508 = vmul.f32 %v389, %v507
      %vm509 = vcmp.eq.f32.partialorder %v389, inf
      %v510 = vsel %vm509, %v389, %v508
      %vm511 = vcmp.eq.f32.partialorder %v389, 0.0
      %v512 = vand.u32 %v389, 2147483648
      %v513 = vsel %vm511, %v512, %v510
      %v514 = vrsqrt.pop %v392
      %v515 = vmul.f32 %v392, %v514
      %vm516 = vcmp.eq.f32.partialorder %v392, inf
      %v517 = vsel %vm516, %v392, %v515
      %vm518 = vcmp.eq.f32.partialorder %v392, 0.0
      %v519 = vand.u32 %v392, 2147483648
      %v520 = vsel %vm518, %v519, %v517
      %v521 = vrsqrt.pop %v395
      %v522 = vmul.f32 %v395, %v521
      %vm523 = vcmp.eq.f32.partialorder %v395, inf
      %v524 = vsel %vm523, %v395, %v522
      %vm525 = vcmp.eq.f32.partialorder %v395, 0.0
      %v526 = vand.u32 %v395, 2147483648
      %v527 = vsel %vm525, %v526, %v524
      %v528 = vrsqrt.pop %v398
      %v529 = vmul.f32 %v398, %v528
      %vm530 = vcmp.eq.f32.partialorder %v398, inf
      %v531 = vsel %vm530, %v398, %v529
      %vm532 = vcmp.eq.f32.partialorder %v398, 0.0
      %v533 = vand.u32 %v398, 2147483648
      %v534 = vsel %vm532, %v533, %v531
      %v535 = vrsqrt.pop %v401
      %v536 = vmul.f32 %v401, %v535
      %vm537 = vcmp.eq.f32.partialorder %v401, inf
      %v538 = vsel %vm537, %v401, %v536
      %vm539 = vcmp.eq.f32.partialorder %v401, 0.0
      %v540 = vand.u32 %v401, 2147483648
      %v541 = vsel %vm539, %v540, %v538
      %v542 = vrsqrt.pop %v404
      %v543 = vmul.f32 %v404, %v542
      %vm544 = vcmp.eq.f32.partialorder %v404, inf
      %v545 = vsel %vm544, %v404, %v543
      %vm546 = vcmp.eq.f32.partialorder %v404, 0.0
      %v547 = vand.u32 %v404, 2147483648
      %v548 = vsel %vm546, %v547, %v545
      %v549 = vrsqrt.pop %v407
      %v550 = vmul.f32 %v407, %v549
      %vm551 = vcmp.eq.f32.partialorder %v407, inf
      %v552 = vsel %vm551, %v407, %v550
      %vm553 = vcmp.eq.f32.partialorder %v407, 0.0
      %v554 = vand.u32 %v407, 2147483648
      %v555 = vsel %vm553, %v554, %v552
      %v556 = vrsqrt.pop %v410
      %v557 = vmul.f32 %v410, %v556
      %vm558 = vcmp.eq.f32.partialorder %v410, inf
      %v559 = vsel %vm558, %v410, %v557
      %vm560 = vcmp.eq.f32.partialorder %v410, 0.0
      %v561 = vand.u32 %v410, 2147483648
      %v562 = vsel %vm560, %v561, %v559
      %v563 = vrsqrt.pop %v413
      %v564 = vmul.f32 %v413, %v563
      %vm565 = vcmp.eq.f32.partialorder %v413, inf
      %v566 = vsel %vm565, %v413, %v564
      %vm567 = vcmp.eq.f32.partialorder %v413, 0.0
      %v568 = vand.u32 %v413, 2147483648
      %v569 = vsel %vm567, %v568, %v566
      %v570 = vrsqrt.pop %v416
      %v571 = vmul.f32 %v416, %v570
      %vm572 = vcmp.eq.f32.partialorder %v416, inf
      %v573 = vsel %vm572, %v416, %v571
      %vm574 = vcmp.eq.f32.partialorder %v416, 0.0
      %v575 = vand.u32 %v416, 2147483648
      %v576 = vsel %vm574, %v575, %v573
      %v577 = vrsqrt.pop %v419
      %v578 = vmul.f32 %v419, %v577
      %vm579 = vcmp.eq.f32.partialorder %v419, inf
      %v580 = vsel %vm579, %v419, %v578
      %vm581 = vcmp.eq.f32.partialorder %v419, 0.0
      %v582 = vand.u32 %v419, 2147483648
      %v583 = vsel %vm581, %v582, %v580
      %v584 = vrsqrt.pop %v422
      %v585 = vmul.f32 %v422, %v584
      %vm586 = vcmp.eq.f32.partialorder %v422, inf
      %v587 = vsel %vm586, %v422, %v585
      %vm588 = vcmp.eq.f32.partialorder %v422, 0.0
      %v589 = vand.u32 %v422, 2147483648
      %v590 = vsel %vm588, %v589, %v587
      %v591 = vrsqrt.pop %v425
      %v592 = vmul.f32 %v425, %v591
      %vm593 = vcmp.eq.f32.partialorder %v425, inf
      %v594 = vsel %vm593, %v425, %v592
      %vm595 = vcmp.eq.f32.partialorder %v425, 0.0
      %v596 = vand.u32 %v425, 2147483648
      %v597 = vsel %vm595, %v596, %v594
      %v598 = vrsqrt.pop %v428
      %v599 = vmul.f32 %v428, %v598
      %vm600 = vcmp.eq.f32.partialorder %v428, inf
      %v601 = vsel %vm600, %v428, %v599
      %vm602 = vcmp.eq.f32.partialorder %v428, 0.0
      %v603 = vand.u32 %v428, 2147483648
      %v604 = vsel %vm602, %v603, %v601
      %v605 = vrsqrt.pop %v431
      %v606 = vmul.f32 %v431, %v605
      %vm607 = vcmp.eq.f32.partialorder %v431, inf
      %v608 = vsel %vm607, %v431, %v606
      %vm609 = vcmp.eq.f32.partialorder %v431, 0.0
      %v610 = vand.u32 %v431, 2147483648
      %v611 = vsel %vm609, %v610, %v608
      %v612 = vrsqrt.pop %v434
      %v613 = vmul.f32 %v434, %v612
      %vm614 = vcmp.eq.f32.partialorder %v434, inf
      %v615 = vsel %vm614, %v434, %v613
      %vm616 = vcmp.eq.f32.partialorder %v434, 0.0
      %v617 = vand.u32 %v434, 2147483648
      %v618 = vsel %vm616, %v617, %v615
      %v619 = vrsqrt.pop %v437
      %v620 = vmul.f32 %v437, %v619
      %vm621 = vcmp.eq.f32.partialorder %v437, inf
      %v622 = vsel %vm621, %v437, %v620
      %vm623 = vcmp.eq.f32.partialorder %v437, 0.0
      %v624 = vand.u32 %v437, 2147483648
      %v625 = vsel %vm623, %v624, %v622
      %v626 = vrsqrt.pop %v440
      %v627 = vmul.f32 %v440, %v626
      %vm628 = vcmp.eq.f32.partialorder %v440, inf
      %v629 = vsel %vm628, %v440, %v627
      %vm630 = vcmp.eq.f32.partialorder %v440, 0.0
      %v631 = vand.u32 %v440, 2147483648
      %v632 = vsel %vm630, %v631, %v629
      %v633 = vrsqrt.pop %v443
      %v634 = vmul.f32 %v443, %v633
      %vm635 = vcmp.eq.f32.partialorder %v443, inf
      %v636 = vsel %vm635, %v443, %v634
      %vm637 = vcmp.eq.f32.partialorder %v443, 0.0
      %v638 = vand.u32 %v443, 2147483648
      %v639 = vsel %vm637, %v638, %v636
      %v640 = vrsqrt.pop %v446
      %v641 = vmul.f32 %v446, %v640
      %vm642 = vcmp.eq.f32.partialorder %v446, inf
      %v643 = vsel %vm642, %v446, %v641
      %vm644 = vcmp.eq.f32.partialorder %v446, 0.0
      %v645 = vand.u32 %v446, 2147483648
      %v646 = vsel %vm644, %v645, %v643
      %v647 = vrsqrt.pop %v449
      %v648 = vmul.f32 %v449, %v647
      %vm649 = vcmp.eq.f32.partialorder %v449, inf
      %v650 = vsel %vm649, %v449, %v648
      %vm651 = vcmp.eq.f32.partialorder %v449, 0.0
      %v652 = vand.u32 %v449, 2147483648
      %v653 = vsel %vm651, %v652, %v650
      %v654 = vrsqrt.pop %v452
      %v655 = vmul.f32 %v452, %v654
      %vm656 = vcmp.eq.f32.partialorder %v452, inf
      %v657 = vsel %vm656, %v452, %v655
      %vm658 = vcmp.eq.f32.partialorder %v452, 0.0
      %v659 = vand.u32 %v452, 2147483648
      %v660 = vsel %vm658, %v659, %v657
      %v661 = vrsqrt.pop %v455
      %v662 = vmul.f32 %v455, %v661
      %vm663 = vcmp.eq.f32.partialorder %v455, inf
      %v664 = vsel %vm663, %v455, %v662
      %vm665 = vcmp.eq.f32.partialorder %v455, 0.0
      %v666 = vand.u32 %v455, 2147483648
      %v667 = vsel %vm665, %v666, %v664
      %v668 = vrsqrt.pop %v458
      %v669 = vmul.f32 %v458, %v668
      %vm670 = vcmp.eq.f32.partialorder %v458, inf
      %v671 = vsel %vm670, %v458, %v669
      %vm672 = vcmp.eq.f32.partialorder %v458, 0.0
      %v673 = vand.u32 %v458, 2147483648
      %v674 = vsel %vm672, %v673, %v671
      %v675 = vrsqrt.pop %v461
      %v676 = vmul.f32 %v461, %v675
      %vm677 = vcmp.eq.f32.partialorder %v461, inf
      %v678 = vsel %vm677, %v461, %v676
      %vm679 = vcmp.eq.f32.partialorder %v461, 0.0
      %v680 = vand.u32 %v461, 2147483648
      %v681 = vsel %vm679, %v680, %v678
      %v682 = vrsqrt.pop %v464
      %v683 = vmul.f32 %v464, %v682
      %vm684 = vcmp.eq.f32.partialorder %v464, inf
      %v685 = vsel %vm684, %v464, %v683
      %vm686 = vcmp.eq.f32.partialorder %v464, 0.0
      %v687 = vand.u32 %v464, 2147483648
      %v688 = vsel %vm686, %v687, %v685
      %v689 = vmax.f32 %v471, 1e-12
      %v690 = vmax.f32 %v478, 1e-12
      %v691 = vmax.f32 %v485, 1e-12
      %v692 = vmax.f32 %v492, 1e-12
      %v693 = vmax.f32 %v499, 1e-12
      %v694 = vmax.f32 %v506, 1e-12
      %v695 = vmax.f32 %v513, 1e-12
      %v696 = vmax.f32 %v520, 1e-12
      %v697 = vmax.f32 %v527, 1e-12
      %v698 = vmax.f32 %v534, 1e-12
      %v699 = vmax.f32 %v541, 1e-12
      %v700 = vmax.f32 %v548, 1e-12
      %v701 = vmax.f32 %v555, 1e-12
      %v702 = vmax.f32 %v562, 1e-12
      %v703 = vmax.f32 %v569, 1e-12
      %v704 = vmax.f32 %v576, 1e-12
      %v705 = vmax.f32 %v583, 1e-12
      %v706 = vmax.f32 %v590, 1e-12
      %v707 = vmax.f32 %v597, 1e-12
      %v708 = vmax.f32 %v604, 1e-12
      %v709 = vmax.f32 %v611, 1e-12
      %v710 = vmax.f32 %v618, 1e-12
      %v711 = vmax.f32 %v625, 1e-12
      %v712 = vmax.f32 %v632, 1e-12
      %v713 = vmax.f32 %v639, 1e-12
      %v714 = vmax.f32 %v646, 1e-12
      %v715 = vmax.f32 %v653, 1e-12
      %v716 = vmax.f32 %v660, 1e-12
      %v717 = vmax.f32 %v667, 1e-12
      %v718 = vmax.f32 %v674, 1e-12
      %v719 = vmax.f32 %v681, 1e-12
      %v720 = vmax.f32 %v688, 1e-12
      %v721 = vrcp.pop %v689
      %v722 = vmul.f32 %v239, %v721
      %v723 = vrcp.pop %v690
      %v724 = vmul.f32 %v240, %v723
      %v725 = vrcp.pop %v691
      %v726 = vmul.f32 %v241, %v725
      %v727 = vrcp.pop %v692
      %v728 = vmul.f32 %v242, %v727
      %v729 = vrcp.pop %v693
      %v730 = vmul.f32 %v243, %v729
      %v731 = vrcp.pop %v694
      %v732 = vmul.f32 %v244, %v731
      %v733 = vrcp.pop %v695
      %v734 = vmul.f32 %v245, %v733
      %v735 = vrcp.pop %v696
      %v736 = vmul.f32 %v246, %v735
      %v737 = vrcp.pop %v697
      %v738 = vmul.f32 %v247, %v737
      %v739 = vrcp.pop %v698
      %v740 = vmul.f32 %v248, %v739
      %v741 = vrcp.pop %v699
      %v742 = vmul.f32 %v249, %v741
      %v743 = vrcp.pop %v700
      %v744 = vmul.f32 %v250, %v743
      %v745 = vrcp.pop %v701
      %v746 = vmul.f32 %v251, %v745
      %v747 = vrcp.pop %v702
      %v748 = vmul.f32 %v252, %v747
      %v749 = vrcp.pop %v703
      %v750 = vmul.f32 %v253, %v749
      %v751 = vrcp.pop %v704
      %v752 = vmul.f32 %v254, %v751
      %v753 = vrcp.pop %v705
      %v754 = vmul.f32 %v255, %v753
      %v755 = vrcp.pop %v706
      %v756 = vmul.f32 %v256, %v755
      %v757 = vrcp.pop %v707
      %v758 = vmul.f32 %v257, %v757
      %v759 = vrcp.pop %v708
      %v760 = vmul.f32 %v258, %v759
      %v761 = vrcp.pop %v709
      %v762 = vmul.f32 %v259, %v761
      %v763 = vrcp.pop %v710
      %v764 = vmul.f32 %v260, %v763
      %v765 = vrcp.pop %v711
      %v766 = vmul.f32 %v261, %v765
      %v767 = vrcp.pop %v712
      %v768 = vmul.f32 %v262, %v767
      %v769 = vrcp.pop %v713
      %v770 = vmul.f32 %v263, %v769
      %v771 = vrcp.pop %v714
      %v772 = vmul.f32 %v264, %v771
      %v773 = vrcp.pop %v715
      %v774 = vmul.f32 %v265, %v773
      %v775 = vrcp.pop %v716
      %v776 = vmul.f32 %v266, %v775
      %v777 = vrcp.pop %v717
      %v778 = vmul.f32 %v267, %v777
      %v779 = vrcp.pop %v718
      %v780 = vmul.f32 %v268, %v779
      %v781 = vrcp.pop %v719
      %v782 = vmul.f32 %v269, %v781
      %v783 = vrcp.pop %v720
      %v784 = vmul.f32 %v270, %v783
      %v785 = vmul.f32 %v271, %v271
      %v786 = vmul.f32 %v272, %v272
      %v787 = vmul.f32 %v273, %v273
      %v788 = vmul.f32 %v274, %v274
      %v789 = vmul.f32 %v275, %v275
      %v790 = vmul.f32 %v276, %v276
      %v791 = vmul.f32 %v277, %v277
      %v792 = vmul.f32 %v278, %v278
      %v793 = vmul.f32 %v279, %v279
      %v794 = vmul.f32 %v280, %v280
      %v795 = vmul.f32 %v281, %v281
      %v796 = vmul.f32 %v282, %v282
      %v797 = vmul.f32 %v283, %v283
      %v798 = vmul.f32 %v284, %v284
      %v799 = vmul.f32 %v285, %v285
      %v800 = vmul.f32 %v286, %v286
      %v801 = vmul.f32 %v287, %v287
      %v802 = vmul.f32 %v288, %v288
      %v803 = vmul.f32 %v289, %v289
      %v804 = vmul.f32 %v290, %v290
      %v805 = vmul.f32 %v291, %v291
      %v806 = vmul.f32 %v292, %v292
      %v807 = vmul.f32 %v293, %v293
      %v808 = vmul.f32 %v294, %v294
      %v809 = vmul.f32 %v295, %v295
      %v810 = vmul.f32 %v296, %v296
      %v811 = vmul.f32 %v297, %v297
      %v812 = vmul.f32 %v298, %v298
      %v813 = vmul.f32 %v299, %v299
      %v814 = vmul.f32 %v300, %v300
      %v815 = vmul.f32 %v301, %v301
      %v816 = vmul.f32 %v302, %v302
      %v817 = vsel %vm368, %v785, 0.0
      %818 = vadd.xlane.f32.xlu0 %v817
      %v819 = vpop.xlane.xlu0 %818
      %v820 = vsel %vm368, %v786, 0.0
      %821 = vadd.xlane.f32.xlu0 %v820
      %v822 = vpop.xlane.xlu0 %821
      %v823 = vsel %vm368, %v787, 0.0
      %824 = vadd.xlane.f32.xlu0 %v823
      %v825 = vpop.xlane.xlu0 %824
      %v826 = vsel %vm368, %v788, 0.0
      %827 = vadd.xlane.f32.xlu0 %v826
      %v828 = vpop.xlane.xlu0 %827
      %v829 = vsel %vm368, %v789, 0.0
      %830 = vadd.xlane.f32.xlu0 %v829
      %v831 = vpop.xlane.xlu0 %830
      %v832 = vsel %vm368, %v790, 0.0
      %833 = vadd.xlane.f32.xlu0 %v832
      %v834 = vpop.xlane.xlu0 %833
      %v835 = vsel %vm368, %v791, 0.0
      %836 = vadd.xlane.f32.xlu0 %v835
      %v837 = vpop.xlane.xlu0 %836
      %v838 = vsel %vm368, %v792, 0.0
      %839 = vadd.xlane.f32.xlu0 %v838
      %v840 = vpop.xlane.xlu0 %839
      %v841 = vsel %vm368, %v793, 0.0
      %842 = vadd.xlane.f32.xlu0 %v841
      %v843 = vpop.xlane.xlu0 %842
      %v844 = vsel %vm368, %v794, 0.0
      %845 = vadd.xlane.f32.xlu0 %v844
      %v846 = vpop.xlane.xlu0 %845
      %v847 = vsel %vm368, %v795, 0.0
      %848 = vadd.xlane.f32.xlu0 %v847
      %v849 = vpop.xlane.xlu0 %848
      %v850 = vsel %vm368, %v796, 0.0
      %851 = vadd.xlane.f32.xlu0 %v850
      %v852 = vpop.xlane.xlu0 %851
      %v853 = vsel %vm368, %v797, 0.0
      %854 = vadd.xlane.f32.xlu0 %v853
      %v855 = vpop.xlane.xlu0 %854
      %v856 = vsel %vm368, %v798, 0.0
      %857 = vadd.xlane.f32.xlu0 %v856
      %v858 = vpop.xlane.xlu0 %857
      %v859 = vsel %vm368, %v799, 0.0
      %860 = vadd.xlane.f32.xlu0 %v859
      %v861 = vpop.xlane.xlu0 %860
      %v862 = vsel %vm368, %v800, 0.0
      %863 = vadd.xlane.f32.xlu0 %v862
      %v864 = vpop.xlane.xlu0 %863
      %v865 = vsel %vm368, %v801, 0.0
      %866 = vadd.xlane.f32.xlu0 %v865
      %v867 = vpop.xlane.xlu0 %866
      %v868 = vsel %vm368, %v802, 0.0
      %869 = vadd.xlane.f32.xlu0 %v868
      %v870 = vpop.xlane.xlu0 %869
      %v871 = vsel %vm368, %v803, 0.0
      %872 = vadd.xlane.f32.xlu0 %v871
      %v873 = vpop.xlane.xlu0 %872
      %v874 = vsel %vm368, %v804, 0.0
      %875 = vadd.xlane.f32.xlu0 %v874
      %v876 = vpop.xlane.xlu0 %875
      %v877 = vsel %vm368, %v805, 0.0
      %878 = vadd.xlane.f32.xlu0 %v877
      %v879 = vpop.xlane.xlu0 %878
      %v880 = vsel %vm368, %v806, 0.0
      %881 = vadd.xlane.f32.xlu0 %v880
      %v882 = vpop.xlane.xlu0 %881
      %v883 = vsel %vm368, %v807, 0.0
      %884 = vadd.xlane.f32.xlu0 %v883
      %v885 = vpop.xlane.xlu0 %884
      %v886 = vsel %vm368, %v808, 0.0
      %887 = vadd.xlane.f32.xlu0 %v886
      %v888 = vpop.xlane.xlu0 %887
      %v889 = vsel %vm368, %v809, 0.0
      %890 = vadd.xlane.f32.xlu0 %v889
      %v891 = vpop.xlane.xlu0 %890
      %v892 = vsel %vm368, %v810, 0.0
      %893 = vadd.xlane.f32.xlu0 %v892
      %v894 = vpop.xlane.xlu0 %893
      %v895 = vsel %vm368, %v811, 0.0
      %896 = vadd.xlane.f32.xlu0 %v895
      %v897 = vpop.xlane.xlu0 %896
      %v898 = vsel %vm368, %v812, 0.0
      %899 = vadd.xlane.f32.xlu0 %v898
      %v900 = vpop.xlane.xlu0 %899
      %v901 = vsel %vm368, %v813, 0.0
      %902 = vadd.xlane.f32.xlu0 %v901
      %v903 = vpop.xlane.xlu0 %902
      %v904 = vsel %vm368, %v814, 0.0
      %905 = vadd.xlane.f32.xlu0 %v904
      %v906 = vpop.xlane.xlu0 %905
      %v907 = vsel %vm368, %v815, 0.0
      %908 = vadd.xlane.f32.xlu0 %v907
      %v909 = vpop.xlane.xlu0 %908
      %v910 = vsel %vm368, %v816, 0.0
      %911 = vadd.xlane.f32.xlu0 %v910
      %v912 = vpop.xlane.xlu0 %911
      %v913 = vrsqrt.pop %v819
      %v914 = vmul.f32 %v819, %v913
      %vm915 = vcmp.eq.f32.partialorder %v819, inf
      %v916 = vsel %vm915, %v819, %v914
      %vm917 = vcmp.eq.f32.partialorder %v819, 0.0
      %v918 = vand.u32 %v819, 2147483648
      %v919 = vsel %vm917, %v918, %v916
      %v920 = vrsqrt.pop %v822
      %v921 = vmul.f32 %v822, %v920
      %vm922 = vcmp.eq.f32.partialorder %v822, inf
      %v923 = vsel %vm922, %v822, %v921
      %vm924 = vcmp.eq.f32.partialorder %v822, 0.0
      %v925 = vand.u32 %v822, 2147483648
      %v926 = vsel %vm924, %v925, %v923
      %v927 = vrsqrt.pop %v825
      %v928 = vmul.f32 %v825, %v927
      %vm929 = vcmp.eq.f32.partialorder %v825, inf
      %v930 = vsel %vm929, %v825, %v928
      %vm931 = vcmp.eq.f32.partialorder %v825, 0.0
      %v932 = vand.u32 %v825, 2147483648
      %v933 = vsel %vm931, %v932, %v930
      %v934 = vrsqrt.pop %v828
      %v935 = vmul.f32 %v828, %v934
      %vm936 = vcmp.eq.f32.partialorder %v828, inf
      %v937 = vsel %vm936, %v828, %v935
      %vm938 = vcmp.eq.f32.partialorder %v828, 0.0
      %v939 = vand.u32 %v828, 2147483648
      %v940 = vsel %vm938, %v939, %v937
      %v941 = vrsqrt.pop %v831
      %v942 = vmul.f32 %v831, %v941
      %vm943 = vcmp.eq.f32.partialorder %v831, inf
      %v944 = vsel %vm943, %v831, %v942
      %vm945 = vcmp.eq.f32.partialorder %v831, 0.0
      %v946 = vand.u32 %v831, 2147483648
      %v947 = vsel %vm945, %v946, %v944
      %v948 = vrsqrt.pop %v834
      %v949 = vmul.f32 %v834, %v948
      %vm950 = vcmp.eq.f32.partialorder %v834, inf
      %v951 = vsel %vm950, %v834, %v949
      %vm952 = vcmp.eq.f32.partialorder %v834, 0.0
      %v953 = vand.u32 %v834, 2147483648
      %v954 = vsel %vm952, %v953, %v951
      %v955 = vrsqrt.pop %v837
      %v956 = vmul.f32 %v837, %v955
      %vm957 = vcmp.eq.f32.partialorder %v837, inf
      %v958 = vsel %vm957, %v837, %v956
      %vm959 = vcmp.eq.f32.partialorder %v837, 0.0
      %v960 = vand.u32 %v837, 2147483648
      %v961 = vsel %vm959, %v960, %v958
      %v962 = vrsqrt.pop %v840
      %v963 = vmul.f32 %v840, %v962
      %vm964 = vcmp.eq.f32.partialorder %v840, inf
      %v965 = vsel %vm964, %v840, %v963
      %vm966 = vcmp.eq.f32.partialorder %v840, 0.0
      %v967 = vand.u32 %v840, 2147483648
      %v968 = vsel %vm966, %v967, %v965
      %v969 = vrsqrt.pop %v843
      %v970 = vmul.f32 %v843, %v969
      %vm971 = vcmp.eq.f32.partialorder %v843, inf
      %v972 = vsel %vm971, %v843, %v970
      %vm973 = vcmp.eq.f32.partialorder %v843, 0.0
      %v974 = vand.u32 %v843, 2147483648
      %v975 = vsel %vm973, %v974, %v972
      %v976 = vrsqrt.pop %v846
      %v977 = vmul.f32 %v846, %v976
      %vm978 = vcmp.eq.f32.partialorder %v846, inf
      %v979 = vsel %vm978, %v846, %v977
      %vm980 = vcmp.eq.f32.partialorder %v846, 0.0
      %v981 = vand.u32 %v846, 2147483648
      %v982 = vsel %vm980, %v981, %v979
      %v983 = vrsqrt.pop %v849
      %v984 = vmul.f32 %v849, %v983
      %vm985 = vcmp.eq.f32.partialorder %v849, inf
      %v986 = vsel %vm985, %v849, %v984
      %vm987 = vcmp.eq.f32.partialorder %v849, 0.0
      %v988 = vand.u32 %v849, 2147483648
      %v989 = vsel %vm987, %v988, %v986
      %v990 = vrsqrt.pop %v852
      %v991 = vmul.f32 %v852, %v990
      %vm992 = vcmp.eq.f32.partialorder %v852, inf
      %v993 = vsel %vm992, %v852, %v991
      %vm994 = vcmp.eq.f32.partialorder %v852, 0.0
      %v995 = vand.u32 %v852, 2147483648
      %v996 = vsel %vm994, %v995, %v993
      %v997 = vrsqrt.pop %v855
      %v998 = vmul.f32 %v855, %v997
      %vm999 = vcmp.eq.f32.partialorder %v855, inf
      %v1000 = vsel %vm999, %v855, %v998
      %vm1001 = vcmp.eq.f32.partialorder %v855, 0.0
      %v1002 = vand.u32 %v855, 2147483648
      %v1003 = vsel %vm1001, %v1002, %v1000
      %v1004 = vrsqrt.pop %v858
      %v1005 = vmul.f32 %v858, %v1004
      %vm1006 = vcmp.eq.f32.partialorder %v858, inf
      %v1007 = vsel %vm1006, %v858, %v1005
      %vm1008 = vcmp.eq.f32.partialorder %v858, 0.0
      %v1009 = vand.u32 %v858, 2147483648
      %v1010 = vsel %vm1008, %v1009, %v1007
      %v1011 = vrsqrt.pop %v861
      %v1012 = vmul.f32 %v861, %v1011
      %vm1013 = vcmp.eq.f32.partialorder %v861, inf
      %v1014 = vsel %vm1013, %v861, %v1012
      %vm1015 = vcmp.eq.f32.partialorder %v861, 0.0
      %v1016 = vand.u32 %v861, 2147483648
      %v1017 = vsel %vm1015, %v1016, %v1014
      %v1018 = vrsqrt.pop %v864
      %v1019 = vmul.f32 %v864, %v1018
      %vm1020 = vcmp.eq.f32.partialorder %v864, inf
      %v1021 = vsel %vm1020, %v864, %v1019
      %vm1022 = vcmp.eq.f32.partialorder %v864, 0.0
      %v1023 = vand.u32 %v864, 2147483648
      %v1024 = vsel %vm1022, %v1023, %v1021
      %v1025 = vrsqrt.pop %v867
      %v1026 = vmul.f32 %v867, %v1025
      %vm1027 = vcmp.eq.f32.partialorder %v867, inf
      %v1028 = vsel %vm1027, %v867, %v1026
      %vm1029 = vcmp.eq.f32.partialorder %v867, 0.0
      %v1030 = vand.u32 %v867, 2147483648
      %v1031 = vsel %vm1029, %v1030, %v1028
      %v1032 = vrsqrt.pop %v870
      %v1033 = vmul.f32 %v870, %v1032
      %vm1034 = vcmp.eq.f32.partialorder %v870, inf
      %v1035 = vsel %vm1034, %v870, %v1033
      %vm1036 = vcmp.eq.f32.partialorder %v870, 0.0
      %v1037 = vand.u32 %v870, 2147483648
      %v1038 = vsel %vm1036, %v1037, %v1035
      %v1039 = vrsqrt.pop %v873
      %v1040 = vmul.f32 %v873, %v1039
      %vm1041 = vcmp.eq.f32.partialorder %v873, inf
      %v1042 = vsel %vm1041, %v873, %v1040
      %vm1043 = vcmp.eq.f32.partialorder %v873, 0.0
      %v1044 = vand.u32 %v873, 2147483648
      %v1045 = vsel %vm1043, %v1044, %v1042
      %v1046 = vrsqrt.pop %v876
      %v1047 = vmul.f32 %v876, %v1046
      %vm1048 = vcmp.eq.f32.partialorder %v876, inf
      %v1049 = vsel %vm1048, %v876, %v1047
      %vm1050 = vcmp.eq.f32.partialorder %v876, 0.0
      %v1051 = vand.u32 %v876, 2147483648
      %v1052 = vsel %vm1050, %v1051, %v1049
      %v1053 = vrsqrt.pop %v879
      %v1054 = vmul.f32 %v879, %v1053
      %vm1055 = vcmp.eq.f32.partialorder %v879, inf
      %v1056 = vsel %vm1055, %v879, %v1054
      %vm1057 = vcmp.eq.f32.partialorder %v879, 0.0
      %v1058 = vand.u32 %v879, 2147483648
      %v1059 = vsel %vm1057, %v1058, %v1056
      %v1060 = vrsqrt.pop %v882
      %v1061 = vmul.f32 %v882, %v1060
      %vm1062 = vcmp.eq.f32.partialorder %v882, inf
      %v1063 = vsel %vm1062, %v882, %v1061
      %vm1064 = vcmp.eq.f32.partialorder %v882, 0.0
      %v1065 = vand.u32 %v882, 2147483648
      %v1066 = vsel %vm1064, %v1065, %v1063
      %v1067 = vrsqrt.pop %v885
      %v1068 = vmul.f32 %v885, %v1067
      %vm1069 = vcmp.eq.f32.partialorder %v885, inf
      %v1070 = vsel %vm1069, %v885, %v1068
      %vm1071 = vcmp.eq.f32.partialorder %v885, 0.0
      %v1072 = vand.u32 %v885, 2147483648
      %v1073 = vsel %vm1071, %v1072, %v1070
      %v1074 = vrsqrt.pop %v888
      %v1075 = vmul.f32 %v888, %v1074
      %vm1076 = vcmp.eq.f32.partialorder %v888, inf
      %v1077 = vsel %vm1076, %v888, %v1075
      %vm1078 = vcmp.eq.f32.partialorder %v888, 0.0
      %v1079 = vand.u32 %v888, 2147483648
      %v1080 = vsel %vm1078, %v1079, %v1077
      %v1081 = vrsqrt.pop %v891
      %v1082 = vmul.f32 %v891, %v1081
      %vm1083 = vcmp.eq.f32.partialorder %v891, inf
      %v1084 = vsel %vm1083, %v891, %v1082
      %vm1085 = vcmp.eq.f32.partialorder %v891, 0.0
      %v1086 = vand.u32 %v891, 2147483648
      %v1087 = vsel %vm1085, %v1086, %v1084
      %v1088 = vrsqrt.pop %v894
      %v1089 = vmul.f32 %v894, %v1088
      %vm1090 = vcmp.eq.f32.partialorder %v894, inf
      %v1091 = vsel %vm1090, %v894, %v1089
      %vm1092 = vcmp.eq.f32.partialorder %v894, 0.0
      %v1093 = vand.u32 %v894, 2147483648
      %v1094 = vsel %vm1092, %v1093, %v1091
      %v1095 = vrsqrt.pop %v897
      %v1096 = vmul.f32 %v897, %v1095
      %vm1097 = vcmp.eq.f32.partialorder %v897, inf
      %v1098 = vsel %vm1097, %v897, %v1096
      %vm1099 = vcmp.eq.f32.partialorder %v897, 0.0
      %v1100 = vand.u32 %v897, 2147483648
      %v1101 = vsel %vm1099, %v1100, %v1098
      %v1102 = vrsqrt.pop %v900
      %v1103 = vmul.f32 %v900, %v1102
      %vm1104 = vcmp.eq.f32.partialorder %v900, inf
      %v1105 = vsel %vm1104, %v900, %v1103
      %vm1106 = vcmp.eq.f32.partialorder %v900, 0.0
      %v1107 = vand.u32 %v900, 2147483648
      %v1108 = vsel %vm1106, %v1107, %v1105
      %v1109 = vrsqrt.pop %v903
      %v1110 = vmul.f32 %v903, %v1109
      %vm1111 = vcmp.eq.f32.partialorder %v903, inf
      %v1112 = vsel %vm1111, %v903, %v1110
      %vm1113 = vcmp.eq.f32.partialorder %v903, 0.0
      %v1114 = vand.u32 %v903, 2147483648
      %v1115 = vsel %vm1113, %v1114, %v1112
      %v1116 = vrsqrt.pop %v906
      %v1117 = vmul.f32 %v906, %v1116
      %vm1118 = vcmp.eq.f32.partialorder %v906, inf
      %v1119 = vsel %vm1118, %v906, %v1117
      %vm1120 = vcmp.eq.f32.partialorder %v906, 0.0
      %v1121 = vand.u32 %v906, 2147483648
      %v1122 = vsel %vm1120, %v1121, %v1119
      %v1123 = vrsqrt.pop %v909
      %v1124 = vmul.f32 %v909, %v1123
      %vm1125 = vcmp.eq.f32.partialorder %v909, inf
      %v1126 = vsel %vm1125, %v909, %v1124
      %vm1127 = vcmp.eq.f32.partialorder %v909, 0.0
      %v1128 = vand.u32 %v909, 2147483648
      %v1129 = vsel %vm1127, %v1128, %v1126
      %v1130 = vrsqrt.pop %v912
      %v1131 = vmul.f32 %v912, %v1130
      %vm1132 = vcmp.eq.f32.partialorder %v912, inf
      %v1133 = vsel %vm1132, %v912, %v1131
      %vm1134 = vcmp.eq.f32.partialorder %v912, 0.0
      %v1135 = vand.u32 %v912, 2147483648
      %v1136 = vsel %vm1134, %v1135, %v1133
      %v1137 = vmax.f32 %v919, 1e-12
      %v1138 = vmax.f32 %v926, 1e-12
      %v1139 = vmax.f32 %v933, 1e-12
      %v1140 = vmax.f32 %v940, 1e-12
      %v1141 = vmax.f32 %v947, 1e-12
      %v1142 = vmax.f32 %v954, 1e-12
      %v1143 = vmax.f32 %v961, 1e-12
      %v1144 = vmax.f32 %v968, 1e-12
      %v1145 = vmax.f32 %v975, 1e-12
      %v1146 = vmax.f32 %v982, 1e-12
      %v1147 = vmax.f32 %v989, 1e-12
      %v1148 = vmax.f32 %v996, 1e-12
      %v1149 = vmax.f32 %v1003, 1e-12
      %v1150 = vmax.f32 %v1010, 1e-12
      %v1151 = vmax.f32 %v1017, 1e-12
      %v1152 = vmax.f32 %v1024, 1e-12
      %v1153 = vmax.f32 %v1031, 1e-12
      %v1154 = vmax.f32 %v1038, 1e-12
      %v1155 = vmax.f32 %v1045, 1e-12
      %v1156 = vmax.f32 %v1052, 1e-12
      %v1157 = vmax.f32 %v1059, 1e-12
      %v1158 = vmax.f32 %v1066, 1e-12
      %v1159 = vmax.f32 %v1073, 1e-12
      %v1160 = vmax.f32 %v1080, 1e-12
      %v1161 = vmax.f32 %v1087, 1e-12
      %v1162 = vmax.f32 %v1094, 1e-12
      %v1163 = vmax.f32 %v1101, 1e-12
      %v1164 = vmax.f32 %v1108, 1e-12
      %v1165 = vmax.f32 %v1115, 1e-12
      %v1166 = vmax.f32 %v1122, 1e-12
      %v1167 = vmax.f32 %v1129, 1e-12
      %v1168 = vmax.f32 %v1136, 1e-12
      %v1169 = vrcp.pop %v1137
      %v1170 = vmul.f32 %v271, %v1169
      %v1171 = vrcp.pop %v1138
      %v1172 = vmul.f32 %v272, %v1171
      %v1173 = vrcp.pop %v1139
      %v1174 = vmul.f32 %v273, %v1173
      %v1175 = vrcp.pop %v1140
      %v1176 = vmul.f32 %v274, %v1175
      %v1177 = vrcp.pop %v1141
      %v1178 = vmul.f32 %v275, %v1177
      %v1179 = vrcp.pop %v1142
      %v1180 = vmul.f32 %v276, %v1179
      %v1181 = vrcp.pop %v1143
      %v1182 = vmul.f32 %v277, %v1181
      %v1183 = vrcp.pop %v1144
      %v1184 = vmul.f32 %v278, %v1183
      %v1185 = vrcp.pop %v1145
      %v1186 = vmul.f32 %v279, %v1185
      %v1187 = vrcp.pop %v1146
      %v1188 = vmul.f32 %v280, %v1187
      %v1189 = vrcp.pop %v1147
      %v1190 = vmul.f32 %v281, %v1189
      %v1191 = vrcp.pop %v1148
      %v1192 = vmul.f32 %v282, %v1191
      %v1193 = vrcp.pop %v1149
      %v1194 = vmul.f32 %v283, %v1193
      %v1195 = vrcp.pop %v1150
      %v1196 = vmul.f32 %v284, %v1195
      %v1197 = vrcp.pop %v1151
      %v1198 = vmul.f32 %v285, %v1197
      %v1199 = vrcp.pop %v1152
      %v1200 = vmul.f32 %v286, %v1199
      %v1201 = vrcp.pop %v1153
      %v1202 = vmul.f32 %v287, %v1201
      %v1203 = vrcp.pop %v1154
      %v1204 = vmul.f32 %v288, %v1203
      %v1205 = vrcp.pop %v1155
      %v1206 = vmul.f32 %v289, %v1205
      %v1207 = vrcp.pop %v1156
      %v1208 = vmul.f32 %v290, %v1207
      %v1209 = vrcp.pop %v1157
      %v1210 = vmul.f32 %v291, %v1209
      %v1211 = vrcp.pop %v1158
      %v1212 = vmul.f32 %v292, %v1211
      %v1213 = vrcp.pop %v1159
      %v1214 = vmul.f32 %v293, %v1213
      %v1215 = vrcp.pop %v1160
      %v1216 = vmul.f32 %v294, %v1215
      %v1217 = vrcp.pop %v1161
      %v1218 = vmul.f32 %v295, %v1217
      %v1219 = vrcp.pop %v1162
      %v1220 = vmul.f32 %v296, %v1219
      %v1221 = vrcp.pop %v1163
      %v1222 = vmul.f32 %v297, %v1221
      %v1223 = vrcp.pop %v1164
      %v1224 = vmul.f32 %v298, %v1223
      %v1225 = vrcp.pop %v1165
      %v1226 = vmul.f32 %v299, %v1225
      %v1227 = vrcp.pop %v1166
      %v1228 = vmul.f32 %v300, %v1227
      %v1229 = vrcp.pop %v1167
      %v1230 = vmul.f32 %v301, %v1229
      %v1231 = vrcp.pop %v1168
      %v1232 = vmul.f32 %v302, %v1231
      %v1234 = vsel %vm368, %v722, 0
      %v1237 = vsel %vm368, %v724, 0
      %v1240 = vsel %vm368, %v1170, 0
      %v1243 = vsel %vm368, %v1172, 0
      %1245 = vmatprep.subr.mxu0 0.0
      %1246 = vmatpush1.xpose.msra.mxu0 0.0
      %1247 = vmatprep.subr.mxu0 0.0
      %1248 = vmatpush1.xpose.msra.mxu0 0.0
      %1249 = vmatprep.subr.mxu0 0.0
      %1250 = vmatpush1.xpose.msra.mxu0 0.0
      %1251 = vmatprep.subr.mxu0 0.0
      %1252 = vmatpush1.xpose.msra.mxu0 0.0
      %1253 = vmatprep.subr.mxu0 0.0
      %1254 = vmatpush1.xpose.msra.mxu0 0.0
      %1255 = vmatprep.subr.mxu0 0.0
      %1256 = vmatpush1.xpose.msra.mxu0 0.0
      %1257 = vmatprep.subr.mxu0 0.0
      %1258 = vmatpush1.xpose.msra.mxu0 0.0
      %1259 = vmatprep.subr.mxu0 0.0
      %1260 = vmatpush1.xpose.msra.mxu0 0.0
      %1261 = vmatprep.subr.mxu0 0.0
      %1262 = vmatpush1.xpose.msra.mxu0 0.0
      %1263 = vmatprep.subr.mxu0 0.0
      %1264 = vmatpush1.xpose.msra.mxu0 0.0
      %1265 = vmatprep.subr.mxu0 0.0
      %1266 = vmatpush1.xpose.msra.mxu0 0.0
      %1267 = vmatprep.subr.mxu0 0.0
      %1268 = vmatpush1.xpose.msra.mxu0 0.0
      %1269 = vmatprep.subr.mxu0 0.0
      %1270 = vmatpush1.xpose.msra.mxu0 0.0
      %1271 = vmatprep.subr.mxu0 0.0
      %1272 = vmatpush1.xpose.msra.mxu0 0.0
      %1273 = vmatprep.subr.mxu0 0.0
      %1274 = vmatpush1.xpose.msra.mxu0 %v1243
      %1275 = vmatprep.subr.mxu0 0.0
      %1276 = vmatpush1.xpose.msra.mxu0 %v1240
      %1277 = vmatprep.subr.mxu0 0.0
      %1278 = vmatpush2.xpose.msra.mxu0 0.0
      %1279 = vmatprep.subr.mxu0 0.0
      %1280 = vmatpush2.xpose.msra.mxu0 0.0
      %1281 = vmatprep.subr.mxu0 0.0
      %1282 = vmatpush2.xpose.msra.mxu0 0.0
      %1283 = vmatprep.subr.mxu0 0.0
      %1284 = vmatpush2.xpose.msra.mxu0 0.0
      %1285 = vmatprep.subr.mxu0 0.0
      %1286 = vmatpush2.xpose.msra.mxu0 0.0
      %1287 = vmatprep.subr.mxu0 0.0
      %1288 = vmatpush2.xpose.msra.mxu0 0.0
      %1289 = vmatprep.subr.mxu0 0.0
      %1290 = vmatpush2.xpose.msra.mxu0 0.0
      %1291 = vmatprep.subr.mxu0 0.0
      %1292 = vmatpush2.xpose.msra.mxu0 0.0
      %1293 = vmatprep.subr.mxu0 0.0
      %1294 = vmatpush2.xpose.msra.mxu0 0.0
      %1295 = vmatprep.subr.mxu0 0.0
      %1296 = vmatpush2.xpose.msra.mxu0 0.0
      %1297 = vmatprep.subr.mxu0 0.0
      %1298 = vmatpush2.xpose.msra.mxu0 0.0
      %1299 = vmatprep.subr.mxu0 0.0
      %1300 = vmatpush2.xpose.msra.mxu0 0.0
      %1301 = vmatprep.subr.mxu0 0.0
      %1302 = vmatpush2.xpose.msra.mxu0 0.0
      %1303 = vmatprep.subr.mxu0 0.0
      %1304 = vmatpush2.xpose.msra.mxu0 0.0
      %1305 = vmatprep.subr.mxu0 0.0
      %1306 = vmatpush2.xpose.msra.mxu0 0.0
      %1307 = vmatprep.subr.mxu0 0.0
      %1308 = vmatpush2.xpose.msra.mxu0 0.0
      %1309 = vmatprep.mubr.f32.mxu0 0.0
      %1310 = vmatmul.mubr.f32.gmra.mxu0 %v1234
      %v1311 = vpop.f32.mrf.mxu0
      %v1312 = vadd.f32 0.0, %v1311
      %v1313 = vpop.f32.mrf.mxu0
      %1314 = vmatprep.mubr.f32.mxu0 0.0
      %1315 = vmatmul.mubr.f32.gmra.mxu0 %v1237
      %v1316 = vpop.f32.mrf.mxu0
      %v1317 = vadd.f32 0.0, %v1316
      %v1318 = vpop.f32.mrf.mxu0
      %1319 = vdwg.mxu0
      %v1321 = vsel %vm368, %v726, 0
      %v1324 = vsel %vm368, %v728, 0
      %v1327 = vsel %vm368, %v1174, 0
      %v1330 = vsel %vm368, %v1176, 0
      %1332 = vmatprep.subr.mxu0 0.0
      %1333 = vmatpush1.xpose.msra.mxu0 0.0
      %1334 = vmatprep.subr.mxu0 0.0
      %1335 = vmatpush1.xpose.msra.mxu0 0.0
      %1336 = vmatprep.subr.mxu0 0.0
      %1337 = vmatpush1.xpose.msra.mxu0 0.0
      %1338 = vmatprep.subr.mxu0 0.0
      %1339 = vmatpush1.xpose.msra.mxu0 0.0
      %1340 = vmatprep.subr.mxu0 0.0
      %1341 = vmatpush1.xpose.msra.mxu0 0.0
      %1342 = vmatprep.subr.mxu0 0.0
      %1343 = vmatpush1.xpose.msra.mxu0 0.0
      %1344 = vmatprep.subr.mxu0 0.0
      %1345 = vmatpush1.xpose.msra.mxu0 0.0
      %1346 = vmatprep.subr.mxu0 0.0
      %1347 = vmatpush1.xpose.msra.mxu0 0.0
      %1348 = vmatprep.subr.mxu0 0.0
      %1349 = vmatpush1.xpose.msra.mxu0 0.0
      %1350 = vmatprep.subr.mxu0 0.0
      %1351 = vmatpush1.xpose.msra.mxu0 0.0
      %1352 = vmatprep.subr.mxu0 0.0
      %1353 = vmatpush1.xpose.msra.mxu0 0.0
      %1354 = vmatprep.subr.mxu0 0.0
      %1355 = vmatpush1.xpose.msra.mxu0 0.0
      %1356 = vmatprep.subr.mxu0 0.0
      %1357 = vmatpush1.xpose.msra.mxu0 0.0
      %1358 = vmatprep.subr.mxu0 0.0
      %1359 = vmatpush1.xpose.msra.mxu0 0.0
      %1360 = vmatprep.subr.mxu0 0.0
      %1361 = vmatpush1.xpose.msra.mxu0 %v1330
      %1362 = vmatprep.subr.mxu0 0.0
      %1363 = vmatpush1.xpose.msra.mxu0 %v1327
      %1364 = vmatprep.subr.mxu0 0.0
      %1365 = vmatpush2.xpose.msra.mxu0 0.0
      %1366 = vmatprep.subr.mxu0 0.0
      %1367 = vmatpush2.xpose.msra.mxu0 0.0
      %1368 = vmatprep.subr.mxu0 0.0
      %1369 = vmatpush2.xpose.msra.mxu0 0.0
      %1370 = vmatprep.subr.mxu0 0.0
      %1371 = vmatpush2.xpose.msra.mxu0 0.0
      %1372 = vmatprep.subr.mxu0 0.0
      %1373 = vmatpush2.xpose.msra.mxu0 0.0
      %1374 = vmatprep.subr.mxu0 0.0
      %1375 = vmatpush2.xpose.msra.mxu0 0.0
      %1376 = vmatprep.subr.mxu0 0.0
      %1377 = vmatpush2.xpose.msra.mxu0 0.0
      %1378 = vmatprep.subr.mxu0 0.0
      %1379 = vmatpush2.xpose.msra.mxu0 0.0
      %1380 = vmatprep.subr.mxu0 0.0
      %1381 = vmatpush2.xpose.msra.mxu0 0.0
      %1382 = vmatprep.subr.mxu0 0.0
      %1383 = vmatpush2.xpose.msra.mxu0 0.0
      %1384 = vmatprep.subr.mxu0 0.0
      %1385 = vmatpush2.xpose.msra.mxu0 0.0
      %1386 = vmatprep.subr.mxu0 0.0
      %1387 = vmatpush2.xpose.msra.mxu0 0.0
      %1388 = vmatprep.subr.mxu0 0.0
      %1389 = vmatpush2.xpose.msra.mxu0 0.0
      %1390 = vmatprep.subr.mxu0 0.0
      %1391 = vmatpush2.xpose.msra.mxu0 0.0
      %1392 = vmatprep.subr.mxu0 0.0
      %1393 = vmatpush2.xpose.msra.mxu0 0.0
      %1394 = vmatprep.subr.mxu0 0.0
      %1395 = vmatpush2.xpose.msra.mxu0 0.0
      %1396 = vmatprep.mubr.f32.mxu0 0.0
      %1397 = vmatmul.mubr.f32.gmra.mxu0 %v1321
      %v1398 = vpop.f32.mrf.mxu0
      %v1399 = vadd.f32 0.0, %v1398
      %v1400 = vpop.f32.mrf.mxu0
      %1401 = vmatprep.mubr.f32.mxu0 0.0
      %1402 = vmatmul.mubr.f32.gmra.mxu0 %v1324
      %v1403 = vpop.f32.mrf.mxu0
      %v1404 = vadd.f32 0.0, %v1403
      %v1405 = vpop.f32.mrf.mxu0
      %1406 = vdwg.mxu0
      %v1408 = vsel %vm368, %v730, 0
      %v1411 = vsel %vm368, %v732, 0
      %v1414 = vsel %vm368, %v1178, 0
      %v1417 = vsel %vm368, %v1180, 0
      %1419 = vmatprep.subr.mxu0 0.0
      %1420 = vmatpush1.xpose.msra.mxu0 0.0
      %1421 = vmatprep.subr.mxu0 0.0
      %1422 = vmatpush1.xpose.msra.mxu0 0.0
      %1423 = vmatprep.subr.mxu0 0.0
      %1424 = vmatpush1.xpose.msra.mxu0 0.0
      %1425 = vmatprep.subr.mxu0 0.0
      %1426 = vmatpush1.xpose.msra.mxu0 0.0
      %1427 = vmatprep.subr.mxu0 0.0
      %1428 = vmatpush1.xpose.msra.mxu0 0.0
      %1429 = vmatprep.subr.mxu0 0.0
      %1430 = vmatpush1.xpose.msra.mxu0 0.0
      %1431 = vmatprep.subr.mxu0 0.0
      %1432 = vmatpush1.xpose.msra.mxu0 0.0
      %1433 = vmatprep.subr.mxu0 0.0
      %1434 = vmatpush1.xpose.msra.mxu0 0.0
      %1435 = vmatprep.subr.mxu0 0.0
      %1436 = vmatpush1.xpose.msra.mxu0 0.0
      %1437 = vmatprep.subr.mxu0 0.0
      %1438 = vmatpush1.xpose.msra.mxu0 0.0
      %1439 = vmatprep.subr.mxu0 0.0
      %1440 = vmatpush1.xpose.msra.mxu0 0.0
      %1441 = vmatprep.subr.mxu0 0.0
      %1442 = vmatpush1.xpose.msra.mxu0 0.0
      %1443 = vmatprep.subr.mxu0 0.0
      %1444 = vmatpush1.xpose.msra.mxu0 0.0
      %1445 = vmatprep.subr.mxu0 0.0
      %1446 = vmatpush1.xpose.msra.mxu0 0.0
      %1447 = vmatprep.subr.mxu0 0.0
      %1448 = vmatpush1.xpose.msra.mxu0 %v1417
      %1449 = vmatprep.subr.mxu0 0.0
      %1450 = vmatpush1.xpose.msra.mxu0 %v1414
      %1451 = vmatprep.subr.mxu0 0.0
      %1452 = vmatpush2.xpose.msra.mxu0 0.0
      %1453 = vmatprep.subr.mxu0 0.0
      %1454 = vmatpush2.xpose.msra.mxu0 0.0
      %1455 = vmatprep.subr.mxu0 0.0
      %1456 = vmatpush2.xpose.msra.mxu0 0.0
      %1457 = vmatprep.subr.mxu0 0.0
      %1458 = vmatpush2.xpose.msra.mxu0 0.0
      %1459 = vmatprep.subr.mxu0 0.0
      %1460 = vmatpush2.xpose.msra.mxu0 0.0
      %1461 = vmatprep.subr.mxu0 0.0
      %1462 = vmatpush2.xpose.msra.mxu0 0.0
      %1463 = vmatprep.subr.mxu0 0.0
      %1464 = vmatpush2.xpose.msra.mxu0 0.0
      %1465 = vmatprep.subr.mxu0 0.0
      %1466 = vmatpush2.xpose.msra.mxu0 0.0
      %1467 = vmatprep.subr.mxu0 0.0
      %1468 = vmatpush2.xpose.msra.mxu0 0.0
      %1469 = vmatprep.subr.mxu0 0.0
      %1470 = vmatpush2.xpose.msra.mxu0 0.0
      %1471 = vmatprep.subr.mxu0 0.0
      %1472 = vmatpush2.xpose.msra.mxu0 0.0
      %1473 = vmatprep.subr.mxu0 0.0
      %1474 = vmatpush2.xpose.msra.mxu0 0.0
      %1475 = vmatprep.subr.mxu0 0.0
      %1476 = vmatpush2.xpose.msra.mxu0 0.0
      %1477 = vmatprep.subr.mxu0 0.0
      %1478 = vmatpush2.xpose.msra.mxu0 0.0
      %1479 = vmatprep.subr.mxu0 0.0
      %1480 = vmatpush2.xpose.msra.mxu0 0.0
      %1481 = vmatprep.subr.mxu0 0.0
      %1482 = vmatpush2.xpose.msra.mxu0 0.0
      %1483 = vmatprep.mubr.f32.mxu0 0.0
      %1484 = vmatmul.mubr.f32.gmra.mxu0 %v1408
      %v1485 = vpop.f32.mrf.mxu0
      %v1486 = vadd.f32 0.0, %v1485
      %v1487 = vpop.f32.mrf.mxu0
      %1488 = vmatprep.mubr.f32.mxu0 0.0
      %1489 = vmatmul.mubr.f32.gmra.mxu0 %v1411
      %v1490 = vpop.f32.mrf.mxu0
      %v1491 = vadd.f32 0.0, %v1490
      %v1492 = vpop.f32.mrf.mxu0
      %1493 = vdwg.mxu0
      %v1495 = vsel %vm368, %v734, 0
      %v1498 = vsel %vm368, %v736, 0
      %v1501 = vsel %vm368, %v1182, 0
      %v1504 = vsel %vm368, %v1184, 0
      %1506 = vmatprep.subr.mxu0 0.0
      %1507 = vmatpush1.xpose.msra.mxu0 0.0
      %1508 = vmatprep.subr.mxu0 0.0
      %1509 = vmatpush1.xpose.msra.mxu0 0.0
      %1510 = vmatprep.subr.mxu0 0.0
      %1511 = vmatpush1.xpose.msra.mxu0 0.0
      %1512 = vmatprep.subr.mxu0 0.0
      %1513 = vmatpush1.xpose.msra.mxu0 0.0
      %1514 = vmatprep.subr.mxu0 0.0
      %1515 = vmatpush1.xpose.msra.mxu0 0.0
      %1516 = vmatprep.subr.mxu0 0.0
      %1517 = vmatpush1.xpose.msra.mxu0 0.0
      %1518 = vmatprep.subr.mxu0 0.0
      %1519 = vmatpush1.xpose.msra.mxu0 0.0
      %1520 = vmatprep.subr.mxu0 0.0
      %1521 = vmatpush1.xpose.msra.mxu0 0.0
      %1522 = vmatprep.subr.mxu0 0.0
      %1523 = vmatpush1.xpose.msra.mxu0 0.0
      %1524 = vmatprep.subr.mxu0 0.0
      %1525 = vmatpush1.xpose.msra.mxu0 0.0
      %1526 = vmatprep.subr.mxu0 0.0
      %1527 = vmatpush1.xpose.msra.mxu0 0.0
      %1528 = vmatprep.subr.mxu0 0.0
      %1529 = vmatpush1.xpose.msra.mxu0 0.0
      %1530 = vmatprep.subr.mxu0 0.0
      %1531 = vmatpush1.xpose.msra.mxu0 0.0
      %1532 = vmatprep.subr.mxu0 0.0
      %1533 = vmatpush1.xpose.msra.mxu0 0.0
      %1534 = vmatprep.subr.mxu0 0.0
      %1535 = vmatpush1.xpose.msra.mxu0 %v1504
      %1536 = vmatprep.subr.mxu0 0.0
      %1537 = vmatpush1.xpose.msra.mxu0 %v1501
      %1538 = vmatprep.subr.mxu0 0.0
      %1539 = vmatpush2.xpose.msra.mxu0 0.0
      %1540 = vmatprep.subr.mxu0 0.0
      %1541 = vmatpush2.xpose.msra.mxu0 0.0
      %1542 = vmatprep.subr.mxu0 0.0
      %1543 = vmatpush2.xpose.msra.mxu0 0.0
      %1544 = vmatprep.subr.mxu0 0.0
      %1545 = vmatpush2.xpose.msra.mxu0 0.0
      %1546 = vmatprep.subr.mxu0 0.0
      %1547 = vmatpush2.xpose.msra.mxu0 0.0
      %1548 = vmatprep.subr.mxu0 0.0
      %1549 = vmatpush2.xpose.msra.mxu0 0.0
      %1550 = vmatprep.subr.mxu0 0.0
      %1551 = vmatpush2.xpose.msra.mxu0 0.0
      %1552 = vmatprep.subr.mxu0 0.0
      %1553 = vmatpush2.xpose.msra.mxu0 0.0
      %1554 = vmatprep.subr.mxu0 0.0
      %1555 = vmatpush2.xpose.msra.mxu0 0.0
      %1556 = vmatprep.subr.mxu0 0.0
      %1557 = vmatpush2.xpose.msra.mxu0 0.0
      %1558 = vmatprep.subr.mxu0 0.0
      %1559 = vmatpush2.xpose.msra.mxu0 0.0
      %1560 = vmatprep.subr.mxu0 0.0
      %1561 = vmatpush2.xpose.msra.mxu0 0.0
      %1562 = vmatprep.subr.mxu0 0.0
      %1563 = vmatpush2.xpose.msra.mxu0 0.0
      %1564 = vmatprep.subr.mxu0 0.0
      %1565 = vmatpush2.xpose.msra.mxu0 0.0
      %1566 = vmatprep.subr.mxu0 0.0
      %1567 = vmatpush2.xpose.msra.mxu0 0.0
      %1568 = vmatprep.subr.mxu0 0.0
      %1569 = vmatpush2.xpose.msra.mxu0 0.0
      %1570 = vmatprep.mubr.f32.mxu0 0.0
      %1571 = vmatmul.mubr.f32.gmra.mxu0 %v1495
      %v1572 = vpop.f32.mrf.mxu0
      %v1573 = vadd.f32 0.0, %v1572
      %v1574 = vpop.f32.mrf.mxu0
      %1575 = vmatprep.mubr.f32.mxu0 0.0
      %1576 = vmatmul.mubr.f32.gmra.mxu0 %v1498
      %v1577 = vpop.f32.mrf.mxu0
      %v1578 = vadd.f32 0.0, %v1577
      %v1579 = vpop.f32.mrf.mxu0
      %1580 = vdwg.mxu0
      %v1582 = vsel %vm368, %v738, 0
      %v1585 = vsel %vm368, %v740, 0
      %v1588 = vsel %vm368, %v1186, 0
      %v1591 = vsel %vm368, %v1188, 0
      %1593 = vmatprep.subr.mxu0 0.0
      %1594 = vmatpush1.xpose.msra.mxu0 0.0
      %1595 = vmatprep.subr.mxu0 0.0
      %1596 = vmatpush1.xpose.msra.mxu0 0.0
      %1597 = vmatprep.subr.mxu0 0.0
      %1598 = vmatpush1.xpose.msra.mxu0 0.0
      %1599 = vmatprep.subr.mxu0 0.0
      %1600 = vmatpush1.xpose.msra.mxu0 0.0
      %1601 = vmatprep.subr.mxu0 0.0
      %1602 = vmatpush1.xpose.msra.mxu0 0.0
      %1603 = vmatprep.subr.mxu0 0.0
      %1604 = vmatpush1.xpose.msra.mxu0 0.0
      %1605 = vmatprep.subr.mxu0 0.0
      %1606 = vmatpush1.xpose.msra.mxu0 0.0
      %1607 = vmatprep.subr.mxu0 0.0
      %1608 = vmatpush1.xpose.msra.mxu0 0.0
      %1609 = vmatprep.subr.mxu0 0.0
      %1610 = vmatpush1.xpose.msra.mxu0 0.0
      %1611 = vmatprep.subr.mxu0 0.0
      %1612 = vmatpush1.xpose.msra.mxu0 0.0
      %1613 = vmatprep.subr.mxu0 0.0
      %1614 = vmatpush1.xpose.msra.mxu0 0.0
      %1615 = vmatprep.subr.mxu0 0.0
      %1616 = vmatpush1.xpose.msra.mxu0 0.0
      %1617 = vmatprep.subr.mxu0 0.0
      %1618 = vmatpush1.xpose.msra.mxu0 0.0
      %1619 = vmatprep.subr.mxu0 0.0
      %1620 = vmatpush1.xpose.msra.mxu0 0.0
      %1621 = vmatprep.subr.mxu0 0.0
      %1622 = vmatpush1.xpose.msra.mxu0 %v1591
      %1623 = vmatprep.subr.mxu0 0.0
      %1624 = vmatpush1.xpose.msra.mxu0 %v1588
      %1625 = vmatprep.subr.mxu0 0.0
      %1626 = vmatpush2.xpose.msra.mxu0 0.0
      %1627 = vmatprep.subr.mxu0 0.0
      %1628 = vmatpush2.xpose.msra.mxu0 0.0
      %1629 = vmatprep.subr.mxu0 0.0
      %1630 = vmatpush2.xpose.msra.mxu0 0.0
      %1631 = vmatprep.subr.mxu0 0.0
      %1632 = vmatpush2.xpose.msra.mxu0 0.0
      %1633 = vmatprep.subr.mxu0 0.0
      %1634 = vmatpush2.xpose.msra.mxu0 0.0
      %1635 = vmatprep.subr.mxu0 0.0
      %1636 = vmatpush2.xpose.msra.mxu0 0.0
      %1637 = vmatprep.subr.mxu0 0.0
      %1638 = vmatpush2.xpose.msra.mxu0 0.0
      %1639 = vmatprep.subr.mxu0 0.0
      %1640 = vmatpush2.xpose.msra.mxu0 0.0
      %1641 = vmatprep.subr.mxu0 0.0
      %1642 = vmatpush2.xpose.msra.mxu0 0.0
      %1643 = vmatprep.subr.mxu0 0.0
      %1644 = vmatpush2.xpose.msra.mxu0 0.0
      %1645 = vmatprep.subr.mxu0 0.0
      %1646 = vmatpush2.xpose.msra.mxu0 0.0
      %1647 = vmatprep.subr.mxu0 0.0
      %1648 = vmatpush2.xpose.msra.mxu0 0.0
      %1649 = vmatprep.subr.mxu0 0.0
      %1650 = vmatpush2.xpose.msra.mxu0 0.0
      %1651 = vmatprep.subr.mxu0 0.0
      %1652 = vmatpush2.xpose.msra.mxu0 0.0
      %1653 = vmatprep.subr.mxu0 0.0
      %1654 = vmatpush2.xpose.msra.mxu0 0.0
      %1655 = vmatprep.subr.mxu0 0.0
      %1656 = vmatpush2.xpose.msra.mxu0 0.0
      %1657 = vmatprep.mubr.f32.mxu0 0.0
      %1658 = vmatmul.mubr.f32.gmra.mxu0 %v1582
      %v1659 = vpop.f32.mrf.mxu0
      %v1660 = vadd.f32 0.0, %v1659
      %v1661 = vpop.f32.mrf.mxu0
      %1662 = vmatprep.mubr.f32.mxu0 0.0
      %1663 = vmatmul.mubr.f32.gmra.mxu0 %v1585
      %v1664 = vpop.f32.mrf.mxu0
      %v1665 = vadd.f32 0.0, %v1664
      %v1666 = vpop.f32.mrf.mxu0
      %1667 = vdwg.mxu0
      %v1669 = vsel %vm368, %v742, 0
      %v1672 = vsel %vm368, %v744, 0
      %v1675 = vsel %vm368, %v1190, 0
      %v1678 = vsel %vm368, %v1192, 0
      %1680 = vmatprep.subr.mxu0 0.0
      %1681 = vmatpush1.xpose.msra.mxu0 0.0
      %1682 = vmatprep.subr.mxu0 0.0
      %1683 = vmatpush1.xpose.msra.mxu0 0.0
      %1684 = vmatprep.subr.mxu0 0.0
      %1685 = vmatpush1.xpose.msra.mxu0 0.0
      %1686 = vmatprep.subr.mxu0 0.0
      %1687 = vmatpush1.xpose.msra.mxu0 0.0
      %1688 = vmatprep.subr.mxu0 0.0
      %1689 = vmatpush1.xpose.msra.mxu0 0.0
      %1690 = vmatprep.subr.mxu0 0.0
      %1691 = vmatpush1.xpose.msra.mxu0 0.0
      %1692 = vmatprep.subr.mxu0 0.0
      %1693 = vmatpush1.xpose.msra.mxu0 0.0
      %1694 = vmatprep.subr.mxu0 0.0
      %1695 = vmatpush1.xpose.msra.mxu0 0.0
      %1696 = vmatprep.subr.mxu0 0.0
      %1697 = vmatpush1.xpose.msra.mxu0 0.0
      %1698 = vmatprep.subr.mxu0 0.0
      %1699 = vmatpush1.xpose.msra.mxu0 0.0
      %1700 = vmatprep.subr.mxu0 0.0
      %1701 = vmatpush1.xpose.msra.mxu0 0.0
      %1702 = vmatprep.subr.mxu0 0.0
      %1703 = vmatpush1.xpose.msra.mxu0 0.0
      %1704 = vmatprep.subr.mxu0 0.0
      %1705 = vmatpush1.xpose.msra.mxu0 0.0
      %1706 = vmatprep.subr.mxu0 0.0
      %1707 = vmatpush1.xpose.msra.mxu0 0.0
      %1708 = vmatprep.subr.mxu0 0.0
      %1709 = vmatpush1.xpose.msra.mxu0 %v1678
      %1710 = vmatprep.subr.mxu0 0.0
      %1711 = vmatpush1.xpose.msra.mxu0 %v1675
      %1712 = vmatprep.subr.mxu0 0.0
      %1713 = vmatpush2.xpose.msra.mxu0 0.0
      %1714 = vmatprep.subr.mxu0 0.0
      %1715 = vmatpush2.xpose.msra.mxu0 0.0
      %1716 = vmatprep.subr.mxu0 0.0
      %1717 = vmatpush2.xpose.msra.mxu0 0.0
      %1718 = vmatprep.subr.mxu0 0.0
      %1719 = vmatpush2.xpose.msra.mxu0 0.0
      %1720 = vmatprep.subr.mxu0 0.0
      %1721 = vmatpush2.xpose.msra.mxu0 0.0
      %1722 = vmatprep.subr.mxu0 0.0
      %1723 = vmatpush2.xpose.msra.mxu0 0.0
      %1724 = vmatprep.subr.mxu0 0.0
      %1725 = vmatpush2.xpose.msra.mxu0 0.0
      %1726 = vmatprep.subr.mxu0 0.0
      %1727 = vmatpush2.xpose.msra.mxu0 0.0
      %1728 = vmatprep.subr.mxu0 0.0
      %1729 = vmatpush2.xpose.msra.mxu0 0.0
      %1730 = vmatprep.subr.mxu0 0.0
      %1731 = vmatpush2.xpose.msra.mxu0 0.0
      %1732 = vmatprep.subr.mxu0 0.0
      %1733 = vmatpush2.xpose.msra.mxu0 0.0
      %1734 = vmatprep.subr.mxu0 0.0
      %1735 = vmatpush2.xpose.msra.mxu0 0.0
      %1736 = vmatprep.subr.mxu0 0.0
      %1737 = vmatpush2.xpose.msra.mxu0 0.0
      %1738 = vmatprep.subr.mxu0 0.0
      %1739 = vmatpush2.xpose.msra.mxu0 0.0
      %1740 = vmatprep.subr.mxu0 0.0
      %1741 = vmatpush2.xpose.msra.mxu0 0.0
      %1742 = vmatprep.subr.mxu0 0.0
      %1743 = vmatpush2.xpose.msra.mxu0 0.0
      %1744 = vmatprep.mubr.f32.mxu0 0.0
      %1745 = vmatmul.mubr.f32.gmra.mxu0 %v1669
      %v1746 = vpop.f32.mrf.mxu0
      %v1747 = vadd.f32 0.0, %v1746
      %v1748 = vpop.f32.mrf.mxu0
      %1749 = vmatprep.mubr.f32.mxu0 0.0
      %1750 = vmatmul.mubr.f32.gmra.mxu0 %v1672
      %v1751 = vpop.f32.mrf.mxu0
      %v1752 = vadd.f32 0.0, %v1751
      %v1753 = vpop.f32.mrf.mxu0
      %1754 = vdwg.mxu0
      %v1756 = vsel %vm368, %v746, 0
      %v1759 = vsel %vm368, %v748, 0
      %v1762 = vsel %vm368, %v1194, 0
      %v1765 = vsel %vm368, %v1196, 0
      %1767 = vmatprep.subr.mxu0 0.0
      %1768 = vmatpush1.xpose.msra.mxu0 0.0
      %1769 = vmatprep.subr.mxu0 0.0
      %1770 = vmatpush1.xpose.msra.mxu0 0.0
      %1771 = vmatprep.subr.mxu0 0.0
      %1772 = vmatpush1.xpose.msra.mxu0 0.0
      %1773 = vmatprep.subr.mxu0 0.0
      %1774 = vmatpush1.xpose.msra.mxu0 0.0
      %1775 = vmatprep.subr.mxu0 0.0
      %1776 = vmatpush1.xpose.msra.mxu0 0.0
      %1777 = vmatprep.subr.mxu0 0.0
      %1778 = vmatpush1.xpose.msra.mxu0 0.0
      %1779 = vmatprep.subr.mxu0 0.0
      %1780 = vmatpush1.xpose.msra.mxu0 0.0
      %1781 = vmatprep.subr.mxu0 0.0
      %1782 = vmatpush1.xpose.msra.mxu0 0.0
      %1783 = vmatprep.subr.mxu0 0.0
      %1784 = vmatpush1.xpose.msra.mxu0 0.0
      %1785 = vmatprep.subr.mxu0 0.0
      %1786 = vmatpush1.xpose.msra.mxu0 0.0
      %1787 = vmatprep.subr.mxu0 0.0
      %1788 = vmatpush1.xpose.msra.mxu0 0.0
      %1789 = vmatprep.subr.mxu0 0.0
      %1790 = vmatpush1.xpose.msra.mxu0 0.0
      %1791 = vmatprep.subr.mxu0 0.0
      %1792 = vmatpush1.xpose.msra.mxu0 0.0
      %1793 = vmatprep.subr.mxu0 0.0
      %1794 = vmatpush1.xpose.msra.mxu0 0.0
      %1795 = vmatprep.subr.mxu0 0.0
      %1796 = vmatpush1.xpose.msra.mxu0 %v1765
      %1797 = vmatprep.subr.mxu0 0.0
      %1798 = vmatpush1.xpose.msra.mxu0 %v1762
      %1799 = vmatprep.subr.mxu0 0.0
      %1800 = vmatpush2.xpose.msra.mxu0 0.0
      %1801 = vmatprep.subr.mxu0 0.0
      %1802 = vmatpush2.xpose.msra.mxu0 0.0
      %1803 = vmatprep.subr.mxu0 0.0
      %1804 = vmatpush2.xpose.msra.mxu0 0.0
      %1805 = vmatprep.subr.mxu0 0.0
      %1806 = vmatpush2.xpose.msra.mxu0 0.0
      %1807 = vmatprep.subr.mxu0 0.0
      %1808 = vmatpush2.xpose.msra.mxu0 0.0
      %1809 = vmatprep.subr.mxu0 0.0
      %1810 = vmatpush2.xpose.msra.mxu0 0.0
      %1811 = vmatprep.subr.mxu0 0.0
      %1812 = vmatpush2.xpose.msra.mxu0 0.0
      %1813 = vmatprep.subr.mxu0 0.0
      %1814 = vmatpush2.xpose.msra.mxu0 0.0
      %1815 = vmatprep.subr.mxu0 0.0
      %1816 = vmatpush2.xpose.msra.mxu0 0.0
      %1817 = vmatprep.subr.mxu0 0.0
      %1818 = vmatpush2.xpose.msra.mxu0 0.0
      %1819 = vmatprep.subr.mxu0 0.0
      %1820 = vmatpush2.xpose.msra.mxu0 0.0
      %1821 = vmatprep.subr.mxu0 0.0
      %1822 = vmatpush2.xpose.msra.mxu0 0.0
      %1823 = vmatprep.subr.mxu0 0.0
      %1824 = vmatpush2.xpose.msra.mxu0 0.0
      %1825 = vmatprep.subr.mxu0 0.0
      %1826 = vmatpush2.xpose.msra.mxu0 0.0
      %1827 = vmatprep.subr.mxu0 0.0
      %1828 = vmatpush2.xpose.msra.mxu0 0.0
      %1829 = vmatprep.subr.mxu0 0.0
      %1830 = vmatpush2.xpose.msra.mxu0 0.0
      %1831 = vmatprep.mubr.f32.mxu0 0.0
      %1832 = vmatmul.mubr.f32.gmra.mxu0 %v1756
      %v1833 = vpop.f32.mrf.mxu0
      %v1834 = vadd.f32 0.0, %v1833
      %v1835 = vpop.f32.mrf.mxu0
      %1836 = vmatprep.mubr.f32.mxu0 0.0
      %1837 = vmatmul.mubr.f32.gmra.mxu0 %v1759
      %v1838 = vpop.f32.mrf.mxu0
      %v1839 = vadd.f32 0.0, %v1838
      %v1840 = vpop.f32.mrf.mxu0
      %1841 = vdwg.mxu0
      %v1843 = vsel %vm368, %v750, 0
      %v1846 = vsel %vm368, %v752, 0
      %v1849 = vsel %vm368, %v1198, 0
      %v1852 = vsel %vm368, %v1200, 0
      %1854 = vmatprep.subr.mxu0 0.0
      %1855 = vmatpush1.xpose.msra.mxu0 0.0
      %1856 = vmatprep.subr.mxu0 0.0
      %1857 = vmatpush1.xpose.msra.mxu0 0.0
      %1858 = vmatprep.subr.mxu0 0.0
      %1859 = vmatpush1.xpose.msra.mxu0 0.0
      %1860 = vmatprep.subr.mxu0 0.0
      %1861 = vmatpush1.xpose.msra.mxu0 0.0
      %1862 = vmatprep.subr.mxu0 0.0
      %1863 = vmatpush1.xpose.msra.mxu0 0.0
      %1864 = vmatprep.subr.mxu0 0.0
      %1865 = vmatpush1.xpose.msra.mxu0 0.0
      %1866 = vmatprep.subr.mxu0 0.0
      %1867 = vmatpush1.xpose.msra.mxu0 0.0
      %1868 = vmatprep.subr.mxu0 0.0
      %1869 = vmatpush1.xpose.msra.mxu0 0.0
      %1870 = vmatprep.subr.mxu0 0.0
      %1871 = vmatpush1.xpose.msra.mxu0 0.0
      %1872 = vmatprep.subr.mxu0 0.0
      %1873 = vmatpush1.xpose.msra.mxu0 0.0
      %1874 = vmatprep.subr.mxu0 0.0
      %1875 = vmatpush1.xpose.msra.mxu0 0.0
      %1876 = vmatprep.subr.mxu0 0.0
      %1877 = vmatpush1.xpose.msra.mxu0 0.0
      %1878 = vmatprep.subr.mxu0 0.0
      %1879 = vmatpush1.xpose.msra.mxu0 0.0
      %1880 = vmatprep.subr.mxu0 0.0
      %1881 = vmatpush1.xpose.msra.mxu0 0.0
      %1882 = vmatprep.subr.mxu0 0.0
      %1883 = vmatpush1.xpose.msra.mxu0 %v1852
      %1884 = vmatprep.subr.mxu0 0.0
      %1885 = vmatpush1.xpose.msra.mxu0 %v1849
      %1886 = vmatprep.subr.mxu0 0.0
      %1887 = vmatpush2.xpose.msra.mxu0 0.0
      %1888 = vmatprep.subr.mxu0 0.0
      %1889 = vmatpush2.xpose.msra.mxu0 0.0
      %1890 = vmatprep.subr.mxu0 0.0
      %1891 = vmatpush2.xpose.msra.mxu0 0.0
      %1892 = vmatprep.subr.mxu0 0.0
      %1893 = vmatpush2.xpose.msra.mxu0 0.0
      %1894 = vmatprep.subr.mxu0 0.0
      %1895 = vmatpush2.xpose.msra.mxu0 0.0
      %1896 = vmatprep.subr.mxu0 0.0
      %1897 = vmatpush2.xpose.msra.mxu0 0.0
      %1898 = vmatprep.subr.mxu0 0.0
      %1899 = vmatpush2.xpose.msra.mxu0 0.0
      %1900 = vmatprep.subr.mxu0 0.0
      %1901 = vmatpush2.xpose.msra.mxu0 0.0
      %1902 = vmatprep.subr.mxu0 0.0
      %1903 = vmatpush2.xpose.msra.mxu0 0.0
      %1904 = vmatprep.subr.mxu0 0.0
      %1905 = vmatpush2.xpose.msra.mxu0 0.0
      %1906 = vmatprep.subr.mxu0 0.0
      %1907 = vmatpush2.xpose.msra.mxu0 0.0
      %1908 = vmatprep.subr.mxu0 0.0
      %1909 = vmatpush2.xpose.msra.mxu0 0.0
      %1910 = vmatprep.subr.mxu0 0.0
      %1911 = vmatpush2.xpose.msra.mxu0 0.0
      %1912 = vmatprep.subr.mxu0 0.0
      %1913 = vmatpush2.xpose.msra.mxu0 0.0
      %1914 = vmatprep.subr.mxu0 0.0
      %1915 = vmatpush2.xpose.msra.mxu0 0.0
      %1916 = vmatprep.subr.mxu0 0.0
      %1917 = vmatpush2.xpose.msra.mxu0 0.0
      %1918 = vmatprep.mubr.f32.mxu0 0.0
      %1919 = vmatmul.mubr.f32.gmra.mxu0 %v1843
      %v1920 = vpop.f32.mrf.mxu0
      %v1921 = vadd.f32 0.0, %v1920
      %v1922 = vpop.f32.mrf.mxu0
      %1923 = vmatprep.mubr.f32.mxu0 0.0
      %1924 = vmatmul.mubr.f32.gmra.mxu0 %v1846
      %v1925 = vpop.f32.mrf.mxu0
      %v1926 = vadd.f32 0.0, %v1925
      %v1927 = vpop.f32.mrf.mxu0
      %1928 = vdwg.mxu0
      %v1930 = vsel %vm368, %v754, 0
      %v1933 = vsel %vm368, %v756, 0
      %v1936 = vsel %vm368, %v1202, 0
      %v1939 = vsel %vm368, %v1204, 0
      %1941 = vmatprep.subr.mxu0 0.0
      %1942 = vmatpush1.xpose.msra.mxu0 0.0
      %1943 = vmatprep.subr.mxu0 0.0
      %1944 = vmatpush1.xpose.msra.mxu0 0.0
      %1945 = vmatprep.subr.mxu0 0.0
      %1946 = vmatpush1.xpose.msra.mxu0 0.0
      %1947 = vmatprep.subr.mxu0 0.0
      %1948 = vmatpush1.xpose.msra.mxu0 0.0
      %1949 = vmatprep.subr.mxu0 0.0
      %1950 = vmatpush1.xpose.msra.mxu0 0.0
      %1951 = vmatprep.subr.mxu0 0.0
      %1952 = vmatpush1.xpose.msra.mxu0 0.0
      %1953 = vmatprep.subr.mxu0 0.0
      %1954 = vmatpush1.xpose.msra.mxu0 0.0
      %1955 = vmatprep.subr.mxu0 0.0
      %1956 = vmatpush1.xpose.msra.mxu0 0.0
      %1957 = vmatprep.subr.mxu0 0.0
      %1958 = vmatpush1.xpose.msra.mxu0 0.0
      %1959 = vmatprep.subr.mxu0 0.0
      %1960 = vmatpush1.xpose.msra.mxu0 0.0
      %1961 = vmatprep.subr.mxu0 0.0
      %1962 = vmatpush1.xpose.msra.mxu0 0.0
      %1963 = vmatprep.subr.mxu0 0.0
      %1964 = vmatpush1.xpose.msra.mxu0 0.0
      %1965 = vmatprep.subr.mxu0 0.0
      %1966 = vmatpush1.xpose.msra.mxu0 0.0
      %1967 = vmatprep.subr.mxu0 0.0
      %1968 = vmatpush1.xpose.msra.mxu0 0.0
      %1969 = vmatprep.subr.mxu0 0.0
      %1970 = vmatpush1.xpose.msra.mxu0 %v1939
      %1971 = vmatprep.subr.mxu0 0.0
      %1972 = vmatpush1.xpose.msra.mxu0 %v1936
      %1973 = vmatprep.subr.mxu0 0.0
      %1974 = vmatpush2.xpose.msra.mxu0 0.0
      %1975 = vmatprep.subr.mxu0 0.0
      %1976 = vmatpush2.xpose.msra.mxu0 0.0
      %1977 = vmatprep.subr.mxu0 0.0
      %1978 = vmatpush2.xpose.msra.mxu0 0.0
      %1979 = vmatprep.subr.mxu0 0.0
      %1980 = vmatpush2.xpose.msra.mxu0 0.0
      %1981 = vmatprep.subr.mxu0 0.0
      %1982 = vmatpush2.xpose.msra.mxu0 0.0
      %1983 = vmatprep.subr.mxu0 0.0
      %1984 = vmatpush2.xpose.msra.mxu0 0.0
      %1985 = vmatprep.subr.mxu0 0.0
      %1986 = vmatpush2.xpose.msra.mxu0 0.0
      %1987 = vmatprep.subr.mxu0 0.0
      %1988 = vmatpush2.xpose.msra.mxu0 0.0
      %1989 = vmatprep.subr.mxu0 0.0
      %1990 = vmatpush2.xpose.msra.mxu0 0.0
      %1991 = vmatprep.subr.mxu0 0.0
      %1992 = vmatpush2.xpose.msra.mxu0 0.0
      %1993 = vmatprep.subr.mxu0 0.0
      %1994 = vmatpush2.xpose.msra.mxu0 0.0
      %1995 = vmatprep.subr.mxu0 0.0
      %1996 = vmatpush2.xpose.msra.mxu0 0.0
      %1997 = vmatprep.subr.mxu0 0.0
      %1998 = vmatpush2.xpose.msra.mxu0 0.0
      %1999 = vmatprep.subr.mxu0 0.0
      %2000 = vmatpush2.xpose.msra.mxu0 0.0
      %2001 = vmatprep.subr.mxu0 0.0
      %2002 = vmatpush2.xpose.msra.mxu0 0.0
      %2003 = vmatprep.subr.mxu0 0.0
      %2004 = vmatpush2.xpose.msra.mxu0 0.0
      %2005 = vmatprep.mubr.f32.mxu0 0.0
      %2006 = vmatmul.mubr.f32.gmra.mxu0 %v1930
      %v2007 = vpop.f32.mrf.mxu0
      %v2008 = vadd.f32 0.0, %v2007
      %v2009 = vpop.f32.mrf.mxu0
      %2010 = vmatprep.mubr.f32.mxu0 0.0
      %2011 = vmatmul.mubr.f32.gmra.mxu0 %v1933
      %v2012 = vpop.f32.mrf.mxu0
      %v2013 = vadd.f32 0.0, %v2012
      %v2014 = vpop.f32.mrf.mxu0
      %2015 = vdwg.mxu0
      %v2017 = vsel %vm368, %v758, 0
      %v2020 = vsel %vm368, %v760, 0
      %v2023 = vsel %vm368, %v1206, 0
      %v2026 = vsel %vm368, %v1208, 0
      %2028 = vmatprep.subr.mxu0 0.0
      %2029 = vmatpush1.xpose.msra.mxu0 0.0
      %2030 = vmatprep.subr.mxu0 0.0
      %2031 = vmatpush1.xpose.msra.mxu0 0.0
      %2032 = vmatprep.subr.mxu0 0.0
      %2033 = vmatpush1.xpose.msra.mxu0 0.0
      %2034 = vmatprep.subr.mxu0 0.0
      %2035 = vmatpush1.xpose.msra.mxu0 0.0
      %2036 = vmatprep.subr.mxu0 0.0
      %2037 = vmatpush1.xpose.msra.mxu0 0.0
      %2038 = vmatprep.subr.mxu0 0.0
      %2039 = vmatpush1.xpose.msra.mxu0 0.0
      %2040 = vmatprep.subr.mxu0 0.0
      %2041 = vmatpush1.xpose.msra.mxu0 0.0
      %2042 = vmatprep.subr.mxu0 0.0
      %2043 = vmatpush1.xpose.msra.mxu0 0.0
      %2044 = vmatprep.subr.mxu0 0.0
      %2045 = vmatpush1.xpose.msra.mxu0 0.0
      %2046 = vmatprep.subr.mxu0 0.0
      %2047 = vmatpush1.xpose.msra.mxu0 0.0
      %2048 = vmatprep.subr.mxu0 0.0
      %2049 = vmatpush1.xpose.msra.mxu0 0.0
      %2050 = vmatprep.subr.mxu0 0.0
      %2051 = vmatpush1.xpose.msra.mxu0 0.0
      %2052 = vmatprep.subr.mxu0 0.0
      %2053 = vmatpush1.xpose.msra.mxu0 0.0
      %2054 = vmatprep.subr.mxu0 0.0
      %2055 = vmatpush1.xpose.msra.mxu0 0.0
      %2056 = vmatprep.subr.mxu0 0.0
      %2057 = vmatpush1.xpose.msra.mxu0 %v2026
      %2058 = vmatprep.subr.mxu0 0.0
      %2059 = vmatpush1.xpose.msra.mxu0 %v2023
      %2060 = vmatprep.subr.mxu0 0.0
      %2061 = vmatpush2.xpose.msra.mxu0 0.0
      %2062 = vmatprep.subr.mxu0 0.0
      %2063 = vmatpush2.xpose.msra.mxu0 0.0
      %2064 = vmatprep.subr.mxu0 0.0
      %2065 = vmatpush2.xpose.msra.mxu0 0.0
      %2066 = vmatprep.subr.mxu0 0.0
      %2067 = vmatpush2.xpose.msra.mxu0 0.0
      %2068 = vmatprep.subr.mxu0 0.0
      %2069 = vmatpush2.xpose.msra.mxu0 0.0
      %2070 = vmatprep.subr.mxu0 0.0
      %2071 = vmatpush2.xpose.msra.mxu0 0.0
      %2072 = vmatprep.subr.mxu0 0.0
      %2073 = vmatpush2.xpose.msra.mxu0 0.0
      %2074 = vmatprep.subr.mxu0 0.0
      %2075 = vmatpush2.xpose.msra.mxu0 0.0
      %2076 = vmatprep.subr.mxu0 0.0
      %2077 = vmatpush2.xpose.msra.mxu0 0.0
      %2078 = vmatprep.subr.mxu0 0.0
      %2079 = vmatpush2.xpose.msra.mxu0 0.0
      %2080 = vmatprep.subr.mxu0 0.0
      %2081 = vmatpush2.xpose.msra.mxu0 0.0
      %2082 = vmatprep.subr.mxu0 0.0
      %2083 = vmatpush2.xpose.msra.mxu0 0.0
      %2084 = vmatprep.subr.mxu0 0.0
      %2085 = vmatpush2.xpose.msra.mxu0 0.0
      %2086 = vmatprep.subr.mxu0 0.0
      %2087 = vmatpush2.xpose.msra.mxu0 0.0
      %2088 = vmatprep.subr.mxu0 0.0
      %2089 = vmatpush2.xpose.msra.mxu0 0.0
      %2090 = vmatprep.subr.mxu0 0.0
      %2091 = vmatpush2.xpose.msra.mxu0 0.0
      %2092 = vmatprep.mubr.f32.mxu0 0.0
      %2093 = vmatmul.mubr.f32.gmra.mxu0 %v2017
      %v2094 = vpop.f32.mrf.mxu0
      %v2095 = vadd.f32 0.0, %v2094
      %v2096 = vpop.f32.mrf.mxu0
      %2097 = vmatprep.mubr.f32.mxu0 0.0
      %2098 = vmatmul.mubr.f32.gmra.mxu0 %v2020
      %v2099 = vpop.f32.mrf.mxu0
      %v2100 = vadd.f32 0.0, %v2099
      %v2101 = vpop.f32.mrf.mxu0
      %2102 = vdwg.mxu0
      %v2104 = vsel %vm368, %v762, 0
      %v2107 = vsel %vm368, %v764, 0
      %v2110 = vsel %vm368, %v1210, 0
      %v2113 = vsel %vm368, %v1212, 0
      %2115 = vmatprep.subr.mxu0 0.0
      %2116 = vmatpush1.xpose.msra.mxu0 0.0
      %2117 = vmatprep.subr.mxu0 0.0
      %2118 = vmatpush1.xpose.msra.mxu0 0.0
      %2119 = vmatprep.subr.mxu0 0.0
      %2120 = vmatpush1.xpose.msra.mxu0 0.0
      %2121 = vmatprep.subr.mxu0 0.0
      %2122 = vmatpush1.xpose.msra.mxu0 0.0
      %2123 = vmatprep.subr.mxu0 0.0
      %2124 = vmatpush1.xpose.msra.mxu0 0.0
      %2125 = vmatprep.subr.mxu0 0.0
      %2126 = vmatpush1.xpose.msra.mxu0 0.0
      %2127 = vmatprep.subr.mxu0 0.0
      %2128 = vmatpush1.xpose.msra.mxu0 0.0
      %2129 = vmatprep.subr.mxu0 0.0
      %2130 = vmatpush1.xpose.msra.mxu0 0.0
      %2131 = vmatprep.subr.mxu0 0.0
      %2132 = vmatpush1.xpose.msra.mxu0 0.0
      %2133 = vmatprep.subr.mxu0 0.0
      %2134 = vmatpush1.xpose.msra.mxu0 0.0
      %2135 = vmatprep.subr.mxu0 0.0
      %2136 = vmatpush1.xpose.msra.mxu0 0.0
      %2137 = vmatprep.subr.mxu0 0.0
      %2138 = vmatpush1.xpose.msra.mxu0 0.0
      %2139 = vmatprep.subr.mxu0 0.0
      %2140 = vmatpush1.xpose.msra.mxu0 0.0
      %2141 = vmatprep.subr.mxu0 0.0
      %2142 = vmatpush1.xpose.msra.mxu0 0.0
      %2143 = vmatprep.subr.mxu0 0.0
      %2144 = vmatpush1.xpose.msra.mxu0 %v2113
      %2145 = vmatprep.subr.mxu0 0.0
      %2146 = vmatpush1.xpose.msra.mxu0 %v2110
      %2147 = vmatprep.subr.mxu0 0.0
      %2148 = vmatpush2.xpose.msra.mxu0 0.0
      %2149 = vmatprep.subr.mxu0 0.0
      %2150 = vmatpush2.xpose.msra.mxu0 0.0
      %2151 = vmatprep.subr.mxu0 0.0
      %2152 = vmatpush2.xpose.msra.mxu0 0.0
      %2153 = vmatprep.subr.mxu0 0.0
      %2154 = vmatpush2.xpose.msra.mxu0 0.0
      %2155 = vmatprep.subr.mxu0 0.0
      %2156 = vmatpush2.xpose.msra.mxu0 0.0
      %2157 = vmatprep.subr.mxu0 0.0
      %2158 = vmatpush2.xpose.msra.mxu0 0.0
      %2159 = vmatprep.subr.mxu0 0.0
      %2160 = vmatpush2.xpose.msra.mxu0 0.0
      %2161 = vmatprep.subr.mxu0 0.0
      %2162 = vmatpush2.xpose.msra.mxu0 0.0
      %2163 = vmatprep.subr.mxu0 0.0
      %2164 = vmatpush2.xpose.msra.mxu0 0.0
      %2165 = vmatprep.subr.mxu0 0.0
      %2166 = vmatpush2.xpose.msra.mxu0 0.0
      %2167 = vmatprep.subr.mxu0 0.0
      %2168 = vmatpush2.xpose.msra.mxu0 0.0
      %2169 = vmatprep.subr.mxu0 0.0
      %2170 = vmatpush2.xpose.msra.mxu0 0.0
      %2171 = vmatprep.subr.mxu0 0.0
      %2172 = vmatpush2.xpose.msra.mxu0 0.0
      %2173 = vmatprep.subr.mxu0 0.0
      %2174 = vmatpush2.xpose.msra.mxu0 0.0
      %2175 = vmatprep.subr.mxu0 0.0
      %2176 = vmatpush2.xpose.msra.mxu0 0.0
      %2177 = vmatprep.subr.mxu0 0.0
      %2178 = vmatpush2.xpose.msra.mxu0 0.0
      %2179 = vmatprep.mubr.f32.mxu0 0.0
      %2180 = vmatmul.mubr.f32.gmra.mxu0 %v2104
      %v2181 = vpop.f32.mrf.mxu0
      %v2182 = vadd.f32 0.0, %v2181
      %v2183 = vpop.f32.mrf.mxu0
      %2184 = vmatprep.mubr.f32.mxu0 0.0
      %2185 = vmatmul.mubr.f32.gmra.mxu0 %v2107
      %v2186 = vpop.f32.mrf.mxu0
      %v2187 = vadd.f32 0.0, %v2186
      %v2188 = vpop.f32.mrf.mxu0
      %2189 = vdwg.mxu0
      %v2191 = vsel %vm368, %v766, 0
      %v2194 = vsel %vm368, %v768, 0
      %v2197 = vsel %vm368, %v1214, 0
      %v2200 = vsel %vm368, %v1216, 0
      %2202 = vmatprep.subr.mxu0 0.0
      %2203 = vmatpush1.xpose.msra.mxu0 0.0
      %2204 = vmatprep.subr.mxu0 0.0
      %2205 = vmatpush1.xpose.msra.mxu0 0.0
      %2206 = vmatprep.subr.mxu0 0.0
      %2207 = vmatpush1.xpose.msra.mxu0 0.0
      %2208 = vmatprep.subr.mxu0 0.0
      %2209 = vmatpush1.xpose.msra.mxu0 0.0
      %2210 = vmatprep.subr.mxu0 0.0
      %2211 = vmatpush1.xpose.msra.mxu0 0.0
      %2212 = vmatprep.subr.mxu0 0.0
      %2213 = vmatpush1.xpose.msra.mxu0 0.0
      %2214 = vmatprep.subr.mxu0 0.0
      %2215 = vmatpush1.xpose.msra.mxu0 0.0
      %2216 = vmatprep.subr.mxu0 0.0
      %2217 = vmatpush1.xpose.msra.mxu0 0.0
      %2218 = vmatprep.subr.mxu0 0.0
      %2219 = vmatpush1.xpose.msra.mxu0 0.0
      %2220 = vmatprep.subr.mxu0 0.0
      %2221 = vmatpush1.xpose.msra.mxu0 0.0
      %2222 = vmatprep.subr.mxu0 0.0
      %2223 = vmatpush1.xpose.msra.mxu0 0.0
      %2224 = vmatprep.subr.mxu0 0.0
      %2225 = vmatpush1.xpose.msra.mxu0 0.0
      %2226 = vmatprep.subr.mxu0 0.0
      %2227 = vmatpush1.xpose.msra.mxu0 0.0
      %2228 = vmatprep.subr.mxu0 0.0
      %2229 = vmatpush1.xpose.msra.mxu0 0.0
      %2230 = vmatprep.subr.mxu0 0.0
      %2231 = vmatpush1.xpose.msra.mxu0 %v2200
      %2232 = vmatprep.subr.mxu0 0.0
      %2233 = vmatpush1.xpose.msra.mxu0 %v2197
      %2234 = vmatprep.subr.mxu0 0.0
      %2235 = vmatpush2.xpose.msra.mxu0 0.0
      %2236 = vmatprep.subr.mxu0 0.0
      %2237 = vmatpush2.xpose.msra.mxu0 0.0
      %2238 = vmatprep.subr.mxu0 0.0
      %2239 = vmatpush2.xpose.msra.mxu0 0.0
      %2240 = vmatprep.subr.mxu0 0.0
      %2241 = vmatpush2.xpose.msra.mxu0 0.0
      %2242 = vmatprep.subr.mxu0 0.0
      %2243 = vmatpush2.xpose.msra.mxu0 0.0
      %2244 = vmatprep.subr.mxu0 0.0
      %2245 = vmatpush2.xpose.msra.mxu0 0.0
      %2246 = vmatprep.subr.mxu0 0.0
      %2247 = vmatpush2.xpose.msra.mxu0 0.0
      %2248 = vmatprep.subr.mxu0 0.0
      %2249 = vmatpush2.xpose.msra.mxu0 0.0
      %2250 = vmatprep.subr.mxu0 0.0
      %2251 = vmatpush2.xpose.msra.mxu0 0.0
      %2252 = vmatprep.subr.mxu0 0.0
      %2253 = vmatpush2.xpose.msra.mxu0 0.0
      %2254 = vmatprep.subr.mxu0 0.0
      %2255 = vmatpush2.xpose.msra.mxu0 0.0
      %2256 = vmatprep.subr.mxu0 0.0
      %2257 = vmatpush2.xpose.msra.mxu0 0.0
      %2258 = vmatprep.subr.mxu0 0.0
      %2259 = vmatpush2.xpose.msra.mxu0 0.0
      %2260 = vmatprep.subr.mxu0 0.0
      %2261 = vmatpush2.xpose.msra.mxu0 0.0
      %2262 = vmatprep.subr.mxu0 0.0
      %2263 = vmatpush2.xpose.msra.mxu0 0.0
      %2264 = vmatprep.subr.mxu0 0.0
      %2265 = vmatpush2.xpose.msra.mxu0 0.0
      %2266 = vmatprep.mubr.f32.mxu0 0.0
      %2267 = vmatmul.mubr.f32.gmra.mxu0 %v2191
      %v2268 = vpop.f32.mrf.mxu0
      %v2269 = vadd.f32 0.0, %v2268
      %v2270 = vpop.f32.mrf.mxu0
      %2271 = vmatprep.mubr.f32.mxu0 0.0
      %2272 = vmatmul.mubr.f32.gmra.mxu0 %v2194
      %v2273 = vpop.f32.mrf.mxu0
      %v2274 = vadd.f32 0.0, %v2273
      %v2275 = vpop.f32.mrf.mxu0
      %2276 = vdwg.mxu0
      %v2278 = vsel %vm368, %v770, 0
      %v2281 = vsel %vm368, %v772, 0
      %v2284 = vsel %vm368, %v1218, 0
      %v2287 = vsel %vm368, %v1220, 0
      %2289 = vmatprep.subr.mxu0 0.0
      %2290 = vmatpush1.xpose.msra.mxu0 0.0
      %2291 = vmatprep.subr.mxu0 0.0
      %2292 = vmatpush1.xpose.msra.mxu0 0.0
      %2293 = vmatprep.subr.mxu0 0.0
      %2294 = vmatpush1.xpose.msra.mxu0 0.0
      %2295 = vmatprep.subr.mxu0 0.0
      %2296 = vmatpush1.xpose.msra.mxu0 0.0
      %2297 = vmatprep.subr.mxu0 0.0
      %2298 = vmatpush1.xpose.msra.mxu0 0.0
      %2299 = vmatprep.subr.mxu0 0.0
      %2300 = vmatpush1.xpose.msra.mxu0 0.0
      %2301 = vmatprep.subr.mxu0 0.0
      %2302 = vmatpush1.xpose.msra.mxu0 0.0
      %2303 = vmatprep.subr.mxu0 0.0
      %2304 = vmatpush1.xpose.msra.mxu0 0.0
      %2305 = vmatprep.subr.mxu0 0.0
      %2306 = vmatpush1.xpose.msra.mxu0 0.0
      %2307 = vmatprep.subr.mxu0 0.0
      %2308 = vmatpush1.xpose.msra.mxu0 0.0
      %2309 = vmatprep.subr.mxu0 0.0
      %2310 = vmatpush1.xpose.msra.mxu0 0.0
      %2311 = vmatprep.subr.mxu0 0.0
      %2312 = vmatpush1.xpose.msra.mxu0 0.0
      %2313 = vmatprep.subr.mxu0 0.0
      %2314 = vmatpush1.xpose.msra.mxu0 0.0
      %2315 = vmatprep.subr.mxu0 0.0
      %2316 = vmatpush1.xpose.msra.mxu0 0.0
      %2317 = vmatprep.subr.mxu0 0.0
      %2318 = vmatpush1.xpose.msra.mxu0 %v2287
      %2319 = vmatprep.subr.mxu0 0.0
      %2320 = vmatpush1.xpose.msra.mxu0 %v2284
      %2321 = vmatprep.subr.mxu0 0.0
      %2322 = vmatpush2.xpose.msra.mxu0 0.0
      %2323 = vmatprep.subr.mxu0 0.0
      %2324 = vmatpush2.xpose.msra.mxu0 0.0
      %2325 = vmatprep.subr.mxu0 0.0
      %2326 = vmatpush2.xpose.msra.mxu0 0.0
      %2327 = vmatprep.subr.mxu0 0.0
      %2328 = vmatpush2.xpose.msra.mxu0 0.0
      %2329 = vmatprep.subr.mxu0 0.0
      %2330 = vmatpush2.xpose.msra.mxu0 0.0
      %2331 = vmatprep.subr.mxu0 0.0
      %2332 = vmatpush2.xpose.msra.mxu0 0.0
      %2333 = vmatprep.subr.mxu0 0.0
      %2334 = vmatpush2.xpose.msra.mxu0 0.0
      %2335 = vmatprep.subr.mxu0 0.0
      %2336 = vmatpush2.xpose.msra.mxu0 0.0
      %2337 = vmatprep.subr.mxu0 0.0
      %2338 = vmatpush2.xpose.msra.mxu0 0.0
      %2339 = vmatprep.subr.mxu0 0.0
      %2340 = vmatpush2.xpose.msra.mxu0 0.0
      %2341 = vmatprep.subr.mxu0 0.0
      %2342 = vmatpush2.xpose.msra.mxu0 0.0
      %2343 = vmatprep.subr.mxu0 0.0
      %2344 = vmatpush2.xpose.msra.mxu0 0.0
      %2345 = vmatprep.subr.mxu0 0.0
      %2346 = vmatpush2.xpose.msra.mxu0 0.0
      %2347 = vmatprep.subr.mxu0 0.0
      %2348 = vmatpush2.xpose.msra.mxu0 0.0
      %2349 = vmatprep.subr.mxu0 0.0
      %2350 = vmatpush2.xpose.msra.mxu0 0.0
      %2351 = vmatprep.subr.mxu0 0.0
      %2352 = vmatpush2.xpose.msra.mxu0 0.0
      %2353 = vmatprep.mubr.f32.mxu0 0.0
      %2354 = vmatmul.mubr.f32.gmra.mxu0 %v2278
      %v2355 = vpop.f32.mrf.mxu0
      %v2356 = vadd.f32 0.0, %v2355
      %v2357 = vpop.f32.mrf.mxu0
      %2358 = vmatprep.mubr.f32.mxu0 0.0
      %2359 = vmatmul.mubr.f32.gmra.mxu0 %v2281
      %v2360 = vpop.f32.mrf.mxu0
      %v2361 = vadd.f32 0.0, %v2360
      %v2362 = vpop.f32.mrf.mxu0
      %2363 = vdwg.mxu0
      %v2365 = vsel %vm368, %v774, 0
      %v2368 = vsel %vm368, %v776, 0
      %v2371 = vsel %vm368, %v1222, 0
      %v2374 = vsel %vm368, %v1224, 0
      %2376 = vmatprep.subr.mxu0 0.0
      %2377 = vmatpush1.xpose.msra.mxu0 0.0
      %2378 = vmatprep.subr.mxu0 0.0
      %2379 = vmatpush1.xpose.msra.mxu0 0.0
      %2380 = vmatprep.subr.mxu0 0.0
      %2381 = vmatpush1.xpose.msra.mxu0 0.0
      %2382 = vmatprep.subr.mxu0 0.0
      %2383 = vmatpush1.xpose.msra.mxu0 0.0
      %2384 = vmatprep.subr.mxu0 0.0
      %2385 = vmatpush1.xpose.msra.mxu0 0.0
      %2386 = vmatprep.subr.mxu0 0.0
      %2387 = vmatpush1.xpose.msra.mxu0 0.0
      %2388 = vmatprep.subr.mxu0 0.0
      %2389 = vmatpush1.xpose.msra.mxu0 0.0
      %2390 = vmatprep.subr.mxu0 0.0
      %2391 = vmatpush1.xpose.msra.mxu0 0.0
      %2392 = vmatprep.subr.mxu0 0.0
      %2393 = vmatpush1.xpose.msra.mxu0 0.0
      %2394 = vmatprep.subr.mxu0 0.0
      %2395 = vmatpush1.xpose.msra.mxu0 0.0
      %2396 = vmatprep.subr.mxu0 0.0
      %2397 = vmatpush1.xpose.msra.mxu0 0.0
      %2398 = vmatprep.subr.mxu0 0.0
      %2399 = vmatpush1.xpose.msra.mxu0 0.0
      %2400 = vmatprep.subr.mxu0 0.0
      %2401 = vmatpush1.xpose.msra.mxu0 0.0
      %2402 = vmatprep.subr.mxu0 0.0
      %2403 = vmatpush1.xpose.msra.mxu0 0.0
      %2404 = vmatprep.subr.mxu0 0.0
      %2405 = vmatpush1.xpose.msra.mxu0 %v2374
      %2406 = vmatprep.subr.mxu0 0.0
      %2407 = vmatpush1.xpose.msra.mxu0 %v2371
      %2408 = vmatprep.subr.mxu0 0.0
      %2409 = vmatpush2.xpose.msra.mxu0 0.0
      %2410 = vmatprep.subr.mxu0 0.0
      %2411 = vmatpush2.xpose.msra.mxu0 0.0
      %2412 = vmatprep.subr.mxu0 0.0
      %2413 = vmatpush2.xpose.msra.mxu0 0.0
      %2414 = vmatprep.subr.mxu0 0.0
      %2415 = vmatpush2.xpose.msra.mxu0 0.0
      %2416 = vmatprep.subr.mxu0 0.0
      %2417 = vmatpush2.xpose.msra.mxu0 0.0
      %2418 = vmatprep.subr.mxu0 0.0
      %2419 = vmatpush2.xpose.msra.mxu0 0.0
      %2420 = vmatprep.subr.mxu0 0.0
      %2421 = vmatpush2.xpose.msra.mxu0 0.0
      %2422 = vmatprep.subr.mxu0 0.0
      %2423 = vmatpush2.xpose.msra.mxu0 0.0
      %2424 = vmatprep.subr.mxu0 0.0
      %2425 = vmatpush2.xpose.msra.mxu0 0.0
      %2426 = vmatprep.subr.mxu0 0.0
      %2427 = vmatpush2.xpose.msra.mxu0 0.0
      %2428 = vmatprep.subr.mxu0 0.0
      %2429 = vmatpush2.xpose.msra.mxu0 0.0
      %2430 = vmatprep.subr.mxu0 0.0
      %2431 = vmatpush2.xpose.msra.mxu0 0.0
      %2432 = vmatprep.subr.mxu0 0.0
      %2433 = vmatpush2.xpose.msra.mxu0 0.0
      %2434 = vmatprep.subr.mxu0 0.0
      %2435 = vmatpush2.xpose.msra.mxu0 0.0
      %2436 = vmatprep.subr.mxu0 0.0
      %2437 = vmatpush2.xpose.msra.mxu0 0.0
      %2438 = vmatprep.subr.mxu0 0.0
      %2439 = vmatpush2.xpose.msra.mxu0 0.0
      %2440 = vmatprep.mubr.f32.mxu0 0.0
      %2441 = vmatmul.mubr.f32.gmra.mxu0 %v2365
      %v2442 = vpop.f32.mrf.mxu0
      %v2443 = vadd.f32 0.0, %v2442
      %v2444 = vpop.f32.mrf.mxu0
      %2445 = vmatprep.mubr.f32.mxu0 0.0
      %2446 = vmatmul.mubr.f32.gmra.mxu0 %v2368
      %v2447 = vpop.f32.mrf.mxu0
      %v2448 = vadd.f32 0.0, %v2447
      %v2449 = vpop.f32.mrf.mxu0
      %2450 = vdwg.mxu0
      %v2452 = vsel %vm368, %v778, 0
      %v2455 = vsel %vm368, %v780, 0
      %v2458 = vsel %vm368, %v1226, 0
      %v2461 = vsel %vm368, %v1228, 0
      %2463 = vmatprep.subr.mxu0 0.0
      %2464 = vmatpush1.xpose.msra.mxu0 0.0
      %2465 = vmatprep.subr.mxu0 0.0
      %2466 = vmatpush1.xpose.msra.mxu0 0.0
      %2467 = vmatprep.subr.mxu0 0.0
      %2468 = vmatpush1.xpose.msra.mxu0 0.0
      %2469 = vmatprep.subr.mxu0 0.0
      %2470 = vmatpush1.xpose.msra.mxu0 0.0
      %2471 = vmatprep.subr.mxu0 0.0
      %2472 = vmatpush1.xpose.msra.mxu0 0.0
      %2473 = vmatprep.subr.mxu0 0.0
      %2474 = vmatpush1.xpose.msra.mxu0 0.0
      %2475 = vmatprep.subr.mxu0 0.0
      %2476 = vmatpush1.xpose.msra.mxu0 0.0
      %2477 = vmatprep.subr.mxu0 0.0
      %2478 = vmatpush1.xpose.msra.mxu0 0.0
      %2479 = vmatprep.subr.mxu0 0.0
      %2480 = vmatpush1.xpose.msra.mxu0 0.0
      %2481 = vmatprep.subr.mxu0 0.0
      %2482 = vmatpush1.xpose.msra.mxu0 0.0
      %2483 = vmatprep.subr.mxu0 0.0
      %2484 = vmatpush1.xpose.msra.mxu0 0.0
      %2485 = vmatprep.subr.mxu0 0.0
      %2486 = vmatpush1.xpose.msra.mxu0 0.0
      %2487 = vmatprep.subr.mxu0 0.0
      %2488 = vmatpush1.xpose.msra.mxu0 0.0
      %2489 = vmatprep.subr.mxu0 0.0
      %2490 = vmatpush1.xpose.msra.mxu0 0.0
      %2491 = vmatprep.subr.mxu0 0.0
      %2492 = vmatpush1.xpose.msra.mxu0 %v2461
      %2493 = vmatprep.subr.mxu0 0.0
      %2494 = vmatpush1.xpose.msra.mxu0 %v2458
      %2495 = vmatprep.subr.mxu0 0.0
      %2496 = vmatpush2.xpose.msra.mxu0 0.0
      %2497 = vmatprep.subr.mxu0 0.0
      %2498 = vmatpush2.xpose.msra.mxu0 0.0
      %2499 = vmatprep.subr.mxu0 0.0
      %2500 = vmatpush2.xpose.msra.mxu0 0.0
      %2501 = vmatprep.subr.mxu0 0.0
      %2502 = vmatpush2.xpose.msra.mxu0 0.0
      %2503 = vmatprep.subr.mxu0 0.0
      %2504 = vmatpush2.xpose.msra.mxu0 0.0
      %2505 = vmatprep.subr.mxu0 0.0
      %2506 = vmatpush2.xpose.msra.mxu0 0.0
      %2507 = vmatprep.subr.mxu0 0.0
      %2508 = vmatpush2.xpose.msra.mxu0 0.0
      %2509 = vmatprep.subr.mxu0 0.0
      %2510 = vmatpush2.xpose.msra.mxu0 0.0
      %2511 = vmatprep.subr.mxu0 0.0
      %2512 = vmatpush2.xpose.msra.mxu0 0.0
      %2513 = vmatprep.subr.mxu0 0.0
      %2514 = vmatpush2.xpose.msra.mxu0 0.0
      %2515 = vmatprep.subr.mxu0 0.0
      %2516 = vmatpush2.xpose.msra.mxu0 0.0
      %2517 = vmatprep.subr.mxu0 0.0
      %2518 = vmatpush2.xpose.msra.mxu0 0.0
      %2519 = vmatprep.subr.mxu0 0.0
      %2520 = vmatpush2.xpose.msra.mxu0 0.0
      %2521 = vmatprep.subr.mxu0 0.0
      %2522 = vmatpush2.xpose.msra.mxu0 0.0
      %2523 = vmatprep.subr.mxu0 0.0
      %2524 = vmatpush2.xpose.msra.mxu0 0.0
      %2525 = vmatprep.subr.mxu0 0.0
      %2526 = vmatpush2.xpose.msra.mxu0 0.0
      %2527 = vmatprep.mubr.f32.mxu0 0.0
      %2528 = vmatmul.mubr.f32.gmra.mxu0 %v2452
      %v2529 = vpop.f32.mrf.mxu0
      %v2530 = vadd.f32 0.0, %v2529
      %v2531 = vpop.f32.mrf.mxu0
      %2532 = vmatprep.mubr.f32.mxu0 0.0
      %2533 = vmatmul.mubr.f32.gmra.mxu0 %v2455
      %v2534 = vpop.f32.mrf.mxu0
      %v2535 = vadd.f32 0.0, %v2534
      %v2536 = vpop.f32.mrf.mxu0
      %2537 = vdwg.mxu0
      %v2539 = vsel %vm368, %v782, 0
      %v2542 = vsel %vm368, %v784, 0
      %v2545 = vsel %vm368, %v1230, 0
      %v2548 = vsel %vm368, %v1232, 0
      %2550 = vmatprep.subr.mxu0 0.0
      %2551 = vmatpush1.xpose.msra.mxu0 0.0
      %2552 = vmatprep.subr.mxu0 0.0
      %2553 = vmatpush1.xpose.msra.mxu0 0.0
      %2554 = vmatprep.subr.mxu0 0.0
      %2555 = vmatpush1.xpose.msra.mxu0 0.0
      %2556 = vmatprep.subr.mxu0 0.0
      %2557 = vmatpush1.xpose.msra.mxu0 0.0
      %2558 = vmatprep.subr.mxu0 0.0
      %2559 = vmatpush1.xpose.msra.mxu0 0.0
      %2560 = vmatprep.subr.mxu0 0.0
      %2561 = vmatpush1.xpose.msra.mxu0 0.0
      %2562 = vmatprep.subr.mxu0 0.0
      %2563 = vmatpush1.xpose.msra.mxu0 0.0
      %2564 = vmatprep.subr.mxu0 0.0
      %2565 = vmatpush1.xpose.msra.mxu0 0.0
      %2566 = vmatprep.subr.mxu0 0.0
      %2567 = vmatpush1.xpose.msra.mxu0 0.0
      %2568 = vmatprep.subr.mxu0 0.0
      %2569 = vmatpush1.xpose.msra.mxu0 0.0
      %2570 = vmatprep.subr.mxu0 0.0
      %2571 = vmatpush1.xpose.msra.mxu0 0.0
      %2572 = vmatprep.subr.mxu0 0.0
      %2573 = vmatpush1.xpose.msra.mxu0 0.0
      %2574 = vmatprep.subr.mxu0 0.0
      %2575 = vmatpush1.xpose.msra.mxu0 0.0
      %2576 = vmatprep.subr.mxu0 0.0
      %2577 = vmatpush1.xpose.msra.mxu0 0.0
      %2578 = vmatprep.subr.mxu0 0.0
      %2579 = vmatpush1.xpose.msra.mxu0 %v2548
      %2580 = vmatprep.subr.mxu0 0.0
      %2581 = vmatpush1.xpose.msra.mxu0 %v2545
      %2582 = vmatprep.subr.mxu0 0.0
      %2583 = vmatpush2.xpose.msra.mxu0 0.0
      %2584 = vmatprep.subr.mxu0 0.0
      %2585 = vmatpush2.xpose.msra.mxu0 0.0
      %2586 = vmatprep.subr.mxu0 0.0
      %2587 = vmatpush2.xpose.msra.mxu0 0.0
      %2588 = vmatprep.subr.mxu0 0.0
      %2589 = vmatpush2.xpose.msra.mxu0 0.0
      %2590 = vmatprep.subr.mxu0 0.0
      %2591 = vmatpush2.xpose.msra.mxu0 0.0
      %2592 = vmatprep.subr.mxu0 0.0
      %2593 = vmatpush2.xpose.msra.mxu0 0.0
      %2594 = vmatprep.subr.mxu0 0.0
      %2595 = vmatpush2.xpose.msra.mxu0 0.0
      %2596 = vmatprep.subr.mxu0 0.0
      %2597 = vmatpush2.xpose.msra.mxu0 0.0
      %2598 = vmatprep.subr.mxu0 0.0
      %2599 = vmatpush2.xpose.msra.mxu0 0.0
      %2600 = vmatprep.subr.mxu0 0.0
      %2601 = vmatpush2.xpose.msra.mxu0 0.0
      %2602 = vmatprep.subr.mxu0 0.0
      %2603 = vmatpush2.xpose.msra.mxu0 0.0
      %2604 = vmatprep.subr.mxu0 0.0
      %2605 = vmatpush2.xpose.msra.mxu0 0.0
      %2606 = vmatprep.subr.mxu0 0.0
      %2607 = vmatpush2.xpose.msra.mxu0 0.0
      %2608 = vmatprep.subr.mxu0 0.0
      %2609 = vmatpush2.xpose.msra.mxu0 0.0
      %2610 = vmatprep.subr.mxu0 0.0
      %2611 = vmatpush2.xpose.msra.mxu0 0.0
      %2612 = vmatprep.subr.mxu0 0.0
      %2613 = vmatpush2.xpose.msra.mxu0 0.0
      %2614 = vmatprep.mubr.f32.mxu0 0.0
      %2615 = vmatmul.mubr.f32.gmra.mxu0 %v2539
      %v2616 = vpop.f32.mrf.mxu0
      %v2617 = vadd.f32 0.0, %v2616
      %v2618 = vpop.f32.mrf.mxu0
      %2619 = vmatprep.mubr.f32.mxu0 0.0
      %2620 = vmatmul.mubr.f32.gmra.mxu0 %v2542
      %v2621 = vpop.f32.mrf.mxu0
      %v2622 = vadd.f32 0.0, %v2621
      %v2623 = vpop.f32.mrf.mxu0
      %2624 = vdwg.mxu0
      %v2625 = vstv %s335
      %v2626 = vmul.f32 %v1312, %v2625
      %v2627 = vmul.f32 %v1317, %v2625
      %v2628 = vmul.f32 %v1399, %v2625
      %v2629 = vmul.f32 %v1404, %v2625
      %v2630 = vmul.f32 %v1486, %v2625
      %v2631 = vmul.f32 %v1491, %v2625
      %v2632 = vmul.f32 %v1573, %v2625
      %v2633 = vmul.f32 %v1578, %v2625
      %v2634 = vmul.f32 %v1660, %v2625
      %v2635 = vmul.f32 %v1665, %v2625
      %v2636 = vmul.f32 %v1747, %v2625
      %v2637 = vmul.f32 %v1752, %v2625
      %v2638 = vmul.f32 %v1834, %v2625
      %v2639 = vmul.f32 %v1839, %v2625
      %v2640 = vmul.f32 %v1921, %v2625
      %v2641 = vmul.f32 %v1926, %v2625
      %v2642 = vmul.f32 %v2008, %v2625
      %v2643 = vmul.f32 %v2013, %v2625
      %v2644 = vmul.f32 %v2095, %v2625
      %v2645 = vmul.f32 %v2100, %v2625
      %v2646 = vmul.f32 %v2182, %v2625
      %v2647 = vmul.f32 %v2187, %v2625
      %v2648 = vmul.f32 %v2269, %v2625
      %v2649 = vmul.f32 %v2274, %v2625
      %v2650 = vmul.f32 %v2356, %v2625
      %v2651 = vmul.f32 %v2361, %v2625
      %v2652 = vmul.f32 %v2443, %v2625
      %v2653 = vmul.f32 %v2448, %v2625
      %v2654 = vmul.f32 %v2530, %v2625
      %v2655 = vmul.f32 %v2535, %v2625
      %v2656 = vmul.f32 %v2617, %v2625
      %v2657 = vmul.f32 %v2622, %v2625
      %vm2658 = vcmask 130048
      %v2659 = vsel %vm2658, %v2626, -inf
      %2660 = vmax.xlane.f32.xlu0 %v2659
      %v2661 = vpop.xlane.xlu0 %2660
      %v2662 = vsel %vm2658, %v2627, -inf
      %2663 = vmax.xlane.f32.xlu0 %v2662
      %v2664 = vpop.xlane.xlu0 %2663
      %v2665 = vsel %vm2658, %v2628, -inf
      %2666 = vmax.xlane.f32.xlu0 %v2665
      %v2667 = vpop.xlane.xlu0 %2666
      %v2668 = vsel %vm2658, %v2629, -inf
      %2669 = vmax.xlane.f32.xlu0 %v2668
      %v2670 = vpop.xlane.xlu0 %2669
      %v2671 = vsel %vm2658, %v2630, -inf
      %2672 = vmax.xlane.f32.xlu0 %v2671
      %v2673 = vpop.xlane.xlu0 %2672
      %v2674 = vsel %vm2658, %v2631, -inf
      %2675 = vmax.xlane.f32.xlu0 %v2674
      %v2676 = vpop.xlane.xlu0 %2675
      %v2677 = vsel %vm2658, %v2632, -inf
      %2678 = vmax.xlane.f32.xlu0 %v2677
      %v2679 = vpop.xlane.xlu0 %2678
      %v2680 = vsel %vm2658, %v2633, -inf
      %2681 = vmax.xlane.f32.xlu0 %v2680
      %v2682 = vpop.xlane.xlu0 %2681
      %v2683 = vsel %vm2658, %v2634, -inf
      %2684 = vmax.xlane.f32.xlu0 %v2683
      %v2685 = vpop.xlane.xlu0 %2684
      %v2686 = vsel %vm2658, %v2635, -inf
      %2687 = vmax.xlane.f32.xlu0 %v2686
      %v2688 = vpop.xlane.xlu0 %2687
      %v2689 = vsel %vm2658, %v2636, -inf
      %2690 = vmax.xlane.f32.xlu0 %v2689
      %v2691 = vpop.xlane.xlu0 %2690
      %v2692 = vsel %vm2658, %v2637, -inf
      %2693 = vmax.xlane.f32.xlu0 %v2692
      %v2694 = vpop.xlane.xlu0 %2693
      %v2695 = vsel %vm2658, %v2638, -inf
      %2696 = vmax.xlane.f32.xlu0 %v2695
      %v2697 = vpop.xlane.xlu0 %2696
      %v2698 = vsel %vm2658, %v2639, -inf
      %2699 = vmax.xlane.f32.xlu0 %v2698
      %v2700 = vpop.xlane.xlu0 %2699
      %v2701 = vsel %vm2658, %v2640, -inf
      %2702 = vmax.xlane.f32.xlu0 %v2701
      %v2703 = vpop.xlane.xlu0 %2702
      %v2704 = vsel %vm2658, %v2641, -inf
      %2705 = vmax.xlane.f32.xlu0 %v2704
      %v2706 = vpop.xlane.xlu0 %2705
      %v2707 = vsel %vm2658, %v2642, -inf
      %2708 = vmax.xlane.f32.xlu0 %v2707
      %v2709 = vpop.xlane.xlu0 %2708
      %v2710 = vsel %vm2658, %v2643, -inf
      %2711 = vmax.xlane.f32.xlu0 %v2710
      %v2712 = vpop.xlane.xlu0 %2711
      %v2713 = vsel %vm2658, %v2644, -inf
      %2714 = vmax.xlane.f32.xlu0 %v2713
      %v2715 = vpop.xlane.xlu0 %2714
      %v2716 = vsel %vm2658, %v2645, -inf
      %2717 = vmax.xlane.f32.xlu0 %v2716
      %v2718 = vpop.xlane.xlu0 %2717
      %v2719 = vsel %vm2658, %v2646, -inf
      %2720 = vmax.xlane.f32.xlu0 %v2719
      %v2721 = vpop.xlane.xlu0 %2720
      %v2722 = vsel %vm2658, %v2647, -inf
      %2723 = vmax.xlane.f32.xlu0 %v2722
      %v2724 = vpop.xlane.xlu0 %2723
      %v2725 = vsel %vm2658, %v2648, -inf
      %2726 = vmax.xlane.f32.xlu0 %v2725
      %v2727 = vpop.xlane.xlu0 %2726
      %v2728 = vsel %vm2658, %v2649, -inf
      %2729 = vmax.xlane.f32.xlu0 %v2728
      %v2730 = vpop.xlane.xlu0 %2729
      %v2731 = vsel %vm2658, %v2650, -inf
      %2732 = vmax.xlane.f32.xlu0 %v2731
      %v2733 = vpop.xlane.xlu0 %2732
      %v2734 = vsel %vm2658, %v2651, -inf
      %2735 = vmax.xlane.f32.xlu0 %v2734
      %v2736 = vpop.xlane.xlu0 %2735
      %v2737 = vsel %vm2658, %v2652, -inf
      %2738 = vmax.xlane.f32.xlu0 %v2737
      %v2739 = vpop.xlane.xlu0 %2738
      %v2740 = vsel %vm2658, %v2653, -inf
      %2741 = vmax.xlane.f32.xlu0 %v2740
      %v2742 = vpop.xlane.xlu0 %2741
      %v2743 = vsel %vm2658, %v2654, -inf
      %2744 = vmax.xlane.f32.xlu0 %v2743
      %v2745 = vpop.xlane.xlu0 %2744
      %v2746 = vsel %vm2658, %v2655, -inf
      %2747 = vmax.xlane.f32.xlu0 %v2746
      %v2748 = vpop.xlane.xlu0 %2747
      %v2749 = vsel %vm2658, %v2656, -inf
      %2750 = vmax.xlane.f32.xlu0 %v2749
      %v2751 = vpop.xlane.xlu0 %2750
      %v2752 = vsel %vm2658, %v2657, -inf
      %2753 = vmax.xlane.f32.xlu0 %v2752
      %v2754 = vpop.xlane.xlu0 %2753
      %v2755 = vsub.f32 %v2626, %v2661
      %v2756 = vsub.f32 %v2627, %v2664
      %v2757 = vsub.f32 %v2628, %v2667
      %v2758 = vsub.f32 %v2629, %v2670
      %v2759 = vsub.f32 %v2630, %v2673
      %v2760 = vsub.f32 %v2631, %v2676
      %v2761 = vsub.f32 %v2632, %v2679
      %v2762 = vsub.f32 %v2633, %v2682
      %v2763 = vsub.f32 %v2634, %v2685
      %v2764 = vsub.f32 %v2635, %v2688
      %v2765 = vsub.f32 %v2636, %v2691
      %v2766 = vsub.f32 %v2637, %v2694
      %v2767 = vsub.f32 %v2638, %v2697
      %v2768 = vsub.f32 %v2639, %v2700
      %v2769 = vsub.f32 %v2640, %v2703
      %v2770 = vsub.f32 %v2641, %v2706
      %v2771 = vsub.f32 %v2642, %v2709
      %v2772 = vsub.f32 %v2643, %v2712
      %v2773 = vsub.f32 %v2644, %v2715
      %v2774 = vsub.f32 %v2645, %v2718
      %v2775 = vsub.f32 %v2646, %v2721
      %v2776 = vsub.f32 %v2647, %v2724
      %v2777 = vsub.f32 %v2648, %v2727
      %v2778 = vsub.f32 %v2649, %v2730
      %v2779 = vsub.f32 %v2650, %v2733
      %v2780 = vsub.f32 %v2651, %v2736
      %v2781 = vsub.f32 %v2652, %v2739
      %v2782 = vsub.f32 %v2653, %v2742
      %v2783 = vsub.f32 %v2654, %v2745
      %v2784 = vsub.f32 %v2655, %v2748
      %v2785 = vsub.f32 %v2656, %v2751
      %v2786 = vsub.f32 %v2657, %v2754
      %v2787 = vmul.f32 %v2755, 1.442695
      %v2788 = vpow.pop %v2787
      %v2789 = vmul.f32 %v2756, 1.442695
      %v2790 = vpow.pop %v2789
      %v2791 = vmul.f32 %v2757, 1.442695
      %v2792 = vpow.pop %v2791
      %v2793 = vmul.f32 %v2758, 1.442695
      %v2794 = vpow.pop %v2793
      %v2795 = vmul.f32 %v2759, 1.442695
      %v2796 = vpow.pop %v2795
      %v2797 = vmul.f32 %v2760, 1.442695
      %v2798 = vpow.pop %v2797
      %v2799 = vmul.f32 %v2761, 1.442695
      %v2800 = vpow.pop %v2799
      %v2801 = vmul.f32 %v2762, 1.442695
      %v2802 = vpow.pop %v2801
      %v2803 = vmul.f32 %v2763, 1.442695
      %v2804 = vpow.pop %v2803
      %v2805 = vmul.f32 %v2764, 1.442695
      %v2806 = vpow.pop %v2805
      %v2807 = vmul.f32 %v2765, 1.442695
      %v2808 = vpow.pop %v2807
      %v2809 = vmul.f32 %v2766, 1.442695
      %v2810 = vpow.pop %v2809
      %v2811 = vmul.f32 %v2767, 1.442695
      %v2812 = vpow.pop %v2811
      %v2813 = vmul.f32 %v2768, 1.442695
      %v2814 = vpow.pop %v2813
      %v2815 = vmul.f32 %v2769, 1.442695
      %v2816 = vpow.pop %v2815
      %v2817 = vmul.f32 %v2770, 1.442695
      %v2818 = vpow.pop %v2817
      %v2819 = vmul.f32 %v2771, 1.442695
      %v2820 = vpow.pop %v2819
      %v2821 = vmul.f32 %v2772, 1.442695
      %v2822 = vpow.pop %v2821
      %v2823 = vmul.f32 %v2773, 1.442695
      %v2824 = vpow.pop %v2823
      %v2825 = vmul.f32 %v2774, 1.442695
      %v2826 = vpow.pop %v2825
      %v2827 = vmul.f32 %v2775, 1.442695
      %v2828 = vpow.pop %v2827
      %v2829 = vmul.f32 %v2776, 1.442695
      %v2830 = vpow.pop %v2829
      %v2831 = vmul.f32 %v2777, 1.442695
      %v2832 = vpow.pop %v2831
      %v2833 = vmul.f32 %v2778, 1.442695
      %v2834 = vpow.pop %v2833
      %v2835 = vmul.f32 %v2779, 1.442695
      %v2836 = vpow.pop %v2835
      %v2837 = vmul.f32 %v2780, 1.442695
      %v2838 = vpow.pop %v2837
      %v2839 = vmul.f32 %v2781, 1.442695
      %v2840 = vpow.pop %v2839
      %v2841 = vmul.f32 %v2782, 1.442695
      %v2842 = vpow.pop %v2841
      %v2843 = vmul.f32 %v2783, 1.442695
      %v2844 = vpow.pop %v2843
      %v2845 = vmul.f32 %v2784, 1.442695
      %v2846 = vpow.pop %v2845
      %v2847 = vmul.f32 %v2785, 1.442695
      %v2848 = vpow.pop %v2847
      %v2849 = vmul.f32 %v2786, 1.442695
      %v2850 = vpow.pop %v2849
      %v2851 = vsel %vm2658, %v2788, 0.0
      %2852 = vadd.xlane.f32.xlu0 %v2851
      %v2853 = vpop.xlane.xlu0 %2852
      %v2854 = vsel %vm2658, %v2790, 0.0
      %2855 = vadd.xlane.f32.xlu0 %v2854
      %v2856 = vpop.xlane.xlu0 %2855
      %v2857 = vsel %vm2658, %v2792, 0.0
      %2858 = vadd.xlane.f32.xlu0 %v2857
      %v2859 = vpop.xlane.xlu0 %2858
      %v2860 = vsel %vm2658, %v2794, 0.0
      %2861 = vadd.xlane.f32.xlu0 %v2860
      %v2862 = vpop.xlane.xlu0 %2861
      %v2863 = vsel %vm2658, %v2796, 0.0
      %2864 = vadd.xlane.f32.xlu0 %v2863
      %v2865 = vpop.xlane.xlu0 %2864
      %v2866 = vsel %vm2658, %v2798, 0.0
      %2867 = vadd.xlane.f32.xlu0 %v2866
      %v2868 = vpop.xlane.xlu0 %2867
      %v2869 = vsel %vm2658, %v2800, 0.0
      %2870 = vadd.xlane.f32.xlu0 %v2869
      %v2871 = vpop.xlane.xlu0 %2870
      %v2872 = vsel %vm2658, %v2802, 0.0
      %2873 = vadd.xlane.f32.xlu0 %v2872
      %v2874 = vpop.xlane.xlu0 %2873
      %v2875 = vsel %vm2658, %v2804, 0.0
      %2876 = vadd.xlane.f32.xlu0 %v2875
      %v2877 = vpop.xlane.xlu0 %2876
      %v2878 = vsel %vm2658, %v2806, 0.0
      %2879 = vadd.xlane.f32.xlu0 %v2878
      %v2880 = vpop.xlane.xlu0 %2879
      %v2881 = vsel %vm2658, %v2808, 0.0
      %2882 = vadd.xlane.f32.xlu0 %v2881
      %v2883 = vpop.xlane.xlu0 %2882
      %v2884 = vsel %vm2658, %v2810, 0.0
      %2885 = vadd.xlane.f32.xlu0 %v2884
      %v2886 = vpop.xlane.xlu0 %2885
      %v2887 = vsel %vm2658, %v2812, 0.0
      %2888 = vadd.xlane.f32.xlu0 %v2887
      %v2889 = vpop.xlane.xlu0 %2888
      %v2890 = vsel %vm2658, %v2814, 0.0
      %2891 = vadd.xlane.f32.xlu0 %v2890
      %v2892 = vpop.xlane.xlu0 %2891
      %v2893 = vsel %vm2658, %v2816, 0.0
      %2894 = vadd.xlane.f32.xlu0 %v2893
      %v2895 = vpop.xlane.xlu0 %2894
      %v2896 = vsel %vm2658, %v2818, 0.0
      %2897 = vadd.xlane.f32.xlu0 %v2896
      %v2898 = vpop.xlane.xlu0 %2897
      %v2899 = vsel %vm2658, %v2820, 0.0
      %2900 = vadd.xlane.f32.xlu0 %v2899
      %v2901 = vpop.xlane.xlu0 %2900
      %v2902 = vsel %vm2658, %v2822, 0.0
      %2903 = vadd.xlane.f32.xlu0 %v2902
      %v2904 = vpop.xlane.xlu0 %2903
      %v2905 = vsel %vm2658, %v2824, 0.0
      %2906 = vadd.xlane.f32.xlu0 %v2905
      %v2907 = vpop.xlane.xlu0 %2906
      %v2908 = vsel %vm2658, %v2826, 0.0
      %2909 = vadd.xlane.f32.xlu0 %v2908
      %v2910 = vpop.xlane.xlu0 %2909
      %v2911 = vsel %vm2658, %v2828, 0.0
      %2912 = vadd.xlane.f32.xlu0 %v2911
      %v2913 = vpop.xlane.xlu0 %2912
      %v2914 = vsel %vm2658, %v2830, 0.0
      %2915 = vadd.xlane.f32.xlu0 %v2914
      %v2916 = vpop.xlane.xlu0 %2915
      %v2917 = vsel %vm2658, %v2832, 0.0
      %2918 = vadd.xlane.f32.xlu0 %v2917
      %v2919 = vpop.xlane.xlu0 %2918
      %v2920 = vsel %vm2658, %v2834, 0.0
      %2921 = vadd.xlane.f32.xlu0 %v2920
      %v2922 = vpop.xlane.xlu0 %2921
      %v2923 = vsel %vm2658, %v2836, 0.0
      %2924 = vadd.xlane.f32.xlu0 %v2923
      %v2925 = vpop.xlane.xlu0 %2924
      %v2926 = vsel %vm2658, %v2838, 0.0
      %2927 = vadd.xlane.f32.xlu0 %v2926
      %v2928 = vpop.xlane.xlu0 %2927
      %v2929 = vsel %vm2658, %v2840, 0.0
      %2930 = vadd.xlane.f32.xlu0 %v2929
      %v2931 = vpop.xlane.xlu0 %2930
      %v2932 = vsel %vm2658, %v2842, 0.0
      %2933 = vadd.xlane.f32.xlu0 %v2932
      %v2934 = vpop.xlane.xlu0 %2933
      %v2935 = vsel %vm2658, %v2844, 0.0
      %2936 = vadd.xlane.f32.xlu0 %v2935
      %v2937 = vpop.xlane.xlu0 %2936
      %v2938 = vsel %vm2658, %v2846, 0.0
      %2939 = vadd.xlane.f32.xlu0 %v2938
      %v2940 = vpop.xlane.xlu0 %2939
      %v2941 = vsel %vm2658, %v2848, 0.0
      %2942 = vadd.xlane.f32.xlu0 %v2941
      %v2943 = vpop.xlane.xlu0 %2942
      %v2944 = vsel %vm2658, %v2850, 0.0
      %2945 = vadd.xlane.f32.xlu0 %v2944
      %v2946 = vpop.xlane.xlu0 %2945
      %v2947 = vrcp.pop %v2853
      %v2948 = vmul.f32 %v2788, %v2947
      %v2949 = vrcp.pop %v2856
      %v2950 = vmul.f32 %v2790, %v2949
      %v2951 = vrcp.pop %v2859
      %v2952 = vmul.f32 %v2792, %v2951
      %v2953 = vrcp.pop %v2862
      %v2954 = vmul.f32 %v2794, %v2953
      %v2955 = vrcp.pop %v2865
      %v2956 = vmul.f32 %v2796, %v2955
      %v2957 = vrcp.pop %v2868
      %v2958 = vmul.f32 %v2798, %v2957
      %v2959 = vrcp.pop %v2871
      %v2960 = vmul.f32 %v2800, %v2959
      %v2961 = vrcp.pop %v2874
      %v2962 = vmul.f32 %v2802, %v2961
      %v2963 = vrcp.pop %v2877
      %v2964 = vmul.f32 %v2804, %v2963
      %v2965 = vrcp.pop %v2880
      %v2966 = vmul.f32 %v2806, %v2965
      %v2967 = vrcp.pop %v2883
      %v2968 = vmul.f32 %v2808, %v2967
      %v2969 = vrcp.pop %v2886
      %v2970 = vmul.f32 %v2810, %v2969
      %v2971 = vrcp.pop %v2889
      %v2972 = vmul.f32 %v2812, %v2971
      %v2973 = vrcp.pop %v2892
      %v2974 = vmul.f32 %v2814, %v2973
      %v2975 = vrcp.pop %v2895
      %v2976 = vmul.f32 %v2816, %v2975
      %v2977 = vrcp.pop %v2898
      %v2978 = vmul.f32 %v2818, %v2977
      %v2979 = vrcp.pop %v2901
      %v2980 = vmul.f32 %v2820, %v2979
      %v2981 = vrcp.pop %v2904
      %v2982 = vmul.f32 %v2822, %v2981
      %v2983 = vrcp.pop %v2907
      %v2984 = vmul.f32 %v2824, %v2983
      %v2985 = vrcp.pop %v2910
      %v2986 = vmul.f32 %v2826, %v2985
      %v2987 = vrcp.pop %v2913
      %v2988 = vmul.f32 %v2828, %v2987
      %v2989 = vrcp.pop %v2916
      %v2990 = vmul.f32 %v2830, %v2989
      %v2991 = vrcp.pop %v2919
      %v2992 = vmul.f32 %v2832, %v2991
      %v2993 = vrcp.pop %v2922
      %v2994 = vmul.f32 %v2834, %v2993
      %v2995 = vrcp.pop %v2925
      %v2996 = vmul.f32 %v2836, %v2995
      %v2997 = vrcp.pop %v2928
      %v2998 = vmul.f32 %v2838, %v2997
      %v2999 = vrcp.pop %v2931
      %v3000 = vmul.f32 %v2840, %v2999
      %v3001 = vrcp.pop %v2934
      %v3002 = vmul.f32 %v2842, %v3001
      %v3003 = vrcp.pop %v2937
      %v3004 = vmul.f32 %v2844, %v3003
      %v3005 = vrcp.pop %v2940
      %v3006 = vmul.f32 %v2846, %v3005
      %v3007 = vrcp.pop %v2943
      %v3008 = vmul.f32 %v2848, %v3007
      %v3009 = vrcp.pop %v2946
      %v3010 = vmul.f32 %v2850, %v3009
      %v3012 = vsel %vm2658, %v2948, 0
      %v3015 = vsel %vm2658, %v2950, 0
      %3017 = vmatprep.subr.mxu0 0.0
      %3018 = vmatpush1.msra.mxu0 0.0
      %3019 = vmatprep.subr.mxu0 0.0
      %3020 = vmatpush1.msra.mxu0 0.0
      %3021 = vmatprep.subr.mxu0 0.0
      %3022 = vmatpush1.msra.mxu0 0.0
      %3023 = vmatprep.subr.mxu0 0.0
      %3024 = vmatpush1.msra.mxu0 0.0
      %3025 = vmatprep.subr.mxu0 0.0
      %3026 = vmatpush1.msra.mxu0 0.0
      %3027 = vmatprep.subr.mxu0 0.0
      %3028 = vmatpush1.msra.mxu0 0.0
      %3029 = vmatprep.subr.mxu0 0.0
      %3030 = vmatpush1.msra.mxu0 0.0
      %3031 = vmatprep.subr.mxu0 0.0
      %3032 = vmatpush1.msra.mxu0 0.0
      %3033 = vmatprep.subr.mxu0 0.0
      %3034 = vmatpush1.msra.mxu0 0.0
      %3035 = vmatprep.subr.mxu0 0.0
      %3036 = vmatpush1.msra.mxu0 0.0
      %3037 = vmatprep.subr.mxu0 0.0
      %3038 = vmatpush1.msra.mxu0 0.0
      %3039 = vmatprep.subr.mxu0 0.0
      %3040 = vmatpush1.msra.mxu0 0.0
      %3041 = vmatprep.subr.mxu0 0.0
      %3042 = vmatpush1.msra.mxu0 0.0
      %3043 = vmatprep.subr.mxu0 0.0
      %3044 = vmatpush1.msra.mxu0 0.0
      %3045 = vmatprep.subr.mxu0 0.0
      %3046 = vmatpush1.msra.mxu0 %v304
      %3047 = vmatprep.subr.mxu0 0.0
      %3048 = vmatpush1.msra.mxu0 %v303
      %3049 = vmatprep.subr.mxu0 0.0
      %3050 = vmatpush2.msra.mxu0 0.0
      %3051 = vmatprep.subr.mxu0 0.0
      %3052 = vmatpush2.msra.mxu0 0.0
      %3053 = vmatprep.subr.mxu0 0.0
      %3054 = vmatpush2.msra.mxu0 0.0
      %3055 = vmatprep.subr.mxu0 0.0
      %3056 = vmatpush2.msra.mxu0 0.0
      %3057 = vmatprep.subr.mxu0 0.0
      %3058 = vmatpush2.msra.mxu0 0.0
      %3059 = vmatprep.subr.mxu0 0.0
      %3060 = vmatpush2.msra.mxu0 0.0
      %3061 = vmatprep.subr.mxu0 0.0
      %3062 = vmatpush2.msra.mxu0 0.0
      %3063 = vmatprep.subr.mxu0 0.0
      %3064 = vmatpush2.msra.mxu0 0.0
      %3065 = vmatprep.subr.mxu0 0.0
      %3066 = vmatpush2.msra.mxu0 0.0
      %3067 = vmatprep.subr.mxu0 0.0
      %3068 = vmatpush2.msra.mxu0 0.0
      %3069 = vmatprep.subr.mxu0 0.0
      %3070 = vmatpush2.msra.mxu0 0.0
      %3071 = vmatprep.subr.mxu0 0.0
      %3072 = vmatpush2.msra.mxu0 0.0
      %3073 = vmatprep.subr.mxu0 0.0
      %3074 = vmatpush2.msra.mxu0 0.0
      %3075 = vmatprep.subr.mxu0 0.0
      %3076 = vmatpush2.msra.mxu0 0.0
      %3077 = vmatprep.subr.mxu0 0.0
      %3078 = vmatpush2.msra.mxu0 0.0
      %3079 = vmatprep.subr.mxu0 0.0
      %3080 = vmatpush2.msra.mxu0 0.0
      %3081 = vmatprep.mubr.f32.mxu0 0.0
      %3082 = vmatmul.mubr.f32.gmra.mxu0 %v3012
      %v3083 = vpop.f32.mrf.mxu0
      %v3084 = vadd.f32 0.0, %v3083
      %v3085 = vpop.f32.mrf.mxu0
      %3086 = vmatprep.mubr.f32.mxu0 0.0
      %3087 = vmatmul.mubr.f32.gmra.mxu0 %v3015
      %v3088 = vpop.f32.mrf.mxu0
      %v3089 = vadd.f32 0.0, %v3088
      %v3090 = vpop.f32.mrf.mxu0
      %3091 = vdwg.mxu0
      %v3093 = vsel %vm2658, %v2952, 0
      %v3096 = vsel %vm2658, %v2954, 0
      %3098 = vmatprep.subr.mxu0 0.0
      %3099 = vmatpush1.msra.mxu0 0.0
      %3100 = vmatprep.subr.mxu0 0.0
      %3101 = vmatpush1.msra.mxu0 0.0
      %3102 = vmatprep.subr.mxu0 0.0
      %3103 = vmatpush1.msra.mxu0 0.0
      %3104 = vmatprep.subr.mxu0 0.0
      %3105 = vmatpush1.msra.mxu0 0.0
      %3106 = vmatprep.subr.mxu0 0.0
      %3107 = vmatpush1.msra.mxu0 0.0
      %3108 = vmatprep.subr.mxu0 0.0
      %3109 = vmatpush1.msra.mxu0 0.0
      %3110 = vmatprep.subr.mxu0 0.0
      %3111 = vmatpush1.msra.mxu0 0.0
      %3112 = vmatprep.subr.mxu0 0.0
      %3113 = vmatpush1.msra.mxu0 0.0
      %3114 = vmatprep.subr.mxu0 0.0
      %3115 = vmatpush1.msra.mxu0 0.0
      %3116 = vmatprep.subr.mxu0 0.0
      %3117 = vmatpush1.msra.mxu0 0.0
      %3118 = vmatprep.subr.mxu0 0.0
      %3119 = vmatpush1.msra.mxu0 0.0
      %3120 = vmatprep.subr.mxu0 0.0
      %3121 = vmatpush1.msra.mxu0 0.0
      %3122 = vmatprep.subr.mxu0 0.0
      %3123 = vmatpush1.msra.mxu0 0.0
      %3124 = vmatprep.subr.mxu0 0.0
      %3125 = vmatpush1.msra.mxu0 0.0
      %3126 = vmatprep.subr.mxu0 0.0
      %3127 = vmatpush1.msra.mxu0 %v306
      %3128 = vmatprep.subr.mxu0 0.0
      %3129 = vmatpush1.msra.mxu0 %v305
      %3130 = vmatprep.subr.mxu0 0.0
      %3131 = vmatpush2.msra.mxu0 0.0
      %3132 = vmatprep.subr.mxu0 0.0
      %3133 = vmatpush2.msra.mxu0 0.0
      %3134 = vmatprep.subr.mxu0 0.0
      %3135 = vmatpush2.msra.mxu0 0.0
      %3136 = vmatprep.subr.mxu0 0.0
      %3137 = vmatpush2.msra.mxu0 0.0
      %3138 = vmatprep.subr.mxu0 0.0
      %3139 = vmatpush2.msra.mxu0 0.0
      %3140 = vmatprep.subr.mxu0 0.0
      %3141 = vmatpush2.msra.mxu0 0.0
      %3142 = vmatprep.subr.mxu0 0.0
      %3143 = vmatpush2.msra.mxu0 0.0
      %3144 = vmatprep.subr.mxu0 0.0
      %3145 = vmatpush2.msra.mxu0 0.0
      %3146 = vmatprep.subr.mxu0 0.0
      %3147 = vmatpush2.msra.mxu0 0.0
      %3148 = vmatprep.subr.mxu0 0.0
      %3149 = vmatpush2.msra.mxu0 0.0
      %3150 = vmatprep.subr.mxu0 0.0
      %3151 = vmatpush2.msra.mxu0 0.0
      %3152 = vmatprep.subr.mxu0 0.0
      %3153 = vmatpush2.msra.mxu0 0.0
      %3154 = vmatprep.subr.mxu0 0.0
      %3155 = vmatpush2.msra.mxu0 0.0
      %3156 = vmatprep.subr.mxu0 0.0
      %3157 = vmatpush2.msra.mxu0 0.0
      %3158 = vmatprep.subr.mxu0 0.0
      %3159 = vmatpush2.msra.mxu0 0.0
      %3160 = vmatprep.subr.mxu0 0.0
      %3161 = vmatpush2.msra.mxu0 0.0
      %3162 = vmatprep.mubr.f32.mxu0 0.0
      %3163 = vmatmul.mubr.f32.gmra.mxu0 %v3093
      %v3164 = vpop.f32.mrf.mxu0
      %v3165 = vadd.f32 0.0, %v3164
      %v3166 = vpop.f32.mrf.mxu0
      %3167 = vmatprep.mubr.f32.mxu0 0.0
      %3168 = vmatmul.mubr.f32.gmra.mxu0 %v3096
      %v3169 = vpop.f32.mrf.mxu0
      %v3170 = vadd.f32 0.0, %v3169
      %v3171 = vpop.f32.mrf.mxu0
      %3172 = vdwg.mxu0
      %v3174 = vsel %vm2658, %v2956, 0
      %v3177 = vsel %vm2658, %v2958, 0
      %3179 = vmatprep.subr.mxu0 0.0
      %3180 = vmatpush1.msra.mxu0 0.0
      %3181 = vmatprep.subr.mxu0 0.0
      %3182 = vmatpush1.msra.mxu0 0.0
      %3183 = vmatprep.subr.mxu0 0.0
      %3184 = vmatpush1.msra.mxu0 0.0
      %3185 = vmatprep.subr.mxu0 0.0
      %3186 = vmatpush1.msra.mxu0 0.0
      %3187 = vmatprep.subr.mxu0 0.0
      %3188 = vmatpush1.msra.mxu0 0.0
      %3189 = vmatprep.subr.mxu0 0.0
      %3190 = vmatpush1.msra.mxu0 0.0
      %3191 = vmatprep.subr.mxu0 0.0
      %3192 = vmatpush1.msra.mxu0 0.0
      %3193 = vmatprep.subr.mxu0 0.0
      %3194 = vmatpush1.msra.mxu0 0.0
      %3195 = vmatprep.subr.mxu0 0.0
      %3196 = vmatpush1.msra.mxu0 0.0
      %3197 = vmatprep.subr.mxu0 0.0
      %3198 = vmatpush1.msra.mxu0 0.0
      %3199 = vmatprep.subr.mxu0 0.0
      %3200 = vmatpush1.msra.mxu0 0.0
      %3201 = vmatprep.subr.mxu0 0.0
      %3202 = vmatpush1.msra.mxu0 0.0
      %3203 = vmatprep.subr.mxu0 0.0
      %3204 = vmatpush1.msra.mxu0 0.0
      %3205 = vmatprep.subr.mxu0 0.0
      %3206 = vmatpush1.msra.mxu0 0.0
      %3207 = vmatprep.subr.mxu0 0.0
      %3208 = vmatpush1.msra.mxu0 %v308
      %3209 = vmatprep.subr.mxu0 0.0
      %3210 = vmatpush1.msra.mxu0 %v307
      %3211 = vmatprep.subr.mxu0 0.0
      %3212 = vmatpush2.msra.mxu0 0.0
      %3213 = vmatprep.subr.mxu0 0.0
      %3214 = vmatpush2.msra.mxu0 0.0
      %3215 = vmatprep.subr.mxu0 0.0
      %3216 = vmatpush2.msra.mxu0 0.0
      %3217 = vmatprep.subr.mxu0 0.0
      %3218 = vmatpush2.msra.mxu0 0.0
      %3219 = vmatprep.subr.mxu0 0.0
      %3220 = vmatpush2.msra.mxu0 0.0
      %3221 = vmatprep.subr.mxu0 0.0
      %3222 = vmatpush2.msra.mxu0 0.0
      %3223 = vmatprep.subr.mxu0 0.0
      %3224 = vmatpush2.msra.mxu0 0.0
      %3225 = vmatprep.subr.mxu0 0.0
      %3226 = vmatpush2.msra.mxu0 0.0
      %3227 = vmatprep.subr.mxu0 0.0
      %3228 = vmatpush2.msra.mxu0 0.0
      %3229 = vmatprep.subr.mxu0 0.0
      %3230 = vmatpush2.msra.mxu0 0.0
      %3231 = vmatprep.subr.mxu0 0.0
      %3232 = vmatpush2.msra.mxu0 0.0
      %3233 = vmatprep.subr.mxu0 0.0
      %3234 = vmatpush2.msra.mxu0 0.0
      %3235 = vmatprep.subr.mxu0 0.0
      %3236 = vmatpush2.msra.mxu0 0.0
      %3237 = vmatprep.subr.mxu0 0.0
      %3238 = vmatpush2.msra.mxu0 0.0
      %3239 = vmatprep.subr.mxu0 0.0
      %3240 = vmatpush2.msra.mxu0 0.0
      %3241 = vmatprep.subr.mxu0 0.0
      %3242 = vmatpush2.msra.mxu0 0.0
      %3243 = vmatprep.mubr.f32.mxu0 0.0
      %3244 = vmatmul.mubr.f32.gmra.mxu0 %v3174
      %v3245 = vpop.f32.mrf.mxu0
      %v3246 = vadd.f32 0.0, %v3245
      %v3247 = vpop.f32.mrf.mxu0
      %3248 = vmatprep.mubr.f32.mxu0 0.0
      %3249 = vmatmul.mubr.f32.gmra.mxu0 %v3177
      %v3250 = vpop.f32.mrf.mxu0
      %v3251 = vadd.f32 0.0, %v3250
      %v3252 = vpop.f32.mrf.mxu0
      %3253 = vdwg.mxu0
      %v3255 = vsel %vm2658, %v2960, 0
      %v3258 = vsel %vm2658, %v2962, 0
      %3260 = vmatprep.subr.mxu0 0.0
      %3261 = vmatpush1.msra.mxu0 0.0
      %3262 = vmatprep.subr.mxu0 0.0
      %3263 = vmatpush1.msra.mxu0 0.0
      %3264 = vmatprep.subr.mxu0 0.0
      %3265 = vmatpush1.msra.mxu0 0.0
      %3266 = vmatprep.subr.mxu0 0.0
      %3267 = vmatpush1.msra.mxu0 0.0
      %3268 = vmatprep.subr.mxu0 0.0
      %3269 = vmatpush1.msra.mxu0 0.0
      %3270 = vmatprep.subr.mxu0 0.0
      %3271 = vmatpush1.msra.mxu0 0.0
      %3272 = vmatprep.subr.mxu0 0.0
      %3273 = vmatpush1.msra.mxu0 0.0
      %3274 = vmatprep.subr.mxu0 0.0
      %3275 = vmatpush1.msra.mxu0 0.0
      %3276 = vmatprep.subr.mxu0 0.0
      %3277 = vmatpush1.msra.mxu0 0.0
      %3278 = vmatprep.subr.mxu0 0.0
      %3279 = vmatpush1.msra.mxu0 0.0
      %3280 = vmatprep.subr.mxu0 0.0
      %3281 = vmatpush1.msra.mxu0 0.0
      %3282 = vmatprep.subr.mxu0 0.0
      %3283 = vmatpush1.msra.mxu0 0.0
      %3284 = vmatprep.subr.mxu0 0.0
      %3285 = vmatpush1.msra.mxu0 0.0
      %3286 = vmatprep.subr.mxu0 0.0
      %3287 = vmatpush1.msra.mxu0 0.0
      %3288 = vmatprep.subr.mxu0 0.0
      %3289 = vmatpush1.msra.mxu0 %v310
      %3290 = vmatprep.subr.mxu0 0.0
      %3291 = vmatpush1.msra.mxu0 %v309
      %3292 = vmatprep.subr.mxu0 0.0
      %3293 = vmatpush2.msra.mxu0 0.0
      %3294 = vmatprep.subr.mxu0 0.0
      %3295 = vmatpush2.msra.mxu0 0.0
      %3296 = vmatprep.subr.mxu0 0.0
      %3297 = vmatpush2.msra.mxu0 0.0
      %3298 = vmatprep.subr.mxu0 0.0
      %3299 = vmatpush2.msra.mxu0 0.0
      %3300 = vmatprep.subr.mxu0 0.0
      %3301 = vmatpush2.msra.mxu0 0.0
      %3302 = vmatprep.subr.mxu0 0.0
      %3303 = vmatpush2.msra.mxu0 0.0
      %3304 = vmatprep.subr.mxu0 0.0
      %3305 = vmatpush2.msra.mxu0 0.0
      %3306 = vmatprep.subr.mxu0 0.0
      %3307 = vmatpush2.msra.mxu0 0.0
      %3308 = vmatprep.subr.mxu0 0.0
      %3309 = vmatpush2.msra.mxu0 0.0
      %3310 = vmatprep.subr.mxu0 0.0
      %3311 = vmatpush2.msra.mxu0 0.0
      %3312 = vmatprep.subr.mxu0 0.0
      %3313 = vmatpush2.msra.mxu0 0.0
      %3314 = vmatprep.subr.mxu0 0.0
      %3315 = vmatpush2.msra.mxu0 0.0
      %3316 = vmatprep.subr.mxu0 0.0
      %3317 = vmatpush2.msra.mxu0 0.0
      %3318 = vmatprep.subr.mxu0 0.0
      %3319 = vmatpush2.msra.mxu0 0.0
      %3320 = vmatprep.subr.mxu0 0.0
      %3321 = vmatpush2.msra.mxu0 0.0
      %3322 = vmatprep.subr.mxu0 0.0
      %3323 = vmatpush2.msra.mxu0 0.0
      %3324 = vmatprep.mubr.f32.mxu0 0.0
      %3325 = vmatmul.mubr.f32.gmra.mxu0 %v3255
      %v3326 = vpop.f32.mrf.mxu0
      %v3327 = vadd.f32 0.0, %v3326
      %v3328 = vpop.f32.mrf.mxu0
      %3329 = vmatprep.mubr.f32.mxu0 0.0
      %3330 = vmatmul.mubr.f32.gmra.mxu0 %v3258
      %v3331 = vpop.f32.mrf.mxu0
      %v3332 = vadd.f32 0.0, %v3331
      %v3333 = vpop.f32.mrf.mxu0
      %3334 = vdwg.mxu0
      %v3336 = vsel %vm2658, %v2964, 0
      %v3339 = vsel %vm2658, %v2966, 0
      %3341 = vmatprep.subr.mxu0 0.0
      %3342 = vmatpush1.msra.mxu0 0.0
      %3343 = vmatprep.subr.mxu0 0.0
      %3344 = vmatpush1.msra.mxu0 0.0
      %3345 = vmatprep.subr.mxu0 0.0
      %3346 = vmatpush1.msra.mxu0 0.0
      %3347 = vmatprep.subr.mxu0 0.0
      %3348 = vmatpush1.msra.mxu0 0.0
      %3349 = vmatprep.subr.mxu0 0.0
      %3350 = vmatpush1.msra.mxu0 0.0
      %3351 = vmatprep.subr.mxu0 0.0
      %3352 = vmatpush1.msra.mxu0 0.0
      %3353 = vmatprep.subr.mxu0 0.0
      %3354 = vmatpush1.msra.mxu0 0.0
      %3355 = vmatprep.subr.mxu0 0.0
      %3356 = vmatpush1.msra.mxu0 0.0
      %3357 = vmatprep.subr.mxu0 0.0
      %3358 = vmatpush1.msra.mxu0 0.0
      %3359 = vmatprep.subr.mxu0 0.0
      %3360 = vmatpush1.msra.mxu0 0.0
      %3361 = vmatprep.subr.mxu0 0.0
      %3362 = vmatpush1.msra.mxu0 0.0
      %3363 = vmatprep.subr.mxu0 0.0
      %3364 = vmatpush1.msra.mxu0 0.0
      %3365 = vmatprep.subr.mxu0 0.0
      %3366 = vmatpush1.msra.mxu0 0.0
      %3367 = vmatprep.subr.mxu0 0.0
      %3368 = vmatpush1.msra.mxu0 0.0
      %3369 = vmatprep.subr.mxu0 0.0
      %3370 = vmatpush1.msra.mxu0 %v312
      %3371 = vmatprep.subr.mxu0 0.0
      %3372 = vmatpush1.msra.mxu0 %v311
      %3373 = vmatprep.subr.mxu0 0.0
      %3374 = vmatpush2.msra.mxu0 0.0
      %3375 = vmatprep.subr.mxu0 0.0
      %3376 = vmatpush2.msra.mxu0 0.0
      %3377 = vmatprep.subr.mxu0 0.0
      %3378 = vmatpush2.msra.mxu0 0.0
      %3379 = vmatprep.subr.mxu0 0.0
      %3380 = vmatpush2.msra.mxu0 0.0
      %3381 = vmatprep.subr.mxu0 0.0
      %3382 = vmatpush2.msra.mxu0 0.0
      %3383 = vmatprep.subr.mxu0 0.0
      %3384 = vmatpush2.msra.mxu0 0.0
      %3385 = vmatprep.subr.mxu0 0.0
      %3386 = vmatpush2.msra.mxu0 0.0
      %3387 = vmatprep.subr.mxu0 0.0
      %3388 = vmatpush2.msra.mxu0 0.0
      %3389 = vmatprep.subr.mxu0 0.0
      %3390 = vmatpush2.msra.mxu0 0.0
      %3391 = vmatprep.subr.mxu0 0.0
      %3392 = vmatpush2.msra.mxu0 0.0
      %3393 = vmatprep.subr.mxu0 0.0
      %3394 = vmatpush2.msra.mxu0 0.0
      %3395 = vmatprep.subr.mxu0 0.0
      %3396 = vmatpush2.msra.mxu0 0.0
      %3397 = vmatprep.subr.mxu0 0.0
      %3398 = vmatpush2.msra.mxu0 0.0
      %3399 = vmatprep.subr.mxu0 0.0
      %3400 = vmatpush2.msra.mxu0 0.0
      %3401 = vmatprep.subr.mxu0 0.0
      %3402 = vmatpush2.msra.mxu0 0.0
      %3403 = vmatprep.subr.mxu0 0.0
      %3404 = vmatpush2.msra.mxu0 0.0
      %3405 = vmatprep.mubr.f32.mxu0 0.0
      %3406 = vmatmul.mubr.f32.gmra.mxu0 %v3336
      %v3407 = vpop.f32.mrf.mxu0
      %v3408 = vadd.f32 0.0, %v3407
      %v3409 = vpop.f32.mrf.mxu0
      %3410 = vmatprep.mubr.f32.mxu0 0.0
      %3411 = vmatmul.mubr.f32.gmra.mxu0 %v3339
      %v3412 = vpop.f32.mrf.mxu0
      %v3413 = vadd.f32 0.0, %v3412
      %v3414 = vpop.f32.mrf.mxu0
      %3415 = vdwg.mxu0
      %v3417 = vsel %vm2658, %v2968, 0
      %v3420 = vsel %vm2658, %v2970, 0
      %3422 = vmatprep.subr.mxu0 0.0
      %3423 = vmatpush1.msra.mxu0 0.0
      %3424 = vmatprep.subr.mxu0 0.0
      %3425 = vmatpush1.msra.mxu0 0.0
      %3426 = vmatprep.subr.mxu0 0.0
      %3427 = vmatpush1.msra.mxu0 0.0
      %3428 = vmatprep.subr.mxu0 0.0
      %3429 = vmatpush1.msra.mxu0 0.0
      %3430 = vmatprep.subr.mxu0 0.0
      %3431 = vmatpush1.msra.mxu0 0.0
      %3432 = vmatprep.subr.mxu0 0.0
      %3433 = vmatpush1.msra.mxu0 0.0
      %3434 = vmatprep.subr.mxu0 0.0
      %3435 = vmatpush1.msra.mxu0 0.0
      %3436 = vmatprep.subr.mxu0 0.0
      %3437 = vmatpush1.msra.mxu0 0.0
      %3438 = vmatprep.subr.mxu0 0.0
      %3439 = vmatpush1.msra.mxu0 0.0
      %3440 = vmatprep.subr.mxu0 0.0
      %3441 = vmatpush1.msra.mxu0 0.0
      %3442 = vmatprep.subr.mxu0 0.0
      %3443 = vmatpush1.msra.mxu0 0.0
      %3444 = vmatprep.subr.mxu0 0.0
      %3445 = vmatpush1.msra.mxu0 0.0
      %3446 = vmatprep.subr.mxu0 0.0
      %3447 = vmatpush1.msra.mxu0 0.0
      %3448 = vmatprep.subr.mxu0 0.0
      %3449 = vmatpush1.msra.mxu0 0.0
      %3450 = vmatprep.subr.mxu0 0.0
      %3451 = vmatpush1.msra.mxu0 %v314
      %3452 = vmatprep.subr.mxu0 0.0
      %3453 = vmatpush1.msra.mxu0 %v313
      %3454 = vmatprep.subr.mxu0 0.0
      %3455 = vmatpush2.msra.mxu0 0.0
      %3456 = vmatprep.subr.mxu0 0.0
      %3457 = vmatpush2.msra.mxu0 0.0
      %3458 = vmatprep.subr.mxu0 0.0
      %3459 = vmatpush2.msra.mxu0 0.0
      %3460 = vmatprep.subr.mxu0 0.0
      %3461 = vmatpush2.msra.mxu0 0.0
      %3462 = vmatprep.subr.mxu0 0.0
      %3463 = vmatpush2.msra.mxu0 0.0
      %3464 = vmatprep.subr.mxu0 0.0
      %3465 = vmatpush2.msra.mxu0 0.0
      %3466 = vmatprep.subr.mxu0 0.0
      %3467 = vmatpush2.msra.mxu0 0.0
      %3468 = vmatprep.subr.mxu0 0.0
      %3469 = vmatpush2.msra.mxu0 0.0
      %3470 = vmatprep.subr.mxu0 0.0
      %3471 = vmatpush2.msra.mxu0 0.0
      %3472 = vmatprep.subr.mxu0 0.0
      %3473 = vmatpush2.msra.mxu0 0.0
      %3474 = vmatprep.subr.mxu0 0.0
      %3475 = vmatpush2.msra.mxu0 0.0
      %3476 = vmatprep.subr.mxu0 0.0
      %3477 = vmatpush2.msra.mxu0 0.0
      %3478 = vmatprep.subr.mxu0 0.0
      %3479 = vmatpush2.msra.mxu0 0.0
      %3480 = vmatprep.subr.mxu0 0.0
      %3481 = vmatpush2.msra.mxu0 0.0
      %3482 = vmatprep.subr.mxu0 0.0
      %3483 = vmatpush2.msra.mxu0 0.0
      %3484 = vmatprep.subr.mxu0 0.0
      %3485 = vmatpush2.msra.mxu0 0.0
      %3486 = vmatprep.mubr.f32.mxu0 0.0
      %3487 = vmatmul.mubr.f32.gmra.mxu0 %v3417
      %v3488 = vpop.f32.mrf.mxu0
      %v3489 = vadd.f32 0.0, %v3488
      %v3490 = vpop.f32.mrf.mxu0
      %3491 = vmatprep.mubr.f32.mxu0 0.0
      %3492 = vmatmul.mubr.f32.gmra.mxu0 %v3420
      %v3493 = vpop.f32.mrf.mxu0
      %v3494 = vadd.f32 0.0, %v3493
      %v3495 = vpop.f32.mrf.mxu0
      %3496 = vdwg.mxu0
      %v3498 = vsel %vm2658, %v2972, 0
      %v3501 = vsel %vm2658, %v2974, 0
      %3503 = vmatprep.subr.mxu0 0.0
      %3504 = vmatpush1.msra.mxu0 0.0
      %3505 = vmatprep.subr.mxu0 0.0
      %3506 = vmatpush1.msra.mxu0 0.0
      %3507 = vmatprep.subr.mxu0 0.0
      %3508 = vmatpush1.msra.mxu0 0.0
      %3509 = vmatprep.subr.mxu0 0.0
      %3510 = vmatpush1.msra.mxu0 0.0
      %3511 = vmatprep.subr.mxu0 0.0
      %3512 = vmatpush1.msra.mxu0 0.0
      %3513 = vmatprep.subr.mxu0 0.0
      %3514 = vmatpush1.msra.mxu0 0.0
      %3515 = vmatprep.subr.mxu0 0.0
      %3516 = vmatpush1.msra.mxu0 0.0
      %3517 = vmatprep.subr.mxu0 0.0
      %3518 = vmatpush1.msra.mxu0 0.0
      %3519 = vmatprep.subr.mxu0 0.0
      %3520 = vmatpush1.msra.mxu0 0.0
      %3521 = vmatprep.subr.mxu0 0.0
      %3522 = vmatpush1.msra.mxu0 0.0
      %3523 = vmatprep.subr.mxu0 0.0
      %3524 = vmatpush1.msra.mxu0 0.0
      %3525 = vmatprep.subr.mxu0 0.0
      %3526 = vmatpush1.msra.mxu0 0.0
      %3527 = vmatprep.subr.mxu0 0.0
      %3528 = vmatpush1.msra.mxu0 0.0
      %3529 = vmatprep.subr.mxu0 0.0
      %3530 = vmatpush1.msra.mxu0 0.0
      %3531 = vmatprep.subr.mxu0 0.0
      %3532 = vmatpush1.msra.mxu0 %v316
      %3533 = vmatprep.subr.mxu0 0.0
      %3534 = vmatpush1.msra.mxu0 %v315
      %3535 = vmatprep.subr.mxu0 0.0
      %3536 = vmatpush2.msra.mxu0 0.0
      %3537 = vmatprep.subr.mxu0 0.0
      %3538 = vmatpush2.msra.mxu0 0.0
      %3539 = vmatprep.subr.mxu0 0.0
      %3540 = vmatpush2.msra.mxu0 0.0
      %3541 = vmatprep.subr.mxu0 0.0
      %3542 = vmatpush2.msra.mxu0 0.0
      %3543 = vmatprep.subr.mxu0 0.0
      %3544 = vmatpush2.msra.mxu0 0.0
      %3545 = vmatprep.subr.mxu0 0.0
      %3546 = vmatpush2.msra.mxu0 0.0
      %3547 = vmatprep.subr.mxu0 0.0
      %3548 = vmatpush2.msra.mxu0 0.0
      %3549 = vmatprep.subr.mxu0 0.0
      %3550 = vmatpush2.msra.mxu0 0.0
      %3551 = vmatprep.subr.mxu0 0.0
      %3552 = vmatpush2.msra.mxu0 0.0
      %3553 = vmatprep.subr.mxu0 0.0
      %3554 = vmatpush2.msra.mxu0 0.0
      %3555 = vmatprep.subr.mxu0 0.0
      %3556 = vmatpush2.msra.mxu0 0.0
      %3557 = vmatprep.subr.mxu0 0.0
      %3558 = vmatpush2.msra.mxu0 0.0
      %3559 = vmatprep.subr.mxu0 0.0
      %3560 = vmatpush2.msra.mxu0 0.0
      %3561 = vmatprep.subr.mxu0 0.0
      %3562 = vmatpush2.msra.mxu0 0.0
      %3563 = vmatprep.subr.mxu0 0.0
      %3564 = vmatpush2.msra.mxu0 0.0
      %3565 = vmatprep.subr.mxu0 0.0
      %3566 = vmatpush2.msra.mxu0 0.0
      %3567 = vmatprep.mubr.f32.mxu0 0.0
      %3568 = vmatmul.mubr.f32.gmra.mxu0 %v3498
      %v3569 = vpop.f32.mrf.mxu0
      %v3570 = vadd.f32 0.0, %v3569
      %v3571 = vpop.f32.mrf.mxu0
      %3572 = vmatprep.mubr.f32.mxu0 0.0
      %3573 = vmatmul.mubr.f32.gmra.mxu0 %v3501
      %v3574 = vpop.f32.mrf.mxu0
      %v3575 = vadd.f32 0.0, %v3574
      %v3576 = vpop.f32.mrf.mxu0
      %3577 = vdwg.mxu0
      %v3579 = vsel %vm2658, %v2976, 0
      %v3582 = vsel %vm2658, %v2978, 0
      %3584 = vmatprep.subr.mxu0 0.0
      %3585 = vmatpush1.msra.mxu0 0.0
      %3586 = vmatprep.subr.mxu0 0.0
      %3587 = vmatpush1.msra.mxu0 0.0
      %3588 = vmatprep.subr.mxu0 0.0
      %3589 = vmatpush1.msra.mxu0 0.0
      %3590 = vmatprep.subr.mxu0 0.0
      %3591 = vmatpush1.msra.mxu0 0.0
      %3592 = vmatprep.subr.mxu0 0.0
      %3593 = vmatpush1.msra.mxu0 0.0
      %3594 = vmatprep.subr.mxu0 0.0
      %3595 = vmatpush1.msra.mxu0 0.0
      %3596 = vmatprep.subr.mxu0 0.0
      %3597 = vmatpush1.msra.mxu0 0.0
      %3598 = vmatprep.subr.mxu0 0.0
      %3599 = vmatpush1.msra.mxu0 0.0
      %3600 = vmatprep.subr.mxu0 0.0
      %3601 = vmatpush1.msra.mxu0 0.0
      %3602 = vmatprep.subr.mxu0 0.0
      %3603 = vmatpush1.msra.mxu0 0.0
      %3604 = vmatprep.subr.mxu0 0.0
      %3605 = vmatpush1.msra.mxu0 0.0
      %3606 = vmatprep.subr.mxu0 0.0
      %3607 = vmatpush1.msra.mxu0 0.0
      %3608 = vmatprep.subr.mxu0 0.0
      %3609 = vmatpush1.msra.mxu0 0.0
      %3610 = vmatprep.subr.mxu0 0.0
      %3611 = vmatpush1.msra.mxu0 0.0
      %3612 = vmatprep.subr.mxu0 0.0
      %3613 = vmatpush1.msra.mxu0 %v318
      %3614 = vmatprep.subr.mxu0 0.0
      %3615 = vmatpush1.msra.mxu0 %v317
      %3616 = vmatprep.subr.mxu0 0.0
      %3617 = vmatpush2.msra.mxu0 0.0
      %3618 = vmatprep.subr.mxu0 0.0
      %3619 = vmatpush2.msra.mxu0 0.0
      %3620 = vmatprep.subr.mxu0 0.0
      %3621 = vmatpush2.msra.mxu0 0.0
      %3622 = vmatprep.subr.mxu0 0.0
      %3623 = vmatpush2.msra.mxu0 0.0
      %3624 = vmatprep.subr.mxu0 0.0
      %3625 = vmatpush2.msra.mxu0 0.0
      %3626 = vmatprep.subr.mxu0 0.0
      %3627 = vmatpush2.msra.mxu0 0.0
      %3628 = vmatprep.subr.mxu0 0.0
      %3629 = vmatpush2.msra.mxu0 0.0
      %3630 = vmatprep.subr.mxu0 0.0
      %3631 = vmatpush2.msra.mxu0 0.0
      %3632 = vmatprep.subr.mxu0 0.0
      %3633 = vmatpush2.msra.mxu0 0.0
      %3634 = vmatprep.subr.mxu0 0.0
      %3635 = vmatpush2.msra.mxu0 0.0
      %3636 = vmatprep.subr.mxu0 0.0
      %3637 = vmatpush2.msra.mxu0 0.0
      %3638 = vmatprep.subr.mxu0 0.0
      %3639 = vmatpush2.msra.mxu0 0.0
      %3640 = vmatprep.subr.mxu0 0.0
      %3641 = vmatpush2.msra.mxu0 0.0
      %3642 = vmatprep.subr.mxu0 0.0
      %3643 = vmatpush2.msra.mxu0 0.0
      %3644 = vmatprep.subr.mxu0 0.0
      %3645 = vmatpush2.msra.mxu0 0.0
      %3646 = vmatprep.subr.mxu0 0.0
      %3647 = vmatpush2.msra.mxu0 0.0
      %3648 = vmatprep.mubr.f32.mxu0 0.0
      %3649 = vmatmul.mubr.f32.gmra.mxu0 %v3579
      %v3650 = vpop.f32.mrf.mxu0
      %v3651 = vadd.f32 0.0, %v3650
      %v3652 = vpop.f32.mrf.mxu0
      %3653 = vmatprep.mubr.f32.mxu0 0.0
      %3654 = vmatmul.mubr.f32.gmra.mxu0 %v3582
      %v3655 = vpop.f32.mrf.mxu0
      %v3656 = vadd.f32 0.0, %v3655
      %v3657 = vpop.f32.mrf.mxu0
      %3658 = vdwg.mxu0
      %v3660 = vsel %vm2658, %v2980, 0
      %v3663 = vsel %vm2658, %v2982, 0
      %3665 = vmatprep.subr.mxu0 0.0
      %3666 = vmatpush1.msra.mxu0 0.0
      %3667 = vmatprep.subr.mxu0 0.0
      %3668 = vmatpush1.msra.mxu0 0.0
      %3669 = vmatprep.subr.mxu0 0.0
      %3670 = vmatpush1.msra.mxu0 0.0
      %3671 = vmatprep.subr.mxu0 0.0
      %3672 = vmatpush1.msra.mxu0 0.0
      %3673 = vmatprep.subr.mxu0 0.0
      %3674 = vmatpush1.msra.mxu0 0.0
      %3675 = vmatprep.subr.mxu0 0.0
      %3676 = vmatpush1.msra.mxu0 0.0
      %3677 = vmatprep.subr.mxu0 0.0
      %3678 = vmatpush1.msra.mxu0 0.0
      %3679 = vmatprep.subr.mxu0 0.0
      %3680 = vmatpush1.msra.mxu0 0.0
      %3681 = vmatprep.subr.mxu0 0.0
      %3682 = vmatpush1.msra.mxu0 0.0
      %3683 = vmatprep.subr.mxu0 0.0
      %3684 = vmatpush1.msra.mxu0 0.0
      %3685 = vmatprep.subr.mxu0 0.0
      %3686 = vmatpush1.msra.mxu0 0.0
      %3687 = vmatprep.subr.mxu0 0.0
      %3688 = vmatpush1.msra.mxu0 0.0
      %3689 = vmatprep.subr.mxu0 0.0
      %3690 = vmatpush1.msra.mxu0 0.0
      %3691 = vmatprep.subr.mxu0 0.0
      %3692 = vmatpush1.msra.mxu0 0.0
      %3693 = vmatprep.subr.mxu0 0.0
      %3694 = vmatpush1.msra.mxu0 %v320
      %3695 = vmatprep.subr.mxu0 0.0
      %3696 = vmatpush1.msra.mxu0 %v319
      %3697 = vmatprep.subr.mxu0 0.0
      %3698 = vmatpush2.msra.mxu0 0.0
      %3699 = vmatprep.subr.mxu0 0.0
      %3700 = vmatpush2.msra.mxu0 0.0
      %3701 = vmatprep.subr.mxu0 0.0
      %3702 = vmatpush2.msra.mxu0 0.0
      %3703 = vmatprep.subr.mxu0 0.0
      %3704 = vmatpush2.msra.mxu0 0.0
      %3705 = vmatprep.subr.mxu0 0.0
      %3706 = vmatpush2.msra.mxu0 0.0
      %3707 = vmatprep.subr.mxu0 0.0
      %3708 = vmatpush2.msra.mxu0 0.0
      %3709 = vmatprep.subr.mxu0 0.0
      %3710 = vmatpush2.msra.mxu0 0.0
      %3711 = vmatprep.subr.mxu0 0.0
      %3712 = vmatpush2.msra.mxu0 0.0
      %3713 = vmatprep.subr.mxu0 0.0
      %3714 = vmatpush2.msra.mxu0 0.0
      %3715 = vmatprep.subr.mxu0 0.0
      %3716 = vmatpush2.msra.mxu0 0.0
      %3717 = vmatprep.subr.mxu0 0.0
      %3718 = vmatpush2.msra.mxu0 0.0
      %3719 = vmatprep.subr.mxu0 0.0
      %3720 = vmatpush2.msra.mxu0 0.0
      %3721 = vmatprep.subr.mxu0 0.0
      %3722 = vmatpush2.msra.mxu0 0.0
      %3723 = vmatprep.subr.mxu0 0.0
      %3724 = vmatpush2.msra.mxu0 0.0
      %3725 = vmatprep.subr.mxu0 0.0
      %3726 = vmatpush2.msra.mxu0 0.0
      %3727 = vmatprep.subr.mxu0 0.0
      %3728 = vmatpush2.msra.mxu0 0.0
      %3729 = vmatprep.mubr.f32.mxu0 0.0
      %3730 = vmatmul.mubr.f32.gmra.mxu0 %v3660
      %v3731 = vpop.f32.mrf.mxu0
      %v3732 = vadd.f32 0.0, %v3731
      %v3733 = vpop.f32.mrf.mxu0
      %3734 = vmatprep.mubr.f32.mxu0 0.0
      %3735 = vmatmul.mubr.f32.gmra.mxu0 %v3663
      %v3736 = vpop.f32.mrf.mxu0
      %v3737 = vadd.f32 0.0, %v3736
      %v3738 = vpop.f32.mrf.mxu0
      %3739 = vdwg.mxu0
      %v3741 = vsel %vm2658, %v2984, 0
      %v3744 = vsel %vm2658, %v2986, 0
      %3746 = vmatprep.subr.mxu0 0.0
      %3747 = vmatpush1.msra.mxu0 0.0
      %3748 = vmatprep.subr.mxu0 0.0
      %3749 = vmatpush1.msra.mxu0 0.0
      %3750 = vmatprep.subr.mxu0 0.0
      %3751 = vmatpush1.msra.mxu0 0.0
      %3752 = vmatprep.subr.mxu0 0.0
      %3753 = vmatpush1.msra.mxu0 0.0
      %3754 = vmatprep.subr.mxu0 0.0
      %3755 = vmatpush1.msra.mxu0 0.0
      %3756 = vmatprep.subr.mxu0 0.0
      %3757 = vmatpush1.msra.mxu0 0.0
      %3758 = vmatprep.subr.mxu0 0.0
      %3759 = vmatpush1.msra.mxu0 0.0
      %3760 = vmatprep.subr.mxu0 0.0
      %3761 = vmatpush1.msra.mxu0 0.0
      %3762 = vmatprep.subr.mxu0 0.0
      %3763 = vmatpush1.msra.mxu0 0.0
      %3764 = vmatprep.subr.mxu0 0.0
      %3765 = vmatpush1.msra.mxu0 0.0
      %3766 = vmatprep.subr.mxu0 0.0
      %3767 = vmatpush1.msra.mxu0 0.0
      %3768 = vmatprep.subr.mxu0 0.0
      %3769 = vmatpush1.msra.mxu0 0.0
      %3770 = vmatprep.subr.mxu0 0.0
      %3771 = vmatpush1.msra.mxu0 0.0
      %3772 = vmatprep.subr.mxu0 0.0
      %3773 = vmatpush1.msra.mxu0 0.0
      %3774 = vmatprep.subr.mxu0 0.0
      %3775 = vmatpush1.msra.mxu0 %v322
      %3776 = vmatprep.subr.mxu0 0.0
      %3777 = vmatpush1.msra.mxu0 %v321
      %3778 = vmatprep.subr.mxu0 0.0
      %3779 = vmatpush2.msra.mxu0 0.0
      %3780 = vmatprep.subr.mxu0 0.0
      %3781 = vmatpush2.msra.mxu0 0.0
      %3782 = vmatprep.subr.mxu0 0.0
      %3783 = vmatpush2.msra.mxu0 0.0
      %3784 = vmatprep.subr.mxu0 0.0
      %3785 = vmatpush2.msra.mxu0 0.0
      %3786 = vmatprep.subr.mxu0 0.0
      %3787 = vmatpush2.msra.mxu0 0.0
      %3788 = vmatprep.subr.mxu0 0.0
      %3789 = vmatpush2.msra.mxu0 0.0
      %3790 = vmatprep.subr.mxu0 0.0
      %3791 = vmatpush2.msra.mxu0 0.0
      %3792 = vmatprep.subr.mxu0 0.0
      %3793 = vmatpush2.msra.mxu0 0.0
      %3794 = vmatprep.subr.mxu0 0.0
      %3795 = vmatpush2.msra.mxu0 0.0
      %3796 = vmatprep.subr.mxu0 0.0
      %3797 = vmatpush2.msra.mxu0 0.0
      %3798 = vmatprep.subr.mxu0 0.0
      %3799 = vmatpush2.msra.mxu0 0.0
      %3800 = vmatprep.subr.mxu0 0.0
      %3801 = vmatpush2.msra.mxu0 0.0
      %3802 = vmatprep.subr.mxu0 0.0
      %3803 = vmatpush2.msra.mxu0 0.0
      %3804 = vmatprep.subr.mxu0 0.0
      %3805 = vmatpush2.msra.mxu0 0.0
      %3806 = vmatprep.subr.mxu0 0.0
      %3807 = vmatpush2.msra.mxu0 0.0
      %3808 = vmatprep.subr.mxu0 0.0
      %3809 = vmatpush2.msra.mxu0 0.0
      %3810 = vmatprep.mubr.f32.mxu0 0.0
      %3811 = vmatmul.mubr.f32.gmra.mxu0 %v3741
      %v3812 = vpop.f32.mrf.mxu0
      %v3813 = vadd.f32 0.0, %v3812
      %v3814 = vpop.f32.mrf.mxu0
      %3815 = vmatprep.mubr.f32.mxu0 0.0
      %3816 = vmatmul.mubr.f32.gmra.mxu0 %v3744
      %v3817 = vpop.f32.mrf.mxu0
      %v3818 = vadd.f32 0.0, %v3817
      %v3819 = vpop.f32.mrf.mxu0
      %3820 = vdwg.mxu0
      %v3822 = vsel %vm2658, %v2988, 0
      %v3825 = vsel %vm2658, %v2990, 0
      %3827 = vmatprep.subr.mxu0 0.0
      %3828 = vmatpush1.msra.mxu0 0.0
      %3829 = vmatprep.subr.mxu0 0.0
      %3830 = vmatpush1.msra.mxu0 0.0
      %3831 = vmatprep.subr.mxu0 0.0
      %3832 = vmatpush1.msra.mxu0 0.0
      %3833 = vmatprep.subr.mxu0 0.0
      %3834 = vmatpush1.msra.mxu0 0.0
      %3835 = vmatprep.subr.mxu0 0.0
      %3836 = vmatpush1.msra.mxu0 0.0
      %3837 = vmatprep.subr.mxu0 0.0
      %3838 = vmatpush1.msra.mxu0 0.0
      %3839 = vmatprep.subr.mxu0 0.0
      %3840 = vmatpush1.msra.mxu0 0.0
      %3841 = vmatprep.subr.mxu0 0.0
      %3842 = vmatpush1.msra.mxu0 0.0
      %3843 = vmatprep.subr.mxu0 0.0
      %3844 = vmatpush1.msra.mxu0 0.0
      %3845 = vmatprep.subr.mxu0 0.0
      %3846 = vmatpush1.msra.mxu0 0.0
      %3847 = vmatprep.subr.mxu0 0.0
      %3848 = vmatpush1.msra.mxu0 0.0
      %3849 = vmatprep.subr.mxu0 0.0
      %3850 = vmatpush1.msra.mxu0 0.0
      %3851 = vmatprep.subr.mxu0 0.0
      %3852 = vmatpush1.msra.mxu0 0.0
      %3853 = vmatprep.subr.mxu0 0.0
      %3854 = vmatpush1.msra.mxu0 0.0
      %3855 = vmatprep.subr.mxu0 0.0
      %3856 = vmatpush1.msra.mxu0 %v324
      %3857 = vmatprep.subr.mxu0 0.0
      %3858 = vmatpush1.msra.mxu0 %v323
      %3859 = vmatprep.subr.mxu0 0.0
      %3860 = vmatpush2.msra.mxu0 0.0
      %3861 = vmatprep.subr.mxu0 0.0
      %3862 = vmatpush2.msra.mxu0 0.0
      %3863 = vmatprep.subr.mxu0 0.0
      %3864 = vmatpush2.msra.mxu0 0.0
      %3865 = vmatprep.subr.mxu0 0.0
      %3866 = vmatpush2.msra.mxu0 0.0
      %3867 = vmatprep.subr.mxu0 0.0
      %3868 = vmatpush2.msra.mxu0 0.0
      %3869 = vmatprep.subr.mxu0 0.0
      %3870 = vmatpush2.msra.mxu0 0.0
      %3871 = vmatprep.subr.mxu0 0.0
      %3872 = vmatpush2.msra.mxu0 0.0
      %3873 = vmatprep.subr.mxu0 0.0
      %3874 = vmatpush2.msra.mxu0 0.0
      %3875 = vmatprep.subr.mxu0 0.0
      %3876 = vmatpush2.msra.mxu0 0.0
      %3877 = vmatprep.subr.mxu0 0.0
      %3878 = vmatpush2.msra.mxu0 0.0
      %3879 = vmatprep.subr.mxu0 0.0
      %3880 = vmatpush2.msra.mxu0 0.0
      %3881 = vmatprep.subr.mxu0 0.0
      %3882 = vmatpush2.msra.mxu0 0.0
      %3883 = vmatprep.subr.mxu0 0.0
      %3884 = vmatpush2.msra.mxu0 0.0
      %3885 = vmatprep.subr.mxu0 0.0
      %3886 = vmatpush2.msra.mxu0 0.0
      %3887 = vmatprep.subr.mxu0 0.0
      %3888 = vmatpush2.msra.mxu0 0.0
      %3889 = vmatprep.subr.mxu0 0.0
      %3890 = vmatpush2.msra.mxu0 0.0
      %3891 = vmatprep.mubr.f32.mxu0 0.0
      %3892 = vmatmul.mubr.f32.gmra.mxu0 %v3822
      %v3893 = vpop.f32.mrf.mxu0
      %v3894 = vadd.f32 0.0, %v3893
      %v3895 = vpop.f32.mrf.mxu0
      %3896 = vmatprep.mubr.f32.mxu0 0.0
      %3897 = vmatmul.mubr.f32.gmra.mxu0 %v3825
      %v3898 = vpop.f32.mrf.mxu0
      %v3899 = vadd.f32 0.0, %v3898
      %v3900 = vpop.f32.mrf.mxu0
      %3901 = vdwg.mxu0
      %v3903 = vsel %vm2658, %v2992, 0
      %v3906 = vsel %vm2658, %v2994, 0
      %3908 = vmatprep.subr.mxu0 0.0
      %3909 = vmatpush1.msra.mxu0 0.0
      %3910 = vmatprep.subr.mxu0 0.0
      %3911 = vmatpush1.msra.mxu0 0.0
      %3912 = vmatprep.subr.mxu0 0.0
      %3913 = vmatpush1.msra.mxu0 0.0
      %3914 = vmatprep.subr.mxu0 0.0
      %3915 = vmatpush1.msra.mxu0 0.0
      %3916 = vmatprep.subr.mxu0 0.0
      %3917 = vmatpush1.msra.mxu0 0.0
      %3918 = vmatprep.subr.mxu0 0.0
      %3919 = vmatpush1.msra.mxu0 0.0
      %3920 = vmatprep.subr.mxu0 0.0
      %3921 = vmatpush1.msra.mxu0 0.0
      %3922 = vmatprep.subr.mxu0 0.0
      %3923 = vmatpush1.msra.mxu0 0.0
      %3924 = vmatprep.subr.mxu0 0.0
      %3925 = vmatpush1.msra.mxu0 0.0
      %3926 = vmatprep.subr.mxu0 0.0
      %3927 = vmatpush1.msra.mxu0 0.0
      %3928 = vmatprep.subr.mxu0 0.0
      %3929 = vmatpush1.msra.mxu0 0.0
      %3930 = vmatprep.subr.mxu0 0.0
      %3931 = vmatpush1.msra.mxu0 0.0
      %3932 = vmatprep.subr.mxu0 0.0
      %3933 = vmatpush1.msra.mxu0 0.0
      %3934 = vmatprep.subr.mxu0 0.0
      %3935 = vmatpush1.msra.mxu0 0.0
      %3936 = vmatprep.subr.mxu0 0.0
      %3937 = vmatpush1.msra.mxu0 %v326
      %3938 = vmatprep.subr.mxu0 0.0
      %3939 = vmatpush1.msra.mxu0 %v325
      %3940 = vmatprep.subr.mxu0 0.0
      %3941 = vmatpush2.msra.mxu0 0.0
      %3942 = vmatprep.subr.mxu0 0.0
      %3943 = vmatpush2.msra.mxu0 0.0
      %3944 = vmatprep.subr.mxu0 0.0
      %3945 = vmatpush2.msra.mxu0 0.0
      %3946 = vmatprep.subr.mxu0 0.0
      %3947 = vmatpush2.msra.mxu0 0.0
      %3948 = vmatprep.subr.mxu0 0.0
      %3949 = vmatpush2.msra.mxu0 0.0
      %3950 = vmatprep.subr.mxu0 0.0
      %3951 = vmatpush2.msra.mxu0 0.0
      %3952 = vmatprep.subr.mxu0 0.0
      %3953 = vmatpush2.msra.mxu0 0.0
      %3954 = vmatprep.subr.mxu0 0.0
      %3955 = vmatpush2.msra.mxu0 0.0
      %3956 = vmatprep.subr.mxu0 0.0
      %3957 = vmatpush2.msra.mxu0 0.0
      %3958 = vmatprep.subr.mxu0 0.0
      %3959 = vmatpush2.msra.mxu0 0.0
      %3960 = vmatprep.subr.mxu0 0.0
      %3961 = vmatpush2.msra.mxu0 0.0
      %3962 = vmatprep.subr.mxu0 0.0
      %3963 = vmatpush2.msra.mxu0 0.0
      %3964 = vmatprep.subr.mxu0 0.0
      %3965 = vmatpush2.msra.mxu0 0.0
      %3966 = vmatprep.subr.mxu0 0.0
      %3967 = vmatpush2.msra.mxu0 0.0
      %3968 = vmatprep.subr.mxu0 0.0
      %3969 = vmatpush2.msra.mxu0 0.0
      %3970 = vmatprep.subr.mxu0 0.0
      %3971 = vmatpush2.msra.mxu0 0.0
      %3972 = vmatprep.mubr.f32.mxu0 0.0
      %3973 = vmatmul.mubr.f32.gmra.mxu0 %v3903
      %v3974 = vpop.f32.mrf.mxu0
      %v3975 = vadd.f32 0.0, %v3974
      %v3976 = vpop.f32.mrf.mxu0
      %3977 = vmatprep.mubr.f32.mxu0 0.0
      %3978 = vmatmul.mubr.f32.gmra.mxu0 %v3906
      %v3979 = vpop.f32.mrf.mxu0
      %v3980 = vadd.f32 0.0, %v3979
      %v3981 = vpop.f32.mrf.mxu0
      %3982 = vdwg.mxu0
      %v3984 = vsel %vm2658, %v2996, 0
      %v3987 = vsel %vm2658, %v2998, 0
      %3989 = vmatprep.subr.mxu0 0.0
      %3990 = vmatpush1.msra.mxu0 0.0
      %3991 = vmatprep.subr.mxu0 0.0
      %3992 = vmatpush1.msra.mxu0 0.0
      %3993 = vmatprep.subr.mxu0 0.0
      %3994 = vmatpush1.msra.mxu0 0.0
      %3995 = vmatprep.subr.mxu0 0.0
      %3996 = vmatpush1.msra.mxu0 0.0
      %3997 = vmatprep.subr.mxu0 0.0
      %3998 = vmatpush1.msra.mxu0 0.0
      %3999 = vmatprep.subr.mxu0 0.0
      %4000 = vmatpush1.msra.mxu0 0.0
      %4001 = vmatprep.subr.mxu0 0.0
      %4002 = vmatpush1.msra.mxu0 0.0
      %4003 = vmatprep.subr.mxu0 0.0
      %4004 = vmatpush1.msra.mxu0 0.0
      %4005 = vmatprep.subr.mxu0 0.0
      %4006 = vmatpush1.msra.mxu0 0.0
      %4007 = vmatprep.subr.mxu0 0.0
      %4008 = vmatpush1.msra.mxu0 0.0
      %4009 = vmatprep.subr.mxu0 0.0
      %4010 = vmatpush1.msra.mxu0 0.0
      %4011 = vmatprep.subr.mxu0 0.0
      %4012 = vmatpush1.msra.mxu0 0.0
      %4013 = vmatprep.subr.mxu0 0.0
      %4014 = vmatpush1.msra.mxu0 0.0
      %4015 = vmatprep.subr.mxu0 0.0
      %4016 = vmatpush1.msra.mxu0 0.0
      %4017 = vmatprep.subr.mxu0 0.0
      %4018 = vmatpush1.msra.mxu0 %v328
      %4019 = vmatprep.subr.mxu0 0.0
      %4020 = vmatpush1.msra.mxu0 %v327
      %4021 = vmatprep.subr.mxu0 0.0
      %4022 = vmatpush2.msra.mxu0 0.0
      %4023 = vmatprep.subr.mxu0 0.0
      %4024 = vmatpush2.msra.mxu0 0.0
      %4025 = vmatprep.subr.mxu0 0.0
      %4026 = vmatpush2.msra.mxu0 0.0
      %4027 = vmatprep.subr.mxu0 0.0
      %4028 = vmatpush2.msra.mxu0 0.0
      %4029 = vmatprep.subr.mxu0 0.0
      %4030 = vmatpush2.msra.mxu0 0.0
      %4031 = vmatprep.subr.mxu0 0.0
      %4032 = vmatpush2.msra.mxu0 0.0
      %4033 = vmatprep.subr.mxu0 0.0
      %4034 = vmatpush2.msra.mxu0 0.0
      %4035 = vmatprep.subr.mxu0 0.0
      %4036 = vmatpush2.msra.mxu0 0.0
      %4037 = vmatprep.subr.mxu0 0.0
      %4038 = vmatpush2.msra.mxu0 0.0
      %4039 = vmatprep.subr.mxu0 0.0
      %4040 = vmatpush2.msra.mxu0 0.0
      %4041 = vmatprep.subr.mxu0 0.0
      %4042 = vmatpush2.msra.mxu0 0.0
      %4043 = vmatprep.subr.mxu0 0.0
      %4044 = vmatpush2.msra.mxu0 0.0
      %4045 = vmatprep.subr.mxu0 0.0
      %4046 = vmatpush2.msra.mxu0 0.0
      %4047 = vmatprep.subr.mxu0 0.0
      %4048 = vmatpush2.msra.mxu0 0.0
      %4049 = vmatprep.subr.mxu0 0.0
      %4050 = vmatpush2.msra.mxu0 0.0
      %4051 = vmatprep.subr.mxu0 0.0
      %4052 = vmatpush2.msra.mxu0 0.0
      %4053 = vmatprep.mubr.f32.mxu0 0.0
      %4054 = vmatmul.mubr.f32.gmra.mxu0 %v3984
      %v4055 = vpop.f32.mrf.mxu0
      %v4056 = vadd.f32 0.0, %v4055
      %v4057 = vpop.f32.mrf.mxu0
      %4058 = vmatprep.mubr.f32.mxu0 0.0
      %4059 = vmatmul.mubr.f32.gmra.mxu0 %v3987
      %v4060 = vpop.f32.mrf.mxu0
      %v4061 = vadd.f32 0.0, %v4060
      %v4062 = vpop.f32.mrf.mxu0
      %4063 = vdwg.mxu0
      %v4065 = vsel %vm2658, %v3000, 0
      %v4068 = vsel %vm2658, %v3002, 0
      %4070 = vmatprep.subr.mxu0 0.0
      %4071 = vmatpush1.msra.mxu0 0.0
      %4072 = vmatprep.subr.mxu0 0.0
      %4073 = vmatpush1.msra.mxu0 0.0
      %4074 = vmatprep.subr.mxu0 0.0
      %4075 = vmatpush1.msra.mxu0 0.0
      %4076 = vmatprep.subr.mxu0 0.0
      %4077 = vmatpush1.msra.mxu0 0.0
      %4078 = vmatprep.subr.mxu0 0.0
      %4079 = vmatpush1.msra.mxu0 0.0
      %4080 = vmatprep.subr.mxu0 0.0
      %4081 = vmatpush1.msra.mxu0 0.0
      %4082 = vmatprep.subr.mxu0 0.0
      %4083 = vmatpush1.msra.mxu0 0.0
      %4084 = vmatprep.subr.mxu0 0.0
      %4085 = vmatpush1.msra.mxu0 0.0
      %4086 = vmatprep.subr.mxu0 0.0
      %4087 = vmatpush1.msra.mxu0 0.0
      %4088 = vmatprep.subr.mxu0 0.0
      %4089 = vmatpush1.msra.mxu0 0.0
      %4090 = vmatprep.subr.mxu0 0.0
      %4091 = vmatpush1.msra.mxu0 0.0
      %4092 = vmatprep.subr.mxu0 0.0
      %4093 = vmatpush1.msra.mxu0 0.0
      %4094 = vmatprep.subr.mxu0 0.0
      %4095 = vmatpush1.msra.mxu0 0.0
      %4096 = vmatprep.subr.mxu0 0.0
      %4097 = vmatpush1.msra.mxu0 0.0
      %4098 = vmatprep.subr.mxu0 0.0
      %4099 = vmatpush1.msra.mxu0 %v330
      %4100 = vmatprep.subr.mxu0 0.0
      %4101 = vmatpush1.msra.mxu0 %v329
      %4102 = vmatprep.subr.mxu0 0.0
      %4103 = vmatpush2.msra.mxu0 0.0
      %4104 = vmatprep.subr.mxu0 0.0
      %4105 = vmatpush2.msra.mxu0 0.0
      %4106 = vmatprep.subr.mxu0 0.0
      %4107 = vmatpush2.msra.mxu0 0.0
      %4108 = vmatprep.subr.mxu0 0.0
      %4109 = vmatpush2.msra.mxu0 0.0
      %4110 = vmatprep.subr.mxu0 0.0
      %4111 = vmatpush2.msra.mxu0 0.0
      %4112 = vmatprep.subr.mxu0 0.0
      %4113 = vmatpush2.msra.mxu0 0.0
      %4114 = vmatprep.subr.mxu0 0.0
      %4115 = vmatpush2.msra.mxu0 0.0
      %4116 = vmatprep.subr.mxu0 0.0
      %4117 = vmatpush2.msra.mxu0 0.0
      %4118 = vmatprep.subr.mxu0 0.0
      %4119 = vmatpush2.msra.mxu0 0.0
      %4120 = vmatprep.subr.mxu0 0.0
      %4121 = vmatpush2.msra.mxu0 0.0
      %4122 = vmatprep.subr.mxu0 0.0
      %4123 = vmatpush2.msra.mxu0 0.0
      %4124 = vmatprep.subr.mxu0 0.0
      %4125 = vmatpush2.msra.mxu0 0.0
      %4126 = vmatprep.subr.mxu0 0.0
      %4127 = vmatpush2.msra.mxu0 0.0
      %4128 = vmatprep.subr.mxu0 0.0
      %4129 = vmatpush2.msra.mxu0 0.0
      %4130 = vmatprep.subr.mxu0 0.0
      %4131 = vmatpush2.msra.mxu0 0.0
      %4132 = vmatprep.subr.mxu0 0.0
      %4133 = vmatpush2.msra.mxu0 0.0
      %4134 = vmatprep.mubr.f32.mxu0 0.0
      %4135 = vmatmul.mubr.f32.gmra.mxu0 %v4065
      %v4136 = vpop.f32.mrf.mxu0
      %v4137 = vadd.f32 0.0, %v4136
      %v4138 = vpop.f32.mrf.mxu0
      %4139 = vmatprep.mubr.f32.mxu0 0.0
      %4140 = vmatmul.mubr.f32.gmra.mxu0 %v4068
      %v4141 = vpop.f32.mrf.mxu0
      %v4142 = vadd.f32 0.0, %v4141
      %v4143 = vpop.f32.mrf.mxu0
      %4144 = vdwg.mxu0
      %v4146 = vsel %vm2658, %v3004, 0
      %v4149 = vsel %vm2658, %v3006, 0
      %4151 = vmatprep.subr.mxu0 0.0
      %4152 = vmatpush1.msra.mxu0 0.0
      %4153 = vmatprep.subr.mxu0 0.0
      %4154 = vmatpush1.msra.mxu0 0.0
      %4155 = vmatprep.subr.mxu0 0.0
      %4156 = vmatpush1.msra.mxu0 0.0
      %4157 = vmatprep.subr.mxu0 0.0
      %4158 = vmatpush1.msra.mxu0 0.0
      %4159 = vmatprep.subr.mxu0 0.0
      %4160 = vmatpush1.msra.mxu0 0.0
      %4161 = vmatprep.subr.mxu0 0.0
      %4162 = vmatpush1.msra.mxu0 0.0
      %4163 = vmatprep.subr.mxu0 0.0
      %4164 = vmatpush1.msra.mxu0 0.0
      %4165 = vmatprep.subr.mxu0 0.0
      %4166 = vmatpush1.msra.mxu0 0.0
      %4167 = vmatprep.subr.mxu0 0.0
      %4168 = vmatpush1.msra.mxu0 0.0
      %4169 = vmatprep.subr.mxu0 0.0
      %4170 = vmatpush1.msra.mxu0 0.0
      %4171 = vmatprep.subr.mxu0 0.0
      %4172 = vmatpush1.msra.mxu0 0.0
      %4173 = vmatprep.subr.mxu0 0.0
      %4174 = vmatpush1.msra.mxu0 0.0
      %4175 = vmatprep.subr.mxu0 0.0
      %4176 = vmatpush1.msra.mxu0 0.0
      %4177 = vmatprep.subr.mxu0 0.0
      %4178 = vmatpush1.msra.mxu0 0.0
      %4179 = vmatprep.subr.mxu0 0.0
      %4180 = vmatpush1.msra.mxu0 %v332
      %4181 = vmatprep.subr.mxu0 0.0
      %4182 = vmatpush1.msra.mxu0 %v331
      %4183 = vmatprep.subr.mxu0 0.0
      %4184 = vmatpush2.msra.mxu0 0.0
      %4185 = vmatprep.subr.mxu0 0.0
      %4186 = vmatpush2.msra.mxu0 0.0
      %4187 = vmatprep.subr.mxu0 0.0
      %4188 = vmatpush2.msra.mxu0 0.0
      %4189 = vmatprep.subr.mxu0 0.0
      %4190 = vmatpush2.msra.mxu0 0.0
      %4191 = vmatprep.subr.mxu0 0.0
      %4192 = vmatpush2.msra.mxu0 0.0
      %4193 = vmatprep.subr.mxu0 0.0
      %4194 = vmatpush2.msra.mxu0 0.0
      %4195 = vmatprep.subr.mxu0 0.0
      %4196 = vmatpush2.msra.mxu0 0.0
      %4197 = vmatprep.subr.mxu0 0.0
      %4198 = vmatpush2.msra.mxu0 0.0
      %4199 = vmatprep.subr.mxu0 0.0
      %4200 = vmatpush2.msra.mxu0 0.0
      %4201 = vmatprep.subr.mxu0 0.0
      %4202 = vmatpush2.msra.mxu0 0.0
      %4203 = vmatprep.subr.mxu0 0.0
      %4204 = vmatpush2.msra.mxu0 0.0
      %4205 = vmatprep.subr.mxu0 0.0
      %4206 = vmatpush2.msra.mxu0 0.0
      %4207 = vmatprep.subr.mxu0 0.0
      %4208 = vmatpush2.msra.mxu0 0.0
      %4209 = vmatprep.subr.mxu0 0.0
      %4210 = vmatpush2.msra.mxu0 0.0
      %4211 = vmatprep.subr.mxu0 0.0
      %4212 = vmatpush2.msra.mxu0 0.0
      %4213 = vmatprep.subr.mxu0 0.0
      %4214 = vmatpush2.msra.mxu0 0.0
      %4215 = vmatprep.mubr.f32.mxu0 0.0
      %4216 = vmatmul.mubr.f32.gmra.mxu0 %v4146
      %v4217 = vpop.f32.mrf.mxu0
      %v4218 = vadd.f32 0.0, %v4217
      %v4219 = vpop.f32.mrf.mxu0
      %4220 = vmatprep.mubr.f32.mxu0 0.0
      %4221 = vmatmul.mubr.f32.gmra.mxu0 %v4149
      %v4222 = vpop.f32.mrf.mxu0
      %v4223 = vadd.f32 0.0, %v4222
      %v4224 = vpop.f32.mrf.mxu0
      %4225 = vdwg.mxu0
      %v4227 = vsel %vm2658, %v3008, 0
      %v4230 = vsel %vm2658, %v3010, 0
      %4232 = vmatprep.subr.mxu0 0.0
      %4233 = vmatpush1.msra.mxu0 0.0
      %4234 = vmatprep.subr.mxu0 0.0
      %4235 = vmatpush1.msra.mxu0 0.0
      %4236 = vmatprep.subr.mxu0 0.0
      %4237 = vmatpush1.msra.mxu0 0.0
      %4238 = vmatprep.subr.mxu0 0.0
      %4239 = vmatpush1.msra.mxu0 0.0
      %4240 = vmatprep.subr.mxu0 0.0
      %4241 = vmatpush1.msra.mxu0 0.0
      %4242 = vmatprep.subr.mxu0 0.0
      %4243 = vmatpush1.msra.mxu0 0.0
      %4244 = vmatprep.subr.mxu0 0.0
      %4245 = vmatpush1.msra.mxu0 0.0
      %4246 = vmatprep.subr.mxu0 0.0
      %4247 = vmatpush1.msra.mxu0 0.0
      %4248 = vmatprep.subr.mxu0 0.0
      %4249 = vmatpush1.msra.mxu0 0.0
      %4250 = vmatprep.subr.mxu0 0.0
      %4251 = vmatpush1.msra.mxu0 0.0
      %4252 = vmatprep.subr.mxu0 0.0
      %4253 = vmatpush1.msra.mxu0 0.0
      %4254 = vmatprep.subr.mxu0 0.0
      %4255 = vmatpush1.msra.mxu0 0.0
      %4256 = vmatprep.subr.mxu0 0.0
      %4257 = vmatpush1.msra.mxu0 0.0
      %4258 = vmatprep.subr.mxu0 0.0
      %4259 = vmatpush1.msra.mxu0 0.0
      %4260 = vmatprep.subr.mxu0 0.0
      %4261 = vmatpush1.msra.mxu0 %v334
      %4262 = vmatprep.subr.mxu0 0.0
      %4263 = vmatpush1.msra.mxu0 %v333
      %4264 = vmatprep.subr.mxu0 0.0
      %4265 = vmatpush2.msra.mxu0 0.0
      %4266 = vmatprep.subr.mxu0 0.0
      %4267 = vmatpush2.msra.mxu0 0.0
      %4268 = vmatprep.subr.mxu0 0.0
      %4269 = vmatpush2.msra.mxu0 0.0
      %4270 = vmatprep.subr.mxu0 0.0
      %4271 = vmatpush2.msra.mxu0 0.0
      %4272 = vmatprep.subr.mxu0 0.0
      %4273 = vmatpush2.msra.mxu0 0.0
      %4274 = vmatprep.subr.mxu0 0.0
      %4275 = vmatpush2.msra.mxu0 0.0
      %4276 = vmatprep.subr.mxu0 0.0
      %4277 = vmatpush2.msra.mxu0 0.0
      %4278 = vmatprep.subr.mxu0 0.0
      %4279 = vmatpush2.msra.mxu0 0.0
      %4280 = vmatprep.subr.mxu0 0.0
      %4281 = vmatpush2.msra.mxu0 0.0
      %4282 = vmatprep.subr.mxu0 0.0
      %4283 = vmatpush2.msra.mxu0 0.0
      %4284 = vmatprep.subr.mxu0 0.0
      %4285 = vmatpush2.msra.mxu0 0.0
      %4286 = vmatprep.subr.mxu0 0.0
      %4287 = vmatpush2.msra.mxu0 0.0
      %4288 = vmatprep.subr.mxu0 0.0
      %4289 = vmatpush2.msra.mxu0 0.0
      %4290 = vmatprep.subr.mxu0 0.0
      %4291 = vmatpush2.msra.mxu0 0.0
      %4292 = vmatprep.subr.mxu0 0.0
      %4293 = vmatpush2.msra.mxu0 0.0
      %4294 = vmatprep.subr.mxu0 0.0
      %4295 = vmatpush2.msra.mxu0 0.0
      %4296 = vmatprep.mubr.f32.mxu0 0.0
      %4297 = vmatmul.mubr.f32.gmra.mxu0 %v4227
      %v4298 = vpop.f32.mrf.mxu0
      %v4299 = vadd.f32 0.0, %v4298
      %v4300 = vpop.f32.mrf.mxu0
      %4301 = vmatprep.mubr.f32.mxu0 0.0
      %4302 = vmatmul.mubr.f32.gmra.mxu0 %v4230
      %v4303 = vpop.f32.mrf.mxu0
      %v4304 = vadd.f32 0.0, %v4303
      %v4305 = vpop.f32.mrf.mxu0
      %4306 = vdwg.mxu0
      %4307 = vst.msk [vmem:[%s238] sm:$0xff] %vm368, %v3084
      %4308 = vst.msk [vmem:[%s238 + $0x8] sm:$0xff] %vm368, %v3089
      %4309 = vst.msk [vmem:[%s238 + $0x10] sm:$0xff] %vm368, %v3165
      %4310 = vst.msk [vmem:[%s238 + $0x18] sm:$0xff] %vm368, %v3170
      %4311 = vst.msk [vmem:[%s238 + $0x20] sm:$0xff] %vm368, %v3246
      %4312 = vst.msk [vmem:[%s238 + $0x28] sm:$0xff] %vm368, %v3251
      %4313 = vst.msk [vmem:[%s238 + $0x30] sm:$0xff] %vm368, %v3327
      %4314 = vst.msk [vmem:[%s238 + $0x38] sm:$0xff] %vm368, %v3332
      %4315 = vst.msk [vmem:[%s238 + $0x40] sm:$0xff] %vm368, %v3408
      %4316 = vst.msk [vmem:[%s238 + $0x48] sm:$0xff] %vm368, %v3413
      %4317 = vst.msk [vmem:[%s238 + $0x50] sm:$0xff] %vm368, %v3489
      %4318 = vst.msk [vmem:[%s238 + $0x58] sm:$0xff] %vm368, %v3494
      %4319 = vst.msk [vmem:[%s238 + $0x60] sm:$0xff] %vm368, %v3570
      %4320 = vst.msk [vmem:[%s238 + $0x68] sm:$0xff] %vm368, %v3575
      %4321 = vst.msk [vmem:[%s238 + $0x70] sm:$0xff] %vm368, %v3651
      %4322 = vst.msk [vmem:[%s238 + $0x78] sm:$0xff] %vm368, %v3656
      %4323 = vst.msk [vmem:[%s238 + $0x80] sm:$0xff] %vm368, %v3732
      %4324 = vst.msk [vmem:[%s238 + $0x88] sm:$0xff] %vm368, %v3737
      %4325 = vst.msk [vmem:[%s238 + $0x90] sm:$0xff] %vm368, %v3813
      %4326 = vst.msk [vmem:[%s238 + $0x98] sm:$0xff] %vm368, %v3818
      %4327 = vst.msk [vmem:[%s238 + $0xa0] sm:$0xff] %vm368, %v3894
      %4328 = vst.msk [vmem:[%s238 + $0xa8] sm:$0xff] %vm368, %v3899
      %4329 = vst.msk [vmem:[%s238 + $0xb0] sm:$0xff] %vm368, %v3975
      %4330 = vst.msk [vmem:[%s238 + $0xb8] sm:$0xff] %vm368, %v3980
      %4331 = vst.msk [vmem:[%s238 + $0xc0] sm:$0xff] %vm368, %v4056
      %4332 = vst.msk [vmem:[%s238 + $0xc8] sm:$0xff] %vm368, %v4061
      %4333 = vst.msk [vmem:[%s238 + $0xd0] sm:$0xff] %vm368, %v4137
      %4334 = vst.msk [vmem:[%s238 + $0xd8] sm:$0xff] %vm368, %v4142
      %4335 = vst.msk [vmem:[%s238 + $0xe0] sm:$0xff] %vm368, %v4218
      %4336 = vst.msk [vmem:[%s238 + $0xe8] sm:$0xff] %vm368, %v4223
      %4337 = vst.msk [vmem:[%s238 + $0xf0] sm:$0xff] %vm368, %v4299
      %4338 = vst.msk [vmem:[%s238 + $0xf8] sm:$0xff] %vm368, %v4304
      %p4339 = scmp.lt.s32.totalorder %s16, 3
      %s4340 = scalar_select %p4339, %s16, 3
      %s4341 = smul.addr %s4340, 32
      %s4342 = smul.addr %s4341, 8
      %s4343 = scalar_lea.vmem %s4, %s4342
      // Predicated region
      $region37: #{next_attention_forward.8} parent=35 // pred_check
        %p4344 = pneg %p133
      $region38: #{next_attention_forward.8} parent=35 // pred_check_branch
        %4346 = sbr.rel (%p4344) target = $region40
      $region39: #{next_attention_forward.8} parent=35 // pred_region
        _
      $region40: #{next_attention_forward.8} parent=35 // pred_fallthru
        _
    $region36: #{next_attention_forward.8} parent=5 // pred_fallthru
      _
    %p4347 = scmp.le.s32.totalorder 2, %s11
    // Predicated region
    $region41: #{next_attention_forward.8} parent=5 // pred_check
      %p4348 = pneg %p4347
    $region42: #{next_attention_forward.8} parent=5 // pred_check_branch
      %4350 = sbr.rel (%p4348) target = $region44
    $region43: #{next_attention_forward.8} parent=5 // pred_region
      %s4351 = ssub.s32 %s11, 2
      // Predicated region
      $region45: #{next_attention_forward.8} parent=43 // pred_check
        %p4352 = pneg %p139
      $region46: #{next_attention_forward.8} parent=43 // pred_check_branch
        %4354 = sbr.rel (%p4352) target = $region48
      $region47: #{next_attention_forward.8} parent=43 // pred_region
        %p4355 = scmp.lt.s32.totalorder %s17, 3
        %s4356 = scalar_select %p4355, %s17, 3
        %s4357 = smul.addr %s4356, 32
        %s4358 = smul.addr %s4357, 8
        %s4359 = scalar_lea.vmem %s4, %s4358
      $region48: #{next_attention_forward.8} parent=43 // pred_fallthru
        _
    $region44: #{next_attention_forward.8} parent=5 // pred_fallthru
      _
  $region6: #{next_attention_forward.8} parent=0 // loop_footer
    %s15 = sadd.s32 1, %s11
  $region7: #{next_attention_forward.8} parent=0 // loop_footer_branch
    %10 = sbr.rel target = $region3
  $region8: #{next_attention_forward.8} parent=0 // loop_exit
    _

</llo_original>
